<compile_context>
chip_gen: v7x
topology: tpu7x:2x2x1
jax: 0.10.0
libtpu: 0.0.40
codegen_flags: <defaults>
</compile_context>

<pallas_src>
import functools

import numpy as np
import jax
import jax.numpy as jnp
from jax.experimental import pallas as pl
from jax.experimental.pallas import tpu as pltpu

_LANES = 128                       # lane-dense channel padding
_VMEM_LIMIT = 32 * 1024 * 1024     # explicit, safe on v5e/v6e/v7x; raise with bigger tiles
_DOWN_CFG = [(3, 32), (32, 64), (64, 64), (64, 32)]


# ----------------------------------------------------------------------------------
# Pallas kernels
# ----------------------------------------------------------------------------------
def _down_block_kernel(x_ref, w_ref, bias_ref, gamma_ref, beta_ref, mask_ref,
                       o_ref, stat_ref, *, plane, wp, m_pad, inv_m):
    """Fused conv3x3(stride 2, pad 1) + BatchNorm(batch stats) + LeakyReLU(0.2).

    grid = (2, B): axis 0 = sweep (0: accumulate BN sums, 1: normalize + store),
                   axis 1 = image.
    x_ref   : (1, 4*plane, Cin) bf16  parity-packed, flattened input planes
    w_ref   : (9, Cin, 128)    bf16  per-tap weights (lane-padded Cout)
    bias/gamma/beta : (1, 128) f32
    mask_ref: (m_pad, 1)       f32   1.0 on real output rows, 0.0 on junk columns
    o_ref   : (1, m_pad, 128)  bf16
    stat_ref: (2, 128)         f32   VMEM scratch: [sum(y), sum(y*y)]
    """
    sweep = pl.program_id(0)
    img = pl.program_id(1)

    # ---- conv as 9 shifted matmuls over the VMEM-resident parity planes ----
    acc = jnp.zeros((m_pad, _LANES), jnp.float32)
    tap = 0
    for dy in range(3):
        for dx in range(3):
            par = 2 * (dy % 2) + (dx % 2)
            base = par * plane + (dy // 2) * wp + (dx // 2)
            lhs = x_ref[0, base:base + m_pad, :]                 # (m_pad, Cin) bf16
            acc += jnp.dot(lhs, w_ref[tap], preferred_element_type=jnp.float32)
            tap += 1
    y = acc + bias_ref[...]                                      # (m_pad, 128) f32

    @pl.when((sweep == 0) & (img == 0))
    def _init_stats():
        stat_ref[...] = jnp.zeros_like(stat_ref)

    @pl.when(sweep == 0)
    def _accumulate_stats():
        ym = y * mask_ref[...]                                   # junk rows -> 0
        stat_ref[0:1, :] += jnp.sum(ym, axis=0, keepdims=True)
        stat_ref[1:2, :] += jnp.sum(ym * y, axis=0, keepdims=True)

    @pl.when(sweep == 1)
    def _normalize_store():
        mean = stat_ref[0:1, :] * inv_m
        var = jnp.maximum(stat_ref[1:2, :] * inv_m - mean * mean, 0.0)
        scale = gamma_ref[...] * jax.lax.rsqrt(var + 1e-5)       # folded BN affine
        shift = beta_ref[...] - mean * scale
        z = y * scale + shift
        o_ref[0, :, :] = jnp.where(z > 0, z, 0.2 * z).astype(o_ref.dtype)


def _tail_kernel(x_ref, mask_ref, w_ref, b_ref, g_ref, bt_ref, o_ref, *, inv_hw, inv_b):
    """Fused tail: spatial mean + four (1x1 conv + BN(batch stats) + LeakyReLU) blocks.

    x_ref : (B, m_pad, 128) bf16 (block-4 output, junk rows masked out here)
    w_ref : (4, 128, 128)   bf16   b/g/bt : (4, 1, 128) f32   o_ref : (B, 128) f32
    """
    x = x_ref[...].astype(jnp.float32) * mask_ref[...]
    h = jnp.sum(x, axis=1) * inv_hw                              # (B, 128) spatial mean
    for i in range(4):
        y = jnp.dot(h.astype(jnp.bfloat16), w_ref[i],
                    preferred_element_type=jnp.float32) + b_ref[i]
        mu = jnp.sum(y, axis=0, keepdims=True) * inv_b           # BN over batch dim
        var = jnp.maximum(jnp.sum(y * y, axis=0, keepdims=True) * inv_b - mu * mu, 0.0)
        scale = g_ref[i] * jax.lax.rsqrt(var + 1e-5)
        shift = bt_ref[i] - mu * scale
        z = y * scale + shift
        h = jnp.where(z > 0, z, 0.2 * z)
    o_ref[...] = h


# ----------------------------------------------------------------------------------
# Wrappers around pallas_call
# ----------------------------------------------------------------------------------
def _down_block(xs, mask, w, b, g, bt, *, batch, ho, wo, hp, wp):
    cin = xs.shape[-1]
    plane = hp * wp
    m_pad = ho * wp
    m_true = batch * ho * wo
    kern = functools.partial(_down_block_kernel, plane=plane, wp=wp,
                             m_pad=m_pad, inv_m=1.0 / m_true)
    grid_spec = pltpu.PrefetchScalarGridSpec(
        num_scalar_prefetch=0,
        grid=(2, batch),
        in_specs=[
            pl.BlockSpec((1, 4 * plane, cin), lambda s, i: (i, 0, 0)),
            pl.BlockSpec((9, cin, _LANES), lambda s, i: (0, 0, 0)),
            pl.BlockSpec((1, _LANES), lambda s, i: (0, 0)),
            pl.BlockSpec((1, _LANES), lambda s, i: (0, 0)),
            pl.BlockSpec((1, _LANES), lambda s, i: (0, 0)),
            pl.BlockSpec((m_pad, 1), lambda s, i: (0, 0)),
        ],
        # sweep 0 parks on block 0 (never flushed garbage); sweep 1 writes block i.
        out_specs=pl.BlockSpec((1, m_pad, _LANES), lambda s, i: (i * s, 0, 0)),
        scratch_shapes=[pltpu.VMEM((2, _LANES), jnp.float32)],
    )
    return pl.pallas_call(
        kern,
        out_shape=jax.ShapeDtypeStruct((batch, m_pad, _LANES), jnp.bfloat16),
        grid_spec=grid_spec,
        compiler_params=pltpu.CompilerParams(
            # stats scratch is shared across the grid -> keep axes sequential.
            dimension_semantics=("arbitrary", "arbitrary"),
            vmem_limit_bytes=_VMEM_LIMIT),
    )(xs, w, b, g, bt, mask)


def _up_tail(x4, mask4, up, *, hw_true):
    batch = x4.shape[0]
    kern = functools.partial(_tail_kernel, inv_hw=1.0 / hw_true, inv_b=1.0 / batch)
    vm = pl.BlockSpec(memory_space=pltpu.MemorySpace.VMEM)
    return pl.pallas_call(
        kern,
        out_shape=jax.ShapeDtypeStruct((batch, _LANES), jnp.float32),
        in_specs=[vm] * 6,
        out_specs=vm,
    )(x4, mask4, up["w"], up["b"], up["gamma"], up["beta"])


# ----------------------------------------------------------------------------------
# JAX glue: parity packing (space-to-depth), masks, params, forward
# ----------------------------------------------------------------------------------
def _parity_pack(x_nhwc):
    """(B,H,W,C) -> (B, 4*plane, C): zero-padded parity planes, flattened row-major."""
    batch, h, w, c = x_nhwc.shape
    ho = (h - 1) // 2 + 1
    wo = (w - 1) // 2 + 1
    hp, wp = ho + 2, wo + 2
    xp = jnp.pad(x_nhwc, ((0, 0), (1, 2 * hp - h - 1), (1, 2 * wp - w - 1), (0, 0)))
    xr = xp.reshape(batch, hp, 2, wp, 2, c).transpose(0, 2, 4, 1, 3, 5)
    xs = xr.reshape(batch, 4 * hp * wp, c)
    return xs, ho, wo, hp, wp


def _row_mask(ho, wo, wp):
    m = (np.arange(ho * wp) % wp) < wo
    return jnp.asarray(m.astype(np.float32)).reshape(ho * wp, 1)


def init_params(key, nz):
    """Deterministic synthetic parameters matching UNET_encoder's __init__ shapes,
    repacked into lane-padded (128), bf16-weight kernel layouts."""
    assert nz <= _LANES, "TODO(synk): generalize lane padding for nz > 128"
    if nz < 256:
        up_cfg = [(32, 64), (64, 128), (128, nz), (nz, nz)]
    else:
        up_cfg = [(32, 64), (64, 128), (128, 256), (256, nz)]
    keys = jax.random.split(key, 2 * (len(_DOWN_CFG) + len(up_cfg)))
    ki = 0
    params = {"down": [], "up": None}
    for cin, cout in _DOWN_CFG:
        w = 0.1 * jax.random.normal(keys[ki], (cout, cin, 3, 3), jnp.float32); ki += 1
        b = 0.05 * jax.random.normal(keys[ki], (cout,), jnp.float32); ki += 1
        taps = []
        for dy in range(3):
            for dx in range(3):
                taps.append(jnp.pad(w[:, :, dy, dx].T, ((0, 0), (0, _LANES - cout))))
        params["down"].append(dict(
            w=jnp.stack(taps, 0).astype(jnp.bfloat16),                      # (9,Cin,128)
            b=jnp.pad(b, (0, _LANES - cout)).reshape(1, _LANES),
            gamma=jnp.pad(jnp.ones((cout,), jnp.float32), (0, _LANES - cout)).reshape(1, _LANES),
            beta=jnp.zeros((1, _LANES), jnp.float32)))
    ws, bs, gs, bts = [], [], [], []
    for cin, cout in up_cfg:
        w = 0.1 * jax.random.normal(keys[ki], (cout, cin, 1, 1), jnp.float32); ki += 1
        b = 0.05 * jax.random.normal(keys[ki], (cout,), jnp.float32); ki += 1
        wm = w.reshape(cout, cin).T
        ws.append(jnp.pad(wm, ((0, _LANES - cin), (0, _LANES - cout))))
        bs.append(jnp.pad(b, (0, _LANES - cout)).reshape(1, _LANES))
        gs.append(jnp.pad(jnp.ones((cout,), jnp.float32), (0, _LANES - cout)).reshape(1, _LANES))
        bts.append(jnp.zeros((1, _LANES), jnp.float32))
    params["up"] = dict(
        w=jnp.stack(ws, 0).astype(jnp.bfloat16),                            # (4,128,128)
        b=jnp.stack(bs, 0), gamma=jnp.stack(gs, 0), beta=jnp.stack(bts, 0)) # (4,1,128)
    return params


@functools.partial(jax.jit, static_argnames=("nz",))
def unet_encoder(x_nchw, params, nz):
    """Forward pass of UNET_encoder.  Input NCHW (PyTorch-style), output (B, nz, 1, 1)."""
    batch = x_nchw.shape[0]
    h = jnp.transpose(x_nchw, (0, 2, 3, 1)).astype(jnp.bfloat16)            # NHWC bf16
    y, geom = None, None
    for (_, cout), blk in zip(_DOWN_CFG, params["down"]):
        xs, ho, wo, hp, wp = _parity_pack(h)
        y = _down_block(xs, _row_mask(ho, wo, wp),
                        blk["w"], blk["b"], blk["gamma"], blk["beta"],
                        batch=batch, ho=ho, wo=wo, hp=hp, wp=wp)            # (B, ho*wp, 128)
        geom = (ho, wo, wp)
        h = y.reshape(batch, ho, wp, _LANES)[:, :, :wo, :cout]              # next-block NHWC
    ho, wo, wp = geom
    z = _up_tail(y, _row_mask(ho, wo, wp), params["up"], hw_true=ho * wo)   # (B, 128) f32
    return z[:, :nz].reshape(batch, nz, 1, 1)


# ----------------------------------------------------------------------------------
if __name__ == "__main__":
    NZ = 64                                   # nz < 256 branch of the module
    key = jax.random.PRNGKey(0)
    kx, kp = jax.random.split(key)
    # spatial=32 so block4's output is 2x2 and the spatial mean is non-trivial
    x = jax.random.normal(kx, (2, 3, 32, 32), jnp.float32)
    params = init_params(kp, NZ)

    out = unet_encoder(x, params, NZ)
    out = jax.block_until_ready(out)

    assert out.shape == (2, NZ, 1, 1), out.shape
    assert bool(jnp.all(jnp.isfinite(out)))
    print("KERNEL_OK")
</pallas_src>

<mosaic_0001>
module attributes {stable_mosaic.version = 11 : i64} {
  func.func @_down_block_kernel(%arg0: i32, %arg1: i32, %arg2: memref<1x1296x3xbf16, #tpu.memory_space<vmem>>, %arg3: memref<9x3x128xbf16, #tpu.memory_space<vmem>>, %arg4: memref<1x128xf32, #tpu.memory_space<vmem>>, %arg5: memref<1x128xf32, #tpu.memory_space<vmem>>, %arg6: memref<1x128xf32, #tpu.memory_space<vmem>>, %arg7: memref<288x1xf32, #tpu.memory_space<vmem>>, %arg8: memref<1x288x128xbf16, #tpu.memory_space<vmem>>, %arg9: memref<2x128xf32, #tpu.memory_space<vmem>>) attributes {dimension_semantics = [#tpu.dimension_semantics<arbitrary>, #tpu.dimension_semantics<arbitrary>], iteration_bounds = array<i64: 2, 2>, scalar_prefetch = 0 : i64, scratch_operands = 1 : i64, tpu.core_type = #tpu.core_type<tc>, window_params = [{transform_indices = @transform_0, window_bounds = array<i64: 1, 1296, 3>}, {pipeline_mode = #tpu.pipeline_mode<synchronous>, transform_indices = @transform_1, window_bounds = array<i64: 9, 3, 128>}, {pipeline_mode = #tpu.pipeline_mode<synchronous>, transform_indices = @transform_2, window_bounds = array<i64: 1, 128>}, {pipeline_mode = #tpu.pipeline_mode<synchronous>, transform_indices = @transform_3, window_bounds = array<i64: 1, 128>}, {pipeline_mode = #tpu.pipeline_mode<synchronous>, transform_indices = @transform_4, window_bounds = array<i64: 1, 128>}, {pipeline_mode = #tpu.pipeline_mode<synchronous>, transform_indices = @transform_5, window_bounds = array<i64: 288, 1>}, {transform_indices = @transform_6, window_bounds = array<i64: 1, 288, 128>}]} {
    %cst = arith.constant 0.000000e+00 : f32
    %0 = vector.broadcast %cst : f32 to vector<288x128xf32>
    %c0 = arith.constant 0 : index
    %c0_0 = arith.constant 0 : index
    %c0_1 = arith.constant 0 : index
    %1 = vector.load %arg2[%c0, %c0_0, %c0_1] : memref<1x1296x3xbf16, #tpu.memory_space<vmem>>, vector<1x288x3xbf16>
    %2 = vector.shape_cast %1 : vector<1x288x3xbf16> to vector<288x3xbf16>
    %c0_2 = arith.constant 0 : index
    %c0_3 = arith.constant 0 : index
    %c0_4 = arith.constant 0 : index
    %3 = vector.load %arg3[%c0_2, %c0_3, %c0_4] : memref<9x3x128xbf16, #tpu.memory_space<vmem>>, vector<1x3x128xbf16>
    %4 = vector.shape_cast %3 : vector<1x3x128xbf16> to vector<3x128xbf16>
    %cst_5 = arith.constant dense<0.000000e+00> : vector<288x128xf32>
    %5 = tpu.matmul %2, %4, %cst_5 {dimension_numbers = #tpu.dot_dimension_numbers<[1], [0], [0], [1], [0, 0, 1, 1], [], []>} : vector<288x3xbf16>, vector<3x128xbf16>, vector<288x128xf32> -> vector<288x128xf32>
    %6 = arith.addf %0, %5 : vector<288x128xf32>
    %c0_6 = arith.constant 0 : index
    %c324 = arith.constant 324 : index
    %c0_7 = arith.constant 0 : index
    %7 = vector.load %arg2[%c0_6, %c324, %c0_7] : memref<1x1296x3xbf16, #tpu.memory_space<vmem>>, vector<1x288x3xbf16>
    %8 = vector.shape_cast %7 : vector<1x288x3xbf16> to vector<288x3xbf16>
    %c1 = arith.constant 1 : index
    %c0_8 = arith.constant 0 : index
    %c0_9 = arith.constant 0 : index
    %9 = vector.load %arg3[%c1, %c0_8, %c0_9] : memref<9x3x128xbf16, #tpu.memory_space<vmem>>, vector<1x3x128xbf16>
    %10 = vector.shape_cast %9 : vector<1x3x128xbf16> to vector<3x128xbf16>
    %cst_10 = arith.constant dense<0.000000e+00> : vector<288x128xf32>
    %11 = tpu.matmul %8, %10, %cst_10 {dimension_numbers = #tpu.dot_dimension_numbers<[1], [0], [0], [1], [0, 0, 1, 1], [], []>} : vector<288x3xbf16>, vector<3x128xbf16>, vector<288x128xf32> -> vector<288x128xf32>
    %12 = arith.addf %6, %11 : vector<288x128xf32>
    %c0_11 = arith.constant 0 : index
    %c1_12 = arith.constant 1 : index
    %c0_13 = arith.constant 0 : index
    %13 = vector.load %arg2[%c0_11, %c1_12, %c0_13] : memref<1x1296x3xbf16, #tpu.memory_space<vmem>>, vector<1x288x3xbf16>
    %14 = vector.shape_cast %13 : vector<1x288x3xbf16> to vector<288x3xbf16>
    %c2 = arith.constant 2 : index
    %c0_14 = arith.constant 0 : index
    %c0_15 = arith.constant 0 : index
    %15 = vector.load %arg3[%c2, %c0_14, %c0_15] : memref<9x3x128xbf16, #tpu.memory_space<vmem>>, vector<1x3x128xbf16>
    %16 = vector.shape_cast %15 : vector<1x3x128xbf16> to vector<3x128xbf16>
    %cst_16 = arith.constant dense<0.000000e+00> : vector<288x128xf32>
    %17 = tpu.matmul %14, %16, %cst_16 {dimension_numbers = #tpu.dot_dimension_numbers<[1], [0], [0], [1], [0, 0, 1, 1], [], []>} : vector<288x3xbf16>, vector<3x128xbf16>, vector<288x128xf32> -> vector<288x128xf32>
    %18 = arith.addf %12, %17 : vector<288x128xf32>
    %c0_17 = arith.constant 0 : index
    %c648 = arith.constant 648 : index
    %c0_18 = arith.constant 0 : index
    %19 = vector.load %arg2[%c0_17, %c648, %c0_18] : memref<1x1296x3xbf16, #tpu.memory_space<vmem>>, vector<1x288x3xbf16>
    %20 = vector.shape_cast %19 : vector<1x288x3xbf16> to vector<288x3xbf16>
    %c3 = arith.constant 3 : index
    %c0_19 = arith.constant 0 : index
    %c0_20 = arith.constant 0 : index
    %21 = vector.load %arg3[%c3, %c0_19, %c0_20] : memref<9x3x128xbf16, #tpu.memory_space<vmem>>, vector<1x3x128xbf16>
    %22 = vector.shape_cast %21 : vector<1x3x128xbf16> to vector<3x128xbf16>
    %cst_21 = arith.constant dense<0.000000e+00> : vector<288x128xf32>
    %23 = tpu.matmul %20, %22, %cst_21 {dimension_numbers = #tpu.dot_dimension_numbers<[1], [0], [0], [1], [0, 0, 1, 1], [], []>} : vector<288x3xbf16>, vector<3x128xbf16>, vector<288x128xf32> -> vector<288x128xf32>
    %24 = arith.addf %18, %23 : vector<288x128xf32>
    %c0_22 = arith.constant 0 : index
    %c972 = arith.constant 972 : index
    %c0_23 = arith.constant 0 : index
    %25 = vector.load %arg2[%c0_22, %c972, %c0_23] : memref<1x1296x3xbf16, #tpu.memory_space<vmem>>, vector<1x288x3xbf16>
    %26 = vector.shape_cast %25 : vector<1x288x3xbf16> to vector<288x3xbf16>
    %c4 = arith.constant 4 : index
    %c0_24 = arith.constant 0 : index
    %c0_25 = arith.constant 0 : index
    %27 = vector.load %arg3[%c4, %c0_24, %c0_25] : memref<9x3x128xbf16, #tpu.memory_space<vmem>>, vector<1x3x128xbf16>
    %28 = vector.shape_cast %27 : vector<1x3x128xbf16> to vector<3x128xbf16>
    %cst_26 = arith.constant dense<0.000000e+00> : vector<288x128xf32>
    %29 = tpu.matmul %26, %28, %cst_26 {dimension_numbers = #tpu.dot_dimension_numbers<[1], [0], [0], [1], [0, 0, 1, 1], [], []>} : vector<288x3xbf16>, vector<3x128xbf16>, vector<288x128xf32> -> vector<288x128xf32>
    %30 = arith.addf %24, %29 : vector<288x128xf32>
    %c0_27 = arith.constant 0 : index
    %c649 = arith.constant 649 : index
    %c0_28 = arith.constant 0 : index
    %31 = vector.load %arg2[%c0_27, %c649, %c0_28] : memref<1x1296x3xbf16, #tpu.memory_space<vmem>>, vector<1x288x3xbf16>
    %32 = vector.shape_cast %31 : vector<1x288x3xbf16> to vector<288x3xbf16>
    %c5 = arith.constant 5 : index
    %c0_29 = arith.constant 0 : index
    %c0_30 = arith.constant 0 : index
    %33 = vector.load %arg3[%c5, %c0_29, %c0_30] : memref<9x3x128xbf16, #tpu.memory_space<vmem>>, vector<1x3x128xbf16>
    %34 = vector.shape_cast %33 : vector<1x3x128xbf16> to vector<3x128xbf16>
    %cst_31 = arith.constant dense<0.000000e+00> : vector<288x128xf32>
    %35 = tpu.matmul %32, %34, %cst_31 {dimension_numbers = #tpu.dot_dimension_numbers<[1], [0], [0], [1], [0, 0, 1, 1], [], []>} : vector<288x3xbf16>, vector<3x128xbf16>, vector<288x128xf32> -> vector<288x128xf32>
    %36 = arith.addf %30, %35 : vector<288x128xf32>
    %c0_32 = arith.constant 0 : index
    %c18 = arith.constant 18 : index
    %c0_33 = arith.constant 0 : index
    %37 = vector.load %arg2[%c0_32, %c18, %c0_33] : memref<1x1296x3xbf16, #tpu.memory_space<vmem>>, vector<1x288x3xbf16>
    %38 = vector.shape_cast %37 : vector<1x288x3xbf16> to vector<288x3xbf16>
    %c6 = arith.constant 6 : index
    %c0_34 = arith.constant 0 : index
    %c0_35 = arith.constant 0 : index
    %39 = vector.load %arg3[%c6, %c0_34, %c0_35] : memref<9x3x128xbf16, #tpu.memory_space<vmem>>, vector<1x3x128xbf16>
    %40 = vector.shape_cast %39 : vector<1x3x128xbf16> to vector<3x128xbf16>
    %cst_36 = arith.constant dense<0.000000e+00> : vector<288x128xf32>
    %41 = tpu.matmul %38, %40, %cst_36 {dimension_numbers = #tpu.dot_dimension_numbers<[1], [0], [0], [1], [0, 0, 1, 1], [], []>} : vector<288x3xbf16>, vector<3x128xbf16>, vector<288x128xf32> -> vector<288x128xf32>
    %42 = arith.addf %36, %41 : vector<288x128xf32>
    %c0_37 = arith.constant 0 : index
    %c342 = arith.constant 342 : index
    %c0_38 = arith.constant 0 : index
    %43 = vector.load %arg2[%c0_37, %c342, %c0_38] : memref<1x1296x3xbf16, #tpu.memory_space<vmem>>, vector<1x288x3xbf16>
    %44 = vector.shape_cast %43 : vector<1x288x3xbf16> to vector<288x3xbf16>
    %c7 = arith.constant 7 : index
    %c0_39 = arith.constant 0 : index
    %c0_40 = arith.constant 0 : index
    %45 = vector.load %arg3[%c7, %c0_39, %c0_40] : memref<9x3x128xbf16, #tpu.memory_space<vmem>>, vector<1x3x128xbf16>
    %46 = vector.shape_cast %45 : vector<1x3x128xbf16> to vector<3x128xbf16>
    %cst_41 = arith.constant dense<0.000000e+00> : vector<288x128xf32>
    %47 = tpu.matmul %44, %46, %cst_41 {dimension_numbers = #tpu.dot_dimension_numbers<[1], [0], [0], [1], [0, 0, 1, 1], [], []>} : vector<288x3xbf16>, vector<3x128xbf16>, vector<288x128xf32> -> vector<288x128xf32>
    %48 = arith.addf %42, %47 : vector<288x128xf32>
    %c0_42 = arith.constant 0 : index
    %c19 = arith.constant 19 : index
    %c0_43 = arith.constant 0 : index
    %49 = vector.load %arg2[%c0_42, %c19, %c0_43] : memref<1x1296x3xbf16, #tpu.memory_space<vmem>>, vector<1x288x3xbf16>
    %50 = vector.shape_cast %49 : vector<1x288x3xbf16> to vector<288x3xbf16>
    %c8 = arith.constant 8 : index
    %c0_44 = arith.constant 0 : index
    %c0_45 = arith.constant 0 : index
    %51 = vector.load %arg3[%c8, %c0_44, %c0_45] : memref<9x3x128xbf16, #tpu.memory_space<vmem>>, vector<1x3x128xbf16>
    %52 = vector.shape_cast %51 : vector<1x3x128xbf16> to vector<3x128xbf16>
    %cst_46 = arith.constant dense<0.000000e+00> : vector<288x128xf32>
    %53 = tpu.matmul %50, %52, %cst_46 {dimension_numbers = #tpu.dot_dimension_numbers<[1], [0], [0], [1], [0, 0, 1, 1], [], []>} : vector<288x3xbf16>, vector<3x128xbf16>, vector<288x128xf32> -> vector<288x128xf32>
    %54 = arith.addf %48, %53 : vector<288x128xf32>
    %c0_47 = arith.constant 0 : index
    %c0_48 = arith.constant 0 : index
    %55 = vector.load %arg4[%c0_47, %c0_48] : memref<1x128xf32, #tpu.memory_space<vmem>>, vector<1x128xf32>
    %56 = vector.broadcast %55 : vector<1x128xf32> to vector<288x128xf32>
    %57 = arith.addf %54, %56 : vector<288x128xf32>
    %c0_i32 = arith.constant 0 : i32
    %58 = arith.cmpi eq, %arg0, %c0_i32 : i32
    %c0_i32_49 = arith.constant 0 : i32
    %59 = arith.cmpi eq, %arg1, %c0_i32_49 : i32
    %60 = arith.andi %58, %59 : i1
    %61 = arith.extui %60 : i1 to i32
    %c0_i32_50 = arith.constant 0 : i32
    %62 = arith.cmpi ne, %61, %c0_i32_50 : i32
    scf.if %62 {
      %cst_54 = arith.constant 0.000000e+00 : f32
      %69 = vector.broadcast %cst_54 : f32 to vector<2x128xf32>
      %c0_55 = arith.constant 0 : index
      %c0_56 = arith.constant 0 : index
      %70 = vector.load %arg9[%c0_55, %c0_56] : memref<2x128xf32, #tpu.memory_space<vmem>>, vector<2x128xf32>
      tpu.vector_store %arg9[%c0_55, %c0_56], %69 {strides = array<i32>} : memref<2x128xf32, #tpu.memory_space<vmem>>, vector<2x128xf32>,
    } else {
    }
    %c0_i32_51 = arith.constant 0 : i32
    %63 = arith.cmpi eq, %arg0, %c0_i32_51 : i32
    %64 = arith.extui %63 : i1 to i32
    %c0_i32_52 = arith.constant 0 : i32
    %65 = arith.cmpi ne, %64, %c0_i32_52 : i32
    scf.if %65 {
      %c0_54 = arith.constant 0 : index
      %c0_55 = arith.constant 0 : index
      %69 = vector.load %arg7[%c0_54, %c0_55] : memref<288x1xf32, #tpu.memory_space<vmem>>, vector<288x1xf32>
      %70 = vector.broadcast %69 : vector<288x1xf32> to vector<288x128xf32>
      %71 = arith.mulf %57, %70 : vector<288x128xf32>
      %c0_56 = arith.constant 0 : index
      %c0_57 = arith.constant 0 : index
      %72 = vector.load %arg9[%c0_56, %c0_57] : memref<2x128xf32, #tpu.memory_space<vmem>>, vector<1x128xf32>
      %cst_58 = arith.constant dense<0.000000e+00> : vector<128xf32>
      %73 = vector.multi_reduction <add>, %71, %cst_58 [0] : vector<288x128xf32> to vector<128xf32>
      %74 = vector.shape_cast %73 : vector<128xf32> to vector<1x128xf32>
      %75 = arith.addf %72, %74 : vector<1x128xf32>
      %c0_59 = arith.constant 0 : index
      %c0_60 = arith.constant 0 : index
      %76 = vector.load %arg9[%c0_59, %c0_60] : memref<2x128xf32, #tpu.memory_space<vmem>>, vector<1x128xf32>
      tpu.vector_store %arg9[%c0_59, %c0_60], %75 {strides = array<i32>} : memref<2x128xf32, #tpu.memory_space<vmem>>, vector<1x128xf32>,
      %c1_61 = arith.constant 1 : index
      %c0_62 = arith.constant 0 : index
      %77 = vector.load %arg9[%c1_61, %c0_62] : memref<2x128xf32, #tpu.memory_space<vmem>>, vector<1x128xf32>
      %78 = arith.mulf %71, %57 : vector<288x128xf32>
      %cst_63 = arith.constant dense<0.000000e+00> : vector<128xf32>
      %79 = vector.multi_reduction <add>, %78, %cst_63 [0] : vector<288x128xf32> to vector<128xf32>
      %80 = vector.shape_cast %79 : vector<128xf32> to vector<1x128xf32>
      %81 = arith.addf %77, %80 : vector<1x128xf32>
      %c1_64 = arith.constant 1 : index
      %c0_65 = arith.constant 0 : index
      %82 = vector.load %arg9[%c1_64, %c0_65] : memref<2x128xf32, #tpu.memory_space<vmem>>, vector<1x128xf32>
      tpu.vector_store %arg9[%c1_64, %c0_65], %81 {strides = array<i32>} : memref<2x128xf32, #tpu.memory_space<vmem>>, vector<1x128xf32>,
    } else {
    }
    %c1_i32 = arith.constant 1 : i32
    %66 = arith.cmpi eq, %arg0, %c1_i32 : i32
    %67 = arith.extui %66 : i1 to i32
    %c0_i32_53 = arith.constant 0 : i32
    %68 = arith.cmpi ne, %67, %c0_i32_53 : i32
    scf.if %68 {
      %c0_54 = arith.constant 0 : index
      %c0_55 = arith.constant 0 : index
      %69 = vector.load %arg9[%c0_54, %c0_55] : memref<2x128xf32, #tpu.memory_space<vmem>>, vector<1x128xf32>
      %cst_56 = arith.constant 0.001953125 : f32
      %70 = vector.broadcast %cst_56 : f32 to vector<1x128xf32>
      %71 = arith.mulf %69, %70 : vector<1x128xf32>
      %c1_57 = arith.constant 1 : index
      %c0_58 = arith.constant 0 : index
      %72 = vector.load %arg9[%c1_57, %c0_58] : memref<2x128xf32, #tpu.memory_space<vmem>>, vector<1x128xf32>
      %cst_59 = arith.constant 0.001953125 : f32
      %73 = vector.broadcast %cst_59 : f32 to vector<1x128xf32>
      %74 = arith.mulf %72, %73 : vector<1x128xf32>
      %75 = arith.mulf %71, %71 : vector<1x128xf32>
      %76 = arith.subf %74, %75 : vector<1x128xf32>
      %cst_60 = arith.constant 0.000000e+00 : f32
      %77 = vector.broadcast %cst_60 : f32 to vector<1x128xf32>
      %78 = arith.maximumf %76, %77 : vector<1x128xf32>
      %c0_61 = arith.constant 0 : index
      %c0_62 = arith.constant 0 : index
      %79 = vector.load %arg5[%c0_61, %c0_62] : memref<1x128xf32, #tpu.memory_space<vmem>>, vector<1x128xf32>
      %cst_63 = arith.constant 9.99999974E-6 : f32
      %80 = vector.broadcast %cst_63 : f32 to vector<1x128xf32>
      %81 = arith.addf %78, %80 : vector<1x128xf32>
      %82 = math.rsqrt %81 : vector<1x128xf32>
      %83 = arith.mulf %79, %82 : vector<1x128xf32>
      %c0_64 = arith.constant 0 : index
      %c0_65 = arith.constant 0 : index
      %84 = vector.load %arg6[%c0_64, %c0_65] : memref<1x128xf32, #tpu.memory_space<vmem>>, vector<1x128xf32>
      %85 = arith.mulf %71, %83 : vector<1x128xf32>
      %86 = arith.subf %84, %85 : vector<1x128xf32>
      %87 = vector.broadcast %83 : vector<1x128xf32> to vector<288x128xf32>
      %88 = arith.mulf %57, %87 : vector<288x128xf32>
      %89 = vector.broadcast %86 : vector<1x128xf32> to vector<288x128xf32>
      %90 = arith.addf %88, %89 : vector<288x128xf32>
      %cst_66 = arith.constant 0.000000e+00 : f32
      %91 = vector.broadcast %cst_66 : f32 to vector<288x128xf32>
      %92 = arith.cmpf ogt, %90, %91 : vector<288x128xf32>
      %cst_67 = arith.constant 2.000000e-01 : f32
      %93 = vector.broadcast %cst_67 : f32 to vector<288x128xf32>
      %94 = arith.mulf %93, %90 : vector<288x128xf32>
      %95 = arith.select %92, %90, %94 : vector<288x128xi1>, vector<288x128xf32>
      %96 = arith.truncf %95 : vector<288x128xf32> to vector<288x128xbf16>
      %c0_68 = arith.constant 0 : index
      %c0_69 = arith.constant 0 : index
      %c0_70 = arith.constant 0 : index
      %97 = vector.load %arg8[%c0_68, %c0_69, %c0_70] : memref<1x288x128xbf16, #tpu.memory_space<vmem>>, vector<1x288x128xbf16>
      %98 = vector.shape_cast %97 : vector<1x288x128xbf16> to vector<288x128xbf16>
      %99 = vector.shape_cast %96 : vector<288x128xbf16> to vector<1x288x128xbf16>
      tpu.vector_store %arg8[%c0_68, %c0_69, %c0_70], %99 {strides = array<i32>} : memref<1x288x128xbf16, #tpu.memory_space<vmem>>, vector<1x288x128xbf16>,
    } else {
    }
    return
  }
  func.func @transform_0(%arg0: i32, %arg1: i32) -> (i32, i32, i32) {
    %c0_i32 = arith.constant 0 : i32
    %c0_i32_0 = arith.constant 0 : i32
    %c0_i32_1 = arith.constant 0 : i32
    return %arg1, %c0_i32, %c0_i32_0 : i32, i32, i32
  }
  func.func @transform_1(%arg0: i32, %arg1: i32) -> (i32, i32, i32) {
    %c0_i32 = arith.constant 0 : i32
    %c0_i32_0 = arith.constant 0 : i32
    %c0_i32_1 = arith.constant 0 : i32
    %c0_i32_2 = arith.constant 0 : i32
    return %c0_i32, %c0_i32_0, %c0_i32_1 : i32, i32, i32
  }
  func.func @transform_2(%arg0: i32, %arg1: i32) -> (i32, i32) {
    %c0_i32 = arith.constant 0 : i32
    %c0_i32_0 = arith.constant 0 : i32
    %c0_i32_1 = arith.constant 0 : i32
    return %c0_i32, %c0_i32_0 : i32, i32
  }
  func.func @transform_3(%arg0: i32, %arg1: i32) -> (i32, i32) {
    %c0_i32 = arith.constant 0 : i32
    %c0_i32_0 = arith.constant 0 : i32
    %c0_i32_1 = arith.constant 0 : i32
    return %c0_i32, %c0_i32_0 : i32, i32
  }
  func.func @transform_4(%arg0: i32, %arg1: i32) -> (i32, i32) {
    %c0_i32 = arith.constant 0 : i32
    %c0_i32_0 = arith.constant 0 : i32
    %c0_i32_1 = arith.constant 0 : i32
    return %c0_i32, %c0_i32_0 : i32, i32
  }
  func.func @transform_5(%arg0: i32, %arg1: i32) -> (i32, i32) {
    %c0_i32 = arith.constant 0 : i32
    %c0_i32_0 = arith.constant 0 : i32
    %c0_i32_1 = arith.constant 0 : i32
    return %c0_i32, %c0_i32_0 : i32, i32
  }
  func.func @transform_6(%arg0: i32, %arg1: i32) -> (i32, i32, i32) {
    %0 = arith.muli %arg1, %arg0 : i32
    %c0_i32 = arith.constant 0 : i32
    %c0_i32_0 = arith.constant 0 : i32
    %c0_i32_1 = arith.constant 0 : i32
    return %0, %c0_i32, %c0_i32_0 : i32, i32, i32
  }
}

module attributes {stable_mosaic.version = 11 : i64} {
  func.func @_down_block_kernel(%arg0: i32, %arg1: i32, %arg2: memref<1x400x32xbf16, #tpu.memory_space<vmem>>, %arg3: memref<9x32x128xbf16, #tpu.memory_space<vmem>>, %arg4: memref<1x128xf32, #tpu.memory_space<vmem>>, %arg5: memref<1x128xf32, #tpu.memory_space<vmem>>, %arg6: memref<1x128xf32, #tpu.memory_space<vmem>>, %arg7: memref<80x1xf32, #tpu.memory_space<vmem>>, %arg8: memref<1x80x128xbf16, #tpu.memory_space<vmem>>, %arg9: memref<2x128xf32, #tpu.memory_space<vmem>>) attributes {dimension_semantics = [#tpu.dimension_semantics<arbitrary>, #tpu.dimension_semantics<arbitrary>], iteration_bounds = array<i64: 2, 2>, scalar_prefetch = 0 : i64, scratch_operands = 1 : i64, tpu.core_type = #tpu.core_type<tc>, window_params = [{transform_indices = @transform_0, window_bounds = array<i64: 1, 400, 32>}, {pipeline_mode = #tpu.pipeline_mode<synchronous>, transform_indices = @transform_1, window_bounds = array<i64: 9, 32, 128>}, {pipeline_mode = #tpu.pipeline_mode<synchronous>, transform_indices = @transform_2, window_bounds = array<i64: 1, 128>}, {pipeline_mode = #tpu.pipeline_mode<synchronous>, transform_indices = @transform_3, window_bounds = array<i64: 1, 128>}, {pipeline_mode = #tpu.pipeline_mode<synchronous>, transform_indices = @transform_4, window_bounds = array<i64: 1, 128>}, {pipeline_mode = #tpu.pipeline_mode<synchronous>, transform_indices = @transform_5, window_bounds = array<i64: 80, 1>}, {transform_indices = @transform_6, window_bounds = array<i64: 1, 80, 128>}]} {
    %cst = arith.constant 0.000000e+00 : f32
    %0 = vector.broadcast %cst : f32 to vector<80x128xf32>
    %c0 = arith.constant 0 : index
    %c0_0 = arith.constant 0 : index
    %c0_1 = arith.constant 0 : index
    %1 = vector.load %arg2[%c0, %c0_0, %c0_1] : memref<1x400x32xbf16, #tpu.memory_space<vmem>>, vector<1x80x32xbf16>
    %2 = vector.shape_cast %1 : vector<1x80x32xbf16> to vector<80x32xbf16>
    %c0_2 = arith.constant 0 : index
    %c0_3 = arith.constant 0 : index
    %c0_4 = arith.constant 0 : index
    %3 = vector.load %arg3[%c0_2, %c0_3, %c0_4] : memref<9x32x128xbf16, #tpu.memory_space<vmem>>, vector<1x32x128xbf16>
    %4 = vector.shape_cast %3 : vector<1x32x128xbf16> to vector<32x128xbf16>
    %cst_5 = arith.constant dense<0.000000e+00> : vector<80x128xf32>
    %5 = tpu.matmul %2, %4, %cst_5 {dimension_numbers = #tpu.dot_dimension_numbers<[1], [0], [0], [1], [0, 0, 1, 1], [], []>} : vector<80x32xbf16>, vector<32x128xbf16>, vector<80x128xf32> -> vector<80x128xf32>
    %6 = arith.addf %0, %5 : vector<80x128xf32>
    %c0_6 = arith.constant 0 : index
    %c100 = arith.constant 100 : index
    %c0_7 = arith.constant 0 : index
    %7 = vector.load %arg2[%c0_6, %c100, %c0_7] : memref<1x400x32xbf16, #tpu.memory_space<vmem>>, vector<1x80x32xbf16>
    %8 = vector.shape_cast %7 : vector<1x80x32xbf16> to vector<80x32xbf16>
    %c1 = arith.constant 1 : index
    %c0_8 = arith.constant 0 : index
    %c0_9 = arith.constant 0 : index
    %9 = vector.load %arg3[%c1, %c0_8, %c0_9] : memref<9x32x128xbf16, #tpu.memory_space<vmem>>, vector<1x32x128xbf16>
    %10 = vector.shape_cast %9 : vector<1x32x128xbf16> to vector<32x128xbf16>
    %cst_10 = arith.constant dense<0.000000e+00> : vector<80x128xf32>
    %11 = tpu.matmul %8, %10, %cst_10 {dimension_numbers = #tpu.dot_dimension_numbers<[1], [0], [0], [1], [0, 0, 1, 1], [], []>} : vector<80x32xbf16>, vector<32x128xbf16>, vector<80x128xf32> -> vector<80x128xf32>
    %12 = arith.addf %6, %11 : vector<80x128xf32>
    %c0_11 = arith.constant 0 : index
    %c1_12 = arith.constant 1 : index
    %c0_13 = arith.constant 0 : index
    %13 = vector.load %arg2[%c0_11, %c1_12, %c0_13] : memref<1x400x32xbf16, #tpu.memory_space<vmem>>, vector<1x80x32xbf16>
    %14 = vector.shape_cast %13 : vector<1x80x32xbf16> to vector<80x32xbf16>
    %c2 = arith.constant 2 : index
    %c0_14 = arith.constant 0 : index
    %c0_15 = arith.constant 0 : index
    %15 = vector.load %arg3[%c2, %c0_14, %c0_15] : memref<9x32x128xbf16, #tpu.memory_space<vmem>>, vector<1x32x128xbf16>
    %16 = vector.shape_cast %15 : vector<1x32x128xbf16> to vector<32x128xbf16>
    %cst_16 = arith.constant dense<0.000000e+00> : vector<80x128xf32>
    %17 = tpu.matmul %14, %16, %cst_16 {dimension_numbers = #tpu.dot_dimension_numbers<[1], [0], [0], [1], [0, 0, 1, 1], [], []>} : vector<80x32xbf16>, vector<32x128xbf16>, vector<80x128xf32> -> vector<80x128xf32>
    %18 = arith.addf %12, %17 : vector<80x128xf32>
    %c0_17 = arith.constant 0 : index
    %c200 = arith.constant 200 : index
    %c0_18 = arith.constant 0 : index
    %19 = vector.load %arg2[%c0_17, %c200, %c0_18] : memref<1x400x32xbf16, #tpu.memory_space<vmem>>, vector<1x80x32xbf16>
    %20 = vector.shape_cast %19 : vector<1x80x32xbf16> to vector<80x32xbf16>
    %c3 = arith.constant 3 : index
    %c0_19 = arith.constant 0 : index
    %c0_20 = arith.constant 0 : index
    %21 = vector.load %arg3[%c3, %c0_19, %c0_20] : memref<9x32x128xbf16, #tpu.memory_space<vmem>>, vector<1x32x128xbf16>
    %22 = vector.shape_cast %21 : vector<1x32x128xbf16> to vector<32x128xbf16>
    %cst_21 = arith.constant dense<0.000000e+00> : vector<80x128xf32>
    %23 = tpu.matmul %20, %22, %cst_21 {dimension_numbers = #tpu.dot_dimension_numbers<[1], [0], [0], [1], [0, 0, 1, 1], [], []>} : vector<80x32xbf16>, vector<32x128xbf16>, vector<80x128xf32> -> vector<80x128xf32>
    %24 = arith.addf %18, %23 : vector<80x128xf32>
    %c0_22 = arith.constant 0 : index
    %c300 = arith.constant 300 : index
    %c0_23 = arith.constant 0 : index
    %25 = vector.load %arg2[%c0_22, %c300, %c0_23] : memref<1x400x32xbf16, #tpu.memory_space<vmem>>, vector<1x80x32xbf16>
    %26 = vector.shape_cast %25 : vector<1x80x32xbf16> to vector<80x32xbf16>
    %c4 = arith.constant 4 : index
    %c0_24 = arith.constant 0 : index
    %c0_25 = arith.constant 0 : index
    %27 = vector.load %arg3[%c4, %c0_24, %c0_25] : memref<9x32x128xbf16, #tpu.memory_space<vmem>>, vector<1x32x128xbf16>
    %28 = vector.shape_cast %27 : vector<1x32x128xbf16> to vector<32x128xbf16>
    %cst_26 = arith.constant dense<0.000000e+00> : vector<80x128xf32>
    %29 = tpu.matmul %26, %28, %cst_26 {dimension_numbers = #tpu.dot_dimension_numbers<[1], [0], [0], [1], [0, 0, 1, 1], [], []>} : vector<80x32xbf16>, vector<32x128xbf16>, vector<80x128xf32> -> vector<80x128xf32>
    %30 = arith.addf %24, %29 : vector<80x128xf32>
    %c0_27 = arith.constant 0 : index
    %c201 = arith.constant 201 : index
    %c0_28 = arith.constant 0 : index
    %31 = vector.load %arg2[%c0_27, %c201, %c0_28] : memref<1x400x32xbf16, #tpu.memory_space<vmem>>, vector<1x80x32xbf16>
    %32 = vector.shape_cast %31 : vector<1x80x32xbf16> to vector<80x32xbf16>
    %c5 = arith.constant 5 : index
    %c0_29 = arith.constant 0 : index
    %c0_30 = arith.constant 0 : index
    %33 = vector.load %arg3[%c5, %c0_29, %c0_30] : memref<9x32x128xbf16, #tpu.memory_space<vmem>>, vector<1x32x128xbf16>
    %34 = vector.shape_cast %33 : vector<1x32x128xbf16> to vector<32x128xbf16>
    %cst_31 = arith.constant dense<0.000000e+00> : vector<80x128xf32>
    %35 = tpu.matmul %32, %34, %cst_31 {dimension_numbers = #tpu.dot_dimension_numbers<[1], [0], [0], [1], [0, 0, 1, 1], [], []>} : vector<80x32xbf16>, vector<32x128xbf16>, vector<80x128xf32> -> vector<80x128xf32>
    %36 = arith.addf %30, %35 : vector<80x128xf32>
    %c0_32 = arith.constant 0 : index
    %c10 = arith.constant 10 : index
    %c0_33 = arith.constant 0 : index
    %37 = vector.load %arg2[%c0_32, %c10, %c0_33] : memref<1x400x32xbf16, #tpu.memory_space<vmem>>, vector<1x80x32xbf16>
    %38 = vector.shape_cast %37 : vector<1x80x32xbf16> to vector<80x32xbf16>
    %c6 = arith.constant 6 : index
    %c0_34 = arith.constant 0 : index
    %c0_35 = arith.constant 0 : index
    %39 = vector.load %arg3[%c6, %c0_34, %c0_35] : memref<9x32x128xbf16, #tpu.memory_space<vmem>>, vector<1x32x128xbf16>
    %40 = vector.shape_cast %39 : vector<1x32x128xbf16> to vector<32x128xbf16>
    %cst_36 = arith.constant dense<0.000000e+00> : vector<80x128xf32>
    %41 = tpu.matmul %38, %40, %cst_36 {dimension_numbers = #tpu.dot_dimension_numbers<[1], [0], [0], [1], [0, 0, 1, 1], [], []>} : vector<80x32xbf16>, vector<32x128xbf16>, vector<80x128xf32> -> vector<80x128xf32>
    %42 = arith.addf %36, %41 : vector<80x128xf32>
    %c0_37 = arith.constant 0 : index
    %c110 = arith.constant 110 : index
    %c0_38 = arith.constant 0 : index
    %43 = vector.load %arg2[%c0_37, %c110, %c0_38] : memref<1x400x32xbf16, #tpu.memory_space<vmem>>, vector<1x80x32xbf16>
    %44 = vector.shape_cast %43 : vector<1x80x32xbf16> to vector<80x32xbf16>
    %c7 = arith.constant 7 : index
    %c0_39 = arith.constant 0 : index
    %c0_40 = arith.constant 0 : index
    %45 = vector.load %arg3[%c7, %c0_39, %c0_40] : memref<9x32x128xbf16, #tpu.memory_space<vmem>>, vector<1x32x128xbf16>
    %46 = vector.shape_cast %45 : vector<1x32x128xbf16> to vector<32x128xbf16>
    %cst_41 = arith.constant dense<0.000000e+00> : vector<80x128xf32>
    %47 = tpu.matmul %44, %46, %cst_41 {dimension_numbers = #tpu.dot_dimension_numbers<[1], [0], [0], [1], [0, 0, 1, 1], [], []>} : vector<80x32xbf16>, vector<32x128xbf16>, vector<80x128xf32> -> vector<80x128xf32>
    %48 = arith.addf %42, %47 : vector<80x128xf32>
    %c0_42 = arith.constant 0 : index
    %c11 = arith.constant 11 : index
    %c0_43 = arith.constant 0 : index
    %49 = vector.load %arg2[%c0_42, %c11, %c0_43] : memref<1x400x32xbf16, #tpu.memory_space<vmem>>, vector<1x80x32xbf16>
    %50 = vector.shape_cast %49 : vector<1x80x32xbf16> to vector<80x32xbf16>
    %c8 = arith.constant 8 : index
    %c0_44 = arith.constant 0 : index
    %c0_45 = arith.constant 0 : index
    %51 = vector.load %arg3[%c8, %c0_44, %c0_45] : memref<9x32x128xbf16, #tpu.memory_space<vmem>>, vector<1x32x128xbf16>
    %52 = vector.shape_cast %51 : vector<1x32x128xbf16> to vector<32x128xbf16>
    %cst_46 = arith.constant dense<0.000000e+00> : vector<80x128xf32>
    %53 = tpu.matmul %50, %52, %cst_46 {dimension_numbers = #tpu.dot_dimension_numbers<[1], [0], [0], [1], [0, 0, 1, 1], [], []>} : vector<80x32xbf16>, vector<32x128xbf16>, vector<80x128xf32> -> vector<80x128xf32>
    %54 = arith.addf %48, %53 : vector<80x128xf32>
    %c0_47 = arith.constant 0 : index
    %c0_48 = arith.constant 0 : index
    %55 = vector.load %arg4[%c0_47, %c0_48] : memref<1x128xf32, #tpu.memory_space<vmem>>, vector<1x128xf32>
    %56 = vector.broadcast %55 : vector<1x128xf32> to vector<80x128xf32>
    %57 = arith.addf %54, %56 : vector<80x128xf32>
    %c0_i32 = arith.constant 0 : i32
    %58 = arith.cmpi eq, %arg0, %c0_i32 : i32
    %c0_i32_49 = arith.constant 0 : i32
    %59 = arith.cmpi eq, %arg1, %c0_i32_49 : i32
    %60 = arith.andi %58, %59 : i1
    %61 = arith.extui %60 : i1 to i32
    %c0_i32_50 = arith.constant 0 : i32
    %62 = arith.cmpi ne, %61, %c0_i32_50 : i32
    scf.if %62 {
      %cst_54 = arith.constant 0.000000e+00 : f32
      %69 = vector.broadcast %cst_54 : f32 to vector<2x128xf32>
      %c0_55 = arith.constant 0 : index
      %c0_56 = arith.constant 0 : index
      %70 = vector.load %arg9[%c0_55, %c0_56] : memref<2x128xf32, #tpu.memory_space<vmem>>, vector<2x128xf32>
      tpu.vector_store %arg9[%c0_55, %c0_56], %69 {strides = array<i32>} : memref<2x128xf32, #tpu.memory_space<vmem>>, vector<2x128xf32>,
    } else {
    }
    %c0_i32_51 = arith.constant 0 : i32
    %63 = arith.cmpi eq, %arg0, %c0_i32_51 : i32
    %64 = arith.extui %63 : i1 to i32
    %c0_i32_52 = arith.constant 0 : i32
    %65 = arith.cmpi ne, %64, %c0_i32_52 : i32
    scf.if %65 {
      %c0_54 = arith.constant 0 : index
      %c0_55 = arith.constant 0 : index
      %69 = vector.load %arg7[%c0_54, %c0_55] : memref<80x1xf32, #tpu.memory_space<vmem>>, vector<80x1xf32>
      %70 = vector.broadcast %69 : vector<80x1xf32> to vector<80x128xf32>
      %71 = arith.mulf %57, %70 : vector<80x128xf32>
      %c0_56 = arith.constant 0 : index
      %c0_57 = arith.constant 0 : index
      %72 = vector.load %arg9[%c0_56, %c0_57] : memref<2x128xf32, #tpu.memory_space<vmem>>, vector<1x128xf32>
      %cst_58 = arith.constant dense<0.000000e+00> : vector<128xf32>
      %73 = vector.multi_reduction <add>, %71, %cst_58 [0] : vector<80x128xf32> to vector<128xf32>
      %74 = vector.shape_cast %73 : vector<128xf32> to vector<1x128xf32>
      %75 = arith.addf %72, %74 : vector<1x128xf32>
      %c0_59 = arith.constant 0 : index
      %c0_60 = arith.constant 0 : index
      %76 = vector.load %arg9[%c0_59, %c0_60] : memref<2x128xf32, #tpu.memory_space<vmem>>, vector<1x128xf32>
      tpu.vector_store %arg9[%c0_59, %c0_60], %75 {strides = array<i32>} : memref<2x128xf32, #tpu.memory_space<vmem>>, vector<1x128xf32>,
      %c1_61 = arith.constant 1 : index
      %c0_62 = arith.constant 0 : index
      %77 = vector.load %arg9[%c1_61, %c0_62] : memref<2x128xf32, #tpu.memory_space<vmem>>, vector<1x128xf32>
      %78 = arith.mulf %71, %57 : vector<80x128xf32>
      %cst_63 = arith.constant dense<0.000000e+00> : vector<128xf32>
      %79 = vector.multi_reduction <add>, %78, %cst_63 [0] : vector<80x128xf32> to vector<128xf32>
      %80 = vector.shape_cast %79 : vector<128xf32> to vector<1x128xf32>
      %81 = arith.addf %77, %80 : vector<1x128xf32>
      %c1_64 = arith.constant 1 : index
      %c0_65 = arith.constant 0 : index
      %82 = vector.load %arg9[%c1_64, %c0_65] : memref<2x128xf32, #tpu.memory_space<vmem>>, vector<1x128xf32>
      tpu.vector_store %arg9[%c1_64, %c0_65], %81 {strides = array<i32>} : memref<2x128xf32, #tpu.memory_space<vmem>>, vector<1x128xf32>,
    } else {
    }
    %c1_i32 = arith.constant 1 : i32
    %66 = arith.cmpi eq, %arg0, %c1_i32 : i32
    %67 = arith.extui %66 : i1 to i32
    %c0_i32_53 = arith.constant 0 : i32
    %68 = arith.cmpi ne, %67, %c0_i32_53 : i32
    scf.if %68 {
      %c0_54 = arith.constant 0 : index
      %c0_55 = arith.constant 0 : index
      %69 = vector.load %arg9[%c0_54, %c0_55] : memref<2x128xf32, #tpu.memory_space<vmem>>, vector<1x128xf32>
      %cst_56 = arith.constant 7.812500e-03 : f32
      %70 = vector.broadcast %cst_56 : f32 to vector<1x128xf32>
      %71 = arith.mulf %69, %70 : vector<1x128xf32>
      %c1_57 = arith.constant 1 : index
      %c0_58 = arith.constant 0 : index
      %72 = vector.load %arg9[%c1_57, %c0_58] : memref<2x128xf32, #tpu.memory_space<vmem>>, vector<1x128xf32>
      %cst_59 = arith.constant 7.812500e-03 : f32
      %73 = vector.broadcast %cst_59 : f32 to vector<1x128xf32>
      %74 = arith.mulf %72, %73 : vector<1x128xf32>
      %75 = arith.mulf %71, %71 : vector<1x128xf32>
      %76 = arith.subf %74, %75 : vector<1x128xf32>
      %cst_60 = arith.constant 0.000000e+00 : f32
      %77 = vector.broadcast %cst_60 : f32 to vector<1x128xf32>
      %78 = arith.maximumf %76, %77 : vector<1x128xf32>
      %c0_61 = arith.constant 0 : index
      %c0_62 = arith.constant 0 : index
      %79 = vector.load %arg5[%c0_61, %c0_62] : memref<1x128xf32, #tpu.memory_space<vmem>>, vector<1x128xf32>
      %cst_63 = arith.constant 9.99999974E-6 : f32
      %80 = vector.broadcast %cst_63 : f32 to vector<1x128xf32>
      %81 = arith.addf %78, %80 : vector<1x128xf32>
      %82 = math.rsqrt %81 : vector<1x128xf32>
      %83 = arith.mulf %79, %82 : vector<1x128xf32>
      %c0_64 = arith.constant 0 : index
      %c0_65 = arith.constant 0 : index
      %84 = vector.load %arg6[%c0_64, %c0_65] : memref<1x128xf32, #tpu.memory_space<vmem>>, vector<1x128xf32>
      %85 = arith.mulf %71, %83 : vector<1x128xf32>
      %86 = arith.subf %84, %85 : vector<1x128xf32>
      %87 = vector.broadcast %83 : vector<1x128xf32> to vector<80x128xf32>
      %88 = arith.mulf %57, %87 : vector<80x128xf32>
      %89 = vector.broadcast %86 : vector<1x128xf32> to vector<80x128xf32>
      %90 = arith.addf %88, %89 : vector<80x128xf32>
      %cst_66 = arith.constant 0.000000e+00 : f32
      %91 = vector.broadcast %cst_66 : f32 to vector<80x128xf32>
      %92 = arith.cmpf ogt, %90, %91 : vector<80x128xf32>
      %cst_67 = arith.constant 2.000000e-01 : f32
      %93 = vector.broadcast %cst_67 : f32 to vector<80x128xf32>
      %94 = arith.mulf %93, %90 : vector<80x128xf32>
      %95 = arith.select %92, %90, %94 : vector<80x128xi1>, vector<80x128xf32>
      %96 = arith.truncf %95 : vector<80x128xf32> to vector<80x128xbf16>
      %c0_68 = arith.constant 0 : index
      %c0_69 = arith.constant 0 : index
      %c0_70 = arith.constant 0 : index
      %97 = vector.load %arg8[%c0_68, %c0_69, %c0_70] : memref<1x80x128xbf16, #tpu.memory_space<vmem>>, vector<1x80x128xbf16>
      %98 = vector.shape_cast %97 : vector<1x80x128xbf16> to vector<80x128xbf16>
      %99 = vector.shape_cast %96 : vector<80x128xbf16> to vector<1x80x128xbf16>
      tpu.vector_store %arg8[%c0_68, %c0_69, %c0_70], %99 {strides = array<i32>} : memref<1x80x128xbf16, #tpu.memory_space<vmem>>, vector<1x80x128xbf16>,
    } else {
    }
    return
  }
  func.func @transform_0(%arg0: i32, %arg1: i32) -> (i32, i32, i32) {
    %c0_i32 = arith.constant 0 : i32
    %c0_i32_0 = arith.constant 0 : i32
    %c0_i32_1 = arith.constant 0 : i32
    return %arg1, %c0_i32, %c0_i32_0 : i32, i32, i32
  }
  func.func @transform_1(%arg0: i32, %arg1: i32) -> (i32, i32, i32) {
    %c0_i32 = arith.constant 0 : i32
    %c0_i32_0 = arith.constant 0 : i32
    %c0_i32_1 = arith.constant 0 : i32
    %c0_i32_2 = arith.constant 0 : i32
    return %c0_i32, %c0_i32_0, %c0_i32_1 : i32, i32, i32
  }
  func.func @transform_2(%arg0: i32, %arg1: i32) -> (i32, i32) {
    %c0_i32 = arith.constant 0 : i32
    %c0_i32_0 = arith.constant 0 : i32
    %c0_i32_1 = arith.constant 0 : i32
    return %c0_i32, %c0_i32_0 : i32, i32
  }
  func.func @transform_3(%arg0: i32, %arg1: i32) -> (i32, i32) {
    %c0_i32 = arith.constant 0 : i32
    %c0_i32_0 = arith.constant 0 : i32
    %c0_i32_1 = arith.constant 0 : i32
    return %c0_i32, %c0_i32_0 : i32, i32
  }
  func.func @transform_4(%arg0: i32, %arg1: i32) -> (i32, i32) {
    %c0_i32 = arith.constant 0 : i32
    %c0_i32_0 = arith.constant 0 : i32
    %c0_i32_1 = arith.constant 0 : i32
    return %c0_i32, %c0_i32_0 : i32, i32
  }
  func.func @transform_5(%arg0: i32, %arg1: i32) -> (i32, i32) {
    %c0_i32 = arith.constant 0 : i32
    %c0_i32_0 = arith.constant 0 : i32
    %c0_i32_1 = arith.constant 0 : i32
    return %c0_i32, %c0_i32_0 : i32, i32
  }
  func.func @transform_6(%arg0: i32, %arg1: i32) -> (i32, i32, i32) {
    %0 = arith.muli %arg1, %arg0 : i32
    %c0_i32 = arith.constant 0 : i32
    %c0_i32_0 = arith.constant 0 : i32
    %c0_i32_1 = arith.constant 0 : i32
    return %0, %c0_i32, %c0_i32_0 : i32, i32, i32
  }
}

module attributes {stable_mosaic.version = 11 : i64} {
  func.func @_down_block_kernel(%arg0: i32, %arg1: i32, %arg2: memref<1x144x64xbf16, #tpu.memory_space<vmem>>, %arg3: memref<9x64x128xbf16, #tpu.memory_space<vmem>>, %arg4: memref<1x128xf32, #tpu.memory_space<vmem>>, %arg5: memref<1x128xf32, #tpu.memory_space<vmem>>, %arg6: memref<1x128xf32, #tpu.memory_space<vmem>>, %arg7: memref<24x1xf32, #tpu.memory_space<vmem>>, %arg8: memref<1x24x128xbf16, #tpu.memory_space<vmem>>, %arg9: memref<2x128xf32, #tpu.memory_space<vmem>>) attributes {dimension_semantics = [#tpu.dimension_semantics<arbitrary>, #tpu.dimension_semantics<arbitrary>], iteration_bounds = array<i64: 2, 2>, scalar_prefetch = 0 : i64, scratch_operands = 1 : i64, tpu.core_type = #tpu.core_type<tc>, window_params = [{transform_indices = @transform_0, window_bounds = array<i64: 1, 144, 64>}, {pipeline_mode = #tpu.pipeline_mode<synchronous>, transform_indices = @transform_1, window_bounds = array<i64: 9, 64, 128>}, {pipeline_mode = #tpu.pipeline_mode<synchronous>, transform_indices = @transform_2, window_bounds = array<i64: 1, 128>}, {pipeline_mode = #tpu.pipeline_mode<synchronous>, transform_indices = @transform_3, window_bounds = array<i64: 1, 128>}, {pipeline_mode = #tpu.pipeline_mode<synchronous>, transform_indices = @transform_4, window_bounds = array<i64: 1, 128>}, {pipeline_mode = #tpu.pipeline_mode<synchronous>, transform_indices = @transform_5, window_bounds = array<i64: 24, 1>}, {transform_indices = @transform_6, window_bounds = array<i64: 1, 24, 128>}]} {
    %cst = arith.constant 0.000000e+00 : f32
    %0 = vector.broadcast %cst : f32 to vector<24x128xf32>
    %c0 = arith.constant 0 : index
    %c0_0 = arith.constant 0 : index
    %c0_1 = arith.constant 0 : index
    %1 = vector.load %arg2[%c0, %c0_0, %c0_1] : memref<1x144x64xbf16, #tpu.memory_space<vmem>>, vector<1x24x64xbf16>
    %2 = vector.shape_cast %1 : vector<1x24x64xbf16> to vector<24x64xbf16>
    %c0_2 = arith.constant 0 : index
    %c0_3 = arith.constant 0 : index
    %c0_4 = arith.constant 0 : index
    %3 = vector.load %arg3[%c0_2, %c0_3, %c0_4] : memref<9x64x128xbf16, #tpu.memory_space<vmem>>, vector<1x64x128xbf16>
    %4 = vector.shape_cast %3 : vector<1x64x128xbf16> to vector<64x128xbf16>
    %cst_5 = arith.constant dense<0.000000e+00> : vector<24x128xf32>
    %5 = tpu.matmul %2, %4, %cst_5 {dimension_numbers = #tpu.dot_dimension_numbers<[1], [0], [0], [1], [0, 0, 1, 1], [], []>} : vector<24x64xbf16>, vector<64x128xbf16>, vector<24x128xf32> -> vector<24x128xf32>
    %6 = arith.addf %0, %5 : vector<24x128xf32>
    %c0_6 = arith.constant 0 : index
    %c36 = arith.constant 36 : index
    %c0_7 = arith.constant 0 : index
    %7 = vector.load %arg2[%c0_6, %c36, %c0_7] : memref<1x144x64xbf16, #tpu.memory_space<vmem>>, vector<1x24x64xbf16>
    %8 = vector.shape_cast %7 : vector<1x24x64xbf16> to vector<24x64xbf16>
    %c1 = arith.constant 1 : index
    %c0_8 = arith.constant 0 : index
    %c0_9 = arith.constant 0 : index
    %9 = vector.load %arg3[%c1, %c0_8, %c0_9] : memref<9x64x128xbf16, #tpu.memory_space<vmem>>, vector<1x64x128xbf16>
    %10 = vector.shape_cast %9 : vector<1x64x128xbf16> to vector<64x128xbf16>
    %cst_10 = arith.constant dense<0.000000e+00> : vector<24x128xf32>
    %11 = tpu.matmul %8, %10, %cst_10 {dimension_numbers = #tpu.dot_dimension_numbers<[1], [0], [0], [1], [0, 0, 1, 1], [], []>} : vector<24x64xbf16>, vector<64x128xbf16>, vector<24x128xf32> -> vector<24x128xf32>
    %12 = arith.addf %6, %11 : vector<24x128xf32>
    %c0_11 = arith.constant 0 : index
    %c1_12 = arith.constant 1 : index
    %c0_13 = arith.constant 0 : index
    %13 = vector.load %arg2[%c0_11, %c1_12, %c0_13] : memref<1x144x64xbf16, #tpu.memory_space<vmem>>, vector<1x24x64xbf16>
    %14 = vector.shape_cast %13 : vector<1x24x64xbf16> to vector<24x64xbf16>
    %c2 = arith.constant 2 : index
    %c0_14 = arith.constant 0 : index
    %c0_15 = arith.constant 0 : index
    %15 = vector.load %arg3[%c2, %c0_14, %c0_15] : memref<9x64x128xbf16, #tpu.memory_space<vmem>>, vector<1x64x128xbf16>
    %16 = vector.shape_cast %15 : vector<1x64x128xbf16> to vector<64x128xbf16>
    %cst_16 = arith.constant dense<0.000000e+00> : vector<24x128xf32>
    %17 = tpu.matmul %14, %16, %cst_16 {dimension_numbers = #tpu.dot_dimension_numbers<[1], [0], [0], [1], [0, 0, 1, 1], [], []>} : vector<24x64xbf16>, vector<64x128xbf16>, vector<24x128xf32> -> vector<24x128xf32>
    %18 = arith.addf %12, %17 : vector<24x128xf32>
    %c0_17 = arith.constant 0 : index
    %c72 = arith.constant 72 : index
    %c0_18 = arith.constant 0 : index
    %19 = vector.load %arg2[%c0_17, %c72, %c0_18] : memref<1x144x64xbf16, #tpu.memory_space<vmem>>, vector<1x24x64xbf16>
    %20 = vector.shape_cast %19 : vector<1x24x64xbf16> to vector<24x64xbf16>
    %c3 = arith.constant 3 : index
    %c0_19 = arith.constant 0 : index
    %c0_20 = arith.constant 0 : index
    %21 = vector.load %arg3[%c3, %c0_19, %c0_20] : memref<9x64x128xbf16, #tpu.memory_space<vmem>>, vector<1x64x128xbf16>
    %22 = vector.shape_cast %21 : vector<1x64x128xbf16> to vector<64x128xbf16>
    %cst_21 = arith.constant dense<0.000000e+00> : vector<24x128xf32>
    %23 = tpu.matmul %20, %22, %cst_21 {dimension_numbers = #tpu.dot_dimension_numbers<[1], [0], [0], [1], [0, 0, 1, 1], [], []>} : vector<24x64xbf16>, vector<64x128xbf16>, vector<24x128xf32> -> vector<24x128xf32>
    %24 = arith.addf %18, %23 : vector<24x128xf32>
    %c0_22 = arith.constant 0 : index
    %c108 = arith.constant 108 : index
    %c0_23 = arith.constant 0 : index
    %25 = vector.load %arg2[%c0_22, %c108, %c0_23] : memref<1x144x64xbf16, #tpu.memory_space<vmem>>, vector<1x24x64xbf16>
    %26 = vector.shape_cast %25 : vector<1x24x64xbf16> to vector<24x64xbf16>
    %c4 = arith.constant 4 : index
    %c0_24 = arith.constant 0 : index
    %c0_25 = arith.constant 0 : index
    %27 = vector.load %arg3[%c4, %c0_24, %c0_25] : memref<9x64x128xbf16, #tpu.memory_space<vmem>>, vector<1x64x128xbf16>
    %28 = vector.shape_cast %27 : vector<1x64x128xbf16> to vector<64x128xbf16>
    %cst_26 = arith.constant dense<0.000000e+00> : vector<24x128xf32>
    %29 = tpu.matmul %26, %28, %cst_26 {dimension_numbers = #tpu.dot_dimension_numbers<[1], [0], [0], [1], [0, 0, 1, 1], [], []>} : vector<24x64xbf16>, vector<64x128xbf16>, vector<24x128xf32> -> vector<24x128xf32>
    %30 = arith.addf %24, %29 : vector<24x128xf32>
    %c0_27 = arith.constant 0 : index
    %c73 = arith.constant 73 : index
    %c0_28 = arith.constant 0 : index
    %31 = vector.load %arg2[%c0_27, %c73, %c0_28] : memref<1x144x64xbf16, #tpu.memory_space<vmem>>, vector<1x24x64xbf16>
    %32 = vector.shape_cast %31 : vector<1x24x64xbf16> to vector<24x64xbf16>
    %c5 = arith.constant 5 : index
    %c0_29 = arith.constant 0 : index
    %c0_30 = arith.constant 0 : index
    %33 = vector.load %arg3[%c5, %c0_29, %c0_30] : memref<9x64x128xbf16, #tpu.memory_space<vmem>>, vector<1x64x128xbf16>
    %34 = vector.shape_cast %33 : vector<1x64x128xbf16> to vector<64x128xbf16>
    %cst_31 = arith.constant dense<0.000000e+00> : vector<24x128xf32>
    %35 = tpu.matmul %32, %34, %cst_31 {dimension_numbers = #tpu.dot_dimension_numbers<[1], [0], [0], [1], [0, 0, 1, 1], [], []>} : vector<24x64xbf16>, vector<64x128xbf16>, vector<24x128xf32> -> vector<24x128xf32>
    %36 = arith.addf %30, %35 : vector<24x128xf32>
    %c0_32 = arith.constant 0 : index
    %c6 = arith.constant 6 : index
    %c0_33 = arith.constant 0 : index
    %37 = vector.load %arg2[%c0_32, %c6, %c0_33] : memref<1x144x64xbf16, #tpu.memory_space<vmem>>, vector<1x24x64xbf16>
    %38 = vector.shape_cast %37 : vector<1x24x64xbf16> to vector<24x64xbf16>
    %c6_34 = arith.constant 6 : index
    %c0_35 = arith.constant 0 : index
    %c0_36 = arith.constant 0 : index
    %39 = vector.load %arg3[%c6_34, %c0_35, %c0_36] : memref<9x64x128xbf16, #tpu.memory_space<vmem>>, vector<1x64x128xbf16>
    %40 = vector.shape_cast %39 : vector<1x64x128xbf16> to vector<64x128xbf16>
    %cst_37 = arith.constant dense<0.000000e+00> : vector<24x128xf32>
    %41 = tpu.matmul %38, %40, %cst_37 {dimension_numbers = #tpu.dot_dimension_numbers<[1], [0], [0], [1], [0, 0, 1, 1], [], []>} : vector<24x64xbf16>, vector<64x128xbf16>, vector<24x128xf32> -> vector<24x128xf32>
    %42 = arith.addf %36, %41 : vector<24x128xf32>
    %c0_38 = arith.constant 0 : index
    %c42 = arith.constant 42 : index
    %c0_39 = arith.constant 0 : index
    %43 = vector.load %arg2[%c0_38, %c42, %c0_39] : memref<1x144x64xbf16, #tpu.memory_space<vmem>>, vector<1x24x64xbf16>
    %44 = vector.shape_cast %43 : vector<1x24x64xbf16> to vector<24x64xbf16>
    %c7 = arith.constant 7 : index
    %c0_40 = arith.constant 0 : index
    %c0_41 = arith.constant 0 : index
    %45 = vector.load %arg3[%c7, %c0_40, %c0_41] : memref<9x64x128xbf16, #tpu.memory_space<vmem>>, vector<1x64x128xbf16>
    %46 = vector.shape_cast %45 : vector<1x64x128xbf16> to vector<64x128xbf16>
    %cst_42 = arith.constant dense<0.000000e+00> : vector<24x128xf32>
    %47 = tpu.matmul %44, %46, %cst_42 {dimension_numbers = #tpu.dot_dimension_numbers<[1], [0], [0], [1], [0, 0, 1, 1], [], []>} : vector<24x64xbf16>, vector<64x128xbf16>, vector<24x128xf32> -> vector<24x128xf32>
    %48 = arith.addf %42, %47 : vector<24x128xf32>
    %c0_43 = arith.constant 0 : index
    %c7_44 = arith.constant 7 : index
    %c0_45 = arith.constant 0 : index
    %49 = vector.load %arg2[%c0_43, %c7_44, %c0_45] : memref<1x144x64xbf16, #tpu.memory_space<vmem>>, vector<1x24x64xbf16>
    %50 = vector.shape_cast %49 : vector<1x24x64xbf16> to vector<24x64xbf16>
    %c8 = arith.constant 8 : index
    %c0_46 = arith.constant 0 : index
    %c0_47 = arith.constant 0 : index
    %51 = vector.load %arg3[%c8, %c0_46, %c0_47] : memref<9x64x128xbf16, #tpu.memory_space<vmem>>, vector<1x64x128xbf16>
    %52 = vector.shape_cast %51 : vector<1x64x128xbf16> to vector<64x128xbf16>
    %cst_48 = arith.constant dense<0.000000e+00> : vector<24x128xf32>
    %53 = tpu.matmul %50, %52, %cst_48 {dimension_numbers = #tpu.dot_dimension_numbers<[1], [0], [0], [1], [0, 0, 1, 1], [], []>} : vector<24x64xbf16>, vector<64x128xbf16>, vector<24x128xf32> -> vector<24x128xf32>
    %54 = arith.addf %48, %53 : vector<24x128xf32>
    %c0_49 = arith.constant 0 : index
    %c0_50 = arith.constant 0 : index
    %55 = vector.load %arg4[%c0_49, %c0_50] : memref<1x128xf32, #tpu.memory_space<vmem>>, vector<1x128xf32>
    %56 = vector.broadcast %55 : vector<1x128xf32> to vector<24x128xf32>
    %57 = arith.addf %54, %56 : vector<24x128xf32>
    %c0_i32 = arith.constant 0 : i32
    %58 = arith.cmpi eq, %arg0, %c0_i32 : i32
    %c0_i32_51 = arith.constant 0 : i32
    %59 = arith.cmpi eq, %arg1, %c0_i32_51 : i32
    %60 = arith.andi %58, %59 : i1
    %61 = arith.extui %60 : i1 to i32
    %c0_i32_52 = arith.constant 0 : i32
    %62 = arith.cmpi ne, %61, %c0_i32_52 : i32
    scf.if %62 {
      %cst_56 = arith.constant 0.000000e+00 : f32
      %69 = vector.broadcast %cst_56 : f32 to vector<2x128xf32>
      %c0_57 = arith.constant 0 : index
      %c0_58 = arith.constant 0 : index
      %70 = vector.load %arg9[%c0_57, %c0_58] : memref<2x128xf32, #tpu.memory_space<vmem>>, vector<2x128xf32>
      tpu.vector_store %arg9[%c0_57, %c0_58], %69 {strides = array<i32>} : memref<2x128xf32, #tpu.memory_space<vmem>>, vector<2x128xf32>,
    } else {
    }
    %c0_i32_53 = arith.constant 0 : i32
    %63 = arith.cmpi eq, %arg0, %c0_i32_53 : i32
    %64 = arith.extui %63 : i1 to i32
    %c0_i32_54 = arith.constant 0 : i32
    %65 = arith.cmpi ne, %64, %c0_i32_54 : i32
    scf.if %65 {
      %c0_56 = arith.constant 0 : index
      %c0_57 = arith.constant 0 : index
      %69 = vector.load %arg7[%c0_56, %c0_57] : memref<24x1xf32, #tpu.memory_space<vmem>>, vector<24x1xf32>
      %70 = vector.broadcast %69 : vector<24x1xf32> to vector<24x128xf32>
      %71 = arith.mulf %57, %70 : vector<24x128xf32>
      %c0_58 = arith.constant 0 : index
      %c0_59 = arith.constant 0 : index
      %72 = vector.load %arg9[%c0_58, %c0_59] : memref<2x128xf32, #tpu.memory_space<vmem>>, vector<1x128xf32>
      %cst_60 = arith.constant dense<0.000000e+00> : vector<128xf32>
      %73 = vector.multi_reduction <add>, %71, %cst_60 [0] : vector<24x128xf32> to vector<128xf32>
      %74 = vector.shape_cast %73 : vector<128xf32> to vector<1x128xf32>
      %75 = arith.addf %72, %74 : vector<1x128xf32>
      %c0_61 = arith.constant 0 : index
      %c0_62 = arith.constant 0 : index
      %76 = vector.load %arg9[%c0_61, %c0_62] : memref<2x128xf32, #tpu.memory_space<vmem>>, vector<1x128xf32>
      tpu.vector_store %arg9[%c0_61, %c0_62], %75 {strides = array<i32>} : memref<2x128xf32, #tpu.memory_space<vmem>>, vector<1x128xf32>,
      %c1_63 = arith.constant 1 : index
      %c0_64 = arith.constant 0 : index
      %77 = vector.load %arg9[%c1_63, %c0_64] : memref<2x128xf32, #tpu.memory_space<vmem>>, vector<1x128xf32>
      %78 = arith.mulf %71, %57 : vector<24x128xf32>
      %cst_65 = arith.constant dense<0.000000e+00> : vector<128xf32>
      %79 = vector.multi_reduction <add>, %78, %cst_65 [0] : vector<24x128xf32> to vector<128xf32>
      %80 = vector.shape_cast %79 : vector<128xf32> to vector<1x128xf32>
      %81 = arith.addf %77, %80 : vector<1x128xf32>
      %c1_66 = arith.constant 1 : index
      %c0_67 = arith.constant 0 : index
      %82 = vector.load %arg9[%c1_66, %c0_67] : memref<2x128xf32, #tpu.memory_space<vmem>>, vector<1x128xf32>
      tpu.vector_store %arg9[%c1_66, %c0_67], %81 {strides = array<i32>} : memref<2x128xf32, #tpu.memory_space<vmem>>, vector<1x128xf32>,
    } else {
    }
    %c1_i32 = arith.constant 1 : i32
    %66 = arith.cmpi eq, %arg0, %c1_i32 : i32
    %67 = arith.extui %66 : i1 to i32
    %c0_i32_55 = arith.constant 0 : i32
    %68 = arith.cmpi ne, %67, %c0_i32_55 : i32
    scf.if %68 {
      %c0_56 = arith.constant 0 : index
      %c0_57 = arith.constant 0 : index
      %69 = vector.load %arg9[%c0_56, %c0_57] : memref<2x128xf32, #tpu.memory_space<vmem>>, vector<1x128xf32>
      %cst_58 = arith.constant 3.125000e-02 : f32
      %70 = vector.broadcast %cst_58 : f32 to vector<1x128xf32>
      %71 = arith.mulf %69, %70 : vector<1x128xf32>
      %c1_59 = arith.constant 1 : index
      %c0_60 = arith.constant 0 : index
      %72 = vector.load %arg9[%c1_59, %c0_60] : memref<2x128xf32, #tpu.memory_space<vmem>>, vector<1x128xf32>
      %cst_61 = arith.constant 3.125000e-02 : f32
      %73 = vector.broadcast %cst_61 : f32 to vector<1x128xf32>
      %74 = arith.mulf %72, %73 : vector<1x128xf32>
      %75 = arith.mulf %71, %71 : vector<1x128xf32>
      %76 = arith.subf %74, %75 : vector<1x128xf32>
      %cst_62 = arith.constant 0.000000e+00 : f32
      %77 = vector.broadcast %cst_62 : f32 to vector<1x128xf32>
      %78 = arith.maximumf %76, %77 : vector<1x128xf32>
      %c0_63 = arith.constant 0 : index
      %c0_64 = arith.constant 0 : index
      %79 = vector.load %arg5[%c0_63, %c0_64] : memref<1x128xf32, #tpu.memory_space<vmem>>, vector<1x128xf32>
      %cst_65 = arith.constant 9.99999974E-6 : f32
      %80 = vector.broadcast %cst_65 : f32 to vector<1x128xf32>
      %81 = arith.addf %78, %80 : vector<1x128xf32>
      %82 = math.rsqrt %81 : vector<1x128xf32>
      %83 = arith.mulf %79, %82 : vector<1x128xf32>
      %c0_66 = arith.constant 0 : index
      %c0_67 = arith.constant 0 : index
      %84 = vector.load %arg6[%c0_66, %c0_67] : memref<1x128xf32, #tpu.memory_space<vmem>>, vector<1x128xf32>
      %85 = arith.mulf %71, %83 : vector<1x128xf32>
      %86 = arith.subf %84, %85 : vector<1x128xf32>
      %87 = vector.broadcast %83 : vector<1x128xf32> to vector<24x128xf32>
      %88 = arith.mulf %57, %87 : vector<24x128xf32>
      %89 = vector.broadcast %86 : vector<1x128xf32> to vector<24x128xf32>
      %90 = arith.addf %88, %89 : vector<24x128xf32>
      %cst_68 = arith.constant 0.000000e+00 : f32
      %91 = vector.broadcast %cst_68 : f32 to vector<24x128xf32>
      %92 = arith.cmpf ogt, %90, %91 : vector<24x128xf32>
      %cst_69 = arith.constant 2.000000e-01 : f32
      %93 = vector.broadcast %cst_69 : f32 to vector<24x128xf32>
      %94 = arith.mulf %93, %90 : vector<24x128xf32>
      %95 = arith.select %92, %90, %94 : vector<24x128xi1>, vector<24x128xf32>
      %96 = arith.truncf %95 : vector<24x128xf32> to vector<24x128xbf16>
      %c0_70 = arith.constant 0 : index
      %c0_71 = arith.constant 0 : index
      %c0_72 = arith.constant 0 : index
      %97 = vector.load %arg8[%c0_70, %c0_71, %c0_72] : memref<1x24x128xbf16, #tpu.memory_space<vmem>>, vector<1x24x128xbf16>
      %98 = vector.shape_cast %97 : vector<1x24x128xbf16> to vector<24x128xbf16>
      %99 = vector.shape_cast %96 : vector<24x128xbf16> to vector<1x24x128xbf16>
      tpu.vector_store %arg8[%c0_70, %c0_71, %c0_72], %99 {strides = array<i32>} : memref<1x24x128xbf16, #tpu.memory_space<vmem>>, vector<1x24x128xbf16>,
    } else {
    }
    return
  }
  func.func @transform_0(%arg0: i32, %arg1: i32) -> (i32, i32, i32) {
    %c0_i32 = arith.constant 0 : i32
    %c0_i32_0 = arith.constant 0 : i32
    %c0_i32_1 = arith.constant 0 : i32
    return %arg1, %c0_i32, %c0_i32_0 : i32, i32, i32
  }
  func.func @transform_1(%arg0: i32, %arg1: i32) -> (i32, i32, i32) {
    %c0_i32 = arith.constant 0 : i32
    %c0_i32_0 = arith.constant 0 : i32
    %c0_i32_1 = arith.constant 0 : i32
    %c0_i32_2 = arith.constant 0 : i32
    return %c0_i32, %c0_i32_0, %c0_i32_1 : i32, i32, i32
  }
  func.func @transform_2(%arg0: i32, %arg1: i32) -> (i32, i32) {
    %c0_i32 = arith.constant 0 : i32
    %c0_i32_0 = arith.constant 0 : i32
    %c0_i32_1 = arith.constant 0 : i32
    return %c0_i32, %c0_i32_0 : i32, i32
  }
  func.func @transform_3(%arg0: i32, %arg1: i32) -> (i32, i32) {
    %c0_i32 = arith.constant 0 : i32
    %c0_i32_0 = arith.constant 0 : i32
    %c0_i32_1 = arith.constant 0 : i32
    return %c0_i32, %c0_i32_0 : i32, i32
  }
  func.func @transform_4(%arg0: i32, %arg1: i32) -> (i32, i32) {
    %c0_i32 = arith.constant 0 : i32
    %c0_i32_0 = arith.constant 0 : i32
    %c0_i32_1 = arith.constant 0 : i32
    return %c0_i32, %c0_i32_0 : i32, i32
  }
  func.func @transform_5(%arg0: i32, %arg1: i32) -> (i32, i32) {
    %c0_i32 = arith.constant 0 : i32
    %c0_i32_0 = arith.constant 0 : i32
    %c0_i32_1 = arith.constant 0 : i32
    return %c0_i32, %c0_i32_0 : i32, i32
  }
  func.func @transform_6(%arg0: i32, %arg1: i32) -> (i32, i32, i32) {
    %0 = arith.muli %arg1, %arg0 : i32
    %c0_i32 = arith.constant 0 : i32
    %c0_i32_0 = arith.constant 0 : i32
    %c0_i32_1 = arith.constant 0 : i32
    return %0, %c0_i32, %c0_i32_0 : i32, i32, i32
  }
}

module attributes {stable_mosaic.version = 11 : i64} {
  func.func @_tail_kernel(%arg0: memref<2x8x128xbf16, #tpu.memory_space<vmem>>, %arg1: memref<8x1xf32, #tpu.memory_space<vmem>>, %arg2: memref<4x128x128xbf16, #tpu.memory_space<vmem>>, %arg3: memref<4x1x128xf32, #tpu.memory_space<vmem>>, %arg4: memref<4x1x128xf32, #tpu.memory_space<vmem>>, %arg5: memref<4x1x128xf32, #tpu.memory_space<vmem>>, %arg6: memref<2x128xf32, #tpu.memory_space<vmem>>) attributes {dimension_semantics = [], scalar_prefetch = 0 : i64, scratch_operands = 0 : i64, tpu.core_type = #tpu.core_type<tc>} {
    %c0 = arith.constant 0 : index
    %c0_0 = arith.constant 0 : index
    %c0_1 = arith.constant 0 : index
    %0 = vector.load %arg0[%c0, %c0_0, %c0_1] : memref<2x8x128xbf16, #tpu.memory_space<vmem>>, vector<2x8x128xbf16>
    %1 = arith.extf %0 : vector<2x8x128xbf16> to vector<2x8x128xf32>
    %c0_2 = arith.constant 0 : index
    %c0_3 = arith.constant 0 : index
    %2 = vector.load %arg1[%c0_2, %c0_3] : memref<8x1xf32, #tpu.memory_space<vmem>>, vector<8x1xf32>
    %3 = vector.shape_cast %2 : vector<8x1xf32> to vector<1x8x1xf32>
    %4 = vector.broadcast %3 : vector<1x8x1xf32> to vector<2x8x128xf32>
    %5 = arith.mulf %1, %4 : vector<2x8x128xf32>
    %cst = arith.constant dense<0.000000e+00> : vector<2x128xf32>
    %6 = vector.multi_reduction <add>, %5, %cst [1] : vector<2x8x128xf32> to vector<2x128xf32>
    %cst_4 = arith.constant 2.500000e-01 : f32
    %7 = vector.broadcast %cst_4 : f32 to vector<2x128xf32>
    %8 = arith.mulf %6, %7 : vector<2x128xf32>
    %9 = arith.truncf %8 : vector<2x128xf32> to vector<2x128xbf16>
    %c0_5 = arith.constant 0 : index
    %c0_6 = arith.constant 0 : index
    %c0_7 = arith.constant 0 : index
    %10 = vector.load %arg2[%c0_5, %c0_6, %c0_7] : memref<4x128x128xbf16, #tpu.memory_space<vmem>>, vector<1x128x128xbf16>
    %11 = vector.shape_cast %10 : vector<1x128x128xbf16> to vector<128x128xbf16>
    %cst_8 = arith.constant dense<0.000000e+00> : vector<2x128xf32>
    %12 = tpu.matmul %9, %11, %cst_8 {dimension_numbers = #tpu.dot_dimension_numbers<[1], [0], [0], [1], [0, 0, 1, 1], [], []>} : vector<2x128xbf16>, vector<128x128xbf16>, vector<2x128xf32> -> vector<2x128xf32>
    %c0_9 = arith.constant 0 : index
    %c0_10 = arith.constant 0 : index
    %c0_11 = arith.constant 0 : index
    %13 = vector.load %arg3[%c0_9, %c0_10, %c0_11] : memref<4x1x128xf32, #tpu.memory_space<vmem>>, vector<1x1x128xf32>
    %14 = vector.shape_cast %13 : vector<1x1x128xf32> to vector<1x128xf32>
    %15 = vector.broadcast %14 : vector<1x128xf32> to vector<2x128xf32>
    %16 = arith.addf %12, %15 : vector<2x128xf32>
    %cst_12 = arith.constant dense<0.000000e+00> : vector<128xf32>
    %17 = vector.multi_reduction <add>, %16, %cst_12 [0] : vector<2x128xf32> to vector<128xf32>
    %18 = vector.shape_cast %17 : vector<128xf32> to vector<1x128xf32>
    %cst_13 = arith.constant 5.000000e-01 : f32
    %19 = vector.broadcast %cst_13 : f32 to vector<1x128xf32>
    %20 = arith.mulf %18, %19 : vector<1x128xf32>
    %21 = arith.mulf %16, %16 : vector<2x128xf32>
    %cst_14 = arith.constant dense<0.000000e+00> : vector<128xf32>
    %22 = vector.multi_reduction <add>, %21, %cst_14 [0] : vector<2x128xf32> to vector<128xf32>
    %23 = vector.shape_cast %22 : vector<128xf32> to vector<1x128xf32>
    %cst_15 = arith.constant 5.000000e-01 : f32
    %24 = vector.broadcast %cst_15 : f32 to vector<1x128xf32>
    %25 = arith.mulf %23, %24 : vector<1x128xf32>
    %26 = arith.mulf %20, %20 : vector<1x128xf32>
    %27 = arith.subf %25, %26 : vector<1x128xf32>
    %cst_16 = arith.constant 0.000000e+00 : f32
    %28 = vector.broadcast %cst_16 : f32 to vector<1x128xf32>
    %29 = arith.maximumf %27, %28 : vector<1x128xf32>
    %c0_17 = arith.constant 0 : index
    %c0_18 = arith.constant 0 : index
    %c0_19 = arith.constant 0 : index
    %30 = vector.load %arg4[%c0_17, %c0_18, %c0_19] : memref<4x1x128xf32, #tpu.memory_space<vmem>>, vector<1x1x128xf32>
    %31 = vector.shape_cast %30 : vector<1x1x128xf32> to vector<1x128xf32>
    %cst_20 = arith.constant 9.99999974E-6 : f32
    %32 = vector.broadcast %cst_20 : f32 to vector<1x128xf32>
    %33 = arith.addf %29, %32 : vector<1x128xf32>
    %34 = math.rsqrt %33 : vector<1x128xf32>
    %35 = arith.mulf %31, %34 : vector<1x128xf32>
    %c0_21 = arith.constant 0 : index
    %c0_22 = arith.constant 0 : index
    %c0_23 = arith.constant 0 : index
    %36 = vector.load %arg5[%c0_21, %c0_22, %c0_23] : memref<4x1x128xf32, #tpu.memory_space<vmem>>, vector<1x1x128xf32>
    %37 = vector.shape_cast %36 : vector<1x1x128xf32> to vector<1x128xf32>
    %38 = arith.mulf %20, %35 : vector<1x128xf32>
    %39 = arith.subf %37, %38 : vector<1x128xf32>
    %40 = vector.broadcast %35 : vector<1x128xf32> to vector<2x128xf32>
    %41 = arith.mulf %16, %40 : vector<2x128xf32>
    %42 = vector.broadcast %39 : vector<1x128xf32> to vector<2x128xf32>
    %43 = arith.addf %41, %42 : vector<2x128xf32>
    %cst_24 = arith.constant 0.000000e+00 : f32
    %44 = vector.broadcast %cst_24 : f32 to vector<2x128xf32>
    %45 = arith.cmpf ogt, %43, %44 : vector<2x128xf32>
    %cst_25 = arith.constant 2.000000e-01 : f32
    %46 = vector.broadcast %cst_25 : f32 to vector<2x128xf32>
    %47 = arith.mulf %46, %43 : vector<2x128xf32>
    %48 = arith.select %45, %43, %47 : vector<2x128xi1>, vector<2x128xf32>
    %49 = arith.truncf %48 : vector<2x128xf32> to vector<2x128xbf16>
    %c1 = arith.constant 1 : index
    %c0_26 = arith.constant 0 : index
    %c0_27 = arith.constant 0 : index
    %50 = vector.load %arg2[%c1, %c0_26, %c0_27] : memref<4x128x128xbf16, #tpu.memory_space<vmem>>, vector<1x128x128xbf16>
    %51 = vector.shape_cast %50 : vector<1x128x128xbf16> to vector<128x128xbf16>
    %cst_28 = arith.constant dense<0.000000e+00> : vector<2x128xf32>
    %52 = tpu.matmul %49, %51, %cst_28 {dimension_numbers = #tpu.dot_dimension_numbers<[1], [0], [0], [1], [0, 0, 1, 1], [], []>} : vector<2x128xbf16>, vector<128x128xbf16>, vector<2x128xf32> -> vector<2x128xf32>
    %c1_29 = arith.constant 1 : index
    %c0_30 = arith.constant 0 : index
    %c0_31 = arith.constant 0 : index
    %53 = vector.load %arg3[%c1_29, %c0_30, %c0_31] : memref<4x1x128xf32, #tpu.memory_space<vmem>>, vector<1x1x128xf32>
    %54 = vector.shape_cast %53 : vector<1x1x128xf32> to vector<1x128xf32>
    %55 = vector.broadcast %54 : vector<1x128xf32> to vector<2x128xf32>
    %56 = arith.addf %52, %55 : vector<2x128xf32>
    %cst_32 = arith.constant dense<0.000000e+00> : vector<128xf32>
    %57 = vector.multi_reduction <add>, %56, %cst_32 [0] : vector<2x128xf32> to vector<128xf32>
    %58 = vector.shape_cast %57 : vector<128xf32> to vector<1x128xf32>
    %cst_33 = arith.constant 5.000000e-01 : f32
    %59 = vector.broadcast %cst_33 : f32 to vector<1x128xf32>
    %60 = arith.mulf %58, %59 : vector<1x128xf32>
    %61 = arith.mulf %56, %56 : vector<2x128xf32>
    %cst_34 = arith.constant dense<0.000000e+00> : vector<128xf32>
    %62 = vector.multi_reduction <add>, %61, %cst_34 [0] : vector<2x128xf32> to vector<128xf32>
    %63 = vector.shape_cast %62 : vector<128xf32> to vector<1x128xf32>
    %cst_35 = arith.constant 5.000000e-01 : f32
    %64 = vector.broadcast %cst_35 : f32 to vector<1x128xf32>
    %65 = arith.mulf %63, %64 : vector<1x128xf32>
    %66 = arith.mulf %60, %60 : vector<1x128xf32>
    %67 = arith.subf %65, %66 : vector<1x128xf32>
    %cst_36 = arith.constant 0.000000e+00 : f32
    %68 = vector.broadcast %cst_36 : f32 to vector<1x128xf32>
    %69 = arith.maximumf %67, %68 : vector<1x128xf32>
    %c1_37 = arith.constant 1 : index
    %c0_38 = arith.constant 0 : index
    %c0_39 = arith.constant 0 : index
    %70 = vector.load %arg4[%c1_37, %c0_38, %c0_39] : memref<4x1x128xf32, #tpu.memory_space<vmem>>, vector<1x1x128xf32>
    %71 = vector.shape_cast %70 : vector<1x1x128xf32> to vector<1x128xf32>
    %cst_40 = arith.constant 9.99999974E-6 : f32
    %72 = vector.broadcast %cst_40 : f32 to vector<1x128xf32>
    %73 = arith.addf %69, %72 : vector<1x128xf32>
    %74 = math.rsqrt %73 : vector<1x128xf32>
    %75 = arith.mulf %71, %74 : vector<1x128xf32>
    %c1_41 = arith.constant 1 : index
    %c0_42 = arith.constant 0 : index
    %c0_43 = arith.constant 0 : index
    %76 = vector.load %arg5[%c1_41, %c0_42, %c0_43] : memref<4x1x128xf32, #tpu.memory_space<vmem>>, vector<1x1x128xf32>
    %77 = vector.shape_cast %76 : vector<1x1x128xf32> to vector<1x128xf32>
    %78 = arith.mulf %60, %75 : vector<1x128xf32>
    %79 = arith.subf %77, %78 : vector<1x128xf32>
    %80 = vector.broadcast %75 : vector<1x128xf32> to vector<2x128xf32>
    %81 = arith.mulf %56, %80 : vector<2x128xf32>
    %82 = vector.broadcast %79 : vector<1x128xf32> to vector<2x128xf32>
    %83 = arith.addf %81, %82 : vector<2x128xf32>
    %cst_44 = arith.constant 0.000000e+00 : f32
    %84 = vector.broadcast %cst_44 : f32 to vector<2x128xf32>
    %85 = arith.cmpf ogt, %83, %84 : vector<2x128xf32>
    %cst_45 = arith.constant 2.000000e-01 : f32
    %86 = vector.broadcast %cst_45 : f32 to vector<2x128xf32>
    %87 = arith.mulf %86, %83 : vector<2x128xf32>
    %88 = arith.select %85, %83, %87 : vector<2x128xi1>, vector<2x128xf32>
    %89 = arith.truncf %88 : vector<2x128xf32> to vector<2x128xbf16>
    %c2 = arith.constant 2 : index
    %c0_46 = arith.constant 0 : index
    %c0_47 = arith.constant 0 : index
    %90 = vector.load %arg2[%c2, %c0_46, %c0_47] : memref<4x128x128xbf16, #tpu.memory_space<vmem>>, vector<1x128x128xbf16>
    %91 = vector.shape_cast %90 : vector<1x128x128xbf16> to vector<128x128xbf16>
    %cst_48 = arith.constant dense<0.000000e+00> : vector<2x128xf32>
    %92 = tpu.matmul %89, %91, %cst_48 {dimension_numbers = #tpu.dot_dimension_numbers<[1], [0], [0], [1], [0, 0, 1, 1], [], []>} : vector<2x128xbf16>, vector<128x128xbf16>, vector<2x128xf32> -> vector<2x128xf32>
    %c2_49 = arith.constant 2 : index
    %c0_50 = arith.constant 0 : index
    %c0_51 = arith.constant 0 : index
    %93 = vector.load %arg3[%c2_49, %c0_50, %c0_51] : memref<4x1x128xf32, #tpu.memory_space<vmem>>, vector<1x1x128xf32>
    %94 = vector.shape_cast %93 : vector<1x1x128xf32> to vector<1x128xf32>
    %95 = vector.broadcast %94 : vector<1x128xf32> to vector<2x128xf32>
    %96 = arith.addf %92, %95 : vector<2x128xf32>
    %cst_52 = arith.constant dense<0.000000e+00> : vector<128xf32>
    %97 = vector.multi_reduction <add>, %96, %cst_52 [0] : vector<2x128xf32> to vector<128xf32>
    %98 = vector.shape_cast %97 : vector<128xf32> to vector<1x128xf32>
    %cst_53 = arith.constant 5.000000e-01 : f32
    %99 = vector.broadcast %cst_53 : f32 to vector<1x128xf32>
    %100 = arith.mulf %98, %99 : vector<1x128xf32>
    %101 = arith.mulf %96, %96 : vector<2x128xf32>
    %cst_54 = arith.constant dense<0.000000e+00> : vector<128xf32>
    %102 = vector.multi_reduction <add>, %101, %cst_54 [0] : vector<2x128xf32> to vector<128xf32>
    %103 = vector.shape_cast %102 : vector<128xf32> to vector<1x128xf32>
    %cst_55 = arith.constant 5.000000e-01 : f32
    %104 = vector.broadcast %cst_55 : f32 to vector<1x128xf32>
    %105 = arith.mulf %103, %104 : vector<1x128xf32>
    %106 = arith.mulf %100, %100 : vector<1x128xf32>
    %107 = arith.subf %105, %106 : vector<1x128xf32>
    %cst_56 = arith.constant 0.000000e+00 : f32
    %108 = vector.broadcast %cst_56 : f32 to vector<1x128xf32>
    %109 = arith.maximumf %107, %108 : vector<1x128xf32>
    %c2_57 = arith.constant 2 : index
    %c0_58 = arith.constant 0 : index
    %c0_59 = arith.constant 0 : index
    %110 = vector.load %arg4[%c2_57, %c0_58, %c0_59] : memref<4x1x128xf32, #tpu.memory_space<vmem>>, vector<1x1x128xf32>
    %111 = vector.shape_cast %110 : vector<1x1x128xf32> to vector<1x128xf32>
    %cst_60 = arith.constant 9.99999974E-6 : f32
    %112 = vector.broadcast %cst_60 : f32 to vector<1x128xf32>
    %113 = arith.addf %109, %112 : vector<1x128xf32>
    %114 = math.rsqrt %113 : vector<1x128xf32>
    %115 = arith.mulf %111, %114 : vector<1x128xf32>
    %c2_61 = arith.constant 2 : index
    %c0_62 = arith.constant 0 : index
    %c0_63 = arith.constant 0 : index
    %116 = vector.load %arg5[%c2_61, %c0_62, %c0_63] : memref<4x1x128xf32, #tpu.memory_space<vmem>>, vector<1x1x128xf32>
    %117 = vector.shape_cast %116 : vector<1x1x128xf32> to vector<1x128xf32>
    %118 = arith.mulf %100, %115 : vector<1x128xf32>
    %119 = arith.subf %117, %118 : vector<1x128xf32>
    %120 = vector.broadcast %115 : vector<1x128xf32> to vector<2x128xf32>
    %121 = arith.mulf %96, %120 : vector<2x128xf32>
    %122 = vector.broadcast %119 : vector<1x128xf32> to vector<2x128xf32>
    %123 = arith.addf %121, %122 : vector<2x128xf32>
    %cst_64 = arith.constant 0.000000e+00 : f32
    %124 = vector.broadcast %cst_64 : f32 to vector<2x128xf32>
    %125 = arith.cmpf ogt, %123, %124 : vector<2x128xf32>
    %cst_65 = arith.constant 2.000000e-01 : f32
    %126 = vector.broadcast %cst_65 : f32 to vector<2x128xf32>
    %127 = arith.mulf %126, %123 : vector<2x128xf32>
    %128 = arith.select %125, %123, %127 : vector<2x128xi1>, vector<2x128xf32>
    %129 = arith.truncf %128 : vector<2x128xf32> to vector<2x128xbf16>
    %c3 = arith.constant 3 : index
    %c0_66 = arith.constant 0 : index
    %c0_67 = arith.constant 0 : index
    %130 = vector.load %arg2[%c3, %c0_66, %c0_67] : memref<4x128x128xbf16, #tpu.memory_space<vmem>>, vector<1x128x128xbf16>
    %131 = vector.shape_cast %130 : vector<1x128x128xbf16> to vector<128x128xbf16>
    %cst_68 = arith.constant dense<0.000000e+00> : vector<2x128xf32>
    %132 = tpu.matmul %129, %131, %cst_68 {dimension_numbers = #tpu.dot_dimension_numbers<[1], [0], [0], [1], [0, 0, 1, 1], [], []>} : vector<2x128xbf16>, vector<128x128xbf16>, vector<2x128xf32> -> vector<2x128xf32>
    %c3_69 = arith.constant 3 : index
    %c0_70 = arith.constant 0 : index
    %c0_71 = arith.constant 0 : index
    %133 = vector.load %arg3[%c3_69, %c0_70, %c0_71] : memref<4x1x128xf32, #tpu.memory_space<vmem>>, vector<1x1x128xf32>
    %134 = vector.shape_cast %133 : vector<1x1x128xf32> to vector<1x128xf32>
    %135 = vector.broadcast %134 : vector<1x128xf32> to vector<2x128xf32>
    %136 = arith.addf %132, %135 : vector<2x128xf32>
    %cst_72 = arith.constant dense<0.000000e+00> : vector<128xf32>
    %137 = vector.multi_reduction <add>, %136, %cst_72 [0] : vector<2x128xf32> to vector<128xf32>
    %138 = vector.shape_cast %137 : vector<128xf32> to vector<1x128xf32>
    %cst_73 = arith.constant 5.000000e-01 : f32
    %139 = vector.broadcast %cst_73 : f32 to vector<1x128xf32>
    %140 = arith.mulf %138, %139 : vector<1x128xf32>
    %141 = arith.mulf %136, %136 : vector<2x128xf32>
    %cst_74 = arith.constant dense<0.000000e+00> : vector<128xf32>
    %142 = vector.multi_reduction <add>, %141, %cst_74 [0] : vector<2x128xf32> to vector<128xf32>
    %143 = vector.shape_cast %142 : vector<128xf32> to vector<1x128xf32>
    %cst_75 = arith.constant 5.000000e-01 : f32
    %144 = vector.broadcast %cst_75 : f32 to vector<1x128xf32>
    %145 = arith.mulf %143, %144 : vector<1x128xf32>
    %146 = arith.mulf %140, %140 : vector<1x128xf32>
    %147 = arith.subf %145, %146 : vector<1x128xf32>
    %cst_76 = arith.constant 0.000000e+00 : f32
    %148 = vector.broadcast %cst_76 : f32 to vector<1x128xf32>
    %149 = arith.maximumf %147, %148 : vector<1x128xf32>
    %c3_77 = arith.constant 3 : index
    %c0_78 = arith.constant 0 : index
    %c0_79 = arith.constant 0 : index
    %150 = vector.load %arg4[%c3_77, %c0_78, %c0_79] : memref<4x1x128xf32, #tpu.memory_space<vmem>>, vector<1x1x128xf32>
    %151 = vector.shape_cast %150 : vector<1x1x128xf32> to vector<1x128xf32>
    %cst_80 = arith.constant 9.99999974E-6 : f32
    %152 = vector.broadcast %cst_80 : f32 to vector<1x128xf32>
    %153 = arith.addf %149, %152 : vector<1x128xf32>
    %154 = math.rsqrt %153 : vector<1x128xf32>
    %155 = arith.mulf %151, %154 : vector<1x128xf32>
    %c3_81 = arith.constant 3 : index
    %c0_82 = arith.constant 0 : index
    %c0_83 = arith.constant 0 : index
    %156 = vector.load %arg5[%c3_81, %c0_82, %c0_83] : memref<4x1x128xf32, #tpu.memory_space<vmem>>, vector<1x1x128xf32>
    %157 = vector.shape_cast %156 : vector<1x1x128xf32> to vector<1x128xf32>
    %158 = arith.mulf %140, %155 : vector<1x128xf32>
    %159 = arith.subf %157, %158 : vector<1x128xf32>
    %160 = vector.broadcast %155 : vector<1x128xf32> to vector<2x128xf32>
    %161 = arith.mulf %136, %160 : vector<2x128xf32>
    %162 = vector.broadcast %159 : vector<1x128xf32> to vector<2x128xf32>
    %163 = arith.addf %161, %162 : vector<2x128xf32>
    %cst_84 = arith.constant 0.000000e+00 : f32
    %164 = vector.broadcast %cst_84 : f32 to vector<2x128xf32>
    %165 = arith.cmpf ogt, %163, %164 : vector<2x128xf32>
    %cst_85 = arith.constant 2.000000e-01 : f32
    %166 = vector.broadcast %cst_85 : f32 to vector<2x128xf32>
    %167 = arith.mulf %166, %163 : vector<2x128xf32>
    %168 = arith.select %165, %163, %167 : vector<2x128xi1>, vector<2x128xf32>
    %c0_86 = arith.constant 0 : index
    %c0_87 = arith.constant 0 : index
    %169 = vector.load %arg6[%c0_86, %c0_87] : memref<2x128xf32, #tpu.memory_space<vmem>>, vector<2x128xf32>
    tpu.vector_store %arg6[%c0_86, %c0_87], %168 {strides = array<i32>} : memref<2x128xf32, #tpu.memory_space<vmem>>, vector<2x128xf32>,
    return
  }
}

module attributes {stable_mosaic.version = 11 : i64} {
  func.func @_down_block_kernel(%arg0: i32, %arg1: i32, %arg2: memref<1x64x64xbf16, #tpu.memory_space<vmem>>, %arg3: memref<9x64x128xbf16, #tpu.memory_space<vmem>>, %arg4: memref<1x128xf32, #tpu.memory_space<vmem>>, %arg5: memref<1x128xf32, #tpu.memory_space<vmem>>, %arg6: memref<1x128xf32, #tpu.memory_space<vmem>>, %arg7: memref<8x1xf32, #tpu.memory_space<vmem>>, %arg8: memref<1x8x128xbf16, #tpu.memory_space<vmem>>, %arg9: memref<2x128xf32, #tpu.memory_space<vmem>>) attributes {dimension_semantics = [#tpu.dimension_semantics<arbitrary>, #tpu.dimension_semantics<arbitrary>], iteration_bounds = array<i64: 2, 2>, scalar_prefetch = 0 : i64, scratch_operands = 1 : i64, tpu.core_type = #tpu.core_type<tc>, window_params = [{transform_indices = @transform_0, window_bounds = array<i64: 1, 64, 64>}, {pipeline_mode = #tpu.pipeline_mode<synchronous>, transform_indices = @transform_1, window_bounds = array<i64: 9, 64, 128>}, {pipeline_mode = #tpu.pipeline_mode<synchronous>, transform_indices = @transform_2, window_bounds = array<i64: 1, 128>}, {pipeline_mode = #tpu.pipeline_mode<synchronous>, transform_indices = @transform_3, window_bounds = array<i64: 1, 128>}, {pipeline_mode = #tpu.pipeline_mode<synchronous>, transform_indices = @transform_4, window_bounds = array<i64: 1, 128>}, {pipeline_mode = #tpu.pipeline_mode<synchronous>, transform_indices = @transform_5, window_bounds = array<i64: 8, 1>}, {transform_indices = @transform_6, window_bounds = array<i64: 1, 8, 128>}]} {
    %cst = arith.constant 0.000000e+00 : f32
    %0 = vector.broadcast %cst : f32 to vector<8x128xf32>
    %c0 = arith.constant 0 : index
    %c0_0 = arith.constant 0 : index
    %c0_1 = arith.constant 0 : index
    %1 = vector.load %arg2[%c0, %c0_0, %c0_1] : memref<1x64x64xbf16, #tpu.memory_space<vmem>>, vector<1x8x64xbf16>
    %2 = vector.shape_cast %1 : vector<1x8x64xbf16> to vector<8x64xbf16>
    %c0_2 = arith.constant 0 : index
    %c0_3 = arith.constant 0 : index
    %c0_4 = arith.constant 0 : index
    %3 = vector.load %arg3[%c0_2, %c0_3, %c0_4] : memref<9x64x128xbf16, #tpu.memory_space<vmem>>, vector<1x64x128xbf16>
    %4 = vector.shape_cast %3 : vector<1x64x128xbf16> to vector<64x128xbf16>
    %cst_5 = arith.constant dense<0.000000e+00> : vector<8x128xf32>
    %5 = tpu.matmul %2, %4, %cst_5 {dimension_numbers = #tpu.dot_dimension_numbers<[1], [0], [0], [1], [0, 0, 1, 1], [], []>} : vector<8x64xbf16>, vector<64x128xbf16>, vector<8x128xf32> -> vector<8x128xf32>
    %6 = arith.addf %0, %5 : vector<8x128xf32>
    %c0_6 = arith.constant 0 : index
    %c16 = arith.constant 16 : index
    %c0_7 = arith.constant 0 : index
    %7 = vector.load %arg2[%c0_6, %c16, %c0_7] : memref<1x64x64xbf16, #tpu.memory_space<vmem>>, vector<1x8x64xbf16>
    %8 = vector.shape_cast %7 : vector<1x8x64xbf16> to vector<8x64xbf16>
    %c1 = arith.constant 1 : index
    %c0_8 = arith.constant 0 : index
    %c0_9 = arith.constant 0 : index
    %9 = vector.load %arg3[%c1, %c0_8, %c0_9] : memref<9x64x128xbf16, #tpu.memory_space<vmem>>, vector<1x64x128xbf16>
    %10 = vector.shape_cast %9 : vector<1x64x128xbf16> to vector<64x128xbf16>
    %cst_10 = arith.constant dense<0.000000e+00> : vector<8x128xf32>
    %11 = tpu.matmul %8, %10, %cst_10 {dimension_numbers = #tpu.dot_dimension_numbers<[1], [0], [0], [1], [0, 0, 1, 1], [], []>} : vector<8x64xbf16>, vector<64x128xbf16>, vector<8x128xf32> -> vector<8x128xf32>
    %12 = arith.addf %6, %11 : vector<8x128xf32>
    %c0_11 = arith.constant 0 : index
    %c1_12 = arith.constant 1 : index
    %c0_13 = arith.constant 0 : index
    %13 = vector.load %arg2[%c0_11, %c1_12, %c0_13] : memref<1x64x64xbf16, #tpu.memory_space<vmem>>, vector<1x8x64xbf16>
    %14 = vector.shape_cast %13 : vector<1x8x64xbf16> to vector<8x64xbf16>
    %c2 = arith.constant 2 : index
    %c0_14 = arith.constant 0 : index
    %c0_15 = arith.constant 0 : index
    %15 = vector.load %arg3[%c2, %c0_14, %c0_15] : memref<9x64x128xbf16, #tpu.memory_space<vmem>>, vector<1x64x128xbf16>
    %16 = vector.shape_cast %15 : vector<1x64x128xbf16> to vector<64x128xbf16>
    %cst_16 = arith.constant dense<0.000000e+00> : vector<8x128xf32>
    %17 = tpu.matmul %14, %16, %cst_16 {dimension_numbers = #tpu.dot_dimension_numbers<[1], [0], [0], [1], [0, 0, 1, 1], [], []>} : vector<8x64xbf16>, vector<64x128xbf16>, vector<8x128xf32> -> vector<8x128xf32>
    %18 = arith.addf %12, %17 : vector<8x128xf32>
    %c0_17 = arith.constant 0 : index
    %c32 = arith.constant 32 : index
    %c0_18 = arith.constant 0 : index
    %19 = vector.load %arg2[%c0_17, %c32, %c0_18] : memref<1x64x64xbf16, #tpu.memory_space<vmem>>, vector<1x8x64xbf16>
    %20 = vector.shape_cast %19 : vector<1x8x64xbf16> to vector<8x64xbf16>
    %c3 = arith.constant 3 : index
    %c0_19 = arith.constant 0 : index
    %c0_20 = arith.constant 0 : index
    %21 = vector.load %arg3[%c3, %c0_19, %c0_20] : memref<9x64x128xbf16, #tpu.memory_space<vmem>>, vector<1x64x128xbf16>
    %22 = vector.shape_cast %21 : vector<1x64x128xbf16> to vector<64x128xbf16>
    %cst_21 = arith.constant dense<0.000000e+00> : vector<8x128xf32>
    %23 = tpu.matmul %20, %22, %cst_21 {dimension_numbers = #tpu.dot_dimension_numbers<[1], [0], [0], [1], [0, 0, 1, 1], [], []>} : vector<8x64xbf16>, vector<64x128xbf16>, vector<8x128xf32> -> vector<8x128xf32>
    %24 = arith.addf %18, %23 : vector<8x128xf32>
    %c0_22 = arith.constant 0 : index
    %c48 = arith.constant 48 : index
    %c0_23 = arith.constant 0 : index
    %25 = vector.load %arg2[%c0_22, %c48, %c0_23] : memref<1x64x64xbf16, #tpu.memory_space<vmem>>, vector<1x8x64xbf16>
    %26 = vector.shape_cast %25 : vector<1x8x64xbf16> to vector<8x64xbf16>
    %c4 = arith.constant 4 : index
    %c0_24 = arith.constant 0 : index
    %c0_25 = arith.constant 0 : index
    %27 = vector.load %arg3[%c4, %c0_24, %c0_25] : memref<9x64x128xbf16, #tpu.memory_space<vmem>>, vector<1x64x128xbf16>
    %28 = vector.shape_cast %27 : vector<1x64x128xbf16> to vector<64x128xbf16>
    %cst_26 = arith.constant dense<0.000000e+00> : vector<8x128xf32>
    %29 = tpu.matmul %26, %28, %cst_26 {dimension_numbers = #tpu.dot_dimension_numbers<[1], [0], [0], [1], [0, 0, 1, 1], [], []>} : vector<8x64xbf16>, vector<64x128xbf16>, vector<8x128xf32> -> vector<8x128xf32>
    %30 = arith.addf %24, %29 : vector<8x128xf32>
    %c0_27 = arith.constant 0 : index
    %c33 = arith.constant 33 : index
    %c0_28 = arith.constant 0 : index
    %31 = vector.load %arg2[%c0_27, %c33, %c0_28] : memref<1x64x64xbf16, #tpu.memory_space<vmem>>, vector<1x8x64xbf16>
    %32 = vector.shape_cast %31 : vector<1x8x64xbf16> to vector<8x64xbf16>
    %c5 = arith.constant 5 : index
    %c0_29 = arith.constant 0 : index
    %c0_30 = arith.constant 0 : index
    %33 = vector.load %arg3[%c5, %c0_29, %c0_30] : memref<9x64x128xbf16, #tpu.memory_space<vmem>>, vector<1x64x128xbf16>
    %34 = vector.shape_cast %33 : vector<1x64x128xbf16> to vector<64x128xbf16>
    %cst_31 = arith.constant dense<0.000000e+00> : vector<8x128xf32>
    %35 = tpu.matmul %32, %34, %cst_31 {dimension_numbers = #tpu.dot_dimension_numbers<[1], [0], [0], [1], [0, 0, 1, 1], [], []>} : vector<8x64xbf16>, vector<64x128xbf16>, vector<8x128xf32> -> vector<8x128xf32>
    %36 = arith.addf %30, %35 : vector<8x128xf32>
    %c0_32 = arith.constant 0 : index
    %c4_33 = arith.constant 4 : index
    %c0_34 = arith.constant 0 : index
    %37 = vector.load %arg2[%c0_32, %c4_33, %c0_34] : memref<1x64x64xbf16, #tpu.memory_space<vmem>>, vector<1x8x64xbf16>
    %38 = vector.shape_cast %37 : vector<1x8x64xbf16> to vector<8x64xbf16>
    %c6 = arith.constant 6 : index
    %c0_35 = arith.constant 0 : index
    %c0_36 = arith.constant 0 : index
    %39 = vector.load %arg3[%c6, %c0_35, %c0_36] : memref<9x64x128xbf16, #tpu.memory_space<vmem>>, vector<1x64x128xbf16>
    %40 = vector.shape_cast %39 : vector<1x64x128xbf16> to vector<64x128xbf16>
    %cst_37 = arith.constant dense<0.000000e+00> : vector<8x128xf32>
    %41 = tpu.matmul %38, %40, %cst_37 {dimension_numbers = #tpu.dot_dimension_numbers<[1], [0], [0], [1], [0, 0, 1, 1], [], []>} : vector<8x64xbf16>, vector<64x128xbf16>, vector<8x128xf32> -> vector<8x128xf32>
    %42 = arith.addf %36, %41 : vector<8x128xf32>
    %c0_38 = arith.constant 0 : index
    %c20 = arith.constant 20 : index
    %c0_39 = arith.constant 0 : index
    %43 = vector.load %arg2[%c0_38, %c20, %c0_39] : memref<1x64x64xbf16, #tpu.memory_space<vmem>>, vector<1x8x64xbf16>
    %44 = vector.shape_cast %43 : vector<1x8x64xbf16> to vector<8x64xbf16>
    %c7 = arith.constant 7 : index
    %c0_40 = arith.constant 0 : index
    %c0_41 = arith.constant 0 : index
    %45 = vector.load %arg3[%c7, %c0_40, %c0_41] : memref<9x64x128xbf16, #tpu.memory_space<vmem>>, vector<1x64x128xbf16>
    %46 = vector.shape_cast %45 : vector<1x64x128xbf16> to vector<64x128xbf16>
    %cst_42 = arith.constant dense<0.000000e+00> : vector<8x128xf32>
    %47 = tpu.matmul %44, %46, %cst_42 {dimension_numbers = #tpu.dot_dimension_numbers<[1], [0], [0], [1], [0, 0, 1, 1], [], []>} : vector<8x64xbf16>, vector<64x128xbf16>, vector<8x128xf32> -> vector<8x128xf32>
    %48 = arith.addf %42, %47 : vector<8x128xf32>
    %c0_43 = arith.constant 0 : index
    %c5_44 = arith.constant 5 : index
    %c0_45 = arith.constant 0 : index
    %49 = vector.load %arg2[%c0_43, %c5_44, %c0_45] : memref<1x64x64xbf16, #tpu.memory_space<vmem>>, vector<1x8x64xbf16>
    %50 = vector.shape_cast %49 : vector<1x8x64xbf16> to vector<8x64xbf16>
    %c8 = arith.constant 8 : index
    %c0_46 = arith.constant 0 : index
    %c0_47 = arith.constant 0 : index
    %51 = vector.load %arg3[%c8, %c0_46, %c0_47] : memref<9x64x128xbf16, #tpu.memory_space<vmem>>, vector<1x64x128xbf16>
    %52 = vector.shape_cast %51 : vector<1x64x128xbf16> to vector<64x128xbf16>
    %cst_48 = arith.constant dense<0.000000e+00> : vector<8x128xf32>
    %53 = tpu.matmul %50, %52, %cst_48 {dimension_numbers = #tpu.dot_dimension_numbers<[1], [0], [0], [1], [0, 0, 1, 1], [], []>} : vector<8x64xbf16>, vector<64x128xbf16>, vector<8x128xf32> -> vector<8x128xf32>
    %54 = arith.addf %48, %53 : vector<8x128xf32>
    %c0_49 = arith.constant 0 : index
    %c0_50 = arith.constant 0 : index
    %55 = vector.load %arg4[%c0_49, %c0_50] : memref<1x128xf32, #tpu.memory_space<vmem>>, vector<1x128xf32>
    %56 = vector.broadcast %55 : vector<1x128xf32> to vector<8x128xf32>
    %57 = arith.addf %54, %56 : vector<8x128xf32>
    %c0_i32 = arith.constant 0 : i32
    %58 = arith.cmpi eq, %arg0, %c0_i32 : i32
    %c0_i32_51 = arith.constant 0 : i32
    %59 = arith.cmpi eq, %arg1, %c0_i32_51 : i32
    %60 = arith.andi %58, %59 : i1
    %61 = arith.extui %60 : i1 to i32
    %c0_i32_52 = arith.constant 0 : i32
    %62 = arith.cmpi ne, %61, %c0_i32_52 : i32
    scf.if %62 {
      %cst_56 = arith.constant 0.000000e+00 : f32
      %69 = vector.broadcast %cst_56 : f32 to vector<2x128xf32>
      %c0_57 = arith.constant 0 : index
      %c0_58 = arith.constant 0 : index
      %70 = vector.load %arg9[%c0_57, %c0_58] : memref<2x128xf32, #tpu.memory_space<vmem>>, vector<2x128xf32>
      tpu.vector_store %arg9[%c0_57, %c0_58], %69 {strides = array<i32>} : memref<2x128xf32, #tpu.memory_space<vmem>>, vector<2x128xf32>,
    } else {
    }
    %c0_i32_53 = arith.constant 0 : i32
    %63 = arith.cmpi eq, %arg0, %c0_i32_53 : i32
    %64 = arith.extui %63 : i1 to i32
    %c0_i32_54 = arith.constant 0 : i32
    %65 = arith.cmpi ne, %64, %c0_i32_54 : i32
    scf.if %65 {
      %c0_56 = arith.constant 0 : index
      %c0_57 = arith.constant 0 : index
      %69 = vector.load %arg7[%c0_56, %c0_57] : memref<8x1xf32, #tpu.memory_space<vmem>>, vector<8x1xf32>
      %70 = vector.broadcast %69 : vector<8x1xf32> to vector<8x128xf32>
      %71 = arith.mulf %57, %70 : vector<8x128xf32>
      %c0_58 = arith.constant 0 : index
      %c0_59 = arith.constant 0 : index
      %72 = vector.load %arg9[%c0_58, %c0_59] : memref<2x128xf32, #tpu.memory_space<vmem>>, vector<1x128xf32>
      %cst_60 = arith.constant dense<0.000000e+00> : vector<128xf32>
      %73 = vector.multi_reduction <add>, %71, %cst_60 [0] : vector<8x128xf32> to vector<128xf32>
      %74 = vector.shape_cast %73 : vector<128xf32> to vector<1x128xf32>
      %75 = arith.addf %72, %74 : vector<1x128xf32>
      %c0_61 = arith.constant 0 : index
      %c0_62 = arith.constant 0 : index
      %76 = vector.load %arg9[%c0_61, %c0_62] : memref<2x128xf32, #tpu.memory_space<vmem>>, vector<1x128xf32>
      tpu.vector_store %arg9[%c0_61, %c0_62], %75 {strides = array<i32>} : memref<2x128xf32, #tpu.memory_space<vmem>>, vector<1x128xf32>,
      %c1_63 = arith.constant 1 : index
      %c0_64 = arith.constant 0 : index
      %77 = vector.load %arg9[%c1_63, %c0_64] : memref<2x128xf32, #tpu.memory_space<vmem>>, vector<1x128xf32>
      %78 = arith.mulf %71, %57 : vector<8x128xf32>
      %cst_65 = arith.constant dense<0.000000e+00> : vector<128xf32>
      %79 = vector.multi_reduction <add>, %78, %cst_65 [0] : vector<8x128xf32> to vector<128xf32>
      %80 = vector.shape_cast %79 : vector<128xf32> to vector<1x128xf32>
      %81 = arith.addf %77, %80 : vector<1x128xf32>
      %c1_66 = arith.constant 1 : index
      %c0_67 = arith.constant 0 : index
      %82 = vector.load %arg9[%c1_66, %c0_67] : memref<2x128xf32, #tpu.memory_space<vmem>>, vector<1x128xf32>
      tpu.vector_store %arg9[%c1_66, %c0_67], %81 {strides = array<i32>} : memref<2x128xf32, #tpu.memory_space<vmem>>, vector<1x128xf32>,
    } else {
    }
    %c1_i32 = arith.constant 1 : i32
    %66 = arith.cmpi eq, %arg0, %c1_i32 : i32
    %67 = arith.extui %66 : i1 to i32
    %c0_i32_55 = arith.constant 0 : i32
    %68 = arith.cmpi ne, %67, %c0_i32_55 : i32
    scf.if %68 {
      %c0_56 = arith.constant 0 : index
      %c0_57 = arith.constant 0 : index
      %69 = vector.load %arg9[%c0_56, %c0_57] : memref<2x128xf32, #tpu.memory_space<vmem>>, vector<1x128xf32>
      %cst_58 = arith.constant 1.250000e-01 : f32
      %70 = vector.broadcast %cst_58 : f32 to vector<1x128xf32>
      %71 = arith.mulf %69, %70 : vector<1x128xf32>
      %c1_59 = arith.constant 1 : index
      %c0_60 = arith.constant 0 : index
      %72 = vector.load %arg9[%c1_59, %c0_60] : memref<2x128xf32, #tpu.memory_space<vmem>>, vector<1x128xf32>
      %cst_61 = arith.constant 1.250000e-01 : f32
      %73 = vector.broadcast %cst_61 : f32 to vector<1x128xf32>
      %74 = arith.mulf %72, %73 : vector<1x128xf32>
      %75 = arith.mulf %71, %71 : vector<1x128xf32>
      %76 = arith.subf %74, %75 : vector<1x128xf32>
      %cst_62 = arith.constant 0.000000e+00 : f32
      %77 = vector.broadcast %cst_62 : f32 to vector<1x128xf32>
      %78 = arith.maximumf %76, %77 : vector<1x128xf32>
      %c0_63 = arith.constant 0 : index
      %c0_64 = arith.constant 0 : index
      %79 = vector.load %arg5[%c0_63, %c0_64] : memref<1x128xf32, #tpu.memory_space<vmem>>, vector<1x128xf32>
      %cst_65 = arith.constant 9.99999974E-6 : f32
      %80 = vector.broadcast %cst_65 : f32 to vector<1x128xf32>
      %81 = arith.addf %78, %80 : vector<1x128xf32>
      %82 = math.rsqrt %81 : vector<1x128xf32>
      %83 = arith.mulf %79, %82 : vector<1x128xf32>
      %c0_66 = arith.constant 0 : index
      %c0_67 = arith.constant 0 : index
      %84 = vector.load %arg6[%c0_66, %c0_67] : memref<1x128xf32, #tpu.memory_space<vmem>>, vector<1x128xf32>
      %85 = arith.mulf %71, %83 : vector<1x128xf32>
      %86 = arith.subf %84, %85 : vector<1x128xf32>
      %87 = vector.broadcast %83 : vector<1x128xf32> to vector<8x128xf32>
      %88 = arith.mulf %57, %87 : vector<8x128xf32>
      %89 = vector.broadcast %86 : vector<1x128xf32> to vector<8x128xf32>
      %90 = arith.addf %88, %89 : vector<8x128xf32>
      %cst_68 = arith.constant 0.000000e+00 : f32
      %91 = vector.broadcast %cst_68 : f32 to vector<8x128xf32>
      %92 = arith.cmpf ogt, %90, %91 : vector<8x128xf32>
      %cst_69 = arith.constant 2.000000e-01 : f32
      %93 = vector.broadcast %cst_69 : f32 to vector<8x128xf32>
      %94 = arith.mulf %93, %90 : vector<8x128xf32>
      %95 = arith.select %92, %90, %94 : vector<8x128xi1>, vector<8x128xf32>
      %96 = arith.truncf %95 : vector<8x128xf32> to vector<8x128xbf16>
      %c0_70 = arith.constant 0 : index
      %c0_71 = arith.constant 0 : index
      %c0_72 = arith.constant 0 : index
      %97 = vector.load %arg8[%c0_70, %c0_71, %c0_72] : memref<1x8x128xbf16, #tpu.memory_space<vmem>>, vector<1x8x128xbf16>
      %98 = vector.shape_cast %97 : vector<1x8x128xbf16> to vector<8x128xbf16>
      %99 = vector.shape_cast %96 : vector<8x128xbf16> to vector<1x8x128xbf16>
      tpu.vector_store %arg8[%c0_70, %c0_71, %c0_72], %99 {strides = array<i32>} : memref<1x8x128xbf16, #tpu.memory_space<vmem>>, vector<1x8x128xbf16>,
    } else {
    }
    return
  }
  func.func @transform_0(%arg0: i32, %arg1: i32) -> (i32, i32, i32) {
    %c0_i32 = arith.constant 0 : i32
    %c0_i32_0 = arith.constant 0 : i32
    %c0_i32_1 = arith.constant 0 : i32
    return %arg1, %c0_i32, %c0_i32_0 : i32, i32, i32
  }
  func.func @transform_1(%arg0: i32, %arg1: i32) -> (i32, i32, i32) {
    %c0_i32 = arith.constant 0 : i32
    %c0_i32_0 = arith.constant 0 : i32
    %c0_i32_1 = arith.constant 0 : i32
    %c0_i32_2 = arith.constant 0 : i32
    return %c0_i32, %c0_i32_0, %c0_i32_1 : i32, i32, i32
  }
  func.func @transform_2(%arg0: i32, %arg1: i32) -> (i32, i32) {
    %c0_i32 = arith.constant 0 : i32
    %c0_i32_0 = arith.constant 0 : i32
    %c0_i32_1 = arith.constant 0 : i32
    return %c0_i32, %c0_i32_0 : i32, i32
  }
  func.func @transform_3(%arg0: i32, %arg1: i32) -> (i32, i32) {
    %c0_i32 = arith.constant 0 : i32
    %c0_i32_0 = arith.constant 0 : i32
    %c0_i32_1 = arith.constant 0 : i32
    return %c0_i32, %c0_i32_0 : i32, i32
  }
  func.func @transform_4(%arg0: i32, %arg1: i32) -> (i32, i32) {
    %c0_i32 = arith.constant 0 : i32
    %c0_i32_0 = arith.constant 0 : i32
    %c0_i32_1 = arith.constant 0 : i32
    return %c0_i32, %c0_i32_0 : i32, i32
  }
  func.func @transform_5(%arg0: i32, %arg1: i32) -> (i32, i32) {
    %c0_i32 = arith.constant 0 : i32
    %c0_i32_0 = arith.constant 0 : i32
    %c0_i32_1 = arith.constant 0 : i32
    return %c0_i32, %c0_i32_0 : i32, i32
  }
  func.func @transform_6(%arg0: i32, %arg1: i32) -> (i32, i32, i32) {
    %0 = arith.muli %arg1, %arg0 : i32
    %c0_i32 = arith.constant 0 : i32
    %c0_i32_0 = arith.constant 0 : i32
    %c0_i32_1 = arith.constant 0 : i32
    return %0, %c0_i32, %c0_i32_0 : i32, i32, i32
  }
}

</mosaic_0001>

<llo_original>
// kernel: unet_encoder.5
$region0: #{unet_encoder.5}
  #allocation0 [shape = 'u32[]', space=smem, size = 0x4, offset = 0x4, fixed_abs, tag = 'smem constant byte address 0x4 - core index']
  #allocation1 [shape = 'u32[144,128]{1,0:T(1,128)}', space=vmem, size = 0x12000, scoped, tag = 'internal scratch']
  #allocation2 [shape = 'f32[2,128]{1,0:T(2,128)}', space=vmem, size = 0x400, scoped, tag = 'scratch operand']
  %s0 = inlined_call_operand.vmem [shape: bf16[2,1296,3], index: 0, kind: input, shape index: {}]
  %s1 = inlined_call_operand.vmem [shape: bf16[9,3,128], index: 1, kind: input, shape index: {}]
  %s2 = inlined_call_operand.vmem [shape: f32[1,128], index: 2, kind: input, shape index: {}]
  %s3 = inlined_call_operand.vmem [shape: f32[1,128], index: 3, kind: input, shape index: {}]
  %s4 = inlined_call_operand.vmem [shape: f32[1,128], index: 4, kind: input, shape index: {}]
  %s5 = inlined_call_operand.vmem [shape: f32[288,1], index: 5, kind: input, shape index: {}]
  %s6 = inlined_call_operand.vmem [shape: bf16[2,288,128], index: 6, kind: output, shape index: {}]
  %s7 = sld [smem:[#allocation0]]
  $region69: #{unet_encoder.5} parent=0
    _
  %s9 = ssub.s32 1, %s7
  %s10 = scalar_select 0, %s9, %s7
  loop: start=0, step=1, limit=6
  $region2: #{unet_encoder.5} parent=0 // loop_pre_header
    _
  $region3: #{unet_encoder.5} parent=0 // loop_header
    %s12 = sphi 0, %s16
    %p13 = scmp.ge.s32.totalorder %s12, 6
    %s19 = sphi 0, %s31
    %s20 = sphi 0, %s27
    %s21 = sphi 0, %s19
    %s22 = sphi 0, %s20
    %s23 = sphi 0, %s21
    %s24 = sphi 0, %s22
    %s34 = sphi 0, %s36
    %s37 = sphi 0, %s34
    %s38 = sphi 0, %s37
    %s54 = sphi 0, %s38
    %s58 = sphi 0, %s58
    %s60 = sphi 0, %s58
    %s61 = sphi 0, %s60
    %s75 = sphi 0, %s61
    %s79 = sphi 0, %s79
    %s81 = sphi 0, %s79
    %s82 = sphi 0, %s81
    %s96 = sphi 0, %s82
    %s100 = sphi 0, %s100
    %s102 = sphi 0, %s100
    %s103 = sphi 0, %s102
    %s117 = sphi 0, %s103
    %s121 = sphi 0, %s121
    %s123 = sphi 0, %s121
    %s124 = sphi 0, %s123
    %s138 = sphi 0, %s124
    %s142 = sphi 0, %s142
    %s144 = sphi 0, %s142
    %s145 = sphi 0, %s144
    %s159 = sphi 0, %s145
    %s167 = sphi 0, %s169
    %s170 = sphi 0, %s167
    %s171 = sphi 0, %s170
    %s187 = sphi 0, %s171
  $region4: #{unet_encoder.5} parent=0 // loop_header_branch
    %15 = sbr.rel (%p13) target = $region8
  $region5: #{unet_encoder.5} parent=0 // loop_body
    %s17 = ssub.s32 %s12, 1
    %s18 = ssub.s32 %s12, 2
    %s25 = sadd.s32 1, %s20
    %p26 = scmp.ge.s32.totalorder %s25, 2
    %s27 = scalar_select %p26, 0, %s25
    %s28 = sadd.s32 1, %s19
    %s29 = scalar_select %p26, %s28, %s19
    %p30 = scmp.ge.s32.totalorder %s29, 2
    %s31 = scalar_select %p30, 0, %s29
    %s32 = ssub.s32 %s20, %s27
    %p33 = scmp.eq.s32.totalorder %s32, 0
    %s35 = sadd.s32 %s34, 1
    %s36 = scalar_select %p33, %s34, %s35
    %p39 = pneg %p33
    %p40 = scmp.eq.s32.totalorder %s12, 3
    %p41 = por %p39, %p40
    %p42 = scmp.ne.s32.totalorder %s34, %s37
    %p43 = scmp.eq.s32.totalorder %s12, 0
    %p44 = por %p42, %p43
    %p45 = scmp.ne.s32.totalorder %s34, %s37
    %p46 = scmp.eq.s32.totalorder %s17, 3
    %p47 = por %p45, %p46
    %p48 = scmp.ne.s32.totalorder %s37, %s38
    %p49 = scmp.eq.s32.totalorder %s17, 0
    %p50 = por %p48, %p49
    %p51 = scmp.ne.s32.totalorder %s37, %s38
    %p52 = scmp.eq.s32.totalorder %s18, 3
    %p53 = por %p51, %p52
    %p55 = scmp.ne.s32.totalorder %s38, %s54
    %p56 = scmp.eq.s32.totalorder %s18, 0
    %p57 = por %p55, %p56
    %s59 = sadd.s32 %s58, 1
    %p62 = scmp.eq.s32.totalorder %s12, 3
    %p63 = scmp.ne.s32.totalorder %s58, %s60
    %p64 = scmp.eq.s32.totalorder %s12, 0
    %p65 = por %p63, %p64
    %p66 = scmp.ne.s32.totalorder %s58, %s60
    %p67 = scmp.eq.s32.totalorder %s17, 3
    %p68 = por %p66, %p67
    %p69 = scmp.ne.s32.totalorder %s60, %s61
    %p70 = scmp.eq.s32.totalorder %s17, 0
    %p71 = por %p69, %p70
    %p72 = scmp.ne.s32.totalorder %s60, %s61
    %p73 = scmp.eq.s32.totalorder %s18, 3
    %p74 = por %p72, %p73
    %p76 = scmp.ne.s32.totalorder %s61, %s75
    %p77 = scmp.eq.s32.totalorder %s18, 0
    %p78 = por %p76, %p77
    %s80 = sadd.s32 %s79, 1
    %p83 = scmp.eq.s32.totalorder %s12, 3
    %p84 = scmp.ne.s32.totalorder %s79, %s81
    %p85 = scmp.eq.s32.totalorder %s12, 0
    %p86 = por %p84, %p85
    %p87 = scmp.ne.s32.totalorder %s79, %s81
    %p88 = scmp.eq.s32.totalorder %s17, 3
    %p89 = por %p87, %p88
    %p90 = scmp.ne.s32.totalorder %s81, %s82
    %p91 = scmp.eq.s32.totalorder %s17, 0
    %p92 = por %p90, %p91
    %p93 = scmp.ne.s32.totalorder %s81, %s82
    %p94 = scmp.eq.s32.totalorder %s18, 3
    %p95 = por %p93, %p94
    %p97 = scmp.ne.s32.totalorder %s82, %s96
    %p98 = scmp.eq.s32.totalorder %s18, 0
    %p99 = por %p97, %p98
    %s101 = sadd.s32 %s100, 1
    %p104 = scmp.eq.s32.totalorder %s12, 3
    %p105 = scmp.ne.s32.totalorder %s100, %s102
    %p106 = scmp.eq.s32.totalorder %s12, 0
    %p107 = por %p105, %p106
    %p108 = scmp.ne.s32.totalorder %s100, %s102
    %p109 = scmp.eq.s32.totalorder %s17, 3
    %p110 = por %p108, %p109
    %p111 = scmp.ne.s32.totalorder %s102, %s103
    %p112 = scmp.eq.s32.totalorder %s17, 0
    %p113 = por %p111, %p112
    %p114 = scmp.ne.s32.totalorder %s102, %s103
    %p115 = scmp.eq.s32.totalorder %s18, 3
    %p116 = por %p114, %p115
    %p118 = scmp.ne.s32.totalorder %s103, %s117
    %p119 = scmp.eq.s32.totalorder %s18, 0
    %p120 = por %p118, %p119
    %s122 = sadd.s32 %s121, 1
    %p125 = scmp.eq.s32.totalorder %s12, 3
    %p126 = scmp.ne.s32.totalorder %s121, %s123
    %p127 = scmp.eq.s32.totalorder %s12, 0
    %p128 = por %p126, %p127
    %p129 = scmp.ne.s32.totalorder %s121, %s123
    %p130 = scmp.eq.s32.totalorder %s17, 3
    %p131 = por %p129, %p130
    %p132 = scmp.ne.s32.totalorder %s123, %s124
    %p133 = scmp.eq.s32.totalorder %s17, 0
    %p134 = por %p132, %p133
    %p135 = scmp.ne.s32.totalorder %s123, %s124
    %p136 = scmp.eq.s32.totalorder %s18, 3
    %p137 = por %p135, %p136
    %p139 = scmp.ne.s32.totalorder %s124, %s138
    %p140 = scmp.eq.s32.totalorder %s18, 0
    %p141 = por %p139, %p140
    %s143 = sadd.s32 %s142, 1
    %p146 = scmp.eq.s32.totalorder %s12, 3
    %p147 = scmp.ne.s32.totalorder %s142, %s144
    %p148 = scmp.eq.s32.totalorder %s12, 0
    %p149 = por %p147, %p148
    %p150 = scmp.ne.s32.totalorder %s142, %s144
    %p151 = scmp.eq.s32.totalorder %s17, 3
    %p152 = por %p150, %p151
    %p153 = scmp.ne.s32.totalorder %s144, %s145
    %p154 = scmp.eq.s32.totalorder %s17, 0
    %p155 = por %p153, %p154
    %p156 = scmp.ne.s32.totalorder %s144, %s145
    %p157 = scmp.eq.s32.totalorder %s18, 3
    %p158 = por %p156, %p157
    %p160 = scmp.ne.s32.totalorder %s145, %s159
    %p161 = scmp.eq.s32.totalorder %s18, 0
    %p162 = por %p160, %p161
    %s163 = smul.u32 %s20, %s19
    %s164 = smul.u32 %s27, %s31
    %s165 = ssub.s32 %s163, %s164
    %p166 = scmp.eq.s32.totalorder %s165, 0
    %s168 = sadd.s32 %s167, 1
    %s169 = scalar_select %p166, %s167, %s168
    %p172 = pneg %p166
    %p173 = scmp.eq.s32.totalorder %s12, 3
    %p174 = por %p172, %p173
    %p175 = scmp.ne.s32.totalorder %s167, %s170
    %p176 = scmp.eq.s32.totalorder %s12, 0
    %p177 = por %p175, %p176
    %p178 = scmp.ne.s32.totalorder %s167, %s170
    %p179 = scmp.eq.s32.totalorder %s17, 3
    %p180 = por %p178, %p179
    %p181 = scmp.ne.s32.totalorder %s170, %s171
    %p182 = scmp.eq.s32.totalorder %s17, 0
    %p183 = por %p181, %p182
    %p184 = scmp.ne.s32.totalorder %s170, %s171
    %p185 = scmp.eq.s32.totalorder %s18, 3
    %p186 = por %p184, %p185
    %p188 = scmp.ne.s32.totalorder %s171, %s187
    %p189 = scmp.eq.s32.totalorder %s18, 0
    %p190 = por %p188, %p189
    %p191 = scmp.le.s32.totalorder 1, %s12
    %p192 = scmp.lt.s32.totalorder %s12, 5
    %p193 = pnand %p191, %p192
    %p194 = pneg %p193
    // Predicated region
    $region9: #{unet_encoder.5} parent=5 // pred_check
      _
    $region10: #{unet_encoder.5} parent=5 // pred_check_branch
      %196 = sbr.rel (%p193) target = $region12
    $region11: #{unet_encoder.5} parent=5 // pred_region
      %s197 = ssub.s32 %s12, 1
      // Predicated region
      $region13: #{unet_encoder.5} parent=11 // pred_check
        %p198 = pneg %p71
      $region14: #{unet_encoder.5} parent=11 // pred_check_branch
        %200 = sbr.rel (%p198) target = $region16
      $region15: #{unet_encoder.5} parent=11 // pred_region
        _
      $region16: #{unet_encoder.5} parent=11 // pred_fallthru
        _
      // Predicated region
      $region17: #{unet_encoder.5} parent=11 // pred_check
        %p201 = pneg %p92
      $region18: #{unet_encoder.5} parent=11 // pred_check_branch
        %203 = sbr.rel (%p201) target = $region20
      $region19: #{unet_encoder.5} parent=11 // pred_region
        _
      $region20: #{unet_encoder.5} parent=11 // pred_fallthru
        _
      // Predicated region
      $region21: #{unet_encoder.5} parent=11 // pred_check
        %p204 = pneg %p113
      $region22: #{unet_encoder.5} parent=11 // pred_check_branch
        %206 = sbr.rel (%p204) target = $region24
      $region23: #{unet_encoder.5} parent=11 // pred_region
        _
      $region24: #{unet_encoder.5} parent=11 // pred_fallthru
        _
      // Predicated region
      $region25: #{unet_encoder.5} parent=11 // pred_check
        %p207 = pneg %p134
      $region26: #{unet_encoder.5} parent=11 // pred_check_branch
        %209 = sbr.rel (%p207) target = $region28
      $region27: #{unet_encoder.5} parent=11 // pred_region
        _
      $region28: #{unet_encoder.5} parent=11 // pred_fallthru
        _
      // Predicated region
      $region29: #{unet_encoder.5} parent=11 // pred_check
        %p210 = pneg %p155
      $region30: #{unet_encoder.5} parent=11 // pred_check_branch
        %212 = sbr.rel (%p210) target = $region32
      $region31: #{unet_encoder.5} parent=11 // pred_region
        _
      $region32: #{unet_encoder.5} parent=11 // pred_fallthru
        _
    $region12: #{unet_encoder.5} parent=5 // pred_fallthru
      _
    %p213 = scmp.lt.s32.totalorder %s12, 4
    // Predicated region
    $region33: #{unet_encoder.5} parent=5 // pred_check
      %p214 = pneg %p213
    $region34: #{unet_encoder.5} parent=5 // pred_check_branch
      %216 = sbr.rel (%p214) target = $region36
    $region35: #{unet_encoder.5} parent=5 // pred_region
      // Predicated region
      $region37: #{unet_encoder.5} parent=35 // pred_check
        %p217 = pneg %p44
      $region38: #{unet_encoder.5} parent=35 // pred_check_branch
        %219 = sbr.rel (%p217) target = $region40
      $region39: #{unet_encoder.5} parent=35 // pred_region
        %p220 = scmp.lt.s32.totalorder %s20, 1
        %s221 = scalar_select %p220, %s20, 1
        %s222 = smul.addr %s221, 162
        %s223 = smul.addr %s222, 4
        %s224 = scalar_lea.vmem %s0, %s223
      $region40: #{unet_encoder.5} parent=35 // pred_fallthru
        _
    $region36: #{unet_encoder.5} parent=5 // pred_fallthru
      _
    %p225 = scmp.le.s32.totalorder 1, %s12
    %p226 = scmp.lt.s32.totalorder %s12, 5
    %p227 = pnand %p225, %p226
    %p228 = pneg %p227
    // Predicated region
    $region41: #{unet_encoder.5} parent=5 // pred_check
      _
    $region42: #{unet_encoder.5} parent=5 // pred_check_branch
      %230 = sbr.rel (%p227) target = $region44
    $region43: #{unet_encoder.5} parent=5 // pred_region
      %s231 = ssub.s32 %s12, 1
      %p232 = scmp.lt.s32.totalorder %s22, 1
      %s233 = scalar_select %p232, %s22, 1
      %s234 = smul.addr %s233, 162
      %s235 = smul.addr %s234, 4
      %s236 = scalar_lea.vmem %s0, %s235
      %p237 = pneg %p50
      %p238 = pneg %p47
      %p239 = pneg %p71
      %p240 = pneg %p68
      %p241 = pneg %p92
      %p242 = pneg %p89
      %p243 = pneg %p113
      %p244 = pneg %p110
      %p245 = pneg %p134
      %p246 = pneg %p131
      %p247 = pneg %p155
      %p248 = pneg %p152
      %p249 = pneg %p183
      %p250 = pneg %p180
      %s251 = smul.u32 %s22, %s21
      %p252 = scmp.lt.s32.totalorder %s251, 1
      %s253 = scalar_select %p252, %s251, 1
      %s254 = smul.addr %s253, 36
      %s255 = smul.addr %s254, 4
      %s256 = scalar_lea.vmem %s6, %s255
      %p257 = scmp.lt.s32.totalorder %s22, 1
      %s258 = scalar_select %p257, %s22, 1
      %s259 = smul.addr %s258, 162
      %s260 = smul.addr %s259, 4
      %s261 = scalar_lea.vmem %s0, %s260
      %s262 = smul.u32 %s22, %s21
      %p263 = scmp.lt.s32.totalorder %s262, 1
      %s264 = scalar_select %p263, %s262, 1
      %s265 = smul.addr %s264, 36
      %s266 = smul.addr %s265, 4
      %s267 = scalar_lea.vmem %s6, %s266
      %s268 = smul.u32 %s22, %s21
      %v270 = vld [vmem:[%s261] sm:$0xf]
      %v271 = vld [vmem:[%s261 + $0x4] sm:$0xf]
      %v272 = vld [vmem:[%s261 + $0x8] sm:$0xf]
      %v273 = vld [vmem:[%s261 + $0xc] sm:$0xf]
      %v274 = vld [vmem:[%s261 + $0x10] sm:$0xf]
      %v275 = vld [vmem:[%s261 + $0x14] sm:$0xf]
      %v276 = vld [vmem:[%s261 + $0x18] sm:$0xf]
      %v277 = vld [vmem:[%s261 + $0x1c] sm:$0xf]
      %v278 = vld [vmem:[%s261 + $0x20] sm:$0xf]
      %v279 = vld [vmem:[%s261 + $0x24] sm:$0xf]
      %v280 = vld [vmem:[%s261 + $0x28] sm:$0xf]
      %v281 = vld [vmem:[%s261 + $0x2c] sm:$0xf]
      %v282 = vld [vmem:[%s261 + $0x30] sm:$0xf]
      %v283 = vld [vmem:[%s261 + $0x34] sm:$0xf]
      %v284 = vld [vmem:[%s261 + $0x38] sm:$0xf]
      %v285 = vld [vmem:[%s261 + $0x3c] sm:$0xf]
      %v286 = vld [vmem:[%s261 + $0x40] sm:$0xf]
      %v287 = vld [vmem:[%s261 + $0x44] sm:$0xf]
      %v288 = vld [vmem:[%s261 + $0x48] sm:$0xf]
      %v289 = vld [vmem:[%s261 + $0x4c] sm:$0xf]
      %v290 = vld [vmem:[%s261 + $0x50] sm:$0xf]
      %v291 = vld [vmem:[%s261 + $0x54] sm:$0xf]
      %v292 = vld [vmem:[%s261 + $0x58] sm:$0xf]
      %v293 = vld [vmem:[%s261 + $0x5c] sm:$0xf]
      %v294 = vld [vmem:[%s261 + $0x60] sm:$0xf]
      %v295 = vld [vmem:[%s261 + $0x64] sm:$0xf]
      %v296 = vld [vmem:[%s261 + $0x68] sm:$0xf]
      %v297 = vld [vmem:[%s261 + $0x6c] sm:$0xf]
      %v298 = vld [vmem:[%s261 + $0x70] sm:$0xf]
      %v299 = vld [vmem:[%s261 + $0x74] sm:$0xf]
      %v300 = vld [vmem:[%s261 + $0x78] sm:$0xf]
      %v301 = vld [vmem:[%s261 + $0x7c] sm:$0xf]
      %v302 = vld [vmem:[%s261 + $0x80] sm:$0xf]
      %v303 = vld [vmem:[%s261 + $0x84] sm:$0xf]
      %v304 = vld [vmem:[%s261 + $0x88] sm:$0xf]
      %v305 = vld [vmem:[%s261 + $0x8c] sm:$0xf]
      %v306 = vld [vmem:[%s1] sm:$0x3]
      %v307 = vld [vmem:[%s261 + $0xa0] sm:$0xc]
      %v308 = vld [vmem:[%s261 + $0xa4] sm:$0xf]
      %v309 = vld [vmem:[%s261 + $0xa8] sm:$0xf]
      %v310 = vld [vmem:[%s261 + $0xac] sm:$0xf]
      %v311 = vld [vmem:[%s261 + $0xb0] sm:$0xf]
      %v312 = vld [vmem:[%s261 + $0xb4] sm:$0xf]
      %v313 = vld [vmem:[%s261 + $0xb8] sm:$0xf]
      %v314 = vld [vmem:[%s261 + $0xbc] sm:$0xf]
      %v315 = vld [vmem:[%s261 + $0xc0] sm:$0xf]
      %v316 = vld [vmem:[%s261 + $0xc4] sm:$0xf]
      %v317 = vld [vmem:[%s261 + $0xc8] sm:$0xf]
      %v318 = vld [vmem:[%s261 + $0xcc] sm:$0xf]
      %v319 = vld [vmem:[%s261 + $0xd0] sm:$0xf]
      %v320 = vld [vmem:[%s261 + $0xd4] sm:$0xf]
      %v321 = vld [vmem:[%s261 + $0xd8] sm:$0xf]
      %v322 = vld [vmem:[%s261 + $0xdc] sm:$0xf]
      %v323 = vld [vmem:[%s261 + $0xe0] sm:$0xf]
      %v324 = vld [vmem:[%s261 + $0xe4] sm:$0xf]
      %v325 = vld [vmem:[%s261 + $0xe8] sm:$0xf]
      %v326 = vld [vmem:[%s261 + $0xec] sm:$0xf]
      %v327 = vld [vmem:[%s261 + $0xf0] sm:$0xf]
      %v328 = vld [vmem:[%s261 + $0xf4] sm:$0xf]
      %v329 = vld [vmem:[%s261 + $0xf8] sm:$0xf]
      %v330 = vld [vmem:[%s261 + $0xfc] sm:$0xf]
      %v331 = vld [vmem:[%s261 + $0x100] sm:$0xf]
      %v332 = vld [vmem:[%s261 + $0x104] sm:$0xf]
      %v333 = vld [vmem:[%s261 + $0x108] sm:$0xf]
      %v334 = vld [vmem:[%s261 + $0x10c] sm:$0xf]
      %v335 = vld [vmem:[%s261 + $0x110] sm:$0xf]
      %v336 = vld [vmem:[%s261 + $0x114] sm:$0xf]
      %v337 = vld [vmem:[%s261 + $0x118] sm:$0xf]
      %v338 = vld [vmem:[%s261 + $0x11c] sm:$0xf]
      %v339 = vld [vmem:[%s261 + $0x120] sm:$0xf]
      %v340 = vld [vmem:[%s261 + $0x124] sm:$0xf]
      %v341 = vld [vmem:[%s261 + $0x128] sm:$0xf]
      %v342 = vld [vmem:[%s261 + $0x12c] sm:$0xf]
      %v343 = vld [vmem:[%s261 + $0x130] sm:$0x3]
      %s344 = scalar_lea.vmem %s1, 2
      %v345 = vld [vmem:[%s344] sm:$0x3]
      %v383 = vunpack.c.l.b16 %v307
      %v384 = vunpack.c.l.b16 %v308
      %v385 = vunpack.c.l.b16 %v309
      %v386 = vunpack.c.l.b16 %v310
      %v387 = vunpack.c.l.b16 %v311
      %v388 = vunpack.c.l.b16 %v312
      %v389 = vunpack.c.l.b16 %v313
      %v390 = vunpack.c.l.b16 %v314
      %v391 = vunpack.c.l.b16 %v315
      %v392 = vunpack.c.l.b16 %v316
      %v393 = vunpack.c.l.b16 %v317
      %v394 = vunpack.c.l.b16 %v318
      %v395 = vunpack.c.l.b16 %v319
      %v396 = vunpack.c.l.b16 %v320
      %v397 = vunpack.c.l.b16 %v321
      %v398 = vunpack.c.l.b16 %v322
      %v399 = vunpack.c.l.b16 %v323
      %v400 = vunpack.c.l.b16 %v324
      %v401 = vunpack.c.l.b16 %v325
      %v402 = vunpack.c.l.b16 %v326
      %v403 = vunpack.c.l.b16 %v327
      %v404 = vunpack.c.l.b16 %v328
      %v405 = vunpack.c.l.b16 %v329
      %v406 = vunpack.c.l.b16 %v330
      %v407 = vunpack.c.l.b16 %v331
      %v408 = vunpack.c.l.b16 %v332
      %v409 = vunpack.c.l.b16 %v333
      %v410 = vunpack.c.l.b16 %v334
      %v411 = vunpack.c.l.b16 %v335
      %v412 = vunpack.c.l.b16 %v336
      %v413 = vunpack.c.l.b16 %v337
      %v414 = vunpack.c.l.b16 %v338
      %v415 = vunpack.c.l.b16 %v339
      %v416 = vunpack.c.l.b16 %v340
      %v417 = vunpack.c.l.b16 %v341
      %v418 = vunpack.c.l.b16 %v342
      %v419 = vunpack.c.l.b16 %v343
      %v420 = vpack.c.b16 %v384, %v383
      %v421 = vpack.c.b16 %v386, %v385
      %v422 = vpack.c.b16 %v388, %v387
      %v423 = vpack.c.b16 %v390, %v389
      %v424 = vpack.c.b16 %v392, %v391
      %v425 = vpack.c.b16 %v394, %v393
      %v426 = vpack.c.b16 %v396, %v395
      %v427 = vpack.c.b16 %v398, %v397
      %v428 = vpack.c.b16 %v400, %v399
      %v429 = vpack.c.b16 %v402, %v401
      %v430 = vpack.c.b16 %v404, %v403
      %v431 = vpack.c.b16 %v406, %v405
      %v432 = vpack.c.b16 %v408, %v407
      %v433 = vpack.c.b16 %v410, %v409
      %v434 = vpack.c.b16 %v412, %v411
      %v435 = vpack.c.b16 %v414, %v413
      %v436 = vpack.c.b16 %v416, %v415
      %v437 = vpack.c.b16 %v418, %v417
      %v438 = vpack.c.b16 %v419, %v419
      %vm439 = vcmask 1045504
      %v440 = vrot.slane %v420, 2
      %v441 = vrot.slane %v421, 2
      %v442 = vsel %vm439, %v440, %v441
      %v443 = vrot.slane %v422, 2
      %v444 = vsel %vm439, %v441, %v443
      %v445 = vrot.slane %v423, 2
      %v446 = vsel %vm439, %v443, %v445
      %v447 = vrot.slane %v424, 2
      %v448 = vsel %vm439, %v445, %v447
      %v449 = vrot.slane %v425, 2
      %v450 = vsel %vm439, %v447, %v449
      %v451 = vrot.slane %v426, 2
      %v452 = vsel %vm439, %v449, %v451
      %v453 = vrot.slane %v427, 2
      %v454 = vsel %vm439, %v451, %v453
      %v455 = vrot.slane %v428, 2
      %v456 = vsel %vm439, %v453, %v455
      %v457 = vrot.slane %v429, 2
      %v458 = vsel %vm439, %v455, %v457
      %v459 = vrot.slane %v430, 2
      %v460 = vsel %vm439, %v457, %v459
      %v461 = vrot.slane %v431, 2
      %v462 = vsel %vm439, %v459, %v461
      %v463 = vrot.slane %v432, 2
      %v464 = vsel %vm439, %v461, %v463
      %v465 = vrot.slane %v433, 2
      %v466 = vsel %vm439, %v463, %v465
      %v467 = vrot.slane %v434, 2
      %v468 = vsel %vm439, %v465, %v467
      %v469 = vrot.slane %v435, 2
      %v470 = vsel %vm439, %v467, %v469
      %v471 = vrot.slane %v436, 2
      %v472 = vsel %vm439, %v469, %v471
      %v473 = vrot.slane %v437, 2
      %v474 = vsel %vm439, %v471, %v473
      %v475 = vrot.slane %v438, 2
      %v476 = vsel %vm439, %v473, %v475
      %vm477 = vcmask 23552
      %v479 = vsel %vm477, %v442, 0
      %v482 = vsel %vm477, %v444, 0
      %v485 = vsel %vm477, %v446, 0
      %v488 = vsel %vm477, %v448, 0
      %v491 = vsel %vm477, %v450, 0
      %v494 = vsel %vm477, %v452, 0
      %v497 = vsel %vm477, %v454, 0
      %v500 = vsel %vm477, %v456, 0
      %v503 = vsel %vm477, %v458, 0
      %v506 = vsel %vm477, %v460, 0
      %v509 = vsel %vm477, %v462, 0
      %v512 = vsel %vm477, %v464, 0
      %v515 = vsel %vm477, %v466, 0
      %v518 = vsel %vm477, %v468, 0
      %v521 = vsel %vm477, %v470, 0
      %v524 = vsel %vm477, %v472, 0
      %v527 = vsel %vm477, %v474, 0
      %v530 = vsel %vm477, %v476, 0
      %vm532 = vcmask 1040384
      %vm533 = vcmask 1041408
      %v534 = vsel %vm532, 4294967295, 65535
      %v535 = vsel %vm533, %v534, 0
      %v537 = vand.u32 %v345, %v535
      %539 = vmatprep.subr.bf16.mxu0 0
      %540 = vmatpush1.bf16.msra.mxu0 %v537
      %541 = vmatprep.subr.bf16.mxu0 0
      %542 = vmatpush1.bf16.msra.mxu0 0
      %543 = vmatprep.subr.bf16.mxu0 0
      %544 = vmatpush1.bf16.msra.mxu0 0
      %545 = vmatprep.subr.bf16.mxu0 0
      %546 = vmatpush1.bf16.msra.mxu0 0
      %547 = vmatprep.subr.bf16.mxu0 0
      %548 = vmatpush1.bf16.msra.mxu0 0
      %549 = vmatprep.subr.bf16.mxu0 0
      %550 = vmatpush1.bf16.msra.mxu0 0
      %551 = vmatprep.subr.bf16.mxu0 0
      %552 = vmatpush1.bf16.msra.mxu0 0
      %553 = vmatprep.subr.bf16.mxu0 0
      %554 = vmatpush1.bf16.msra.mxu0 0
      %555 = vmatprep.subr.bf16.mxu0 0
      %556 = vmatpush1.bf16.msra.mxu0 0
      %557 = vmatprep.subr.bf16.mxu0 0
      %558 = vmatpush1.bf16.msra.mxu0 0
      %559 = vmatprep.subr.bf16.mxu0 0
      %560 = vmatpush1.bf16.msra.mxu0 0
      %561 = vmatprep.subr.bf16.mxu0 0
      %562 = vmatpush1.bf16.msra.mxu0 0
      %563 = vmatprep.subr.bf16.mxu0 0
      %564 = vmatpush1.bf16.msra.mxu0 0
      %565 = vmatprep.subr.bf16.mxu0 0
      %566 = vmatpush1.bf16.msra.mxu0 0
      %567 = vmatprep.subr.bf16.mxu0 0
      %568 = vmatpush1.bf16.msra.mxu0 0
      %569 = vmatprep.subr.bf16.mxu0 0
      %570 = vmatpush1.bf16.msra.mxu0 0
      %571 = vmatprep.mubr.bf16.mxu0 0
      %572 = vmatmul.mubr.bf16.gmra.mrb[0].mxu0 %v479
      %v573 = vpop.f32.mrb[0].mxu0
      %v574 = vadd.f32 0.0, %v573
      %v575 = vpop.f32.mrb[0].mxu0
      %v576 = vpop.f32.mrb[0].mxu0
      %v577 = vadd.f32 0.0, %v576
      %v578 = vpop.f32.mrb[0].mxu0
      %579 = vmatprep.mubr.bf16.mxu0 0
      %580 = vmatmul.mubr.bf16.gmra.mrb[0].mxu0 %v482
      %v581 = vpop.f32.mrb[0].mxu0
      %v582 = vadd.f32 0.0, %v581
      %v583 = vpop.f32.mrb[0].mxu0
      %v584 = vpop.f32.mrb[0].mxu0
      %v585 = vadd.f32 0.0, %v584
      %v586 = vpop.f32.mrb[0].mxu0
      %587 = vmatprep.mubr.bf16.mxu0 0
      %588 = vmatmul.mubr.bf16.gmra.mrb[0].mxu0 %v485
      %v589 = vpop.f32.mrb[0].mxu0
      %v590 = vadd.f32 0.0, %v589
      %v591 = vpop.f32.mrb[0].mxu0
      %v592 = vpop.f32.mrb[0].mxu0
      %v593 = vadd.f32 0.0, %v592
      %v594 = vpop.f32.mrb[0].mxu0
      %595 = vmatprep.mubr.bf16.mxu0 0
      %596 = vmatmul.mubr.bf16.gmra.mrb[0].mxu0 %v488
      %v597 = vpop.f32.mrb[0].mxu0
      %v598 = vadd.f32 0.0, %v597
      %v599 = vpop.f32.mrb[0].mxu0
      %v600 = vpop.f32.mrb[0].mxu0
      %v601 = vadd.f32 0.0, %v600
      %v602 = vpop.f32.mrb[0].mxu0
      %603 = vmatprep.mubr.bf16.mxu0 0
      %604 = vmatmul.mubr.bf16.gmra.mrb[0].mxu0 %v491
      %v605 = vpop.f32.mrb[0].mxu0
      %v606 = vadd.f32 0.0, %v605
      %v607 = vpop.f32.mrb[0].mxu0
      %v608 = vpop.f32.mrb[0].mxu0
      %v609 = vadd.f32 0.0, %v608
      %v610 = vpop.f32.mrb[0].mxu0
      %611 = vmatprep.mubr.bf16.mxu0 0
      %612 = vmatmul.mubr.bf16.gmra.mrb[0].mxu0 %v494
      %v613 = vpop.f32.mrb[0].mxu0
      %v614 = vadd.f32 0.0, %v613
      %v615 = vpop.f32.mrb[0].mxu0
      %v616 = vpop.f32.mrb[0].mxu0
      %v617 = vadd.f32 0.0, %v616
      %v618 = vpop.f32.mrb[0].mxu0
      %619 = vmatprep.mubr.bf16.mxu0 0
      %620 = vmatmul.mubr.bf16.gmra.mrb[0].mxu0 %v497
      %v621 = vpop.f32.mrb[0].mxu0
      %v622 = vadd.f32 0.0, %v621
      %v623 = vpop.f32.mrb[0].mxu0
      %v624 = vpop.f32.mrb[0].mxu0
      %v625 = vadd.f32 0.0, %v624
      %v626 = vpop.f32.mrb[0].mxu0
      %627 = vmatprep.mubr.bf16.mxu0 0
      %628 = vmatmul.mubr.bf16.gmra.mrb[0].mxu0 %v500
      %v629 = vpop.f32.mrb[0].mxu0
      %v630 = vadd.f32 0.0, %v629
      %v631 = vpop.f32.mrb[0].mxu0
      %v632 = vpop.f32.mrb[0].mxu0
      %v633 = vadd.f32 0.0, %v632
      %v634 = vpop.f32.mrb[0].mxu0
      %635 = vmatprep.mubr.bf16.mxu0 0
      %636 = vmatmul.mubr.bf16.gmra.mrb[0].mxu0 %v503
      %v637 = vpop.f32.mrb[0].mxu0
      %v638 = vadd.f32 0.0, %v637
      %v639 = vpop.f32.mrb[0].mxu0
      %v640 = vpop.f32.mrb[0].mxu0
      %v641 = vadd.f32 0.0, %v640
      %v642 = vpop.f32.mrb[0].mxu0
      %643 = vmatprep.mubr.bf16.mxu0 0
      %644 = vmatmul.mubr.bf16.gmra.mrb[0].mxu0 %v506
      %v645 = vpop.f32.mrb[0].mxu0
      %v646 = vadd.f32 0.0, %v645
      %v647 = vpop.f32.mrb[0].mxu0
      %v648 = vpop.f32.mrb[0].mxu0
      %v649 = vadd.f32 0.0, %v648
      %v650 = vpop.f32.mrb[0].mxu0
      %651 = vmatprep.mubr.bf16.mxu0 0
      %652 = vmatmul.mubr.bf16.gmra.mrb[0].mxu0 %v509
      %v653 = vpop.f32.mrb[0].mxu0
      %v654 = vadd.f32 0.0, %v653
      %v655 = vpop.f32.mrb[0].mxu0
      %v656 = vpop.f32.mrb[0].mxu0
      %v657 = vadd.f32 0.0, %v656
      %v658 = vpop.f32.mrb[0].mxu0
      %659 = vmatprep.mubr.bf16.mxu0 0
      %660 = vmatmul.mubr.bf16.gmra.mrb[0].mxu0 %v512
      %v661 = vpop.f32.mrb[0].mxu0
      %v662 = vadd.f32 0.0, %v661
      %v663 = vpop.f32.mrb[0].mxu0
      %v664 = vpop.f32.mrb[0].mxu0
      %v665 = vadd.f32 0.0, %v664
      %v666 = vpop.f32.mrb[0].mxu0
      %667 = vmatprep.mubr.bf16.mxu0 0
      %668 = vmatmul.mubr.bf16.gmra.mrb[0].mxu0 %v515
      %v669 = vpop.f32.mrb[0].mxu0
      %v670 = vadd.f32 0.0, %v669
      %v671 = vpop.f32.mrb[0].mxu0
      %v672 = vpop.f32.mrb[0].mxu0
      %v673 = vadd.f32 0.0, %v672
      %v674 = vpop.f32.mrb[0].mxu0
      %675 = vmatprep.mubr.bf16.mxu0 0
      %676 = vmatmul.mubr.bf16.gmra.mrb[0].mxu0 %v518
      %v677 = vpop.f32.mrb[0].mxu0
      %v678 = vadd.f32 0.0, %v677
      %v679 = vpop.f32.mrb[0].mxu0
      %v680 = vpop.f32.mrb[0].mxu0
      %v681 = vadd.f32 0.0, %v680
      %v682 = vpop.f32.mrb[0].mxu0
      %683 = vmatprep.mubr.bf16.mxu0 0
      %684 = vmatmul.mubr.bf16.gmra.mrb[0].mxu0 %v521
      %v685 = vpop.f32.mrb[0].mxu0
      %v686 = vadd.f32 0.0, %v685
      %v687 = vpop.f32.mrb[0].mxu0
      %v688 = vpop.f32.mrb[0].mxu0
      %v689 = vadd.f32 0.0, %v688
      %v690 = vpop.f32.mrb[0].mxu0
      %691 = vmatprep.mubr.bf16.mxu0 0
      %692 = vmatmul.mubr.bf16.gmra.mrb[0].mxu0 %v524
      %v693 = vpop.f32.mrb[0].mxu0
      %v694 = vadd.f32 0.0, %v693
      %v695 = vpop.f32.mrb[0].mxu0
      %v696 = vpop.f32.mrb[0].mxu0
      %v697 = vadd.f32 0.0, %v696
      %v698 = vpop.f32.mrb[0].mxu0
      %699 = vmatprep.mubr.bf16.mxu0 0
      %700 = vmatmul.mubr.bf16.gmra.mrb[0].mxu0 %v527
      %v701 = vpop.f32.mrb[0].mxu0
      %v702 = vadd.f32 0.0, %v701
      %v703 = vpop.f32.mrb[0].mxu0
      %v704 = vpop.f32.mrb[0].mxu0
      %v705 = vadd.f32 0.0, %v704
      %v706 = vpop.f32.mrb[0].mxu0
      %707 = vmatprep.mubr.bf16.mxu0 0
      %708 = vmatmul.mubr.bf16.gmra.mrb[0].mxu0 %v530
      %v709 = vpop.f32.mrb[0].mxu0
      %v710 = vadd.f32 0.0, %v709
      %v711 = vpop.f32.mrb[0].mxu0
      %v712 = vpop.f32.mrb[0].mxu0
      %v713 = vadd.f32 0.0, %v712
      %v714 = vpop.f32.mrb[0].mxu0
      %715 = vdwg.mxu0
      %v752 = vunpack.c.l.b16 %v270
      %v753 = vunpack.c.l.b16 %v271
      %v754 = vunpack.c.l.b16 %v272
      %v755 = vunpack.c.l.b16 %v273
      %v756 = vunpack.c.l.b16 %v274
      %v757 = vunpack.c.l.b16 %v275
      %v758 = vunpack.c.l.b16 %v276
      %v759 = vunpack.c.l.b16 %v277
      %v760 = vunpack.c.l.b16 %v278
      %v761 = vunpack.c.l.b16 %v279
      %v762 = vunpack.c.l.b16 %v280
      %v763 = vunpack.c.l.b16 %v281
      %v764 = vunpack.c.l.b16 %v282
      %v765 = vunpack.c.l.b16 %v283
      %v766 = vunpack.c.l.b16 %v284
      %v767 = vunpack.c.l.b16 %v285
      %v768 = vunpack.c.l.b16 %v286
      %v769 = vunpack.c.l.b16 %v287
      %v770 = vunpack.c.l.b16 %v288
      %v771 = vunpack.c.l.b16 %v289
      %v772 = vunpack.c.l.b16 %v290
      %v773 = vunpack.c.l.b16 %v291
      %v774 = vunpack.c.l.b16 %v292
      %v775 = vunpack.c.l.b16 %v293
      %v776 = vunpack.c.l.b16 %v294
      %v777 = vunpack.c.l.b16 %v295
      %v778 = vunpack.c.l.b16 %v296
      %v779 = vunpack.c.l.b16 %v297
      %v780 = vunpack.c.l.b16 %v298
      %v781 = vunpack.c.l.b16 %v299
      %v782 = vunpack.c.l.b16 %v300
      %v783 = vunpack.c.l.b16 %v301
      %v784 = vunpack.c.l.b16 %v302
      %v785 = vunpack.c.l.b16 %v303
      %v786 = vunpack.c.l.b16 %v304
      %v787 = vunpack.c.l.b16 %v305
      %v788 = vpack.c.b16 %v753, %v752
      %v789 = vpack.c.b16 %v755, %v754
      %v790 = vpack.c.b16 %v757, %v756
      %v791 = vpack.c.b16 %v759, %v758
      %v792 = vpack.c.b16 %v761, %v760
      %v793 = vpack.c.b16 %v763, %v762
      %v794 = vpack.c.b16 %v765, %v764
      %v795 = vpack.c.b16 %v767, %v766
      %v796 = vpack.c.b16 %v769, %v768
      %v797 = vpack.c.b16 %v771, %v770
      %v798 = vpack.c.b16 %v773, %v772
      %v799 = vpack.c.b16 %v775, %v774
      %v800 = vpack.c.b16 %v777, %v776
      %v801 = vpack.c.b16 %v779, %v778
      %v802 = vpack.c.b16 %v781, %v780
      %v803 = vpack.c.b16 %v783, %v782
      %v804 = vpack.c.b16 %v785, %v784
      %v805 = vpack.c.b16 %v787, %v786
      %v807 = vsel %vm477, %v788, 0
      %v810 = vsel %vm477, %v789, 0
      %v813 = vsel %vm477, %v790, 0
      %v816 = vsel %vm477, %v791, 0
      %v819 = vsel %vm477, %v792, 0
      %v822 = vsel %vm477, %v793, 0
      %v825 = vsel %vm477, %v794, 0
      %v828 = vsel %vm477, %v795, 0
      %v831 = vsel %vm477, %v796, 0
      %v834 = vsel %vm477, %v797, 0
      %v837 = vsel %vm477, %v798, 0
      %v840 = vsel %vm477, %v799, 0
      %v843 = vsel %vm477, %v800, 0
      %v846 = vsel %vm477, %v801, 0
      %v849 = vsel %vm477, %v802, 0
      %v852 = vsel %vm477, %v803, 0
      %v855 = vsel %vm477, %v804, 0
      %v858 = vsel %vm477, %v805, 0
      %v861 = vand.u32 %v306, %v535
      %863 = vmatprep.subr.bf16.mxu0 0
      %864 = vmatpush1.bf16.msra.mxu0 %v861
      %865 = vmatprep.subr.bf16.mxu0 0
      %866 = vmatpush1.bf16.msra.mxu0 0
      %867 = vmatprep.subr.bf16.mxu0 0
      %868 = vmatpush1.bf16.msra.mxu0 0
      %869 = vmatprep.subr.bf16.mxu0 0
      %870 = vmatpush1.bf16.msra.mxu0 0
      %871 = vmatprep.subr.bf16.mxu0 0
      %872 = vmatpush1.bf16.msra.mxu0 0
      %873 = vmatprep.subr.bf16.mxu0 0
      %874 = vmatpush1.bf16.msra.mxu0 0
      %875 = vmatprep.subr.bf16.mxu0 0
      %876 = vmatpush1.bf16.msra.mxu0 0
      %877 = vmatprep.subr.bf16.mxu0 0
      %878 = vmatpush1.bf16.msra.mxu0 0
      %879 = vmatprep.subr.bf16.mxu0 0
      %880 = vmatpush1.bf16.msra.mxu0 0
      %881 = vmatprep.subr.bf16.mxu0 0
      %882 = vmatpush1.bf16.msra.mxu0 0
      %883 = vmatprep.subr.bf16.mxu0 0
      %884 = vmatpush1.bf16.msra.mxu0 0
      %885 = vmatprep.subr.bf16.mxu0 0
      %886 = vmatpush1.bf16.msra.mxu0 0
      %887 = vmatprep.subr.bf16.mxu0 0
      %888 = vmatpush1.bf16.msra.mxu0 0
      %889 = vmatprep.subr.bf16.mxu0 0
      %890 = vmatpush1.bf16.msra.mxu0 0
      %891 = vmatprep.subr.bf16.mxu0 0
      %892 = vmatpush1.bf16.msra.mxu0 0
      %893 = vmatprep.subr.bf16.mxu0 0
      %894 = vmatpush1.bf16.msra.mxu0 0
      %895 = vmatprep.mubr.bf16.mxu0 0
      %896 = vmatmul.mubr.bf16.gmra.mrb[0].mxu0 %v807
      %v897 = vpop.f32.mrb[0].mxu0
      %v898 = vadd.f32 %v574, %v897
      %v899 = vpop.f32.mrb[0].mxu0
      %v900 = vpop.f32.mrb[0].mxu0
      %v901 = vadd.f32 %v577, %v900
      %v902 = vpop.f32.mrb[0].mxu0
      %903 = vmatprep.mubr.bf16.mxu0 0
      %904 = vmatmul.mubr.bf16.gmra.mrb[0].mxu0 %v810
      %v905 = vpop.f32.mrb[0].mxu0
      %v906 = vadd.f32 %v582, %v905
      %v907 = vpop.f32.mrb[0].mxu0
      %v908 = vpop.f32.mrb[0].mxu0
      %v909 = vadd.f32 %v585, %v908
      %v910 = vpop.f32.mrb[0].mxu0
      %911 = vmatprep.mubr.bf16.mxu0 0
      %912 = vmatmul.mubr.bf16.gmra.mrb[0].mxu0 %v813
      %v913 = vpop.f32.mrb[0].mxu0
      %v914 = vadd.f32 %v590, %v913
      %v915 = vpop.f32.mrb[0].mxu0
      %v916 = vpop.f32.mrb[0].mxu0
      %v917 = vadd.f32 %v593, %v916
      %v918 = vpop.f32.mrb[0].mxu0
      %919 = vmatprep.mubr.bf16.mxu0 0
      %920 = vmatmul.mubr.bf16.gmra.mrb[0].mxu0 %v816
      %v921 = vpop.f32.mrb[0].mxu0
      %v922 = vadd.f32 %v598, %v921
      %v923 = vpop.f32.mrb[0].mxu0
      %v924 = vpop.f32.mrb[0].mxu0
      %v925 = vadd.f32 %v601, %v924
      %v926 = vpop.f32.mrb[0].mxu0
      %927 = vmatprep.mubr.bf16.mxu0 0
      %928 = vmatmul.mubr.bf16.gmra.mrb[0].mxu0 %v819
      %v929 = vpop.f32.mrb[0].mxu0
      %v930 = vadd.f32 %v606, %v929
      %v931 = vpop.f32.mrb[0].mxu0
      %v932 = vpop.f32.mrb[0].mxu0
      %v933 = vadd.f32 %v609, %v932
      %v934 = vpop.f32.mrb[0].mxu0
      %935 = vmatprep.mubr.bf16.mxu0 0
      %936 = vmatmul.mubr.bf16.gmra.mrb[0].mxu0 %v822
      %v937 = vpop.f32.mrb[0].mxu0
      %v938 = vadd.f32 %v614, %v937
      %v939 = vpop.f32.mrb[0].mxu0
      %v940 = vpop.f32.mrb[0].mxu0
      %v941 = vadd.f32 %v617, %v940
      %v942 = vpop.f32.mrb[0].mxu0
      %943 = vmatprep.mubr.bf16.mxu0 0
      %944 = vmatmul.mubr.bf16.gmra.mrb[0].mxu0 %v825
      %v945 = vpop.f32.mrb[0].mxu0
      %v946 = vadd.f32 %v622, %v945
      %v947 = vpop.f32.mrb[0].mxu0
      %v948 = vpop.f32.mrb[0].mxu0
      %v949 = vadd.f32 %v625, %v948
      %v950 = vpop.f32.mrb[0].mxu0
      %951 = vmatprep.mubr.bf16.mxu0 0
      %952 = vmatmul.mubr.bf16.gmra.mrb[0].mxu0 %v828
      %v953 = vpop.f32.mrb[0].mxu0
      %v954 = vadd.f32 %v630, %v953
      %v955 = vpop.f32.mrb[0].mxu0
      %v956 = vpop.f32.mrb[0].mxu0
      %v957 = vadd.f32 %v633, %v956
      %v958 = vpop.f32.mrb[0].mxu0
      %959 = vmatprep.mubr.bf16.mxu0 0
      %960 = vmatmul.mubr.bf16.gmra.mrb[0].mxu0 %v831
      %v961 = vpop.f32.mrb[0].mxu0
      %v962 = vadd.f32 %v638, %v961
      %v963 = vpop.f32.mrb[0].mxu0
      %v964 = vpop.f32.mrb[0].mxu0
      %v965 = vadd.f32 %v641, %v964
      %v966 = vpop.f32.mrb[0].mxu0
      %967 = vmatprep.mubr.bf16.mxu0 0
      %968 = vmatmul.mubr.bf16.gmra.mrb[0].mxu0 %v834
      %v969 = vpop.f32.mrb[0].mxu0
      %v970 = vadd.f32 %v646, %v969
      %v971 = vpop.f32.mrb[0].mxu0
      %v972 = vpop.f32.mrb[0].mxu0
      %v973 = vadd.f32 %v649, %v972
      %v974 = vpop.f32.mrb[0].mxu0
      %975 = vmatprep.mubr.bf16.mxu0 0
      %976 = vmatmul.mubr.bf16.gmra.mrb[0].mxu0 %v837
      %v977 = vpop.f32.mrb[0].mxu0
      %v978 = vadd.f32 %v654, %v977
      %v979 = vpop.f32.mrb[0].mxu0
      %v980 = vpop.f32.mrb[0].mxu0
      %v981 = vadd.f32 %v657, %v980
      %v982 = vpop.f32.mrb[0].mxu0
      %983 = vmatprep.mubr.bf16.mxu0 0
      %984 = vmatmul.mubr.bf16.gmra.mrb[0].mxu0 %v840
      %v985 = vpop.f32.mrb[0].mxu0
      %v986 = vadd.f32 %v662, %v985
      %v987 = vpop.f32.mrb[0].mxu0
      %v988 = vpop.f32.mrb[0].mxu0
      %v989 = vadd.f32 %v665, %v988
      %v990 = vpop.f32.mrb[0].mxu0
      %991 = vmatprep.mubr.bf16.mxu0 0
      %992 = vmatmul.mubr.bf16.gmra.mrb[0].mxu0 %v843
      %v993 = vpop.f32.mrb[0].mxu0
      %v994 = vadd.f32 %v670, %v993
      %v995 = vpop.f32.mrb[0].mxu0
      %v996 = vpop.f32.mrb[0].mxu0
      %v997 = vadd.f32 %v673, %v996
      %v998 = vpop.f32.mrb[0].mxu0
      %999 = vmatprep.mubr.bf16.mxu0 0
      %1000 = vmatmul.mubr.bf16.gmra.mrb[0].mxu0 %v846
      %v1001 = vpop.f32.mrb[0].mxu0
      %v1002 = vadd.f32 %v678, %v1001
      %v1003 = vpop.f32.mrb[0].mxu0
      %v1004 = vpop.f32.mrb[0].mxu0
      %v1005 = vadd.f32 %v681, %v1004
      %v1006 = vpop.f32.mrb[0].mxu0
      %1007 = vmatprep.mubr.bf16.mxu0 0
      %1008 = vmatmul.mubr.bf16.gmra.mrb[0].mxu0 %v849
      %v1009 = vpop.f32.mrb[0].mxu0
      %v1010 = vadd.f32 %v686, %v1009
      %v1011 = vpop.f32.mrb[0].mxu0
      %v1012 = vpop.f32.mrb[0].mxu0
      %v1013 = vadd.f32 %v689, %v1012
      %v1014 = vpop.f32.mrb[0].mxu0
      %1015 = vmatprep.mubr.bf16.mxu0 0
      %1016 = vmatmul.mubr.bf16.gmra.mrb[0].mxu0 %v852
      %v1017 = vpop.f32.mrb[0].mxu0
      %v1018 = vadd.f32 %v694, %v1017
      %v1019 = vpop.f32.mrb[0].mxu0
      %v1020 = vpop.f32.mrb[0].mxu0
      %v1021 = vadd.f32 %v697, %v1020
      %v1022 = vpop.f32.mrb[0].mxu0
      %1023 = vmatprep.mubr.bf16.mxu0 0
      %1024 = vmatmul.mubr.bf16.gmra.mrb[0].mxu0 %v855
      %v1025 = vpop.f32.mrb[0].mxu0
      %v1026 = vadd.f32 %v702, %v1025
      %v1027 = vpop.f32.mrb[0].mxu0
      %v1028 = vpop.f32.mrb[0].mxu0
      %v1029 = vadd.f32 %v705, %v1028
      %v1030 = vpop.f32.mrb[0].mxu0
      %1031 = vmatprep.mubr.bf16.mxu0 0
      %1032 = vmatmul.mubr.bf16.gmra.mrb[0].mxu0 %v858
      %v1033 = vpop.f32.mrb[0].mxu0
      %v1034 = vadd.f32 %v710, %v1033
      %v1035 = vpop.f32.mrb[0].mxu0
      %v1036 = vpop.f32.mrb[0].mxu0
      %v1037 = vadd.f32 %v713, %v1036
      %v1038 = vpop.f32.mrb[0].mxu0
      %1039 = vdwg.mxu0
      %v1040 = vld [vmem:[%s261] sm:$0xf]
      %v1041 = vld [vmem:[%s261 + $0x4] sm:$0xf]
      %v1042 = vld [vmem:[%s261 + $0x8] sm:$0xf]
      %v1043 = vld [vmem:[%s261 + $0xc] sm:$0xf]
      %v1044 = vld [vmem:[%s261 + $0x10] sm:$0xf]
      %v1045 = vld [vmem:[%s261 + $0x14] sm:$0xf]
      %v1046 = vld [vmem:[%s261 + $0x18] sm:$0xf]
      %v1047 = vld [vmem:[%s261 + $0x1c] sm:$0xf]
      %v1048 = vld [vmem:[%s261 + $0x20] sm:$0xf]
      %v1049 = vld [vmem:[%s261 + $0x24] sm:$0xf]
      %v1050 = vld [vmem:[%s261 + $0x28] sm:$0xf]
      %v1051 = vld [vmem:[%s261 + $0x2c] sm:$0xf]
      %v1052 = vld [vmem:[%s261 + $0x30] sm:$0xf]
      %v1053 = vld [vmem:[%s261 + $0x34] sm:$0xf]
      %v1054 = vld [vmem:[%s261 + $0x38] sm:$0xf]
      %v1055 = vld [vmem:[%s261 + $0x3c] sm:$0xf]
      %v1056 = vld [vmem:[%s261 + $0x40] sm:$0xf]
      %v1057 = vld [vmem:[%s261 + $0x44] sm:$0xf]
      %v1058 = vld [vmem:[%s261 + $0x48] sm:$0xf]
      %v1059 = vld [vmem:[%s261 + $0x4c] sm:$0xf]
      %v1060 = vld [vmem:[%s261 + $0x50] sm:$0xf]
      %v1061 = vld [vmem:[%s261 + $0x54] sm:$0xf]
      %v1062 = vld [vmem:[%s261 + $0x58] sm:$0xf]
      %v1063 = vld [vmem:[%s261 + $0x5c] sm:$0xf]
      %v1064 = vld [vmem:[%s261 + $0x60] sm:$0xf]
      %v1065 = vld [vmem:[%s261 + $0x64] sm:$0xf]
      %v1066 = vld [vmem:[%s261 + $0x68] sm:$0xf]
      %v1067 = vld [vmem:[%s261 + $0x6c] sm:$0xf]
      %v1068 = vld [vmem:[%s261 + $0x70] sm:$0xf]
      %v1069 = vld [vmem:[%s261 + $0x74] sm:$0xf]
      %v1070 = vld [vmem:[%s261 + $0x78] sm:$0xf]
      %v1071 = vld [vmem:[%s261 + $0x7c] sm:$0xf]
      %v1072 = vld [vmem:[%s261 + $0x80] sm:$0xf]
      %v1073 = vld [vmem:[%s261 + $0x84] sm:$0xf]
      %v1074 = vld [vmem:[%s261 + $0x88] sm:$0xf]
      %v1075 = vld [vmem:[%s261 + $0x8c] sm:$0xf]
      %v1076 = vld [vmem:[%s261 + $0x90] sm:$0x1]
      %s1077 = scalar_lea.vmem %s1, 4
      %v1078 = vld [vmem:[%s1077] sm:$0x3]
      %v1116 = vunpack.c.l.b16 %v1040
      %v1117 = vunpack.c.l.b16 %v1041
      %v1118 = vunpack.c.l.b16 %v1042
      %v1119 = vunpack.c.l.b16 %v1043
      %v1120 = vunpack.c.l.b16 %v1044
      %v1121 = vunpack.c.l.b16 %v1045
      %v1122 = vunpack.c.l.b16 %v1046
      %v1123 = vunpack.c.l.b16 %v1047
      %v1124 = vunpack.c.l.b16 %v1048
      %v1125 = vunpack.c.l.b16 %v1049
      %v1126 = vunpack.c.l.b16 %v1050
      %v1127 = vunpack.c.l.b16 %v1051
      %v1128 = vunpack.c.l.b16 %v1052
      %v1129 = vunpack.c.l.b16 %v1053
      %v1130 = vunpack.c.l.b16 %v1054
      %v1131 = vunpack.c.l.b16 %v1055
      %v1132 = vunpack.c.l.b16 %v1056
      %v1133 = vunpack.c.l.b16 %v1057
      %v1134 = vunpack.c.l.b16 %v1058
      %v1135 = vunpack.c.l.b16 %v1059
      %v1136 = vunpack.c.l.b16 %v1060
      %v1137 = vunpack.c.l.b16 %v1061
      %v1138 = vunpack.c.l.b16 %v1062
      %v1139 = vunpack.c.l.b16 %v1063
      %v1140 = vunpack.c.l.b16 %v1064
      %v1141 = vunpack.c.l.b16 %v1065
      %v1142 = vunpack.c.l.b16 %v1066
      %v1143 = vunpack.c.l.b16 %v1067
      %v1144 = vunpack.c.l.b16 %v1068
      %v1145 = vunpack.c.l.b16 %v1069
      %v1146 = vunpack.c.l.b16 %v1070
      %v1147 = vunpack.c.l.b16 %v1071
      %v1148 = vunpack.c.l.b16 %v1072
      %v1149 = vunpack.c.l.b16 %v1073
      %v1150 = vunpack.c.l.b16 %v1074
      %v1151 = vunpack.c.l.b16 %v1075
      %v1152 = vunpack.c.l.b16 %v1076
      %v1153 = vpack.c.b16 %v1117, %v1116
      %v1154 = vpack.c.b16 %v1119, %v1118
      %v1155 = vpack.c.b16 %v1121, %v1120
      %v1156 = vpack.c.b16 %v1123, %v1122
      %v1157 = vpack.c.b16 %v1125, %v1124
      %v1158 = vpack.c.b16 %v1127, %v1126
      %v1159 = vpack.c.b16 %v1129, %v1128
      %v1160 = vpack.c.b16 %v1131, %v1130
      %v1161 = vpack.c.b16 %v1133, %v1132
      %v1162 = vpack.c.b16 %v1135, %v1134
      %v1163 = vpack.c.b16 %v1137, %v1136
      %v1164 = vpack.c.b16 %v1139, %v1138
      %v1165 = vpack.c.b16 %v1141, %v1140
      %v1166 = vpack.c.b16 %v1143, %v1142
      %v1167 = vpack.c.b16 %v1145, %v1144
      %v1168 = vpack.c.b16 %v1147, %v1146
      %v1169 = vpack.c.b16 %v1149, %v1148
      %v1170 = vpack.c.b16 %v1151, %v1150
      %v1171 = vpack.c.b16 %v1152, %v1152
      %vm1172 = vsmask.f32 7424
      %v1174 = vshrl.u32 %v1153, 16
      %v1176 = vshll.u32 %v1153, 16
      %v1178 = vrot.slane %v1176, 1
      %v1179 = vor.u32 %v1174, %v1178
      %v1181 = vshll.u32 %v1154, 16
      %v1183 = vrot.slane %v1181, 1
      %v1184 = vsel %vm1172, %v1179, %v1183
      %v1185 = vshrl.u32 %v1154, 16
      %v1187 = vor.u32 %v1185, %v1183
      %v1189 = vshll.u32 %v1155, 16
      %v1191 = vrot.slane %v1189, 1
      %v1192 = vsel %vm1172, %v1187, %v1191
      %v1193 = vshrl.u32 %v1155, 16
      %v1195 = vor.u32 %v1193, %v1191
      %v1197 = vshll.u32 %v1156, 16
      %v1199 = vrot.slane %v1197, 1
      %v1200 = vsel %vm1172, %v1195, %v1199
      %v1201 = vshrl.u32 %v1156, 16
      %v1203 = vor.u32 %v1201, %v1199
      %v1205 = vshll.u32 %v1157, 16
      %v1207 = vrot.slane %v1205, 1
      %v1208 = vsel %vm1172, %v1203, %v1207
      %v1209 = vshrl.u32 %v1157, 16
      %v1211 = vor.u32 %v1209, %v1207
      %v1213 = vshll.u32 %v1158, 16
      %v1215 = vrot.slane %v1213, 1
      %v1216 = vsel %vm1172, %v1211, %v1215
      %v1217 = vshrl.u32 %v1158, 16
      %v1219 = vor.u32 %v1217, %v1215
      %v1221 = vshll.u32 %v1159, 16
      %v1223 = vrot.slane %v1221, 1
      %v1224 = vsel %vm1172, %v1219, %v1223
      %v1225 = vshrl.u32 %v1159, 16
      %v1227 = vor.u32 %v1225, %v1223
      %v1229 = vshll.u32 %v1160, 16
      %v1231 = vrot.slane %v1229, 1
      %v1232 = vsel %vm1172, %v1227, %v1231
      %v1233 = vshrl.u32 %v1160, 16
      %v1235 = vor.u32 %v1233, %v1231
      %v1237 = vshll.u32 %v1161, 16
      %v1239 = vrot.slane %v1237, 1
      %v1240 = vsel %vm1172, %v1235, %v1239
      %v1241 = vshrl.u32 %v1161, 16
      %v1243 = vor.u32 %v1241, %v1239
      %v1245 = vshll.u32 %v1162, 16
      %v1247 = vrot.slane %v1245, 1
      %v1248 = vsel %vm1172, %v1243, %v1247
      %v1249 = vshrl.u32 %v1162, 16
      %v1251 = vor.u32 %v1249, %v1247
      %v1253 = vshll.u32 %v1163, 16
      %v1255 = vrot.slane %v1253, 1
      %v1256 = vsel %vm1172, %v1251, %v1255
      %v1257 = vshrl.u32 %v1163, 16
      %v1259 = vor.u32 %v1257, %v1255
      %v1261 = vshll.u32 %v1164, 16
      %v1263 = vrot.slane %v1261, 1
      %v1264 = vsel %vm1172, %v1259, %v1263
      %v1265 = vshrl.u32 %v1164, 16
      %v1267 = vor.u32 %v1265, %v1263
      %v1269 = vshll.u32 %v1165, 16
      %v1271 = vrot.slane %v1269, 1
      %v1272 = vsel %vm1172, %v1267, %v1271
      %v1273 = vshrl.u32 %v1165, 16
      %v1275 = vor.u32 %v1273, %v1271
      %v1277 = vshll.u32 %v1166, 16
      %v1279 = vrot.slane %v1277, 1
      %v1280 = vsel %vm1172, %v1275, %v1279
      %v1281 = vshrl.u32 %v1166, 16
      %v1283 = vor.u32 %v1281, %v1279
      %v1285 = vshll.u32 %v1167, 16
      %v1287 = vrot.slane %v1285, 1
      %v1288 = vsel %vm1172, %v1283, %v1287
      %v1289 = vshrl.u32 %v1167, 16
      %v1291 = vor.u32 %v1289, %v1287
      %v1293 = vshll.u32 %v1168, 16
      %v1295 = vrot.slane %v1293, 1
      %v1296 = vsel %vm1172, %v1291, %v1295
      %v1297 = vshrl.u32 %v1168, 16
      %v1299 = vor.u32 %v1297, %v1295
      %v1301 = vshll.u32 %v1169, 16
      %v1303 = vrot.slane %v1301, 1
      %v1304 = vsel %vm1172, %v1299, %v1303
      %v1305 = vshrl.u32 %v1169, 16
      %v1307 = vor.u32 %v1305, %v1303
      %v1309 = vshll.u32 %v1170, 16
      %v1311 = vrot.slane %v1309, 1
      %v1312 = vsel %vm1172, %v1307, %v1311
      %v1313 = vshrl.u32 %v1170, 16
      %v1315 = vor.u32 %v1313, %v1311
      %v1317 = vshll.u32 %v1171, 16
      %v1319 = vrot.slane %v1317, 1
      %v1320 = vsel %vm1172, %v1315, %v1319
      %v1322 = vsel %vm477, %v1184, 0
      %v1325 = vsel %vm477, %v1192, 0
      %v1328 = vsel %vm477, %v1200, 0
      %v1331 = vsel %vm477, %v1208, 0
      %v1334 = vsel %vm477, %v1216, 0
      %v1337 = vsel %vm477, %v1224, 0
      %v1340 = vsel %vm477, %v1232, 0
      %v1343 = vsel %vm477, %v1240, 0
      %v1346 = vsel %vm477, %v1248, 0
      %v1349 = vsel %vm477, %v1256, 0
      %v1352 = vsel %vm477, %v1264, 0
      %v1355 = vsel %vm477, %v1272, 0
      %v1358 = vsel %vm477, %v1280, 0
      %v1361 = vsel %vm477, %v1288, 0
      %v1364 = vsel %vm477, %v1296, 0
      %v1367 = vsel %vm477, %v1304, 0
      %v1370 = vsel %vm477, %v1312, 0
      %v1373 = vsel %vm477, %v1320, 0
      %v1376 = vand.u32 %v1078, %v535
      %1378 = vmatprep.subr.bf16.mxu0 0
      %1379 = vmatpush1.bf16.msra.mxu0 %v1376
      %1380 = vmatprep.subr.bf16.mxu0 0
      %1381 = vmatpush1.bf16.msra.mxu0 0
      %1382 = vmatprep.subr.bf16.mxu0 0
      %1383 = vmatpush1.bf16.msra.mxu0 0
      %1384 = vmatprep.subr.bf16.mxu0 0
      %1385 = vmatpush1.bf16.msra.mxu0 0
      %1386 = vmatprep.subr.bf16.mxu0 0
      %1387 = vmatpush1.bf16.msra.mxu0 0
      %1388 = vmatprep.subr.bf16.mxu0 0
      %1389 = vmatpush1.bf16.msra.mxu0 0
      %1390 = vmatprep.subr.bf16.mxu0 0
      %1391 = vmatpush1.bf16.msra.mxu0 0
      %1392 = vmatprep.subr.bf16.mxu0 0
      %1393 = vmatpush1.bf16.msra.mxu0 0
      %1394 = vmatprep.subr.bf16.mxu0 0
      %1395 = vmatpush1.bf16.msra.mxu0 0
      %1396 = vmatprep.subr.bf16.mxu0 0
      %1397 = vmatpush1.bf16.msra.mxu0 0
      %1398 = vmatprep.subr.bf16.mxu0 0
      %1399 = vmatpush1.bf16.msra.mxu0 0
      %1400 = vmatprep.subr.bf16.mxu0 0
      %1401 = vmatpush1.bf16.msra.mxu0 0
      %1402 = vmatprep.subr.bf16.mxu0 0
      %1403 = vmatpush1.bf16.msra.mxu0 0
      %1404 = vmatprep.subr.bf16.mxu0 0
      %1405 = vmatpush1.bf16.msra.mxu0 0
      %1406 = vmatprep.subr.bf16.mxu0 0
      %1407 = vmatpush1.bf16.msra.mxu0 0
      %1408 = vmatprep.subr.bf16.mxu0 0
      %1409 = vmatpush1.bf16.msra.mxu0 0
      %1410 = vmatprep.mubr.bf16.mxu0 0
      %1411 = vmatmul.mubr.bf16.gmra.mrb[0].mxu0 %v1322
      %v1412 = vpop.f32.mrb[0].mxu0
      %v1413 = vadd.f32 0.0, %v1412
      %v1414 = vpop.f32.mrb[0].mxu0
      %v1415 = vpop.f32.mrb[0].mxu0
      %v1416 = vadd.f32 0.0, %v1415
      %v1417 = vpop.f32.mrb[0].mxu0
      %1418 = vmatprep.mubr.bf16.mxu0 0
      %1419 = vmatmul.mubr.bf16.gmra.mrb[0].mxu0 %v1325
      %v1420 = vpop.f32.mrb[0].mxu0
      %v1421 = vadd.f32 0.0, %v1420
      %v1422 = vpop.f32.mrb[0].mxu0
      %v1423 = vpop.f32.mrb[0].mxu0
      %v1424 = vadd.f32 0.0, %v1423
      %v1425 = vpop.f32.mrb[0].mxu0
      %1426 = vmatprep.mubr.bf16.mxu0 0
      %1427 = vmatmul.mubr.bf16.gmra.mrb[0].mxu0 %v1328
      %v1428 = vpop.f32.mrb[0].mxu0
      %v1429 = vadd.f32 0.0, %v1428
      %v1430 = vpop.f32.mrb[0].mxu0
      %v1431 = vpop.f32.mrb[0].mxu0
      %v1432 = vadd.f32 0.0, %v1431
      %v1433 = vpop.f32.mrb[0].mxu0
      %1434 = vmatprep.mubr.bf16.mxu0 0
      %1435 = vmatmul.mubr.bf16.gmra.mrb[0].mxu0 %v1331
      %v1436 = vpop.f32.mrb[0].mxu0
      %v1437 = vadd.f32 0.0, %v1436
      %v1438 = vpop.f32.mrb[0].mxu0
      %v1439 = vpop.f32.mrb[0].mxu0
      %v1440 = vadd.f32 0.0, %v1439
      %v1441 = vpop.f32.mrb[0].mxu0
      %1442 = vmatprep.mubr.bf16.mxu0 0
      %1443 = vmatmul.mubr.bf16.gmra.mrb[0].mxu0 %v1334
      %v1444 = vpop.f32.mrb[0].mxu0
      %v1445 = vadd.f32 0.0, %v1444
      %v1446 = vpop.f32.mrb[0].mxu0
      %v1447 = vpop.f32.mrb[0].mxu0
      %v1448 = vadd.f32 0.0, %v1447
      %v1449 = vpop.f32.mrb[0].mxu0
      %1450 = vmatprep.mubr.bf16.mxu0 0
      %1451 = vmatmul.mubr.bf16.gmra.mrb[0].mxu0 %v1337
      %v1452 = vpop.f32.mrb[0].mxu0
      %v1453 = vadd.f32 0.0, %v1452
      %v1454 = vpop.f32.mrb[0].mxu0
      %v1455 = vpop.f32.mrb[0].mxu0
      %v1456 = vadd.f32 0.0, %v1455
      %v1457 = vpop.f32.mrb[0].mxu0
      %1458 = vmatprep.mubr.bf16.mxu0 0
      %1459 = vmatmul.mubr.bf16.gmra.mrb[0].mxu0 %v1340
      %v1460 = vpop.f32.mrb[0].mxu0
      %v1461 = vadd.f32 0.0, %v1460
      %v1462 = vpop.f32.mrb[0].mxu0
      %v1463 = vpop.f32.mrb[0].mxu0
      %v1464 = vadd.f32 0.0, %v1463
      %v1465 = vpop.f32.mrb[0].mxu0
      %1466 = vmatprep.mubr.bf16.mxu0 0
      %1467 = vmatmul.mubr.bf16.gmra.mrb[0].mxu0 %v1343
      %v1468 = vpop.f32.mrb[0].mxu0
      %v1469 = vadd.f32 0.0, %v1468
      %v1470 = vpop.f32.mrb[0].mxu0
      %v1471 = vpop.f32.mrb[0].mxu0
      %v1472 = vadd.f32 0.0, %v1471
      %v1473 = vpop.f32.mrb[0].mxu0
      %1474 = vmatprep.mubr.bf16.mxu0 0
      %1475 = vmatmul.mubr.bf16.gmra.mrb[0].mxu0 %v1346
      %v1476 = vpop.f32.mrb[0].mxu0
      %v1477 = vadd.f32 0.0, %v1476
      %v1478 = vpop.f32.mrb[0].mxu0
      %v1479 = vpop.f32.mrb[0].mxu0
      %v1480 = vadd.f32 0.0, %v1479
      %v1481 = vpop.f32.mrb[0].mxu0
      %1482 = vmatprep.mubr.bf16.mxu0 0
      %1483 = vmatmul.mubr.bf16.gmra.mrb[0].mxu0 %v1349
      %v1484 = vpop.f32.mrb[0].mxu0
      %v1485 = vadd.f32 0.0, %v1484
      %v1486 = vpop.f32.mrb[0].mxu0
      %v1487 = vpop.f32.mrb[0].mxu0
      %v1488 = vadd.f32 0.0, %v1487
      %v1489 = vpop.f32.mrb[0].mxu0
      %1490 = vmatprep.mubr.bf16.mxu0 0
      %1491 = vmatmul.mubr.bf16.gmra.mrb[0].mxu0 %v1352
      %v1492 = vpop.f32.mrb[0].mxu0
      %v1493 = vadd.f32 0.0, %v1492
      %v1494 = vpop.f32.mrb[0].mxu0
      %v1495 = vpop.f32.mrb[0].mxu0
      %v1496 = vadd.f32 0.0, %v1495
      %v1497 = vpop.f32.mrb[0].mxu0
      %1498 = vmatprep.mubr.bf16.mxu0 0
      %1499 = vmatmul.mubr.bf16.gmra.mrb[0].mxu0 %v1355
      %v1500 = vpop.f32.mrb[0].mxu0
      %v1501 = vadd.f32 0.0, %v1500
      %v1502 = vpop.f32.mrb[0].mxu0
      %v1503 = vpop.f32.mrb[0].mxu0
      %v1504 = vadd.f32 0.0, %v1503
      %v1505 = vpop.f32.mrb[0].mxu0
      %1506 = vmatprep.mubr.bf16.mxu0 0
      %1507 = vmatmul.mubr.bf16.gmra.mrb[0].mxu0 %v1358
      %v1508 = vpop.f32.mrb[0].mxu0
      %v1509 = vadd.f32 0.0, %v1508
      %v1510 = vpop.f32.mrb[0].mxu0
      %v1511 = vpop.f32.mrb[0].mxu0
      %v1512 = vadd.f32 0.0, %v1511
      %v1513 = vpop.f32.mrb[0].mxu0
      %1514 = vmatprep.mubr.bf16.mxu0 0
      %1515 = vmatmul.mubr.bf16.gmra.mrb[0].mxu0 %v1361
      %v1516 = vpop.f32.mrb[0].mxu0
      %v1517 = vadd.f32 0.0, %v1516
      %v1518 = vpop.f32.mrb[0].mxu0
      %v1519 = vpop.f32.mrb[0].mxu0
      %v1520 = vadd.f32 0.0, %v1519
      %v1521 = vpop.f32.mrb[0].mxu0
      %1522 = vmatprep.mubr.bf16.mxu0 0
      %1523 = vmatmul.mubr.bf16.gmra.mrb[0].mxu0 %v1364
      %v1524 = vpop.f32.mrb[0].mxu0
      %v1525 = vadd.f32 0.0, %v1524
      %v1526 = vpop.f32.mrb[0].mxu0
      %v1527 = vpop.f32.mrb[0].mxu0
      %v1528 = vadd.f32 0.0, %v1527
      %v1529 = vpop.f32.mrb[0].mxu0
      %1530 = vmatprep.mubr.bf16.mxu0 0
      %1531 = vmatmul.mubr.bf16.gmra.mrb[0].mxu0 %v1367
      %v1532 = vpop.f32.mrb[0].mxu0
      %v1533 = vadd.f32 0.0, %v1532
      %v1534 = vpop.f32.mrb[0].mxu0
      %v1535 = vpop.f32.mrb[0].mxu0
      %v1536 = vadd.f32 0.0, %v1535
      %v1537 = vpop.f32.mrb[0].mxu0
      %1538 = vmatprep.mubr.bf16.mxu0 0
      %1539 = vmatmul.mubr.bf16.gmra.mrb[0].mxu0 %v1370
      %v1540 = vpop.f32.mrb[0].mxu0
      %v1541 = vadd.f32 0.0, %v1540
      %v1542 = vpop.f32.mrb[0].mxu0
      %v1543 = vpop.f32.mrb[0].mxu0
      %v1544 = vadd.f32 0.0, %v1543
      %v1545 = vpop.f32.mrb[0].mxu0
      %1546 = vmatprep.mubr.bf16.mxu0 0
      %1547 = vmatmul.mubr.bf16.gmra.mrb[0].mxu0 %v1373
      %v1548 = vpop.f32.mrb[0].mxu0
      %v1549 = vadd.f32 0.0, %v1548
      %v1550 = vpop.f32.mrb[0].mxu0
      %v1551 = vpop.f32.mrb[0].mxu0
      %v1552 = vadd.f32 0.0, %v1551
      %v1553 = vpop.f32.mrb[0].mxu0
      %1554 = vdwg.mxu0
      %v1555 = vadd.f32 %v898, %v1413
      %v1556 = vadd.f32 %v901, %v1416
      %v1557 = vadd.f32 %v906, %v1421
      %v1558 = vadd.f32 %v909, %v1424
      %v1559 = vadd.f32 %v914, %v1429
      %v1560 = vadd.f32 %v917, %v1432
      %v1561 = vadd.f32 %v922, %v1437
      %v1562 = vadd.f32 %v925, %v1440
      %v1563 = vadd.f32 %v930, %v1445
      %v1564 = vadd.f32 %v933, %v1448
      %v1565 = vadd.f32 %v938, %v1453
      %v1566 = vadd.f32 %v941, %v1456
      %v1567 = vadd.f32 %v946, %v1461
      %v1568 = vadd.f32 %v949, %v1464
      %v1569 = vadd.f32 %v954, %v1469
      %v1570 = vadd.f32 %v957, %v1472
      %v1571 = vadd.f32 %v962, %v1477
      %v1572 = vadd.f32 %v965, %v1480
      %v1573 = vadd.f32 %v970, %v1485
      %v1574 = vadd.f32 %v973, %v1488
      %v1575 = vadd.f32 %v978, %v1493
      %v1576 = vadd.f32 %v981, %v1496
      %v1577 = vadd.f32 %v986, %v1501
      %v1578 = vadd.f32 %v989, %v1504
      %v1579 = vadd.f32 %v994, %v1509
      %v1580 = vadd.f32 %v997, %v1512
      %v1581 = vadd.f32 %v1002, %v1517
      %v1582 = vadd.f32 %v1005, %v1520
      %v1583 = vadd.f32 %v1010, %v1525
      %v1584 = vadd.f32 %v1013, %v1528
      %v1585 = vadd.f32 %v1018, %v1533
      %v1586 = vadd.f32 %v1021, %v1536
      %v1587 = vadd.f32 %v1026, %v1541
      %v1588 = vadd.f32 %v1029, %v1544
      %v1589 = vadd.f32 %v1034, %v1549
      %v1590 = vadd.f32 %v1037, %v1552
      %v1591 = vld [vmem:[%s261 + $0x144] sm:$0xf]
      %v1592 = vld [vmem:[%s261 + $0x148] sm:$0xf]
      %v1593 = vld [vmem:[%s261 + $0x14c] sm:$0xf]
      %v1594 = vld [vmem:[%s261 + $0x150] sm:$0xf]
      %v1595 = vld [vmem:[%s261 + $0x154] sm:$0xf]
      %v1596 = vld [vmem:[%s261 + $0x158] sm:$0xf]
      %v1597 = vld [vmem:[%s261 + $0x15c] sm:$0xf]
      %v1598 = vld [vmem:[%s261 + $0x160] sm:$0xf]
      %v1599 = vld [vmem:[%s261 + $0x164] sm:$0xf]
      %v1600 = vld [vmem:[%s261 + $0x168] sm:$0xf]
      %v1601 = vld [vmem:[%s261 + $0x16c] sm:$0xf]
      %v1602 = vld [vmem:[%s261 + $0x170] sm:$0xf]
      %v1603 = vld [vmem:[%s261 + $0x174] sm:$0xf]
      %v1604 = vld [vmem:[%s261 + $0x178] sm:$0xf]
      %v1605 = vld [vmem:[%s261 + $0x17c] sm:$0xf]
      %v1606 = vld [vmem:[%s261 + $0x180] sm:$0xf]
      %v1607 = vld [vmem:[%s261 + $0x184] sm:$0xf]
      %v1608 = vld [vmem:[%s261 + $0x188] sm:$0xf]
      %v1609 = vld [vmem:[%s261 + $0x18c] sm:$0xf]
      %v1610 = vld [vmem:[%s261 + $0x190] sm:$0xf]
      %v1611 = vld [vmem:[%s261 + $0x194] sm:$0xf]
      %v1612 = vld [vmem:[%s261 + $0x198] sm:$0xf]
      %v1613 = vld [vmem:[%s261 + $0x19c] sm:$0xf]
      %v1614 = vld [vmem:[%s261 + $0x1a0] sm:$0xf]
      %v1615 = vld [vmem:[%s261 + $0x1a4] sm:$0xf]
      %v1616 = vld [vmem:[%s261 + $0x1a8] sm:$0xf]
      %v1617 = vld [vmem:[%s261 + $0x1ac] sm:$0xf]
      %v1618 = vld [vmem:[%s261 + $0x1b0] sm:$0xf]
      %v1619 = vld [vmem:[%s261 + $0x1b4] sm:$0xf]
      %v1620 = vld [vmem:[%s261 + $0x1b8] sm:$0xf]
      %v1621 = vld [vmem:[%s261 + $0x1bc] sm:$0xf]
      %v1622 = vld [vmem:[%s261 + $0x1c0] sm:$0xf]
      %v1623 = vld [vmem:[%s261 + $0x1c4] sm:$0xf]
      %v1624 = vld [vmem:[%s261 + $0x1c8] sm:$0xf]
      %v1625 = vld [vmem:[%s261 + $0x1cc] sm:$0xf]
      %v1626 = vld [vmem:[%s261 + $0x1d0] sm:$0xf]
      %s1627 = scalar_lea.vmem %s1, 6
      %v1628 = vld [vmem:[%s1627] sm:$0x3]
      %v1665 = vunpack.c.l.b16 %v1591
      %v1666 = vunpack.c.l.b16 %v1592
      %v1667 = vunpack.c.l.b16 %v1593
      %v1668 = vunpack.c.l.b16 %v1594
      %v1669 = vunpack.c.l.b16 %v1595
      %v1670 = vunpack.c.l.b16 %v1596
      %v1671 = vunpack.c.l.b16 %v1597
      %v1672 = vunpack.c.l.b16 %v1598
      %v1673 = vunpack.c.l.b16 %v1599
      %v1674 = vunpack.c.l.b16 %v1600
      %v1675 = vunpack.c.l.b16 %v1601
      %v1676 = vunpack.c.l.b16 %v1602
      %v1677 = vunpack.c.l.b16 %v1603
      %v1678 = vunpack.c.l.b16 %v1604
      %v1679 = vunpack.c.l.b16 %v1605
      %v1680 = vunpack.c.l.b16 %v1606
      %v1681 = vunpack.c.l.b16 %v1607
      %v1682 = vunpack.c.l.b16 %v1608
      %v1683 = vunpack.c.l.b16 %v1609
      %v1684 = vunpack.c.l.b16 %v1610
      %v1685 = vunpack.c.l.b16 %v1611
      %v1686 = vunpack.c.l.b16 %v1612
      %v1687 = vunpack.c.l.b16 %v1613
      %v1688 = vunpack.c.l.b16 %v1614
      %v1689 = vunpack.c.l.b16 %v1615
      %v1690 = vunpack.c.l.b16 %v1616
      %v1691 = vunpack.c.l.b16 %v1617
      %v1692 = vunpack.c.l.b16 %v1618
      %v1693 = vunpack.c.l.b16 %v1619
      %v1694 = vunpack.c.l.b16 %v1620
      %v1695 = vunpack.c.l.b16 %v1621
      %v1696 = vunpack.c.l.b16 %v1622
      %v1697 = vunpack.c.l.b16 %v1623
      %v1698 = vunpack.c.l.b16 %v1624
      %v1699 = vunpack.c.l.b16 %v1625
      %v1700 = vunpack.c.l.b16 %v1626
      %v1701 = vpack.c.b16 %v1666, %v1665
      %v1702 = vpack.c.b16 %v1668, %v1667
      %v1703 = vpack.c.b16 %v1670, %v1669
      %v1704 = vpack.c.b16 %v1672, %v1671
      %v1705 = vpack.c.b16 %v1674, %v1673
      %v1706 = vpack.c.b16 %v1676, %v1675
      %v1707 = vpack.c.b16 %v1678, %v1677
      %v1708 = vpack.c.b16 %v1680, %v1679
      %v1709 = vpack.c.b16 %v1682, %v1681
      %v1710 = vpack.c.b16 %v1684, %v1683
      %v1711 = vpack.c.b16 %v1686, %v1685
      %v1712 = vpack.c.b16 %v1688, %v1687
      %v1713 = vpack.c.b16 %v1690, %v1689
      %v1714 = vpack.c.b16 %v1692, %v1691
      %v1715 = vpack.c.b16 %v1694, %v1693
      %v1716 = vpack.c.b16 %v1696, %v1695
      %v1717 = vpack.c.b16 %v1698, %v1697
      %v1718 = vpack.c.b16 %v1700, %v1699
      %v1720 = vsel %vm477, %v1701, 0
      %v1723 = vsel %vm477, %v1702, 0
      %v1726 = vsel %vm477, %v1703, 0
      %v1729 = vsel %vm477, %v1704, 0
      %v1732 = vsel %vm477, %v1705, 0
      %v1735 = vsel %vm477, %v1706, 0
      %v1738 = vsel %vm477, %v1707, 0
      %v1741 = vsel %vm477, %v1708, 0
      %v1744 = vsel %vm477, %v1709, 0
      %v1747 = vsel %vm477, %v1710, 0
      %v1750 = vsel %vm477, %v1711, 0
      %v1753 = vsel %vm477, %v1712, 0
      %v1756 = vsel %vm477, %v1713, 0
      %v1759 = vsel %vm477, %v1714, 0
      %v1762 = vsel %vm477, %v1715, 0
      %v1765 = vsel %vm477, %v1716, 0
      %v1768 = vsel %vm477, %v1717, 0
      %v1771 = vsel %vm477, %v1718, 0
      %v1774 = vand.u32 %v1628, %v535
      %1776 = vmatprep.subr.bf16.mxu0 0
      %1777 = vmatpush1.bf16.msra.mxu0 %v1774
      %1778 = vmatprep.subr.bf16.mxu0 0
      %1779 = vmatpush1.bf16.msra.mxu0 0
      %1780 = vmatprep.subr.bf16.mxu0 0
      %1781 = vmatpush1.bf16.msra.mxu0 0
      %1782 = vmatprep.subr.bf16.mxu0 0
      %1783 = vmatpush1.bf16.msra.mxu0 0
      %1784 = vmatprep.subr.bf16.mxu0 0
      %1785 = vmatpush1.bf16.msra.mxu0 0
      %1786 = vmatprep.subr.bf16.mxu0 0
      %1787 = vmatpush1.bf16.msra.mxu0 0
      %1788 = vmatprep.subr.bf16.mxu0 0
      %1789 = vmatpush1.bf16.msra.mxu0 0
      %1790 = vmatprep.subr.bf16.mxu0 0
      %1791 = vmatpush1.bf16.msra.mxu0 0
      %1792 = vmatprep.subr.bf16.mxu0 0
      %1793 = vmatpush1.bf16.msra.mxu0 0
      %1794 = vmatprep.subr.bf16.mxu0 0
      %1795 = vmatpush1.bf16.msra.mxu0 0
      %1796 = vmatprep.subr.bf16.mxu0 0
      %1797 = vmatpush1.bf16.msra.mxu0 0
      %1798 = vmatprep.subr.bf16.mxu0 0
      %1799 = vmatpush1.bf16.msra.mxu0 0
      %1800 = vmatprep.subr.bf16.mxu0 0
      %1801 = vmatpush1.bf16.msra.mxu0 0
      %1802 = vmatprep.subr.bf16.mxu0 0
      %1803 = vmatpush1.bf16.msra.mxu0 0
      %1804 = vmatprep.subr.bf16.mxu0 0
      %1805 = vmatpush1.bf16.msra.mxu0 0
      %1806 = vmatprep.subr.bf16.mxu0 0
      %1807 = vmatpush1.bf16.msra.mxu0 0
      %1808 = vmatprep.mubr.bf16.mxu0 0
      %1809 = vmatmul.mubr.bf16.gmra.mrb[0].mxu0 %v1720
      %v1810 = vpop.f32.mrb[0].mxu0
      %v1811 = vadd.f32 0.0, %v1810
      %v1812 = vpop.f32.mrb[0].mxu0
      %v1813 = vpop.f32.mrb[0].mxu0
      %v1814 = vadd.f32 0.0, %v1813
      %v1815 = vpop.f32.mrb[0].mxu0
      %1816 = vmatprep.mubr.bf16.mxu0 0
      %1817 = vmatmul.mubr.bf16.gmra.mrb[0].mxu0 %v1723
      %v1818 = vpop.f32.mrb[0].mxu0
      %v1819 = vadd.f32 0.0, %v1818
      %v1820 = vpop.f32.mrb[0].mxu0
      %v1821 = vpop.f32.mrb[0].mxu0
      %v1822 = vadd.f32 0.0, %v1821
      %v1823 = vpop.f32.mrb[0].mxu0
      %1824 = vmatprep.mubr.bf16.mxu0 0
      %1825 = vmatmul.mubr.bf16.gmra.mrb[0].mxu0 %v1726
      %v1826 = vpop.f32.mrb[0].mxu0
      %v1827 = vadd.f32 0.0, %v1826
      %v1828 = vpop.f32.mrb[0].mxu0
      %v1829 = vpop.f32.mrb[0].mxu0
      %v1830 = vadd.f32 0.0, %v1829
      %v1831 = vpop.f32.mrb[0].mxu0
      %1832 = vmatprep.mubr.bf16.mxu0 0
      %1833 = vmatmul.mubr.bf16.gmra.mrb[0].mxu0 %v1729
      %v1834 = vpop.f32.mrb[0].mxu0
      %v1835 = vadd.f32 0.0, %v1834
      %v1836 = vpop.f32.mrb[0].mxu0
      %v1837 = vpop.f32.mrb[0].mxu0
      %v1838 = vadd.f32 0.0, %v1837
      %v1839 = vpop.f32.mrb[0].mxu0
      %1840 = vmatprep.mubr.bf16.mxu0 0
      %1841 = vmatmul.mubr.bf16.gmra.mrb[0].mxu0 %v1732
      %v1842 = vpop.f32.mrb[0].mxu0
      %v1843 = vadd.f32 0.0, %v1842
      %v1844 = vpop.f32.mrb[0].mxu0
      %v1845 = vpop.f32.mrb[0].mxu0
      %v1846 = vadd.f32 0.0, %v1845
      %v1847 = vpop.f32.mrb[0].mxu0
      %1848 = vmatprep.mubr.bf16.mxu0 0
      %1849 = vmatmul.mubr.bf16.gmra.mrb[0].mxu0 %v1735
      %v1850 = vpop.f32.mrb[0].mxu0
      %v1851 = vadd.f32 0.0, %v1850
      %v1852 = vpop.f32.mrb[0].mxu0
      %v1853 = vpop.f32.mrb[0].mxu0
      %v1854 = vadd.f32 0.0, %v1853
      %v1855 = vpop.f32.mrb[0].mxu0
      %1856 = vmatprep.mubr.bf16.mxu0 0
      %1857 = vmatmul.mubr.bf16.gmra.mrb[0].mxu0 %v1738
      %v1858 = vpop.f32.mrb[0].mxu0
      %v1859 = vadd.f32 0.0, %v1858
      %v1860 = vpop.f32.mrb[0].mxu0
      %v1861 = vpop.f32.mrb[0].mxu0
      %v1862 = vadd.f32 0.0, %v1861
      %v1863 = vpop.f32.mrb[0].mxu0
      %1864 = vmatprep.mubr.bf16.mxu0 0
      %1865 = vmatmul.mubr.bf16.gmra.mrb[0].mxu0 %v1741
      %v1866 = vpop.f32.mrb[0].mxu0
      %v1867 = vadd.f32 0.0, %v1866
      %v1868 = vpop.f32.mrb[0].mxu0
      %v1869 = vpop.f32.mrb[0].mxu0
      %v1870 = vadd.f32 0.0, %v1869
      %v1871 = vpop.f32.mrb[0].mxu0
      %1872 = vmatprep.mubr.bf16.mxu0 0
      %1873 = vmatmul.mubr.bf16.gmra.mrb[0].mxu0 %v1744
      %v1874 = vpop.f32.mrb[0].mxu0
      %v1875 = vadd.f32 0.0, %v1874
      %v1876 = vpop.f32.mrb[0].mxu0
      %v1877 = vpop.f32.mrb[0].mxu0
      %v1878 = vadd.f32 0.0, %v1877
      %v1879 = vpop.f32.mrb[0].mxu0
      %1880 = vmatprep.mubr.bf16.mxu0 0
      %1881 = vmatmul.mubr.bf16.gmra.mrb[0].mxu0 %v1747
      %v1882 = vpop.f32.mrb[0].mxu0
      %v1883 = vadd.f32 0.0, %v1882
      %v1884 = vpop.f32.mrb[0].mxu0
      %v1885 = vpop.f32.mrb[0].mxu0
      %v1886 = vadd.f32 0.0, %v1885
      %v1887 = vpop.f32.mrb[0].mxu0
      %1888 = vmatprep.mubr.bf16.mxu0 0
      %1889 = vmatmul.mubr.bf16.gmra.mrb[0].mxu0 %v1750
      %v1890 = vpop.f32.mrb[0].mxu0
      %v1891 = vadd.f32 0.0, %v1890
      %v1892 = vpop.f32.mrb[0].mxu0
      %v1893 = vpop.f32.mrb[0].mxu0
      %v1894 = vadd.f32 0.0, %v1893
      %v1895 = vpop.f32.mrb[0].mxu0
      %1896 = vmatprep.mubr.bf16.mxu0 0
      %1897 = vmatmul.mubr.bf16.gmra.mrb[0].mxu0 %v1753
      %v1898 = vpop.f32.mrb[0].mxu0
      %v1899 = vadd.f32 0.0, %v1898
      %v1900 = vpop.f32.mrb[0].mxu0
      %v1901 = vpop.f32.mrb[0].mxu0
      %v1902 = vadd.f32 0.0, %v1901
      %v1903 = vpop.f32.mrb[0].mxu0
      %1904 = vmatprep.mubr.bf16.mxu0 0
      %1905 = vmatmul.mubr.bf16.gmra.mrb[0].mxu0 %v1756
      %v1906 = vpop.f32.mrb[0].mxu0
      %v1907 = vadd.f32 0.0, %v1906
      %v1908 = vpop.f32.mrb[0].mxu0
      %v1909 = vpop.f32.mrb[0].mxu0
      %v1910 = vadd.f32 0.0, %v1909
      %v1911 = vpop.f32.mrb[0].mxu0
      %1912 = vmatprep.mubr.bf16.mxu0 0
      %1913 = vmatmul.mubr.bf16.gmra.mrb[0].mxu0 %v1759
      %v1914 = vpop.f32.mrb[0].mxu0
      %v1915 = vadd.f32 0.0, %v1914
      %v1916 = vpop.f32.mrb[0].mxu0
      %v1917 = vpop.f32.mrb[0].mxu0
      %v1918 = vadd.f32 0.0, %v1917
      %v1919 = vpop.f32.mrb[0].mxu0
      %1920 = vmatprep.mubr.bf16.mxu0 0
      %1921 = vmatmul.mubr.bf16.gmra.mrb[0].mxu0 %v1762
      %v1922 = vpop.f32.mrb[0].mxu0
      %v1923 = vadd.f32 0.0, %v1922
      %v1924 = vpop.f32.mrb[0].mxu0
      %v1925 = vpop.f32.mrb[0].mxu0
      %v1926 = vadd.f32 0.0, %v1925
      %v1927 = vpop.f32.mrb[0].mxu0
      %1928 = vmatprep.mubr.bf16.mxu0 0
      %1929 = vmatmul.mubr.bf16.gmra.mrb[0].mxu0 %v1765
      %v1930 = vpop.f32.mrb[0].mxu0
      %v1931 = vadd.f32 0.0, %v1930
      %v1932 = vpop.f32.mrb[0].mxu0
      %v1933 = vpop.f32.mrb[0].mxu0
      %v1934 = vadd.f32 0.0, %v1933
      %v1935 = vpop.f32.mrb[0].mxu0
      %1936 = vmatprep.mubr.bf16.mxu0 0
      %1937 = vmatmul.mubr.bf16.gmra.mrb[0].mxu0 %v1768
      %v1938 = vpop.f32.mrb[0].mxu0
      %v1939 = vadd.f32 0.0, %v1938
      %v1940 = vpop.f32.mrb[0].mxu0
      %v1941 = vpop.f32.mrb[0].mxu0
      %v1942 = vadd.f32 0.0, %v1941
      %v1943 = vpop.f32.mrb[0].mxu0
      %1944 = vmatprep.mubr.bf16.mxu0 0
      %1945 = vmatmul.mubr.bf16.gmra.mrb[0].mxu0 %v1771
      %v1946 = vpop.f32.mrb[0].mxu0
      %v1947 = vadd.f32 0.0, %v1946
      %v1948 = vpop.f32.mrb[0].mxu0
      %v1949 = vpop.f32.mrb[0].mxu0
      %v1950 = vadd.f32 0.0, %v1949
      %v1951 = vpop.f32.mrb[0].mxu0
      %1952 = vdwg.mxu0
      %v1953 = vadd.f32 %v1555, %v1811
      %v1954 = vadd.f32 %v1556, %v1814
      %v1955 = vadd.f32 %v1557, %v1819
      %v1956 = vadd.f32 %v1558, %v1822
      %v1957 = vadd.f32 %v1559, %v1827
      %v1958 = vadd.f32 %v1560, %v1830
      %v1959 = vadd.f32 %v1561, %v1835
      %v1960 = vadd.f32 %v1562, %v1838
      %v1961 = vadd.f32 %v1563, %v1843
      %v1962 = vadd.f32 %v1564, %v1846
      %v1963 = vadd.f32 %v1565, %v1851
      %v1964 = vadd.f32 %v1566, %v1854
      %v1965 = vadd.f32 %v1567, %v1859
      %v1966 = vadd.f32 %v1568, %v1862
      %v1967 = vadd.f32 %v1569, %v1867
      %v1968 = vadd.f32 %v1570, %v1870
      %v1969 = vadd.f32 %v1571, %v1875
      %v1970 = vadd.f32 %v1572, %v1878
      %v1971 = vadd.f32 %v1573, %v1883
      %v1972 = vadd.f32 %v1574, %v1886
      %v1973 = vadd.f32 %v1575, %v1891
      %v1974 = vadd.f32 %v1576, %v1894
      %v1975 = vadd.f32 %v1577, %v1899
      %v1976 = vadd.f32 %v1578, %v1902
      %v1977 = vadd.f32 %v1579, %v1907
      %v1978 = vadd.f32 %v1580, %v1910
      %v1979 = vadd.f32 %v1581, %v1915
      %v1980 = vadd.f32 %v1582, %v1918
      %v1981 = vadd.f32 %v1583, %v1923
      %v1982 = vadd.f32 %v1584, %v1926
      %v1983 = vadd.f32 %v1585, %v1931
      %v1984 = vadd.f32 %v1586, %v1934
      %v1985 = vadd.f32 %v1587, %v1939
      %v1986 = vadd.f32 %v1588, %v1942
      %v1987 = vadd.f32 %v1589, %v1947
      %v1988 = vadd.f32 %v1590, %v1950
      %v1989 = vld [vmem:[%s261 + $0x1e4] sm:$0xc]
      %v1990 = vld [vmem:[%s261 + $0x1e8] sm:$0xf]
      %v1991 = vld [vmem:[%s261 + $0x1ec] sm:$0xf]
      %v1992 = vld [vmem:[%s261 + $0x1f0] sm:$0xf]
      %v1993 = vld [vmem:[%s261 + $0x1f4] sm:$0xf]
      %v1994 = vld [vmem:[%s261 + $0x1f8] sm:$0xf]
      %v1995 = vld [vmem:[%s261 + $0x1fc] sm:$0xf]
      %v1996 = vld [vmem:[%s261 + $0x200] sm:$0xf]
      %v1997 = vld [vmem:[%s261 + $0x204] sm:$0xf]
      %v1998 = vld [vmem:[%s261 + $0x208] sm:$0xf]
      %v1999 = vld [vmem:[%s261 + $0x20c] sm:$0xf]
      %v2000 = vld [vmem:[%s261 + $0x210] sm:$0xf]
      %v2001 = vld [vmem:[%s261 + $0x214] sm:$0xf]
      %v2002 = vld [vmem:[%s261 + $0x218] sm:$0xf]
      %v2003 = vld [vmem:[%s261 + $0x21c] sm:$0xf]
      %v2004 = vld [vmem:[%s261 + $0x220] sm:$0xf]
      %v2005 = vld [vmem:[%s261 + $0x224] sm:$0xf]
      %v2006 = vld [vmem:[%s261 + $0x228] sm:$0xf]
      %v2007 = vld [vmem:[%s261 + $0x22c] sm:$0xf]
      %v2008 = vld [vmem:[%s261 + $0x230] sm:$0xf]
      %v2009 = vld [vmem:[%s261 + $0x234] sm:$0xf]
      %v2010 = vld [vmem:[%s261 + $0x238] sm:$0xf]
      %v2011 = vld [vmem:[%s261 + $0x23c] sm:$0xf]
      %v2012 = vld [vmem:[%s261 + $0x240] sm:$0xf]
      %v2013 = vld [vmem:[%s261 + $0x244] sm:$0xf]
      %v2014 = vld [vmem:[%s261 + $0x248] sm:$0xf]
      %v2015 = vld [vmem:[%s261 + $0x24c] sm:$0xf]
      %v2016 = vld [vmem:[%s261 + $0x250] sm:$0xf]
      %v2017 = vld [vmem:[%s261 + $0x254] sm:$0xf]
      %v2018 = vld [vmem:[%s261 + $0x258] sm:$0xf]
      %v2019 = vld [vmem:[%s261 + $0x25c] sm:$0xf]
      %v2020 = vld [vmem:[%s261 + $0x260] sm:$0xf]
      %v2021 = vld [vmem:[%s261 + $0x264] sm:$0xf]
      %v2022 = vld [vmem:[%s261 + $0x268] sm:$0xf]
      %v2023 = vld [vmem:[%s261 + $0x26c] sm:$0xf]
      %v2024 = vld [vmem:[%s261 + $0x270] sm:$0xf]
      %v2025 = vld [vmem:[%s261 + $0x274] sm:$0x3]
      %s2026 = scalar_lea.vmem %s1, 8
      %v2027 = vld [vmem:[%s2026] sm:$0x3]
      %v2065 = vunpack.c.l.b16 %v1989
      %v2066 = vunpack.c.l.b16 %v1990
      %v2067 = vunpack.c.l.b16 %v1991
      %v2068 = vunpack.c.l.b16 %v1992
      %v2069 = vunpack.c.l.b16 %v1993
      %v2070 = vunpack.c.l.b16 %v1994
      %v2071 = vunpack.c.l.b16 %v1995
      %v2072 = vunpack.c.l.b16 %v1996
      %v2073 = vunpack.c.l.b16 %v1997
      %v2074 = vunpack.c.l.b16 %v1998
      %v2075 = vunpack.c.l.b16 %v1999
      %v2076 = vunpack.c.l.b16 %v2000
      %v2077 = vunpack.c.l.b16 %v2001
      %v2078 = vunpack.c.l.b16 %v2002
      %v2079 = vunpack.c.l.b16 %v2003
      %v2080 = vunpack.c.l.b16 %v2004
      %v2081 = vunpack.c.l.b16 %v2005
      %v2082 = vunpack.c.l.b16 %v2006
      %v2083 = vunpack.c.l.b16 %v2007
      %v2084 = vunpack.c.l.b16 %v2008
      %v2085 = vunpack.c.l.b16 %v2009
      %v2086 = vunpack.c.l.b16 %v2010
      %v2087 = vunpack.c.l.b16 %v2011
      %v2088 = vunpack.c.l.b16 %v2012
      %v2089 = vunpack.c.l.b16 %v2013
      %v2090 = vunpack.c.l.b16 %v2014
      %v2091 = vunpack.c.l.b16 %v2015
      %v2092 = vunpack.c.l.b16 %v2016
      %v2093 = vunpack.c.l.b16 %v2017
      %v2094 = vunpack.c.l.b16 %v2018
      %v2095 = vunpack.c.l.b16 %v2019
      %v2096 = vunpack.c.l.b16 %v2020
      %v2097 = vunpack.c.l.b16 %v2021
      %v2098 = vunpack.c.l.b16 %v2022
      %v2099 = vunpack.c.l.b16 %v2023
      %v2100 = vunpack.c.l.b16 %v2024
      %v2101 = vunpack.c.l.b16 %v2025
      %v2102 = vpack.c.b16 %v2066, %v2065
      %v2103 = vpack.c.b16 %v2068, %v2067
      %v2104 = vpack.c.b16 %v2070, %v2069
      %v2105 = vpack.c.b16 %v2072, %v2071
      %v2106 = vpack.c.b16 %v2074, %v2073
      %v2107 = vpack.c.b16 %v2076, %v2075
      %v2108 = vpack.c.b16 %v2078, %v2077
      %v2109 = vpack.c.b16 %v2080, %v2079
      %v2110 = vpack.c.b16 %v2082, %v2081
      %v2111 = vpack.c.b16 %v2084, %v2083
      %v2112 = vpack.c.b16 %v2086, %v2085
      %v2113 = vpack.c.b16 %v2088, %v2087
      %v2114 = vpack.c.b16 %v2090, %v2089
      %v2115 = vpack.c.b16 %v2092, %v2091
      %v2116 = vpack.c.b16 %v2094, %v2093
      %v2117 = vpack.c.b16 %v2096, %v2095
      %v2118 = vpack.c.b16 %v2098, %v2097
      %v2119 = vpack.c.b16 %v2100, %v2099
      %v2120 = vpack.c.b16 %v2101, %v2101
      %v2121 = vrot.slane %v2102, 2
      %v2122 = vrot.slane %v2103, 2
      %v2123 = vsel %vm439, %v2121, %v2122
      %v2124 = vrot.slane %v2104, 2
      %v2125 = vsel %vm439, %v2122, %v2124
      %v2126 = vrot.slane %v2105, 2
      %v2127 = vsel %vm439, %v2124, %v2126
      %v2128 = vrot.slane %v2106, 2
      %v2129 = vsel %vm439, %v2126, %v2128
      %v2130 = vrot.slane %v2107, 2
      %v2131 = vsel %vm439, %v2128, %v2130
      %v2132 = vrot.slane %v2108, 2
      %v2133 = vsel %vm439, %v2130, %v2132
      %v2134 = vrot.slane %v2109, 2
      %v2135 = vsel %vm439, %v2132, %v2134
      %v2136 = vrot.slane %v2110, 2
      %v2137 = vsel %vm439, %v2134, %v2136
      %v2138 = vrot.slane %v2111, 2
      %v2139 = vsel %vm439, %v2136, %v2138
      %v2140 = vrot.slane %v2112, 2
      %v2141 = vsel %vm439, %v2138, %v2140
      %v2142 = vrot.slane %v2113, 2
      %v2143 = vsel %vm439, %v2140, %v2142
      %v2144 = vrot.slane %v2114, 2
      %v2145 = vsel %vm439, %v2142, %v2144
      %v2146 = vrot.slane %v2115, 2
      %v2147 = vsel %vm439, %v2144, %v2146
      %v2148 = vrot.slane %v2116, 2
      %v2149 = vsel %vm439, %v2146, %v2148
      %v2150 = vrot.slane %v2117, 2
      %v2151 = vsel %vm439, %v2148, %v2150
      %v2152 = vrot.slane %v2118, 2
      %v2153 = vsel %vm439, %v2150, %v2152
      %v2154 = vrot.slane %v2119, 2
      %v2155 = vsel %vm439, %v2152, %v2154
      %v2156 = vrot.slane %v2120, 2
      %v2157 = vsel %vm439, %v2154, %v2156
      %v2159 = vsel %vm477, %v2123, 0
      %v2162 = vsel %vm477, %v2125, 0
      %v2165 = vsel %vm477, %v2127, 0
      %v2168 = vsel %vm477, %v2129, 0
      %v2171 = vsel %vm477, %v2131, 0
      %v2174 = vsel %vm477, %v2133, 0
      %v2177 = vsel %vm477, %v2135, 0
      %v2180 = vsel %vm477, %v2137, 0
      %v2183 = vsel %vm477, %v2139, 0
      %v2186 = vsel %vm477, %v2141, 0
      %v2189 = vsel %vm477, %v2143, 0
      %v2192 = vsel %vm477, %v2145, 0
      %v2195 = vsel %vm477, %v2147, 0
      %v2198 = vsel %vm477, %v2149, 0
      %v2201 = vsel %vm477, %v2151, 0
      %v2204 = vsel %vm477, %v2153, 0
      %v2207 = vsel %vm477, %v2155, 0
      %v2210 = vsel %vm477, %v2157, 0
      %v2213 = vand.u32 %v2027, %v535
      %2215 = vmatprep.subr.bf16.mxu0 0
      %2216 = vmatpush1.bf16.msra.mxu0 %v2213
      %2217 = vmatprep.subr.bf16.mxu0 0
      %2218 = vmatpush1.bf16.msra.mxu0 0
      %2219 = vmatprep.subr.bf16.mxu0 0
      %2220 = vmatpush1.bf16.msra.mxu0 0
      %2221 = vmatprep.subr.bf16.mxu0 0
      %2222 = vmatpush1.bf16.msra.mxu0 0
      %2223 = vmatprep.subr.bf16.mxu0 0
      %2224 = vmatpush1.bf16.msra.mxu0 0
      %2225 = vmatprep.subr.bf16.mxu0 0
      %2226 = vmatpush1.bf16.msra.mxu0 0
      %2227 = vmatprep.subr.bf16.mxu0 0
      %2228 = vmatpush1.bf16.msra.mxu0 0
      %2229 = vmatprep.subr.bf16.mxu0 0
      %2230 = vmatpush1.bf16.msra.mxu0 0
      %2231 = vmatprep.subr.bf16.mxu0 0
      %2232 = vmatpush1.bf16.msra.mxu0 0
      %2233 = vmatprep.subr.bf16.mxu0 0
      %2234 = vmatpush1.bf16.msra.mxu0 0
      %2235 = vmatprep.subr.bf16.mxu0 0
      %2236 = vmatpush1.bf16.msra.mxu0 0
      %2237 = vmatprep.subr.bf16.mxu0 0
      %2238 = vmatpush1.bf16.msra.mxu0 0
      %2239 = vmatprep.subr.bf16.mxu0 0
      %2240 = vmatpush1.bf16.msra.mxu0 0
      %2241 = vmatprep.subr.bf16.mxu0 0
      %2242 = vmatpush1.bf16.msra.mxu0 0
      %2243 = vmatprep.subr.bf16.mxu0 0
      %2244 = vmatpush1.bf16.msra.mxu0 0
      %2245 = vmatprep.subr.bf16.mxu0 0
      %2246 = vmatpush1.bf16.msra.mxu0 0
      %2247 = vmatprep.mubr.bf16.mxu0 0
      %2248 = vmatmul.mubr.bf16.gmra.mrb[0].mxu0 %v2159
      %v2249 = vpop.f32.mrb[0].mxu0
      %v2250 = vadd.f32 0.0, %v2249
      %v2251 = vpop.f32.mrb[0].mxu0
      %v2252 = vpop.f32.mrb[0].mxu0
      %v2253 = vadd.f32 0.0, %v2252
      %v2254 = vpop.f32.mrb[0].mxu0
      %2255 = vmatprep.mubr.bf16.mxu0 0
      %2256 = vmatmul.mubr.bf16.gmra.mrb[0].mxu0 %v2162
      %v2257 = vpop.f32.mrb[0].mxu0
      %v2258 = vadd.f32 0.0, %v2257
      %v2259 = vpop.f32.mrb[0].mxu0
      %v2260 = vpop.f32.mrb[0].mxu0
      %v2261 = vadd.f32 0.0, %v2260
      %v2262 = vpop.f32.mrb[0].mxu0
      %2263 = vmatprep.mubr.bf16.mxu0 0
      %2264 = vmatmul.mubr.bf16.gmra.mrb[0].mxu0 %v2165
      %v2265 = vpop.f32.mrb[0].mxu0
      %v2266 = vadd.f32 0.0, %v2265
      %v2267 = vpop.f32.mrb[0].mxu0
      %v2268 = vpop.f32.mrb[0].mxu0
      %v2269 = vadd.f32 0.0, %v2268
      %v2270 = vpop.f32.mrb[0].mxu0
      %2271 = vmatprep.mubr.bf16.mxu0 0
      %2272 = vmatmul.mubr.bf16.gmra.mrb[0].mxu0 %v2168
      %v2273 = vpop.f32.mrb[0].mxu0
      %v2274 = vadd.f32 0.0, %v2273
      %v2275 = vpop.f32.mrb[0].mxu0
      %v2276 = vpop.f32.mrb[0].mxu0
      %v2277 = vadd.f32 0.0, %v2276
      %v2278 = vpop.f32.mrb[0].mxu0
      %2279 = vmatprep.mubr.bf16.mxu0 0
      %2280 = vmatmul.mubr.bf16.gmra.mrb[0].mxu0 %v2171
      %v2281 = vpop.f32.mrb[0].mxu0
      %v2282 = vadd.f32 0.0, %v2281
      %v2283 = vpop.f32.mrb[0].mxu0
      %v2284 = vpop.f32.mrb[0].mxu0
      %v2285 = vadd.f32 0.0, %v2284
      %v2286 = vpop.f32.mrb[0].mxu0
      %2287 = vmatprep.mubr.bf16.mxu0 0
      %2288 = vmatmul.mubr.bf16.gmra.mrb[0].mxu0 %v2174
      %v2289 = vpop.f32.mrb[0].mxu0
      %v2290 = vadd.f32 0.0, %v2289
      %v2291 = vpop.f32.mrb[0].mxu0
      %v2292 = vpop.f32.mrb[0].mxu0
      %v2293 = vadd.f32 0.0, %v2292
      %v2294 = vpop.f32.mrb[0].mxu0
      %2295 = vmatprep.mubr.bf16.mxu0 0
      %2296 = vmatmul.mubr.bf16.gmra.mrb[0].mxu0 %v2177
      %v2297 = vpop.f32.mrb[0].mxu0
      %v2298 = vadd.f32 0.0, %v2297
      %v2299 = vpop.f32.mrb[0].mxu0
      %v2300 = vpop.f32.mrb[0].mxu0
      %v2301 = vadd.f32 0.0, %v2300
      %v2302 = vpop.f32.mrb[0].mxu0
      %2303 = vmatprep.mubr.bf16.mxu0 0
      %2304 = vmatmul.mubr.bf16.gmra.mrb[0].mxu0 %v2180
      %v2305 = vpop.f32.mrb[0].mxu0
      %v2306 = vadd.f32 0.0, %v2305
      %v2307 = vpop.f32.mrb[0].mxu0
      %v2308 = vpop.f32.mrb[0].mxu0
      %v2309 = vadd.f32 0.0, %v2308
      %v2310 = vpop.f32.mrb[0].mxu0
      %2311 = vmatprep.mubr.bf16.mxu0 0
      %2312 = vmatmul.mubr.bf16.gmra.mrb[0].mxu0 %v2183
      %v2313 = vpop.f32.mrb[0].mxu0
      %v2314 = vadd.f32 0.0, %v2313
      %v2315 = vpop.f32.mrb[0].mxu0
      %v2316 = vpop.f32.mrb[0].mxu0
      %v2317 = vadd.f32 0.0, %v2316
      %v2318 = vpop.f32.mrb[0].mxu0
      %2319 = vmatprep.mubr.bf16.mxu0 0
      %2320 = vmatmul.mubr.bf16.gmra.mrb[0].mxu0 %v2186
      %v2321 = vpop.f32.mrb[0].mxu0
      %v2322 = vadd.f32 0.0, %v2321
      %v2323 = vpop.f32.mrb[0].mxu0
      %v2324 = vpop.f32.mrb[0].mxu0
      %v2325 = vadd.f32 0.0, %v2324
      %v2326 = vpop.f32.mrb[0].mxu0
      %2327 = vmatprep.mubr.bf16.mxu0 0
      %2328 = vmatmul.mubr.bf16.gmra.mrb[0].mxu0 %v2189
      %v2329 = vpop.f32.mrb[0].mxu0
      %v2330 = vadd.f32 0.0, %v2329
      %v2331 = vpop.f32.mrb[0].mxu0
      %v2332 = vpop.f32.mrb[0].mxu0
      %v2333 = vadd.f32 0.0, %v2332
      %v2334 = vpop.f32.mrb[0].mxu0
      %2335 = vmatprep.mubr.bf16.mxu0 0
      %2336 = vmatmul.mubr.bf16.gmra.mrb[0].mxu0 %v2192
      %v2337 = vpop.f32.mrb[0].mxu0
      %v2338 = vadd.f32 0.0, %v2337
      %v2339 = vpop.f32.mrb[0].mxu0
      %v2340 = vpop.f32.mrb[0].mxu0
      %v2341 = vadd.f32 0.0, %v2340
      %v2342 = vpop.f32.mrb[0].mxu0
      %2343 = vmatprep.mubr.bf16.mxu0 0
      %2344 = vmatmul.mubr.bf16.gmra.mrb[0].mxu0 %v2195
      %v2345 = vpop.f32.mrb[0].mxu0
      %v2346 = vadd.f32 0.0, %v2345
      %v2347 = vpop.f32.mrb[0].mxu0
      %v2348 = vpop.f32.mrb[0].mxu0
      %v2349 = vadd.f32 0.0, %v2348
      %v2350 = vpop.f32.mrb[0].mxu0
      %2351 = vmatprep.mubr.bf16.mxu0 0
      %2352 = vmatmul.mubr.bf16.gmra.mrb[0].mxu0 %v2198
      %v2353 = vpop.f32.mrb[0].mxu0
      %v2354 = vadd.f32 0.0, %v2353
      %v2355 = vpop.f32.mrb[0].mxu0
      %v2356 = vpop.f32.mrb[0].mxu0
      %v2357 = vadd.f32 0.0, %v2356
      %v2358 = vpop.f32.mrb[0].mxu0
      %2359 = vmatprep.mubr.bf16.mxu0 0
      %2360 = vmatmul.mubr.bf16.gmra.mrb[0].mxu0 %v2201
      %v2361 = vpop.f32.mrb[0].mxu0
      %v2362 = vadd.f32 0.0, %v2361
      %v2363 = vpop.f32.mrb[0].mxu0
      %v2364 = vpop.f32.mrb[0].mxu0
      %v2365 = vadd.f32 0.0, %v2364
      %v2366 = vpop.f32.mrb[0].mxu0
      %2367 = vmatprep.mubr.bf16.mxu0 0
      %2368 = vmatmul.mubr.bf16.gmra.mrb[0].mxu0 %v2204
      %v2369 = vpop.f32.mrb[0].mxu0
      %v2370 = vadd.f32 0.0, %v2369
      %v2371 = vpop.f32.mrb[0].mxu0
      %v2372 = vpop.f32.mrb[0].mxu0
      %v2373 = vadd.f32 0.0, %v2372
      %v2374 = vpop.f32.mrb[0].mxu0
      %2375 = vmatprep.mubr.bf16.mxu0 0
      %2376 = vmatmul.mubr.bf16.gmra.mrb[0].mxu0 %v2207
      %v2377 = vpop.f32.mrb[0].mxu0
      %v2378 = vadd.f32 0.0, %v2377
      %v2379 = vpop.f32.mrb[0].mxu0
      %v2380 = vpop.f32.mrb[0].mxu0
      %v2381 = vadd.f32 0.0, %v2380
      %v2382 = vpop.f32.mrb[0].mxu0
      %2383 = vmatprep.mubr.bf16.mxu0 0
      %2384 = vmatmul.mubr.bf16.gmra.mrb[0].mxu0 %v2210
      %v2385 = vpop.f32.mrb[0].mxu0
      %v2386 = vadd.f32 0.0, %v2385
      %v2387 = vpop.f32.mrb[0].mxu0
      %v2388 = vpop.f32.mrb[0].mxu0
      %v2389 = vadd.f32 0.0, %v2388
      %v2390 = vpop.f32.mrb[0].mxu0
      %2391 = vdwg.mxu0
      %v2392 = vadd.f32 %v1953, %v2250
      %v2393 = vadd.f32 %v1954, %v2253
      %v2394 = vadd.f32 %v1955, %v2258
      %v2395 = vadd.f32 %v1956, %v2261
      %v2396 = vadd.f32 %v1957, %v2266
      %v2397 = vadd.f32 %v1958, %v2269
      %v2398 = vadd.f32 %v1959, %v2274
      %v2399 = vadd.f32 %v1960, %v2277
      %v2400 = vadd.f32 %v1961, %v2282
      %v2401 = vadd.f32 %v1962, %v2285
      %v2402 = vadd.f32 %v1963, %v2290
      %v2403 = vadd.f32 %v1964, %v2293
      %v2404 = vadd.f32 %v1965, %v2298
      %v2405 = vadd.f32 %v1966, %v2301
      %v2406 = vadd.f32 %v1967, %v2306
      %v2407 = vadd.f32 %v1968, %v2309
      %v2408 = vadd.f32 %v1969, %v2314
      %v2409 = vadd.f32 %v1970, %v2317
      %v2410 = vadd.f32 %v1971, %v2322
      %v2411 = vadd.f32 %v1972, %v2325
      %v2412 = vadd.f32 %v1973, %v2330
      %v2413 = vadd.f32 %v1974, %v2333
      %v2414 = vadd.f32 %v1975, %v2338
      %v2415 = vadd.f32 %v1976, %v2341
      %v2416 = vadd.f32 %v1977, %v2346
      %v2417 = vadd.f32 %v1978, %v2349
      %v2418 = vadd.f32 %v1979, %v2354
      %v2419 = vadd.f32 %v1980, %v2357
      %v2420 = vadd.f32 %v1981, %v2362
      %v2421 = vadd.f32 %v1982, %v2365
      %v2422 = vadd.f32 %v1983, %v2370
      %v2423 = vadd.f32 %v1984, %v2373
      %v2424 = vadd.f32 %v1985, %v2378
      %v2425 = vadd.f32 %v1986, %v2381
      %v2426 = vadd.f32 %v1987, %v2386
      %v2427 = vadd.f32 %v1988, %v2389
      %v2428 = vld [vmem:[%s261 + $0x144] sm:$0xf]
      %v2429 = vld [vmem:[%s261 + $0x148] sm:$0xf]
      %v2430 = vld [vmem:[%s261 + $0x14c] sm:$0xf]
      %v2431 = vld [vmem:[%s261 + $0x150] sm:$0xf]
      %v2432 = vld [vmem:[%s261 + $0x154] sm:$0xf]
      %v2433 = vld [vmem:[%s261 + $0x158] sm:$0xf]
      %v2434 = vld [vmem:[%s261 + $0x15c] sm:$0xf]
      %v2435 = vld [vmem:[%s261 + $0x160] sm:$0xf]
      %v2436 = vld [vmem:[%s261 + $0x164] sm:$0xf]
      %v2437 = vld [vmem:[%s261 + $0x168] sm:$0xf]
      %v2438 = vld [vmem:[%s261 + $0x16c] sm:$0xf]
      %v2439 = vld [vmem:[%s261 + $0x170] sm:$0xf]
      %v2440 = vld [vmem:[%s261 + $0x174] sm:$0xf]
      %v2441 = vld [vmem:[%s261 + $0x178] sm:$0xf]
      %v2442 = vld [vmem:[%s261 + $0x17c] sm:$0xf]
      %v2443 = vld [vmem:[%s261 + $0x180] sm:$0xf]
      %v2444 = vld [vmem:[%s261 + $0x184] sm:$0xf]
      %v2445 = vld [vmem:[%s261 + $0x188] sm:$0xf]
      %v2446 = vld [vmem:[%s261 + $0x18c] sm:$0xf]
      %v2447 = vld [vmem:[%s261 + $0x190] sm:$0xf]
      %v2448 = vld [vmem:[%s261 + $0x194] sm:$0xf]
      %v2449 = vld [vmem:[%s261 + $0x198] sm:$0xf]
      %v2450 = vld [vmem:[%s261 + $0x19c] sm:$0xf]
      %v2451 = vld [vmem:[%s261 + $0x1a0] sm:$0xf]
      %v2452 = vld [vmem:[%s261 + $0x1a4] sm:$0xf]
      %v2453 = vld [vmem:[%s261 + $0x1a8] sm:$0xf]
      %v2454 = vld [vmem:[%s261 + $0x1ac] sm:$0xf]
      %v2455 = vld [vmem:[%s261 + $0x1b0] sm:$0xf]
      %v2456 = vld [vmem:[%s261 + $0x1b4] sm:$0xf]
      %v2457 = vld [vmem:[%s261 + $0x1b8] sm:$0xf]
      %v2458 = vld [vmem:[%s261 + $0x1bc] sm:$0xf]
      %v2459 = vld [vmem:[%s261 + $0x1c0] sm:$0xf]
      %v2460 = vld [vmem:[%s261 + $0x1c4] sm:$0xf]
      %v2461 = vld [vmem:[%s261 + $0x1c8] sm:$0xf]
      %v2462 = vld [vmem:[%s261 + $0x1cc] sm:$0xf]
      %v2463 = vld [vmem:[%s261 + $0x1d0] sm:$0xf]
      %v2464 = vld [vmem:[%s261 + $0x1d4] sm:$0x1]
      %s2465 = scalar_lea.vmem %s1, 10
      %v2466 = vld [vmem:[%s2465] sm:$0x3]
      %v2504 = vunpack.c.l.b16 %v2428
      %v2505 = vunpack.c.l.b16 %v2429
      %v2506 = vunpack.c.l.b16 %v2430
      %v2507 = vunpack.c.l.b16 %v2431
      %v2508 = vunpack.c.l.b16 %v2432
      %v2509 = vunpack.c.l.b16 %v2433
      %v2510 = vunpack.c.l.b16 %v2434
      %v2511 = vunpack.c.l.b16 %v2435
      %v2512 = vunpack.c.l.b16 %v2436
      %v2513 = vunpack.c.l.b16 %v2437
      %v2514 = vunpack.c.l.b16 %v2438
      %v2515 = vunpack.c.l.b16 %v2439
      %v2516 = vunpack.c.l.b16 %v2440
      %v2517 = vunpack.c.l.b16 %v2441
      %v2518 = vunpack.c.l.b16 %v2442
      %v2519 = vunpack.c.l.b16 %v2443
      %v2520 = vunpack.c.l.b16 %v2444
      %v2521 = vunpack.c.l.b16 %v2445
      %v2522 = vunpack.c.l.b16 %v2446
      %v2523 = vunpack.c.l.b16 %v2447
      %v2524 = vunpack.c.l.b16 %v2448
      %v2525 = vunpack.c.l.b16 %v2449
      %v2526 = vunpack.c.l.b16 %v2450
      %v2527 = vunpack.c.l.b16 %v2451
      %v2528 = vunpack.c.l.b16 %v2452
      %v2529 = vunpack.c.l.b16 %v2453
      %v2530 = vunpack.c.l.b16 %v2454
      %v2531 = vunpack.c.l.b16 %v2455
      %v2532 = vunpack.c.l.b16 %v2456
      %v2533 = vunpack.c.l.b16 %v2457
      %v2534 = vunpack.c.l.b16 %v2458
      %v2535 = vunpack.c.l.b16 %v2459
      %v2536 = vunpack.c.l.b16 %v2460
      %v2537 = vunpack.c.l.b16 %v2461
      %v2538 = vunpack.c.l.b16 %v2462
      %v2539 = vunpack.c.l.b16 %v2463
      %v2540 = vunpack.c.l.b16 %v2464
      %v2541 = vpack.c.b16 %v2505, %v2504
      %v2542 = vpack.c.b16 %v2507, %v2506
      %v2543 = vpack.c.b16 %v2509, %v2508
      %v2544 = vpack.c.b16 %v2511, %v2510
      %v2545 = vpack.c.b16 %v2513, %v2512
      %v2546 = vpack.c.b16 %v2515, %v2514
      %v2547 = vpack.c.b16 %v2517, %v2516
      %v2548 = vpack.c.b16 %v2519, %v2518
      %v2549 = vpack.c.b16 %v2521, %v2520
      %v2550 = vpack.c.b16 %v2523, %v2522
      %v2551 = vpack.c.b16 %v2525, %v2524
      %v2552 = vpack.c.b16 %v2527, %v2526
      %v2553 = vpack.c.b16 %v2529, %v2528
      %v2554 = vpack.c.b16 %v2531, %v2530
      %v2555 = vpack.c.b16 %v2533, %v2532
      %v2556 = vpack.c.b16 %v2535, %v2534
      %v2557 = vpack.c.b16 %v2537, %v2536
      %v2558 = vpack.c.b16 %v2539, %v2538
      %v2559 = vpack.c.b16 %v2540, %v2540
      %v2561 = vshrl.u32 %v2541, 16
      %v2563 = vshll.u32 %v2541, 16
      %v2565 = vrot.slane %v2563, 1
      %v2566 = vor.u32 %v2561, %v2565
      %v2568 = vshll.u32 %v2542, 16
      %v2570 = vrot.slane %v2568, 1
      %v2571 = vsel %vm1172, %v2566, %v2570
      %v2572 = vshrl.u32 %v2542, 16
      %v2574 = vor.u32 %v2572, %v2570
      %v2576 = vshll.u32 %v2543, 16
      %v2578 = vrot.slane %v2576, 1
      %v2579 = vsel %vm1172, %v2574, %v2578
      %v2580 = vshrl.u32 %v2543, 16
      %v2582 = vor.u32 %v2580, %v2578
      %v2584 = vshll.u32 %v2544, 16
      %v2586 = vrot.slane %v2584, 1
      %v2587 = vsel %vm1172, %v2582, %v2586
      %v2588 = vshrl.u32 %v2544, 16
      %v2590 = vor.u32 %v2588, %v2586
      %v2592 = vshll.u32 %v2545, 16
      %v2594 = vrot.slane %v2592, 1
      %v2595 = vsel %vm1172, %v2590, %v2594
      %v2596 = vshrl.u32 %v2545, 16
      %v2598 = vor.u32 %v2596, %v2594
      %v2600 = vshll.u32 %v2546, 16
      %v2602 = vrot.slane %v2600, 1
      %v2603 = vsel %vm1172, %v2598, %v2602
      %v2604 = vshrl.u32 %v2546, 16
      %v2606 = vor.u32 %v2604, %v2602
      %v2608 = vshll.u32 %v2547, 16
      %v2610 = vrot.slane %v2608, 1
      %v2611 = vsel %vm1172, %v2606, %v2610
      %v2612 = vshrl.u32 %v2547, 16
      %v2614 = vor.u32 %v2612, %v2610
      %v2616 = vshll.u32 %v2548, 16
      %v2618 = vrot.slane %v2616, 1
      %v2619 = vsel %vm1172, %v2614, %v2618
      %v2620 = vshrl.u32 %v2548, 16
      %v2622 = vor.u32 %v2620, %v2618
      %v2624 = vshll.u32 %v2549, 16
      %v2626 = vrot.slane %v2624, 1
      %v2627 = vsel %vm1172, %v2622, %v2626
      %v2628 = vshrl.u32 %v2549, 16
      %v2630 = vor.u32 %v2628, %v2626
      %v2632 = vshll.u32 %v2550, 16
      %v2634 = vrot.slane %v2632, 1
      %v2635 = vsel %vm1172, %v2630, %v2634
      %v2636 = vshrl.u32 %v2550, 16
      %v2638 = vor.u32 %v2636, %v2634
      %v2640 = vshll.u32 %v2551, 16
      %v2642 = vrot.slane %v2640, 1
      %v2643 = vsel %vm1172, %v2638, %v2642
      %v2644 = vshrl.u32 %v2551, 16
      %v2646 = vor.u32 %v2644, %v2642
      %v2648 = vshll.u32 %v2552, 16
      %v2650 = vrot.slane %v2648, 1
      %v2651 = vsel %vm1172, %v2646, %v2650
      %v2652 = vshrl.u32 %v2552, 16
      %v2654 = vor.u32 %v2652, %v2650
      %v2656 = vshll.u32 %v2553, 16
      %v2658 = vrot.slane %v2656, 1
      %v2659 = vsel %vm1172, %v2654, %v2658
      %v2660 = vshrl.u32 %v2553, 16
      %v2662 = vor.u32 %v2660, %v2658
      %v2664 = vshll.u32 %v2554, 16
      %v2666 = vrot.slane %v2664, 1
      %v2667 = vsel %vm1172, %v2662, %v2666
      %v2668 = vshrl.u32 %v2554, 16
      %v2670 = vor.u32 %v2668, %v2666
      %v2672 = vshll.u32 %v2555, 16
      %v2674 = vrot.slane %v2672, 1
      %v2675 = vsel %vm1172, %v2670, %v2674
      %v2676 = vshrl.u32 %v2555, 16
      %v2678 = vor.u32 %v2676, %v2674
      %v2680 = vshll.u32 %v2556, 16
      %v2682 = vrot.slane %v2680, 1
      %v2683 = vsel %vm1172, %v2678, %v2682
      %v2684 = vshrl.u32 %v2556, 16
      %v2686 = vor.u32 %v2684, %v2682
      %v2688 = vshll.u32 %v2557, 16
      %v2690 = vrot.slane %v2688, 1
      %v2691 = vsel %vm1172, %v2686, %v2690
      %v2692 = vshrl.u32 %v2557, 16
      %v2694 = vor.u32 %v2692, %v2690
      %v2696 = vshll.u32 %v2558, 16
      %v2698 = vrot.slane %v2696, 1
      %v2699 = vsel %vm1172, %v2694, %v2698
      %v2700 = vshrl.u32 %v2558, 16
      %v2702 = vor.u32 %v2700, %v2698
      %v2704 = vshll.u32 %v2559, 16
      %v2706 = vrot.slane %v2704, 1
      %v2707 = vsel %vm1172, %v2702, %v2706
      %v2709 = vsel %vm477, %v2571, 0
      %v2712 = vsel %vm477, %v2579, 0
      %v2715 = vsel %vm477, %v2587, 0
      %v2718 = vsel %vm477, %v2595, 0
      %v2721 = vsel %vm477, %v2603, 0
      %v2724 = vsel %vm477, %v2611, 0
      %v2727 = vsel %vm477, %v2619, 0
      %v2730 = vsel %vm477, %v2627, 0
      %v2733 = vsel %vm477, %v2635, 0
      %v2736 = vsel %vm477, %v2643, 0
      %v2739 = vsel %vm477, %v2651, 0
      %v2742 = vsel %vm477, %v2659, 0
      %v2745 = vsel %vm477, %v2667, 0
      %v2748 = vsel %vm477, %v2675, 0
      %v2751 = vsel %vm477, %v2683, 0
      %v2754 = vsel %vm477, %v2691, 0
      %v2757 = vsel %vm477, %v2699, 0
      %v2760 = vsel %vm477, %v2707, 0
      %v2763 = vand.u32 %v2466, %v535
      %2765 = vmatprep.subr.bf16.mxu0 0
      %2766 = vmatpush1.bf16.msra.mxu0 %v2763
      %2767 = vmatprep.subr.bf16.mxu0 0
      %2768 = vmatpush1.bf16.msra.mxu0 0
      %2769 = vmatprep.subr.bf16.mxu0 0
      %2770 = vmatpush1.bf16.msra.mxu0 0
      %2771 = vmatprep.subr.bf16.mxu0 0
      %2772 = vmatpush1.bf16.msra.mxu0 0
      %2773 = vmatprep.subr.bf16.mxu0 0
      %2774 = vmatpush1.bf16.msra.mxu0 0
      %2775 = vmatprep.subr.bf16.mxu0 0
      %2776 = vmatpush1.bf16.msra.mxu0 0
      %2777 = vmatprep.subr.bf16.mxu0 0
      %2778 = vmatpush1.bf16.msra.mxu0 0
      %2779 = vmatprep.subr.bf16.mxu0 0
      %2780 = vmatpush1.bf16.msra.mxu0 0
      %2781 = vmatprep.subr.bf16.mxu0 0
      %2782 = vmatpush1.bf16.msra.mxu0 0
      %2783 = vmatprep.subr.bf16.mxu0 0
      %2784 = vmatpush1.bf16.msra.mxu0 0
      %2785 = vmatprep.subr.bf16.mxu0 0
      %2786 = vmatpush1.bf16.msra.mxu0 0
      %2787 = vmatprep.subr.bf16.mxu0 0
      %2788 = vmatpush1.bf16.msra.mxu0 0
      %2789 = vmatprep.subr.bf16.mxu0 0
      %2790 = vmatpush1.bf16.msra.mxu0 0
      %2791 = vmatprep.subr.bf16.mxu0 0
      %2792 = vmatpush1.bf16.msra.mxu0 0
      %2793 = vmatprep.subr.bf16.mxu0 0
      %2794 = vmatpush1.bf16.msra.mxu0 0
      %2795 = vmatprep.subr.bf16.mxu0 0
      %2796 = vmatpush1.bf16.msra.mxu0 0
      %2797 = vmatprep.mubr.bf16.mxu0 0
      %2798 = vmatmul.mubr.bf16.gmra.mrb[0].mxu0 %v2709
      %v2799 = vpop.f32.mrb[0].mxu0
      %v2800 = vadd.f32 0.0, %v2799
      %v2801 = vpop.f32.mrb[0].mxu0
      %v2802 = vpop.f32.mrb[0].mxu0
      %v2803 = vadd.f32 0.0, %v2802
      %v2804 = vpop.f32.mrb[0].mxu0
      %2805 = vmatprep.mubr.bf16.mxu0 0
      %2806 = vmatmul.mubr.bf16.gmra.mrb[0].mxu0 %v2712
      %v2807 = vpop.f32.mrb[0].mxu0
      %v2808 = vadd.f32 0.0, %v2807
      %v2809 = vpop.f32.mrb[0].mxu0
      %v2810 = vpop.f32.mrb[0].mxu0
      %v2811 = vadd.f32 0.0, %v2810
      %v2812 = vpop.f32.mrb[0].mxu0
      %2813 = vmatprep.mubr.bf16.mxu0 0
      %2814 = vmatmul.mubr.bf16.gmra.mrb[0].mxu0 %v2715
      %v2815 = vpop.f32.mrb[0].mxu0
      %v2816 = vadd.f32 0.0, %v2815
      %v2817 = vpop.f32.mrb[0].mxu0
      %v2818 = vpop.f32.mrb[0].mxu0
      %v2819 = vadd.f32 0.0, %v2818
      %v2820 = vpop.f32.mrb[0].mxu0
      %2821 = vmatprep.mubr.bf16.mxu0 0
      %2822 = vmatmul.mubr.bf16.gmra.mrb[0].mxu0 %v2718
      %v2823 = vpop.f32.mrb[0].mxu0
      %v2824 = vadd.f32 0.0, %v2823
      %v2825 = vpop.f32.mrb[0].mxu0
      %v2826 = vpop.f32.mrb[0].mxu0
      %v2827 = vadd.f32 0.0, %v2826
      %v2828 = vpop.f32.mrb[0].mxu0
      %2829 = vmatprep.mubr.bf16.mxu0 0
      %2830 = vmatmul.mubr.bf16.gmra.mrb[0].mxu0 %v2721
      %v2831 = vpop.f32.mrb[0].mxu0
      %v2832 = vadd.f32 0.0, %v2831
      %v2833 = vpop.f32.mrb[0].mxu0
      %v2834 = vpop.f32.mrb[0].mxu0
      %v2835 = vadd.f32 0.0, %v2834
      %v2836 = vpop.f32.mrb[0].mxu0
      %2837 = vmatprep.mubr.bf16.mxu0 0
      %2838 = vmatmul.mubr.bf16.gmra.mrb[0].mxu0 %v2724
      %v2839 = vpop.f32.mrb[0].mxu0
      %v2840 = vadd.f32 0.0, %v2839
      %v2841 = vpop.f32.mrb[0].mxu0
      %v2842 = vpop.f32.mrb[0].mxu0
      %v2843 = vadd.f32 0.0, %v2842
      %v2844 = vpop.f32.mrb[0].mxu0
      %2845 = vmatprep.mubr.bf16.mxu0 0
      %2846 = vmatmul.mubr.bf16.gmra.mrb[0].mxu0 %v2727
      %v2847 = vpop.f32.mrb[0].mxu0
      %v2848 = vadd.f32 0.0, %v2847
      %v2849 = vpop.f32.mrb[0].mxu0
      %v2850 = vpop.f32.mrb[0].mxu0
      %v2851 = vadd.f32 0.0, %v2850
      %v2852 = vpop.f32.mrb[0].mxu0
      %2853 = vmatprep.mubr.bf16.mxu0 0
      %2854 = vmatmul.mubr.bf16.gmra.mrb[0].mxu0 %v2730
      %v2855 = vpop.f32.mrb[0].mxu0
      %v2856 = vadd.f32 0.0, %v2855
      %v2857 = vpop.f32.mrb[0].mxu0
      %v2858 = vpop.f32.mrb[0].mxu0
      %v2859 = vadd.f32 0.0, %v2858
      %v2860 = vpop.f32.mrb[0].mxu0
      %2861 = vmatprep.mubr.bf16.mxu0 0
      %2862 = vmatmul.mubr.bf16.gmra.mrb[0].mxu0 %v2733
      %v2863 = vpop.f32.mrb[0].mxu0
      %v2864 = vadd.f32 0.0, %v2863
      %v2865 = vpop.f32.mrb[0].mxu0
      %v2866 = vpop.f32.mrb[0].mxu0
      %v2867 = vadd.f32 0.0, %v2866
      %v2868 = vpop.f32.mrb[0].mxu0
      %2869 = vmatprep.mubr.bf16.mxu0 0
      %2870 = vmatmul.mubr.bf16.gmra.mrb[0].mxu0 %v2736
      %v2871 = vpop.f32.mrb[0].mxu0
      %v2872 = vadd.f32 0.0, %v2871
      %v2873 = vpop.f32.mrb[0].mxu0
      %v2874 = vpop.f32.mrb[0].mxu0
      %v2875 = vadd.f32 0.0, %v2874
      %v2876 = vpop.f32.mrb[0].mxu0
      %2877 = vmatprep.mubr.bf16.mxu0 0
      %2878 = vmatmul.mubr.bf16.gmra.mrb[0].mxu0 %v2739
      %v2879 = vpop.f32.mrb[0].mxu0
      %v2880 = vadd.f32 0.0, %v2879
      %v2881 = vpop.f32.mrb[0].mxu0
      %v2882 = vpop.f32.mrb[0].mxu0
      %v2883 = vadd.f32 0.0, %v2882
      %v2884 = vpop.f32.mrb[0].mxu0
      %2885 = vmatprep.mubr.bf16.mxu0 0
      %2886 = vmatmul.mubr.bf16.gmra.mrb[0].mxu0 %v2742
      %v2887 = vpop.f32.mrb[0].mxu0
      %v2888 = vadd.f32 0.0, %v2887
      %v2889 = vpop.f32.mrb[0].mxu0
      %v2890 = vpop.f32.mrb[0].mxu0
      %v2891 = vadd.f32 0.0, %v2890
      %v2892 = vpop.f32.mrb[0].mxu0
      %2893 = vmatprep.mubr.bf16.mxu0 0
      %2894 = vmatmul.mubr.bf16.gmra.mrb[0].mxu0 %v2745
      %v2895 = vpop.f32.mrb[0].mxu0
      %v2896 = vadd.f32 0.0, %v2895
      %v2897 = vpop.f32.mrb[0].mxu0
      %v2898 = vpop.f32.mrb[0].mxu0
      %v2899 = vadd.f32 0.0, %v2898
      %v2900 = vpop.f32.mrb[0].mxu0
      %2901 = vmatprep.mubr.bf16.mxu0 0
      %2902 = vmatmul.mubr.bf16.gmra.mrb[0].mxu0 %v2748
      %v2903 = vpop.f32.mrb[0].mxu0
      %v2904 = vadd.f32 0.0, %v2903
      %v2905 = vpop.f32.mrb[0].mxu0
      %v2906 = vpop.f32.mrb[0].mxu0
      %v2907 = vadd.f32 0.0, %v2906
      %v2908 = vpop.f32.mrb[0].mxu0
      %2909 = vmatprep.mubr.bf16.mxu0 0
      %2910 = vmatmul.mubr.bf16.gmra.mrb[0].mxu0 %v2751
      %v2911 = vpop.f32.mrb[0].mxu0
      %v2912 = vadd.f32 0.0, %v2911
      %v2913 = vpop.f32.mrb[0].mxu0
      %v2914 = vpop.f32.mrb[0].mxu0
      %v2915 = vadd.f32 0.0, %v2914
      %v2916 = vpop.f32.mrb[0].mxu0
      %2917 = vmatprep.mubr.bf16.mxu0 0
      %2918 = vmatmul.mubr.bf16.gmra.mrb[0].mxu0 %v2754
      %v2919 = vpop.f32.mrb[0].mxu0
      %v2920 = vadd.f32 0.0, %v2919
      %v2921 = vpop.f32.mrb[0].mxu0
      %v2922 = vpop.f32.mrb[0].mxu0
      %v2923 = vadd.f32 0.0, %v2922
      %v2924 = vpop.f32.mrb[0].mxu0
      %2925 = vmatprep.mubr.bf16.mxu0 0
      %2926 = vmatmul.mubr.bf16.gmra.mrb[0].mxu0 %v2757
      %v2927 = vpop.f32.mrb[0].mxu0
      %v2928 = vadd.f32 0.0, %v2927
      %v2929 = vpop.f32.mrb[0].mxu0
      %v2930 = vpop.f32.mrb[0].mxu0
      %v2931 = vadd.f32 0.0, %v2930
      %v2932 = vpop.f32.mrb[0].mxu0
      %2933 = vmatprep.mubr.bf16.mxu0 0
      %2934 = vmatmul.mubr.bf16.gmra.mrb[0].mxu0 %v2760
      %v2935 = vpop.f32.mrb[0].mxu0
      %v2936 = vadd.f32 0.0, %v2935
      %v2937 = vpop.f32.mrb[0].mxu0
      %v2938 = vpop.f32.mrb[0].mxu0
      %v2939 = vadd.f32 0.0, %v2938
      %v2940 = vpop.f32.mrb[0].mxu0
      %2941 = vdwg.mxu0
      %v2942 = vadd.f32 %v2392, %v2800
      %v2943 = vadd.f32 %v2393, %v2803
      %v2944 = vadd.f32 %v2394, %v2808
      %v2945 = vadd.f32 %v2395, %v2811
      %v2946 = vadd.f32 %v2396, %v2816
      %v2947 = vadd.f32 %v2397, %v2819
      %v2948 = vadd.f32 %v2398, %v2824
      %v2949 = vadd.f32 %v2399, %v2827
      %v2950 = vadd.f32 %v2400, %v2832
      %v2951 = vadd.f32 %v2401, %v2835
      %v2952 = vadd.f32 %v2402, %v2840
      %v2953 = vadd.f32 %v2403, %v2843
      %v2954 = vadd.f32 %v2404, %v2848
      %v2955 = vadd.f32 %v2405, %v2851
      %v2956 = vadd.f32 %v2406, %v2856
      %v2957 = vadd.f32 %v2407, %v2859
      %v2958 = vadd.f32 %v2408, %v2864
      %v2959 = vadd.f32 %v2409, %v2867
      %v2960 = vadd.f32 %v2410, %v2872
      %v2961 = vadd.f32 %v2411, %v2875
      %v2962 = vadd.f32 %v2412, %v2880
      %v2963 = vadd.f32 %v2413, %v2883
      %v2964 = vadd.f32 %v2414, %v2888
      %v2965 = vadd.f32 %v2415, %v2891
      %v2966 = vadd.f32 %v2416, %v2896
      %v2967 = vadd.f32 %v2417, %v2899
      %v2968 = vadd.f32 %v2418, %v2904
      %v2969 = vadd.f32 %v2419, %v2907
      %v2970 = vadd.f32 %v2420, %v2912
      %v2971 = vadd.f32 %v2421, %v2915
      %v2972 = vadd.f32 %v2422, %v2920
      %v2973 = vadd.f32 %v2423, %v2923
      %v2974 = vadd.f32 %v2424, %v2928
      %v2975 = vadd.f32 %v2425, %v2931
      %v2976 = vadd.f32 %v2426, %v2936
      %v2977 = vadd.f32 %v2427, %v2939
      %v2978 = vld [vmem:[%s261 + $0x8] sm:$0xe]
      %v2979 = vld [vmem:[%s261 + $0xc] sm:$0xf]
      %v2980 = vld [vmem:[%s261 + $0x10] sm:$0xf]
      %v2981 = vld [vmem:[%s261 + $0x14] sm:$0xf]
      %v2982 = vld [vmem:[%s261 + $0x18] sm:$0xf]
      %v2983 = vld [vmem:[%s261 + $0x1c] sm:$0xf]
      %v2984 = vld [vmem:[%s261 + $0x20] sm:$0xf]
      %v2985 = vld [vmem:[%s261 + $0x24] sm:$0xf]
      %v2986 = vld [vmem:[%s261 + $0x28] sm:$0xf]
      %v2987 = vld [vmem:[%s261 + $0x2c] sm:$0xf]
      %v2988 = vld [vmem:[%s261 + $0x30] sm:$0xf]
      %v2989 = vld [vmem:[%s261 + $0x34] sm:$0xf]
      %v2990 = vld [vmem:[%s261 + $0x38] sm:$0xf]
      %v2991 = vld [vmem:[%s261 + $0x3c] sm:$0xf]
      %v2992 = vld [vmem:[%s261 + $0x40] sm:$0xf]
      %v2993 = vld [vmem:[%s261 + $0x44] sm:$0xf]
      %v2994 = vld [vmem:[%s261 + $0x48] sm:$0xf]
      %v2995 = vld [vmem:[%s261 + $0x4c] sm:$0xf]
      %v2996 = vld [vmem:[%s261 + $0x50] sm:$0xf]
      %v2997 = vld [vmem:[%s261 + $0x54] sm:$0xf]
      %v2998 = vld [vmem:[%s261 + $0x58] sm:$0xf]
      %v2999 = vld [vmem:[%s261 + $0x5c] sm:$0xf]
      %v3000 = vld [vmem:[%s261 + $0x60] sm:$0xf]
      %v3001 = vld [vmem:[%s261 + $0x64] sm:$0xf]
      %v3002 = vld [vmem:[%s261 + $0x68] sm:$0xf]
      %v3003 = vld [vmem:[%s261 + $0x6c] sm:$0xf]
      %v3004 = vld [vmem:[%s261 + $0x70] sm:$0xf]
      %v3005 = vld [vmem:[%s261 + $0x74] sm:$0xf]
      %v3006 = vld [vmem:[%s261 + $0x78] sm:$0xf]
      %v3007 = vld [vmem:[%s261 + $0x7c] sm:$0xf]
      %v3008 = vld [vmem:[%s261 + $0x80] sm:$0xf]
      %v3009 = vld [vmem:[%s261 + $0x84] sm:$0xf]
      %v3010 = vld [vmem:[%s261 + $0x88] sm:$0xf]
      %v3011 = vld [vmem:[%s261 + $0x8c] sm:$0xf]
      %v3012 = vld [vmem:[%s261 + $0x90] sm:$0xf]
      %v3013 = vld [vmem:[%s261 + $0x94] sm:$0xf]
      %v3014 = vld [vmem:[%s261 + $0x98] sm:$0x1]
      %s3015 = scalar_lea.vmem %s1, 12
      %v3016 = vld [vmem:[%s3015] sm:$0x3]
      %v3054 = vunpack.c.l.b16 %v2978
      %v3055 = vunpack.c.l.b16 %v2979
      %v3056 = vunpack.c.l.b16 %v2980
      %v3057 = vunpack.c.l.b16 %v2981
      %v3058 = vunpack.c.l.b16 %v2982
      %v3059 = vunpack.c.l.b16 %v2983
      %v3060 = vunpack.c.l.b16 %v2984
      %v3061 = vunpack.c.l.b16 %v2985
      %v3062 = vunpack.c.l.b16 %v2986
      %v3063 = vunpack.c.l.b16 %v2987
      %v3064 = vunpack.c.l.b16 %v2988
      %v3065 = vunpack.c.l.b16 %v2989
      %v3066 = vunpack.c.l.b16 %v2990
      %v3067 = vunpack.c.l.b16 %v2991
      %v3068 = vunpack.c.l.b16 %v2992
      %v3069 = vunpack.c.l.b16 %v2993
      %v3070 = vunpack.c.l.b16 %v2994
      %v3071 = vunpack.c.l.b16 %v2995
      %v3072 = vunpack.c.l.b16 %v2996
      %v3073 = vunpack.c.l.b16 %v2997
      %v3074 = vunpack.c.l.b16 %v2998
      %v3075 = vunpack.c.l.b16 %v2999
      %v3076 = vunpack.c.l.b16 %v3000
      %v3077 = vunpack.c.l.b16 %v3001
      %v3078 = vunpack.c.l.b16 %v3002
      %v3079 = vunpack.c.l.b16 %v3003
      %v3080 = vunpack.c.l.b16 %v3004
      %v3081 = vunpack.c.l.b16 %v3005
      %v3082 = vunpack.c.l.b16 %v3006
      %v3083 = vunpack.c.l.b16 %v3007
      %v3084 = vunpack.c.l.b16 %v3008
      %v3085 = vunpack.c.l.b16 %v3009
      %v3086 = vunpack.c.l.b16 %v3010
      %v3087 = vunpack.c.l.b16 %v3011
      %v3088 = vunpack.c.l.b16 %v3012
      %v3089 = vunpack.c.l.b16 %v3013
      %v3090 = vunpack.c.l.b16 %v3014
      %v3091 = vpack.c.b16 %v3055, %v3054
      %v3092 = vpack.c.b16 %v3057, %v3056
      %v3093 = vpack.c.b16 %v3059, %v3058
      %v3094 = vpack.c.b16 %v3061, %v3060
      %v3095 = vpack.c.b16 %v3063, %v3062
      %v3096 = vpack.c.b16 %v3065, %v3064
      %v3097 = vpack.c.b16 %v3067, %v3066
      %v3098 = vpack.c.b16 %v3069, %v3068
      %v3099 = vpack.c.b16 %v3071, %v3070
      %v3100 = vpack.c.b16 %v3073, %v3072
      %v3101 = vpack.c.b16 %v3075, %v3074
      %v3102 = vpack.c.b16 %v3077, %v3076
      %v3103 = vpack.c.b16 %v3079, %v3078
      %v3104 = vpack.c.b16 %v3081, %v3080
      %v3105 = vpack.c.b16 %v3083, %v3082
      %v3106 = vpack.c.b16 %v3085, %v3084
      %v3107 = vpack.c.b16 %v3087, %v3086
      %v3108 = vpack.c.b16 %v3089, %v3088
      %v3109 = vpack.c.b16 %v3090, %v3090
      %vm3110 = vcmask 1046528
      %v3111 = vrot.slane %v3091, 1
      %v3112 = vrot.slane %v3092, 1
      %v3113 = vsel %vm3110, %v3111, %v3112
      %v3114 = vrot.slane %v3093, 1
      %v3115 = vsel %vm3110, %v3112, %v3114
      %v3116 = vrot.slane %v3094, 1
      %v3117 = vsel %vm3110, %v3114, %v3116
      %v3118 = vrot.slane %v3095, 1
      %v3119 = vsel %vm3110, %v3116, %v3118
      %v3120 = vrot.slane %v3096, 1
      %v3121 = vsel %vm3110, %v3118, %v3120
      %v3122 = vrot.slane %v3097, 1
      %v3123 = vsel %vm3110, %v3120, %v3122
      %v3124 = vrot.slane %v3098, 1
      %v3125 = vsel %vm3110, %v3122, %v3124
      %v3126 = vrot.slane %v3099, 1
      %v3127 = vsel %vm3110, %v3124, %v3126
      %v3128 = vrot.slane %v3100, 1
      %v3129 = vsel %vm3110, %v3126, %v3128
      %v3130 = vrot.slane %v3101, 1
      %v3131 = vsel %vm3110, %v3128, %v3130
      %v3132 = vrot.slane %v3102, 1
      %v3133 = vsel %vm3110, %v3130, %v3132
      %v3134 = vrot.slane %v3103, 1
      %v3135 = vsel %vm3110, %v3132, %v3134
      %v3136 = vrot.slane %v3104, 1
      %v3137 = vsel %vm3110, %v3134, %v3136
      %v3138 = vrot.slane %v3105, 1
      %v3139 = vsel %vm3110, %v3136, %v3138
      %v3140 = vrot.slane %v3106, 1
      %v3141 = vsel %vm3110, %v3138, %v3140
      %v3142 = vrot.slane %v3107, 1
      %v3143 = vsel %vm3110, %v3140, %v3142
      %v3144 = vrot.slane %v3108, 1
      %v3145 = vsel %vm3110, %v3142, %v3144
      %v3146 = vrot.slane %v3109, 1
      %v3147 = vsel %vm3110, %v3144, %v3146
      %v3149 = vsel %vm477, %v3113, 0
      %v3152 = vsel %vm477, %v3115, 0
      %v3155 = vsel %vm477, %v3117, 0
      %v3158 = vsel %vm477, %v3119, 0
      %v3161 = vsel %vm477, %v3121, 0
      %v3164 = vsel %vm477, %v3123, 0
      %v3167 = vsel %vm477, %v3125, 0
      %v3170 = vsel %vm477, %v3127, 0
      %v3173 = vsel %vm477, %v3129, 0
      %v3176 = vsel %vm477, %v3131, 0
      %v3179 = vsel %vm477, %v3133, 0
      %v3182 = vsel %vm477, %v3135, 0
      %v3185 = vsel %vm477, %v3137, 0
      %v3188 = vsel %vm477, %v3139, 0
      %v3191 = vsel %vm477, %v3141, 0
      %v3194 = vsel %vm477, %v3143, 0
      %v3197 = vsel %vm477, %v3145, 0
      %v3200 = vsel %vm477, %v3147, 0
      %v3203 = vand.u32 %v3016, %v535
      %3205 = vmatprep.subr.bf16.mxu0 0
      %3206 = vmatpush1.bf16.msra.mxu0 %v3203
      %3207 = vmatprep.subr.bf16.mxu0 0
      %3208 = vmatpush1.bf16.msra.mxu0 0
      %3209 = vmatprep.subr.bf16.mxu0 0
      %3210 = vmatpush1.bf16.msra.mxu0 0
      %3211 = vmatprep.subr.bf16.mxu0 0
      %3212 = vmatpush1.bf16.msra.mxu0 0
      %3213 = vmatprep.subr.bf16.mxu0 0
      %3214 = vmatpush1.bf16.msra.mxu0 0
      %3215 = vmatprep.subr.bf16.mxu0 0
      %3216 = vmatpush1.bf16.msra.mxu0 0
      %3217 = vmatprep.subr.bf16.mxu0 0
      %3218 = vmatpush1.bf16.msra.mxu0 0
      %3219 = vmatprep.subr.bf16.mxu0 0
      %3220 = vmatpush1.bf16.msra.mxu0 0
      %3221 = vmatprep.subr.bf16.mxu0 0
      %3222 = vmatpush1.bf16.msra.mxu0 0
      %3223 = vmatprep.subr.bf16.mxu0 0
      %3224 = vmatpush1.bf16.msra.mxu0 0
      %3225 = vmatprep.subr.bf16.mxu0 0
      %3226 = vmatpush1.bf16.msra.mxu0 0
      %3227 = vmatprep.subr.bf16.mxu0 0
      %3228 = vmatpush1.bf16.msra.mxu0 0
      %3229 = vmatprep.subr.bf16.mxu0 0
      %3230 = vmatpush1.bf16.msra.mxu0 0
      %3231 = vmatprep.subr.bf16.mxu0 0
      %3232 = vmatpush1.bf16.msra.mxu0 0
      %3233 = vmatprep.subr.bf16.mxu0 0
      %3234 = vmatpush1.bf16.msra.mxu0 0
      %3235 = vmatprep.subr.bf16.mxu0 0
      %3236 = vmatpush1.bf16.msra.mxu0 0
      %3237 = vmatprep.mubr.bf16.mxu0 0
      %3238 = vmatmul.mubr.bf16.gmra.mrb[0].mxu0 %v3149
      %v3239 = vpop.f32.mrb[0].mxu0
      %v3240 = vadd.f32 0.0, %v3239
      %v3241 = vpop.f32.mrb[0].mxu0
      %v3242 = vpop.f32.mrb[0].mxu0
      %v3243 = vadd.f32 0.0, %v3242
      %v3244 = vpop.f32.mrb[0].mxu0
      %3245 = vmatprep.mubr.bf16.mxu0 0
      %3246 = vmatmul.mubr.bf16.gmra.mrb[0].mxu0 %v3152
      %v3247 = vpop.f32.mrb[0].mxu0
      %v3248 = vadd.f32 0.0, %v3247
      %v3249 = vpop.f32.mrb[0].mxu0
      %v3250 = vpop.f32.mrb[0].mxu0
      %v3251 = vadd.f32 0.0, %v3250
      %v3252 = vpop.f32.mrb[0].mxu0
      %3253 = vmatprep.mubr.bf16.mxu0 0
      %3254 = vmatmul.mubr.bf16.gmra.mrb[0].mxu0 %v3155
      %v3255 = vpop.f32.mrb[0].mxu0
      %v3256 = vadd.f32 0.0, %v3255
      %v3257 = vpop.f32.mrb[0].mxu0
      %v3258 = vpop.f32.mrb[0].mxu0
      %v3259 = vadd.f32 0.0, %v3258
      %v3260 = vpop.f32.mrb[0].mxu0
      %3261 = vmatprep.mubr.bf16.mxu0 0
      %3262 = vmatmul.mubr.bf16.gmra.mrb[0].mxu0 %v3158
      %v3263 = vpop.f32.mrb[0].mxu0
      %v3264 = vadd.f32 0.0, %v3263
      %v3265 = vpop.f32.mrb[0].mxu0
      %v3266 = vpop.f32.mrb[0].mxu0
      %v3267 = vadd.f32 0.0, %v3266
      %v3268 = vpop.f32.mrb[0].mxu0
      %3269 = vmatprep.mubr.bf16.mxu0 0
      %3270 = vmatmul.mubr.bf16.gmra.mrb[0].mxu0 %v3161
      %v3271 = vpop.f32.mrb[0].mxu0
      %v3272 = vadd.f32 0.0, %v3271
      %v3273 = vpop.f32.mrb[0].mxu0
      %v3274 = vpop.f32.mrb[0].mxu0
      %v3275 = vadd.f32 0.0, %v3274
      %v3276 = vpop.f32.mrb[0].mxu0
      %3277 = vmatprep.mubr.bf16.mxu0 0
      %3278 = vmatmul.mubr.bf16.gmra.mrb[0].mxu0 %v3164
      %v3279 = vpop.f32.mrb[0].mxu0
      %v3280 = vadd.f32 0.0, %v3279
      %v3281 = vpop.f32.mrb[0].mxu0
      %v3282 = vpop.f32.mrb[0].mxu0
      %v3283 = vadd.f32 0.0, %v3282
      %v3284 = vpop.f32.mrb[0].mxu0
      %3285 = vmatprep.mubr.bf16.mxu0 0
      %3286 = vmatmul.mubr.bf16.gmra.mrb[0].mxu0 %v3167
      %v3287 = vpop.f32.mrb[0].mxu0
      %v3288 = vadd.f32 0.0, %v3287
      %v3289 = vpop.f32.mrb[0].mxu0
      %v3290 = vpop.f32.mrb[0].mxu0
      %v3291 = vadd.f32 0.0, %v3290
      %v3292 = vpop.f32.mrb[0].mxu0
      %3293 = vmatprep.mubr.bf16.mxu0 0
      %3294 = vmatmul.mubr.bf16.gmra.mrb[0].mxu0 %v3170
      %v3295 = vpop.f32.mrb[0].mxu0
      %v3296 = vadd.f32 0.0, %v3295
      %v3297 = vpop.f32.mrb[0].mxu0
      %v3298 = vpop.f32.mrb[0].mxu0
      %v3299 = vadd.f32 0.0, %v3298
      %v3300 = vpop.f32.mrb[0].mxu0
      %3301 = vmatprep.mubr.bf16.mxu0 0
      %3302 = vmatmul.mubr.bf16.gmra.mrb[0].mxu0 %v3173
      %v3303 = vpop.f32.mrb[0].mxu0
      %v3304 = vadd.f32 0.0, %v3303
      %v3305 = vpop.f32.mrb[0].mxu0
      %v3306 = vpop.f32.mrb[0].mxu0
      %v3307 = vadd.f32 0.0, %v3306
      %v3308 = vpop.f32.mrb[0].mxu0
      %3309 = vmatprep.mubr.bf16.mxu0 0
      %3310 = vmatmul.mubr.bf16.gmra.mrb[0].mxu0 %v3176
      %v3311 = vpop.f32.mrb[0].mxu0
      %v3312 = vadd.f32 0.0, %v3311
      %v3313 = vpop.f32.mrb[0].mxu0
      %v3314 = vpop.f32.mrb[0].mxu0
      %v3315 = vadd.f32 0.0, %v3314
      %v3316 = vpop.f32.mrb[0].mxu0
      %3317 = vmatprep.mubr.bf16.mxu0 0
      %3318 = vmatmul.mubr.bf16.gmra.mrb[0].mxu0 %v3179
      %v3319 = vpop.f32.mrb[0].mxu0
      %v3320 = vadd.f32 0.0, %v3319
      %v3321 = vpop.f32.mrb[0].mxu0
      %v3322 = vpop.f32.mrb[0].mxu0
      %v3323 = vadd.f32 0.0, %v3322
      %v3324 = vpop.f32.mrb[0].mxu0
      %3325 = vmatprep.mubr.bf16.mxu0 0
      %3326 = vmatmul.mubr.bf16.gmra.mrb[0].mxu0 %v3182
      %v3327 = vpop.f32.mrb[0].mxu0
      %v3328 = vadd.f32 0.0, %v3327
      %v3329 = vpop.f32.mrb[0].mxu0
      %v3330 = vpop.f32.mrb[0].mxu0
      %v3331 = vadd.f32 0.0, %v3330
      %v3332 = vpop.f32.mrb[0].mxu0
      %3333 = vmatprep.mubr.bf16.mxu0 0
      %3334 = vmatmul.mubr.bf16.gmra.mrb[0].mxu0 %v3185
      %v3335 = vpop.f32.mrb[0].mxu0
      %v3336 = vadd.f32 0.0, %v3335
      %v3337 = vpop.f32.mrb[0].mxu0
      %v3338 = vpop.f32.mrb[0].mxu0
      %v3339 = vadd.f32 0.0, %v3338
      %v3340 = vpop.f32.mrb[0].mxu0
      %3341 = vmatprep.mubr.bf16.mxu0 0
      %3342 = vmatmul.mubr.bf16.gmra.mrb[0].mxu0 %v3188
      %v3343 = vpop.f32.mrb[0].mxu0
      %v3344 = vadd.f32 0.0, %v3343
      %v3345 = vpop.f32.mrb[0].mxu0
      %v3346 = vpop.f32.mrb[0].mxu0
      %v3347 = vadd.f32 0.0, %v3346
      %v3348 = vpop.f32.mrb[0].mxu0
      %3349 = vmatprep.mubr.bf16.mxu0 0
      %3350 = vmatmul.mubr.bf16.gmra.mrb[0].mxu0 %v3191
      %v3351 = vpop.f32.mrb[0].mxu0
      %v3352 = vadd.f32 0.0, %v3351
      %v3353 = vpop.f32.mrb[0].mxu0
      %v3354 = vpop.f32.mrb[0].mxu0
      %v3355 = vadd.f32 0.0, %v3354
      %v3356 = vpop.f32.mrb[0].mxu0
      %3357 = vmatprep.mubr.bf16.mxu0 0
      %3358 = vmatmul.mubr.bf16.gmra.mrb[0].mxu0 %v3194
      %v3359 = vpop.f32.mrb[0].mxu0
      %v3360 = vadd.f32 0.0, %v3359
      %v3361 = vpop.f32.mrb[0].mxu0
      %v3362 = vpop.f32.mrb[0].mxu0
      %v3363 = vadd.f32 0.0, %v3362
      %v3364 = vpop.f32.mrb[0].mxu0
      %3365 = vmatprep.mubr.bf16.mxu0 0
      %3366 = vmatmul.mubr.bf16.gmra.mrb[0].mxu0 %v3197
      %v3367 = vpop.f32.mrb[0].mxu0
      %v3368 = vadd.f32 0.0, %v3367
      %v3369 = vpop.f32.mrb[0].mxu0
      %v3370 = vpop.f32.mrb[0].mxu0
      %v3371 = vadd.f32 0.0, %v3370
      %v3372 = vpop.f32.mrb[0].mxu0
      %3373 = vmatprep.mubr.bf16.mxu0 0
      %3374 = vmatmul.mubr.bf16.gmra.mrb[0].mxu0 %v3200
      %v3375 = vpop.f32.mrb[0].mxu0
      %v3376 = vadd.f32 0.0, %v3375
      %v3377 = vpop.f32.mrb[0].mxu0
      %v3378 = vpop.f32.mrb[0].mxu0
      %v3379 = vadd.f32 0.0, %v3378
      %v3380 = vpop.f32.mrb[0].mxu0
      %3381 = vdwg.mxu0
      %v3382 = vadd.f32 %v2942, %v3240
      %v3383 = vadd.f32 %v2943, %v3243
      %v3384 = vadd.f32 %v2944, %v3248
      %v3385 = vadd.f32 %v2945, %v3251
      %v3386 = vadd.f32 %v2946, %v3256
      %v3387 = vadd.f32 %v2947, %v3259
      %v3388 = vadd.f32 %v2948, %v3264
      %v3389 = vadd.f32 %v2949, %v3267
      %v3390 = vadd.f32 %v2950, %v3272
      %v3391 = vadd.f32 %v2951, %v3275
      %v3392 = vadd.f32 %v2952, %v3280
      %v3393 = vadd.f32 %v2953, %v3283
      %v3394 = vadd.f32 %v2954, %v3288
      %v3395 = vadd.f32 %v2955, %v3291
      %v3396 = vadd.f32 %v2956, %v3296
      %v3397 = vadd.f32 %v2957, %v3299
      %v3398 = vadd.f32 %v2958, %v3304
      %v3399 = vadd.f32 %v2959, %v3307
      %v3400 = vadd.f32 %v2960, %v3312
      %v3401 = vadd.f32 %v2961, %v3315
      %v3402 = vadd.f32 %v2962, %v3320
      %v3403 = vadd.f32 %v2963, %v3323
      %v3404 = vadd.f32 %v2964, %v3328
      %v3405 = vadd.f32 %v2965, %v3331
      %v3406 = vadd.f32 %v2966, %v3336
      %v3407 = vadd.f32 %v2967, %v3339
      %v3408 = vadd.f32 %v2968, %v3344
      %v3409 = vadd.f32 %v2969, %v3347
      %v3410 = vadd.f32 %v2970, %v3352
      %v3411 = vadd.f32 %v2971, %v3355
      %v3412 = vadd.f32 %v2972, %v3360
      %v3413 = vadd.f32 %v2973, %v3363
      %v3414 = vadd.f32 %v2974, %v3368
      %v3415 = vadd.f32 %v2975, %v3371
      %v3416 = vadd.f32 %v2976, %v3376
      %v3417 = vadd.f32 %v2977, %v3379
      %v3418 = vld [vmem:[%s261 + $0xa8] sm:$0x8]
      %v3419 = vld [vmem:[%s261 + $0xac] sm:$0xf]
      %v3420 = vld [vmem:[%s261 + $0xb0] sm:$0xf]
      %v3421 = vld [vmem:[%s261 + $0xb4] sm:$0xf]
      %v3422 = vld [vmem:[%s261 + $0xb8] sm:$0xf]
      %v3423 = vld [vmem:[%s261 + $0xbc] sm:$0xf]
      %v3424 = vld [vmem:[%s261 + $0xc0] sm:$0xf]
      %v3425 = vld [vmem:[%s261 + $0xc4] sm:$0xf]
      %v3426 = vld [vmem:[%s261 + $0xc8] sm:$0xf]
      %v3427 = vld [vmem:[%s261 + $0xcc] sm:$0xf]
      %v3428 = vld [vmem:[%s261 + $0xd0] sm:$0xf]
      %v3429 = vld [vmem:[%s261 + $0xd4] sm:$0xf]
      %v3430 = vld [vmem:[%s261 + $0xd8] sm:$0xf]
      %v3431 = vld [vmem:[%s261 + $0xdc] sm:$0xf]
      %v3432 = vld [vmem:[%s261 + $0xe0] sm:$0xf]
      %v3433 = vld [vmem:[%s261 + $0xe4] sm:$0xf]
      %v3434 = vld [vmem:[%s261 + $0xe8] sm:$0xf]
      %v3435 = vld [vmem:[%s261 + $0xec] sm:$0xf]
      %v3436 = vld [vmem:[%s261 + $0xf0] sm:$0xf]
      %v3437 = vld [vmem:[%s261 + $0xf4] sm:$0xf]
      %v3438 = vld [vmem:[%s261 + $0xf8] sm:$0xf]
      %v3439 = vld [vmem:[%s261 + $0xfc] sm:$0xf]
      %v3440 = vld [vmem:[%s261 + $0x100] sm:$0xf]
      %v3441 = vld [vmem:[%s261 + $0x104] sm:$0xf]
      %v3442 = vld [vmem:[%s261 + $0x108] sm:$0xf]
      %v3443 = vld [vmem:[%s261 + $0x10c] sm:$0xf]
      %v3444 = vld [vmem:[%s261 + $0x110] sm:$0xf]
      %v3445 = vld [vmem:[%s261 + $0x114] sm:$0xf]
      %v3446 = vld [vmem:[%s261 + $0x118] sm:$0xf]
      %v3447 = vld [vmem:[%s261 + $0x11c] sm:$0xf]
      %v3448 = vld [vmem:[%s261 + $0x120] sm:$0xf]
      %v3449 = vld [vmem:[%s261 + $0x124] sm:$0xf]
      %v3450 = vld [vmem:[%s261 + $0x128] sm:$0xf]
      %v3451 = vld [vmem:[%s261 + $0x12c] sm:$0xf]
      %v3452 = vld [vmem:[%s261 + $0x130] sm:$0xf]
      %v3453 = vld [vmem:[%s261 + $0x134] sm:$0xf]
      %v3454 = vld [vmem:[%s261 + $0x138] sm:$0x7]
      %s3455 = scalar_lea.vmem %s1, 14
      %v3456 = vld [vmem:[%s3455] sm:$0x3]
      %v3494 = vunpack.c.l.b16 %v3418
      %v3495 = vunpack.c.l.b16 %v3419
      %v3496 = vunpack.c.l.b16 %v3420
      %v3497 = vunpack.c.l.b16 %v3421
      %v3498 = vunpack.c.l.b16 %v3422
      %v3499 = vunpack.c.l.b16 %v3423
      %v3500 = vunpack.c.l.b16 %v3424
      %v3501 = vunpack.c.l.b16 %v3425
      %v3502 = vunpack.c.l.b16 %v3426
      %v3503 = vunpack.c.l.b16 %v3427
      %v3504 = vunpack.c.l.b16 %v3428
      %v3505 = vunpack.c.l.b16 %v3429
      %v3506 = vunpack.c.l.b16 %v3430
      %v3507 = vunpack.c.l.b16 %v3431
      %v3508 = vunpack.c.l.b16 %v3432
      %v3509 = vunpack.c.l.b16 %v3433
      %v3510 = vunpack.c.l.b16 %v3434
      %v3511 = vunpack.c.l.b16 %v3435
      %v3512 = vunpack.c.l.b16 %v3436
      %v3513 = vunpack.c.l.b16 %v3437
      %v3514 = vunpack.c.l.b16 %v3438
      %v3515 = vunpack.c.l.b16 %v3439
      %v3516 = vunpack.c.l.b16 %v3440
      %v3517 = vunpack.c.l.b16 %v3441
      %v3518 = vunpack.c.l.b16 %v3442
      %v3519 = vunpack.c.l.b16 %v3443
      %v3520 = vunpack.c.l.b16 %v3444
      %v3521 = vunpack.c.l.b16 %v3445
      %v3522 = vunpack.c.l.b16 %v3446
      %v3523 = vunpack.c.l.b16 %v3447
      %v3524 = vunpack.c.l.b16 %v3448
      %v3525 = vunpack.c.l.b16 %v3449
      %v3526 = vunpack.c.l.b16 %v3450
      %v3527 = vunpack.c.l.b16 %v3451
      %v3528 = vunpack.c.l.b16 %v3452
      %v3529 = vunpack.c.l.b16 %v3453
      %v3530 = vunpack.c.l.b16 %v3454
      %v3531 = vpack.c.b16 %v3495, %v3494
      %v3532 = vpack.c.b16 %v3497, %v3496
      %v3533 = vpack.c.b16 %v3499, %v3498
      %v3534 = vpack.c.b16 %v3501, %v3500
      %v3535 = vpack.c.b16 %v3503, %v3502
      %v3536 = vpack.c.b16 %v3505, %v3504
      %v3537 = vpack.c.b16 %v3507, %v3506
      %v3538 = vpack.c.b16 %v3509, %v3508
      %v3539 = vpack.c.b16 %v3511, %v3510
      %v3540 = vpack.c.b16 %v3513, %v3512
      %v3541 = vpack.c.b16 %v3515, %v3514
      %v3542 = vpack.c.b16 %v3517, %v3516
      %v3543 = vpack.c.b16 %v3519, %v3518
      %v3544 = vpack.c.b16 %v3521, %v3520
      %v3545 = vpack.c.b16 %v3523, %v3522
      %v3546 = vpack.c.b16 %v3525, %v3524
      %v3547 = vpack.c.b16 %v3527, %v3526
      %v3548 = vpack.c.b16 %v3529, %v3528
      %v3549 = vpack.c.b16 %v3530, %v3530
      %vm3550 = vcmask 1044480
      %v3551 = vrot.slane %v3531, 3
      %v3552 = vrot.slane %v3532, 3
      %v3553 = vsel %vm3550, %v3551, %v3552
      %v3554 = vrot.slane %v3533, 3
      %v3555 = vsel %vm3550, %v3552, %v3554
      %v3556 = vrot.slane %v3534, 3
      %v3557 = vsel %vm3550, %v3554, %v3556
      %v3558 = vrot.slane %v3535, 3
      %v3559 = vsel %vm3550, %v3556, %v3558
      %v3560 = vrot.slane %v3536, 3
      %v3561 = vsel %vm3550, %v3558, %v3560
      %v3562 = vrot.slane %v3537, 3
      %v3563 = vsel %vm3550, %v3560, %v3562
      %v3564 = vrot.slane %v3538, 3
      %v3565 = vsel %vm3550, %v3562, %v3564
      %v3566 = vrot.slane %v3539, 3
      %v3567 = vsel %vm3550, %v3564, %v3566
      %v3568 = vrot.slane %v3540, 3
      %v3569 = vsel %vm3550, %v3566, %v3568
      %v3570 = vrot.slane %v3541, 3
      %v3571 = vsel %vm3550, %v3568, %v3570
      %v3572 = vrot.slane %v3542, 3
      %v3573 = vsel %vm3550, %v3570, %v3572
      %v3574 = vrot.slane %v3543, 3
      %v3575 = vsel %vm3550, %v3572, %v3574
      %v3576 = vrot.slane %v3544, 3
      %v3577 = vsel %vm3550, %v3574, %v3576
      %v3578 = vrot.slane %v3545, 3
      %v3579 = vsel %vm3550, %v3576, %v3578
      %v3580 = vrot.slane %v3546, 3
      %v3581 = vsel %vm3550, %v3578, %v3580
      %v3582 = vrot.slane %v3547, 3
      %v3583 = vsel %vm3550, %v3580, %v3582
      %v3584 = vrot.slane %v3548, 3
      %v3585 = vsel %vm3550, %v3582, %v3584
      %v3586 = vrot.slane %v3549, 3
      %v3587 = vsel %vm3550, %v3584, %v3586
      %v3589 = vsel %vm477, %v3553, 0
      %v3592 = vsel %vm477, %v3555, 0
      %v3595 = vsel %vm477, %v3557, 0
      %v3598 = vsel %vm477, %v3559, 0
      %v3601 = vsel %vm477, %v3561, 0
      %v3604 = vsel %vm477, %v3563, 0
      %v3607 = vsel %vm477, %v3565, 0
      %v3610 = vsel %vm477, %v3567, 0
      %v3613 = vsel %vm477, %v3569, 0
      %v3616 = vsel %vm477, %v3571, 0
      %v3619 = vsel %vm477, %v3573, 0
      %v3622 = vsel %vm477, %v3575, 0
      %v3625 = vsel %vm477, %v3577, 0
      %v3628 = vsel %vm477, %v3579, 0
      %v3631 = vsel %vm477, %v3581, 0
      %v3634 = vsel %vm477, %v3583, 0
      %v3637 = vsel %vm477, %v3585, 0
      %v3640 = vsel %vm477, %v3587, 0
      %v3643 = vand.u32 %v3456, %v535
      %3645 = vmatprep.subr.bf16.mxu0 0
      %3646 = vmatpush1.bf16.msra.mxu0 %v3643
      %3647 = vmatprep.subr.bf16.mxu0 0
      %3648 = vmatpush1.bf16.msra.mxu0 0
      %3649 = vmatprep.subr.bf16.mxu0 0
      %3650 = vmatpush1.bf16.msra.mxu0 0
      %3651 = vmatprep.subr.bf16.mxu0 0
      %3652 = vmatpush1.bf16.msra.mxu0 0
      %3653 = vmatprep.subr.bf16.mxu0 0
      %3654 = vmatpush1.bf16.msra.mxu0 0
      %3655 = vmatprep.subr.bf16.mxu0 0
      %3656 = vmatpush1.bf16.msra.mxu0 0
      %3657 = vmatprep.subr.bf16.mxu0 0
      %3658 = vmatpush1.bf16.msra.mxu0 0
      %3659 = vmatprep.subr.bf16.mxu0 0
      %3660 = vmatpush1.bf16.msra.mxu0 0
      %3661 = vmatprep.subr.bf16.mxu0 0
      %3662 = vmatpush1.bf16.msra.mxu0 0
      %3663 = vmatprep.subr.bf16.mxu0 0
      %3664 = vmatpush1.bf16.msra.mxu0 0
      %3665 = vmatprep.subr.bf16.mxu0 0
      %3666 = vmatpush1.bf16.msra.mxu0 0
      %3667 = vmatprep.subr.bf16.mxu0 0
      %3668 = vmatpush1.bf16.msra.mxu0 0
      %3669 = vmatprep.subr.bf16.mxu0 0
      %3670 = vmatpush1.bf16.msra.mxu0 0
      %3671 = vmatprep.subr.bf16.mxu0 0
      %3672 = vmatpush1.bf16.msra.mxu0 0
      %3673 = vmatprep.subr.bf16.mxu0 0
      %3674 = vmatpush1.bf16.msra.mxu0 0
      %3675 = vmatprep.subr.bf16.mxu0 0
      %3676 = vmatpush1.bf16.msra.mxu0 0
      %3677 = vmatprep.mubr.bf16.mxu0 0
      %3678 = vmatmul.mubr.bf16.gmra.mrb[0].mxu0 %v3589
      %v3679 = vpop.f32.mrb[0].mxu0
      %v3680 = vadd.f32 0.0, %v3679
      %v3681 = vpop.f32.mrb[0].mxu0
      %v3682 = vpop.f32.mrb[0].mxu0
      %v3683 = vadd.f32 0.0, %v3682
      %v3684 = vpop.f32.mrb[0].mxu0
      %3685 = vmatprep.mubr.bf16.mxu0 0
      %3686 = vmatmul.mubr.bf16.gmra.mrb[0].mxu0 %v3592
      %v3687 = vpop.f32.mrb[0].mxu0
      %v3688 = vadd.f32 0.0, %v3687
      %v3689 = vpop.f32.mrb[0].mxu0
      %v3690 = vpop.f32.mrb[0].mxu0
      %v3691 = vadd.f32 0.0, %v3690
      %v3692 = vpop.f32.mrb[0].mxu0
      %3693 = vmatprep.mubr.bf16.mxu0 0
      %3694 = vmatmul.mubr.bf16.gmra.mrb[0].mxu0 %v3595
      %v3695 = vpop.f32.mrb[0].mxu0
      %v3696 = vadd.f32 0.0, %v3695
      %v3697 = vpop.f32.mrb[0].mxu0
      %v3698 = vpop.f32.mrb[0].mxu0
      %v3699 = vadd.f32 0.0, %v3698
      %v3700 = vpop.f32.mrb[0].mxu0
      %3701 = vmatprep.mubr.bf16.mxu0 0
      %3702 = vmatmul.mubr.bf16.gmra.mrb[0].mxu0 %v3598
      %v3703 = vpop.f32.mrb[0].mxu0
      %v3704 = vadd.f32 0.0, %v3703
      %v3705 = vpop.f32.mrb[0].mxu0
      %v3706 = vpop.f32.mrb[0].mxu0
      %v3707 = vadd.f32 0.0, %v3706
      %v3708 = vpop.f32.mrb[0].mxu0
      %3709 = vmatprep.mubr.bf16.mxu0 0
      %3710 = vmatmul.mubr.bf16.gmra.mrb[0].mxu0 %v3601
      %v3711 = vpop.f32.mrb[0].mxu0
      %v3712 = vadd.f32 0.0, %v3711
      %v3713 = vpop.f32.mrb[0].mxu0
      %v3714 = vpop.f32.mrb[0].mxu0
      %v3715 = vadd.f32 0.0, %v3714
      %v3716 = vpop.f32.mrb[0].mxu0
      %3717 = vmatprep.mubr.bf16.mxu0 0
      %3718 = vmatmul.mubr.bf16.gmra.mrb[0].mxu0 %v3604
      %v3719 = vpop.f32.mrb[0].mxu0
      %v3720 = vadd.f32 0.0, %v3719
      %v3721 = vpop.f32.mrb[0].mxu0
      %v3722 = vpop.f32.mrb[0].mxu0
      %v3723 = vadd.f32 0.0, %v3722
      %v3724 = vpop.f32.mrb[0].mxu0
      %3725 = vmatprep.mubr.bf16.mxu0 0
      %3726 = vmatmul.mubr.bf16.gmra.mrb[0].mxu0 %v3607
      %v3727 = vpop.f32.mrb[0].mxu0
      %v3728 = vadd.f32 0.0, %v3727
      %v3729 = vpop.f32.mrb[0].mxu0
      %v3730 = vpop.f32.mrb[0].mxu0
      %v3731 = vadd.f32 0.0, %v3730
      %v3732 = vpop.f32.mrb[0].mxu0
      %3733 = vmatprep.mubr.bf16.mxu0 0
      %3734 = vmatmul.mubr.bf16.gmra.mrb[0].mxu0 %v3610
      %v3735 = vpop.f32.mrb[0].mxu0
      %v3736 = vadd.f32 0.0, %v3735
      %v3737 = vpop.f32.mrb[0].mxu0
      %v3738 = vpop.f32.mrb[0].mxu0
      %v3739 = vadd.f32 0.0, %v3738
      %v3740 = vpop.f32.mrb[0].mxu0
      %3741 = vmatprep.mubr.bf16.mxu0 0
      %3742 = vmatmul.mubr.bf16.gmra.mrb[0].mxu0 %v3613
      %v3743 = vpop.f32.mrb[0].mxu0
      %v3744 = vadd.f32 0.0, %v3743
      %v3745 = vpop.f32.mrb[0].mxu0
      %v3746 = vpop.f32.mrb[0].mxu0
      %v3747 = vadd.f32 0.0, %v3746
      %v3748 = vpop.f32.mrb[0].mxu0
      %3749 = vmatprep.mubr.bf16.mxu0 0
      %3750 = vmatmul.mubr.bf16.gmra.mrb[0].mxu0 %v3616
      %v3751 = vpop.f32.mrb[0].mxu0
      %v3752 = vadd.f32 0.0, %v3751
      %v3753 = vpop.f32.mrb[0].mxu0
      %v3754 = vpop.f32.mrb[0].mxu0
      %v3755 = vadd.f32 0.0, %v3754
      %v3756 = vpop.f32.mrb[0].mxu0
      %3757 = vmatprep.mubr.bf16.mxu0 0
      %3758 = vmatmul.mubr.bf16.gmra.mrb[0].mxu0 %v3619
      %v3759 = vpop.f32.mrb[0].mxu0
      %v3760 = vadd.f32 0.0, %v3759
      %v3761 = vpop.f32.mrb[0].mxu0
      %v3762 = vpop.f32.mrb[0].mxu0
      %v3763 = vadd.f32 0.0, %v3762
      %v3764 = vpop.f32.mrb[0].mxu0
      %3765 = vmatprep.mubr.bf16.mxu0 0
      %3766 = vmatmul.mubr.bf16.gmra.mrb[0].mxu0 %v3622
      %v3767 = vpop.f32.mrb[0].mxu0
      %v3768 = vadd.f32 0.0, %v3767
      %v3769 = vpop.f32.mrb[0].mxu0
      %v3770 = vpop.f32.mrb[0].mxu0
      %v3771 = vadd.f32 0.0, %v3770
      %v3772 = vpop.f32.mrb[0].mxu0
      %3773 = vmatprep.mubr.bf16.mxu0 0
      %3774 = vmatmul.mubr.bf16.gmra.mrb[0].mxu0 %v3625
      %v3775 = vpop.f32.mrb[0].mxu0
      %v3776 = vadd.f32 0.0, %v3775
      %v3777 = vpop.f32.mrb[0].mxu0
      %v3778 = vpop.f32.mrb[0].mxu0
      %v3779 = vadd.f32 0.0, %v3778
      %v3780 = vpop.f32.mrb[0].mxu0
      %3781 = vmatprep.mubr.bf16.mxu0 0
      %3782 = vmatmul.mubr.bf16.gmra.mrb[0].mxu0 %v3628
      %v3783 = vpop.f32.mrb[0].mxu0
      %v3784 = vadd.f32 0.0, %v3783
      %v3785 = vpop.f32.mrb[0].mxu0
      %v3786 = vpop.f32.mrb[0].mxu0
      %v3787 = vadd.f32 0.0, %v3786
      %v3788 = vpop.f32.mrb[0].mxu0
      %3789 = vmatprep.mubr.bf16.mxu0 0
      %3790 = vmatmul.mubr.bf16.gmra.mrb[0].mxu0 %v3631
      %v3791 = vpop.f32.mrb[0].mxu0
      %v3792 = vadd.f32 0.0, %v3791
      %v3793 = vpop.f32.mrb[0].mxu0
      %v3794 = vpop.f32.mrb[0].mxu0
      %v3795 = vadd.f32 0.0, %v3794
      %v3796 = vpop.f32.mrb[0].mxu0
      %3797 = vmatprep.mubr.bf16.mxu0 0
      %3798 = vmatmul.mubr.bf16.gmra.mrb[0].mxu0 %v3634
      %v3799 = vpop.f32.mrb[0].mxu0
      %v3800 = vadd.f32 0.0, %v3799
      %v3801 = vpop.f32.mrb[0].mxu0
      %v3802 = vpop.f32.mrb[0].mxu0
      %v3803 = vadd.f32 0.0, %v3802
      %v3804 = vpop.f32.mrb[0].mxu0
      %3805 = vmatprep.mubr.bf16.mxu0 0
      %3806 = vmatmul.mubr.bf16.gmra.mrb[0].mxu0 %v3637
      %v3807 = vpop.f32.mrb[0].mxu0
      %v3808 = vadd.f32 0.0, %v3807
      %v3809 = vpop.f32.mrb[0].mxu0
      %v3810 = vpop.f32.mrb[0].mxu0
      %v3811 = vadd.f32 0.0, %v3810
      %v3812 = vpop.f32.mrb[0].mxu0
      %3813 = vmatprep.mubr.bf16.mxu0 0
      %3814 = vmatmul.mubr.bf16.gmra.mrb[0].mxu0 %v3640
      %v3815 = vpop.f32.mrb[0].mxu0
      %v3816 = vadd.f32 0.0, %v3815
      %v3817 = vpop.f32.mrb[0].mxu0
      %v3818 = vpop.f32.mrb[0].mxu0
      %v3819 = vadd.f32 0.0, %v3818
      %v3820 = vpop.f32.mrb[0].mxu0
      %3821 = vdwg.mxu0
      %v3822 = vadd.f32 %v3382, %v3680
      %v3823 = vadd.f32 %v3383, %v3683
      %v3824 = vadd.f32 %v3384, %v3688
      %v3825 = vadd.f32 %v3385, %v3691
      %v3826 = vadd.f32 %v3386, %v3696
      %v3827 = vadd.f32 %v3387, %v3699
      %v3828 = vadd.f32 %v3388, %v3704
      %v3829 = vadd.f32 %v3389, %v3707
      %v3830 = vadd.f32 %v3390, %v3712
      %v3831 = vadd.f32 %v3391, %v3715
      %v3832 = vadd.f32 %v3392, %v3720
      %v3833 = vadd.f32 %v3393, %v3723
      %v3834 = vadd.f32 %v3394, %v3728
      %v3835 = vadd.f32 %v3395, %v3731
      %v3836 = vadd.f32 %v3396, %v3736
      %v3837 = vadd.f32 %v3397, %v3739
      %v3838 = vadd.f32 %v3398, %v3744
      %v3839 = vadd.f32 %v3399, %v3747
      %v3840 = vadd.f32 %v3400, %v3752
      %v3841 = vadd.f32 %v3401, %v3755
      %v3842 = vadd.f32 %v3402, %v3760
      %v3843 = vadd.f32 %v3403, %v3763
      %v3844 = vadd.f32 %v3404, %v3768
      %v3845 = vadd.f32 %v3405, %v3771
      %v3846 = vadd.f32 %v3406, %v3776
      %v3847 = vadd.f32 %v3407, %v3779
      %v3848 = vadd.f32 %v3408, %v3784
      %v3849 = vadd.f32 %v3409, %v3787
      %v3850 = vadd.f32 %v3410, %v3792
      %v3851 = vadd.f32 %v3411, %v3795
      %v3852 = vadd.f32 %v3412, %v3800
      %v3853 = vadd.f32 %v3413, %v3803
      %v3854 = vadd.f32 %v3414, %v3808
      %v3855 = vadd.f32 %v3415, %v3811
      %v3856 = vadd.f32 %v3416, %v3816
      %v3857 = vadd.f32 %v3417, %v3819
      %v3858 = vld [vmem:[%s261 + $0x98] sm:$0x3]
      %s3859 = scalar_lea.vmem %s1, 16
      %v3860 = vld [vmem:[%s3859] sm:$0x3]
      %v3862 = vunpack.c.l.b16 %v3858
      %v3863 = vpack.c.b16 %v3862, %v3862
      %vm3864 = vsmask.f32 6400
      %v3866 = vshrl.u32 %v3091, 16
      %v3868 = vrot.slane %v3866, 1
      %v3869 = vshll.u32 %v3091, 16
      %v3871 = vrot.slane %v3869, 2
      %v3872 = vor.u32 %v3868, %v3871
      %v3874 = vshrl.u32 %v3092, 16
      %v3876 = vrot.slane %v3874, 1
      %v3877 = vshll.u32 %v3092, 16
      %v3879 = vrot.slane %v3877, 2
      %v3880 = vor.u32 %v3876, %v3879
      %v3881 = vsel %vm3864, %v3872, %v3880
      %v3883 = vshrl.u32 %v3093, 16
      %v3885 = vrot.slane %v3883, 1
      %v3886 = vshll.u32 %v3093, 16
      %v3888 = vrot.slane %v3886, 2
      %v3889 = vor.u32 %v3885, %v3888
      %v3890 = vsel %vm3864, %v3880, %v3889
      %v3892 = vshrl.u32 %v3094, 16
      %v3894 = vrot.slane %v3892, 1
      %v3895 = vshll.u32 %v3094, 16
      %v3897 = vrot.slane %v3895, 2
      %v3898 = vor.u32 %v3894, %v3897
      %v3899 = vsel %vm3864, %v3889, %v3898
      %v3901 = vshrl.u32 %v3095, 16
      %v3903 = vrot.slane %v3901, 1
      %v3904 = vshll.u32 %v3095, 16
      %v3906 = vrot.slane %v3904, 2
      %v3907 = vor.u32 %v3903, %v3906
      %v3908 = vsel %vm3864, %v3898, %v3907
      %v3910 = vshrl.u32 %v3096, 16
      %v3912 = vrot.slane %v3910, 1
      %v3913 = vshll.u32 %v3096, 16
      %v3915 = vrot.slane %v3913, 2
      %v3916 = vor.u32 %v3912, %v3915
      %v3917 = vsel %vm3864, %v3907, %v3916
      %v3919 = vshrl.u32 %v3097, 16
      %v3921 = vrot.slane %v3919, 1
      %v3922 = vshll.u32 %v3097, 16
      %v3924 = vrot.slane %v3922, 2
      %v3925 = vor.u32 %v3921, %v3924
      %v3926 = vsel %vm3864, %v3916, %v3925
      %v3928 = vshrl.u32 %v3098, 16
      %v3930 = vrot.slane %v3928, 1
      %v3931 = vshll.u32 %v3098, 16
      %v3933 = vrot.slane %v3931, 2
      %v3934 = vor.u32 %v3930, %v3933
      %v3935 = vsel %vm3864, %v3925, %v3934
      %v3937 = vshrl.u32 %v3099, 16
      %v3939 = vrot.slane %v3937, 1
      %v3940 = vshll.u32 %v3099, 16
      %v3942 = vrot.slane %v3940, 2
      %v3943 = vor.u32 %v3939, %v3942
      %v3944 = vsel %vm3864, %v3934, %v3943
      %v3946 = vshrl.u32 %v3100, 16
      %v3948 = vrot.slane %v3946, 1
      %v3949 = vshll.u32 %v3100, 16
      %v3951 = vrot.slane %v3949, 2
      %v3952 = vor.u32 %v3948, %v3951
      %v3953 = vsel %vm3864, %v3943, %v3952
      %v3955 = vshrl.u32 %v3101, 16
      %v3957 = vrot.slane %v3955, 1
      %v3958 = vshll.u32 %v3101, 16
      %v3960 = vrot.slane %v3958, 2
      %v3961 = vor.u32 %v3957, %v3960
      %v3962 = vsel %vm3864, %v3952, %v3961
      %v3964 = vshrl.u32 %v3102, 16
      %v3966 = vrot.slane %v3964, 1
      %v3967 = vshll.u32 %v3102, 16
      %v3969 = vrot.slane %v3967, 2
      %v3970 = vor.u32 %v3966, %v3969
      %v3971 = vsel %vm3864, %v3961, %v3970
      %v3973 = vshrl.u32 %v3103, 16
      %v3975 = vrot.slane %v3973, 1
      %v3976 = vshll.u32 %v3103, 16
      %v3978 = vrot.slane %v3976, 2
      %v3979 = vor.u32 %v3975, %v3978
      %v3980 = vsel %vm3864, %v3970, %v3979
      %v3982 = vshrl.u32 %v3104, 16
      %v3984 = vrot.slane %v3982, 1
      %v3985 = vshll.u32 %v3104, 16
      %v3987 = vrot.slane %v3985, 2
      %v3988 = vor.u32 %v3984, %v3987
      %v3989 = vsel %vm3864, %v3979, %v3988
      %v3991 = vshrl.u32 %v3105, 16
      %v3993 = vrot.slane %v3991, 1
      %v3994 = vshll.u32 %v3105, 16
      %v3996 = vrot.slane %v3994, 2
      %v3997 = vor.u32 %v3993, %v3996
      %v3998 = vsel %vm3864, %v3988, %v3997
      %v4000 = vshrl.u32 %v3106, 16
      %v4002 = vrot.slane %v4000, 1
      %v4003 = vshll.u32 %v3106, 16
      %v4005 = vrot.slane %v4003, 2
      %v4006 = vor.u32 %v4002, %v4005
      %v4007 = vsel %vm3864, %v3997, %v4006
      %v4009 = vshrl.u32 %v3107, 16
      %v4011 = vrot.slane %v4009, 1
      %v4012 = vshll.u32 %v3107, 16
      %v4014 = vrot.slane %v4012, 2
      %v4015 = vor.u32 %v4011, %v4014
      %v4016 = vsel %vm3864, %v4006, %v4015
      %v4018 = vshrl.u32 %v3108, 16
      %v4020 = vrot.slane %v4018, 1
      %v4021 = vshll.u32 %v3108, 16
      %v4023 = vrot.slane %v4021, 2
      %v4024 = vor.u32 %v4020, %v4023
      %v4025 = vsel %vm3864, %v4015, %v4024
      %v4027 = vshrl.u32 %v3863, 16
      %v4029 = vrot.slane %v4027, 1
      %v4030 = vshll.u32 %v3863, 16
      %v4032 = vrot.slane %v4030, 2
      %v4033 = vor.u32 %v4029, %v4032
      %v4034 = vsel %vm3864, %v4024, %v4033
      %v4036 = vsel %vm477, %v3881, 0
      %v4039 = vsel %vm477, %v3890, 0
      %v4042 = vsel %vm477, %v3899, 0
      %v4045 = vsel %vm477, %v3908, 0
      %v4048 = vsel %vm477, %v3917, 0
      %v4051 = vsel %vm477, %v3926, 0
      %v4054 = vsel %vm477, %v3935, 0
      %v4057 = vsel %vm477, %v3944, 0
      %v4060 = vsel %vm477, %v3953, 0
      %v4063 = vsel %vm477, %v3962, 0
      %v4066 = vsel %vm477, %v3971, 0
      %v4069 = vsel %vm477, %v3980, 0
      %v4072 = vsel %vm477, %v3989, 0
      %v4075 = vsel %vm477, %v3998, 0
      %v4078 = vsel %vm477, %v4007, 0
      %v4081 = vsel %vm477, %v4016, 0
      %v4084 = vsel %vm477, %v4025, 0
      %v4087 = vsel %vm477, %v4034, 0
      %v4090 = vand.u32 %v3860, %v535
      %4092 = vmatprep.subr.bf16.mxu0 0
      %4093 = vmatpush1.bf16.msra.mxu0 %v4090
      %4094 = vmatprep.subr.bf16.mxu0 0
      %4095 = vmatpush1.bf16.msra.mxu0 0
      %4096 = vmatprep.subr.bf16.mxu0 0
      %4097 = vmatpush1.bf16.msra.mxu0 0
      %4098 = vmatprep.subr.bf16.mxu0 0
      %4099 = vmatpush1.bf16.msra.mxu0 0
      %4100 = vmatprep.subr.bf16.mxu0 0
      %4101 = vmatpush1.bf16.msra.mxu0 0
      %4102 = vmatprep.subr.bf16.mxu0 0
      %4103 = vmatpush1.bf16.msra.mxu0 0
      %4104 = vmatprep.subr.bf16.mxu0 0
      %4105 = vmatpush1.bf16.msra.mxu0 0
      %4106 = vmatprep.subr.bf16.mxu0 0
      %4107 = vmatpush1.bf16.msra.mxu0 0
      %4108 = vmatprep.subr.bf16.mxu0 0
      %4109 = vmatpush1.bf16.msra.mxu0 0
      %4110 = vmatprep.subr.bf16.mxu0 0
      %4111 = vmatpush1.bf16.msra.mxu0 0
      %4112 = vmatprep.subr.bf16.mxu0 0
      %4113 = vmatpush1.bf16.msra.mxu0 0
      %4114 = vmatprep.subr.bf16.mxu0 0
      %4115 = vmatpush1.bf16.msra.mxu0 0
      %4116 = vmatprep.subr.bf16.mxu0 0
      %4117 = vmatpush1.bf16.msra.mxu0 0
      %4118 = vmatprep.subr.bf16.mxu0 0
      %4119 = vmatpush1.bf16.msra.mxu0 0
      %4120 = vmatprep.subr.bf16.mxu0 0
      %4121 = vmatpush1.bf16.msra.mxu0 0
      %4122 = vmatprep.subr.bf16.mxu0 0
      %4123 = vmatpush1.bf16.msra.mxu0 0
      %4124 = vmatprep.mubr.bf16.mxu0 0
      %4125 = vmatmul.mubr.bf16.gmra.mrb[0].mxu0 %v4036
      %v4126 = vpop.f32.mrb[0].mxu0
      %v4127 = vadd.f32 0.0, %v4126
      %v4128 = vpop.f32.mrb[0].mxu0
      %v4129 = vpop.f32.mrb[0].mxu0
      %v4130 = vadd.f32 0.0, %v4129
      %v4131 = vpop.f32.mrb[0].mxu0
      %4132 = vmatprep.mubr.bf16.mxu0 0
      %4133 = vmatmul.mubr.bf16.gmra.mrb[0].mxu0 %v4039
      %v4134 = vpop.f32.mrb[0].mxu0
      %v4135 = vadd.f32 0.0, %v4134
      %v4136 = vpop.f32.mrb[0].mxu0
      %v4137 = vpop.f32.mrb[0].mxu0
      %v4138 = vadd.f32 0.0, %v4137
      %v4139 = vpop.f32.mrb[0].mxu0
      %4140 = vmatprep.mubr.bf16.mxu0 0
      %4141 = vmatmul.mubr.bf16.gmra.mrb[0].mxu0 %v4042
      %v4142 = vpop.f32.mrb[0].mxu0
      %v4143 = vadd.f32 0.0, %v4142
      %v4144 = vpop.f32.mrb[0].mxu0
      %v4145 = vpop.f32.mrb[0].mxu0
      %v4146 = vadd.f32 0.0, %v4145
      %v4147 = vpop.f32.mrb[0].mxu0
      %4148 = vmatprep.mubr.bf16.mxu0 0
      %4149 = vmatmul.mubr.bf16.gmra.mrb[0].mxu0 %v4045
      %v4150 = vpop.f32.mrb[0].mxu0
      %v4151 = vadd.f32 0.0, %v4150
      %v4152 = vpop.f32.mrb[0].mxu0
      %v4153 = vpop.f32.mrb[0].mxu0
      %v4154 = vadd.f32 0.0, %v4153
      %v4155 = vpop.f32.mrb[0].mxu0
      %4156 = vmatprep.mubr.bf16.mxu0 0
      %4157 = vmatmul.mubr.bf16.gmra.mrb[0].mxu0 %v4048
      %v4158 = vpop.f32.mrb[0].mxu0
      %v4159 = vadd.f32 0.0, %v4158
      %v4160 = vpop.f32.mrb[0].mxu0
      %v4161 = vpop.f32.mrb[0].mxu0
      %v4162 = vadd.f32 0.0, %v4161
      %v4163 = vpop.f32.mrb[0].mxu0
      %4164 = vmatprep.mubr.bf16.mxu0 0
      %4165 = vmatmul.mubr.bf16.gmra.mrb[0].mxu0 %v4051
      %v4166 = vpop.f32.mrb[0].mxu0
      %v4167 = vadd.f32 0.0, %v4166
      %v4168 = vpop.f32.mrb[0].mxu0
      %v4169 = vpop.f32.mrb[0].mxu0
      %v4170 = vadd.f32 0.0, %v4169
      %v4171 = vpop.f32.mrb[0].mxu0
      %4172 = vmatprep.mubr.bf16.mxu0 0
      %4173 = vmatmul.mubr.bf16.gmra.mrb[0].mxu0 %v4054
      %v4174 = vpop.f32.mrb[0].mxu0
      %v4175 = vadd.f32 0.0, %v4174
      %v4176 = vpop.f32.mrb[0].mxu0
      %v4177 = vpop.f32.mrb[0].mxu0
      %v4178 = vadd.f32 0.0, %v4177
      %v4179 = vpop.f32.mrb[0].mxu0
      %4180 = vmatprep.mubr.bf16.mxu0 0
      %4181 = vmatmul.mubr.bf16.gmra.mrb[0].mxu0 %v4057
      %v4182 = vpop.f32.mrb[0].mxu0
      %v4183 = vadd.f32 0.0, %v4182
      %v4184 = vpop.f32.mrb[0].mxu0
      %v4185 = vpop.f32.mrb[0].mxu0
      %v4186 = vadd.f32 0.0, %v4185
      %v4187 = vpop.f32.mrb[0].mxu0
      %4188 = vmatprep.mubr.bf16.mxu0 0
      %4189 = vmatmul.mubr.bf16.gmra.mrb[0].mxu0 %v4060
      %v4190 = vpop.f32.mrb[0].mxu0
      %v4191 = vadd.f32 0.0, %v4190
      %v4192 = vpop.f32.mrb[0].mxu0
      %v4193 = vpop.f32.mrb[0].mxu0
      %v4194 = vadd.f32 0.0, %v4193
      %v4195 = vpop.f32.mrb[0].mxu0
      %4196 = vmatprep.mubr.bf16.mxu0 0
      %4197 = vmatmul.mubr.bf16.gmra.mrb[0].mxu0 %v4063
      %v4198 = vpop.f32.mrb[0].mxu0
      %v4199 = vadd.f32 0.0, %v4198
      %v4200 = vpop.f32.mrb[0].mxu0
      %v4201 = vpop.f32.mrb[0].mxu0
      %v4202 = vadd.f32 0.0, %v4201
      %v4203 = vpop.f32.mrb[0].mxu0
      %4204 = vmatprep.mubr.bf16.mxu0 0
      %4205 = vmatmul.mubr.bf16.gmra.mrb[0].mxu0 %v4066
      %v4206 = vpop.f32.mrb[0].mxu0
      %v4207 = vadd.f32 0.0, %v4206
      %v4208 = vpop.f32.mrb[0].mxu0
      %v4209 = vpop.f32.mrb[0].mxu0
      %v4210 = vadd.f32 0.0, %v4209
      %v4211 = vpop.f32.mrb[0].mxu0
      %4212 = vmatprep.mubr.bf16.mxu0 0
      %4213 = vmatmul.mubr.bf16.gmra.mrb[0].mxu0 %v4069
      %v4214 = vpop.f32.mrb[0].mxu0
      %v4215 = vadd.f32 0.0, %v4214
      %v4216 = vpop.f32.mrb[0].mxu0
      %v4217 = vpop.f32.mrb[0].mxu0
      %v4218 = vadd.f32 0.0, %v4217
      %v4219 = vpop.f32.mrb[0].mxu0
      %4220 = vmatprep.mubr.bf16.mxu0 0
      %4221 = vmatmul.mubr.bf16.gmra.mrb[0].mxu0 %v4072
      %v4222 = vpop.f32.mrb[0].mxu0
      %v4223 = vadd.f32 0.0, %v4222
      %v4224 = vpop.f32.mrb[0].mxu0
      %v4225 = vpop.f32.mrb[0].mxu0
      %v4226 = vadd.f32 0.0, %v4225
      %v4227 = vpop.f32.mrb[0].mxu0
      %4228 = vmatprep.mubr.bf16.mxu0 0
      %4229 = vmatmul.mubr.bf16.gmra.mrb[0].mxu0 %v4075
      %v4230 = vpop.f32.mrb[0].mxu0
      %v4231 = vadd.f32 0.0, %v4230
      %v4232 = vpop.f32.mrb[0].mxu0
      %v4233 = vpop.f32.mrb[0].mxu0
      %v4234 = vadd.f32 0.0, %v4233
      %v4235 = vpop.f32.mrb[0].mxu0
      %4236 = vmatprep.mubr.bf16.mxu0 0
      %4237 = vmatmul.mubr.bf16.gmra.mrb[0].mxu0 %v4078
      %v4238 = vpop.f32.mrb[0].mxu0
      %v4239 = vadd.f32 0.0, %v4238
      %v4240 = vpop.f32.mrb[0].mxu0
      %v4241 = vpop.f32.mrb[0].mxu0
      %v4242 = vadd.f32 0.0, %v4241
      %v4243 = vpop.f32.mrb[0].mxu0
      %4244 = vmatprep.mubr.bf16.mxu0 0
      %4245 = vmatmul.mubr.bf16.gmra.mrb[0].mxu0 %v4081
      %v4246 = vpop.f32.mrb[0].mxu0
      %v4247 = vadd.f32 0.0, %v4246
      %v4248 = vpop.f32.mrb[0].mxu0
      %v4249 = vpop.f32.mrb[0].mxu0
      %v4250 = vadd.f32 0.0, %v4249
      %v4251 = vpop.f32.mrb[0].mxu0
      %4252 = vmatprep.mubr.bf16.mxu0 0
      %4253 = vmatmul.mubr.bf16.gmra.mrb[0].mxu0 %v4084
      %v4254 = vpop.f32.mrb[0].mxu0
      %v4255 = vadd.f32 0.0, %v4254
      %v4256 = vpop.f32.mrb[0].mxu0
      %v4257 = vpop.f32.mrb[0].mxu0
      %v4258 = vadd.f32 0.0, %v4257
      %v4259 = vpop.f32.mrb[0].mxu0
      %4260 = vmatprep.mubr.bf16.mxu0 0
      %4261 = vmatmul.mubr.bf16.gmra.mrb[0].mxu0 %v4087
      %v4262 = vpop.f32.mrb[0].mxu0
      %v4263 = vadd.f32 0.0, %v4262
      %v4264 = vpop.f32.mrb[0].mxu0
      %v4265 = vpop.f32.mrb[0].mxu0
      %v4266 = vadd.f32 0.0, %v4265
      %v4267 = vpop.f32.mrb[0].mxu0
      %4268 = vdwg.mxu0
      %v4269 = vadd.f32 %v3822, %v4127
      %v4270 = vadd.f32 %v3823, %v4130
      %v4271 = vadd.f32 %v3824, %v4135
      %v4272 = vadd.f32 %v3825, %v4138
      %v4273 = vadd.f32 %v3826, %v4143
      %v4274 = vadd.f32 %v3827, %v4146
      %v4275 = vadd.f32 %v3828, %v4151
      %v4276 = vadd.f32 %v3829, %v4154
      %v4277 = vadd.f32 %v3830, %v4159
      %v4278 = vadd.f32 %v3831, %v4162
      %v4279 = vadd.f32 %v3832, %v4167
      %v4280 = vadd.f32 %v3833, %v4170
      %v4281 = vadd.f32 %v3834, %v4175
      %v4282 = vadd.f32 %v3835, %v4178
      %v4283 = vadd.f32 %v3836, %v4183
      %v4284 = vadd.f32 %v3837, %v4186
      %v4285 = vadd.f32 %v3838, %v4191
      %v4286 = vadd.f32 %v3839, %v4194
      %v4287 = vadd.f32 %v3840, %v4199
      %v4288 = vadd.f32 %v3841, %v4202
      %v4289 = vadd.f32 %v3842, %v4207
      %v4290 = vadd.f32 %v3843, %v4210
      %v4291 = vadd.f32 %v3844, %v4215
      %v4292 = vadd.f32 %v3845, %v4218
      %v4293 = vadd.f32 %v3846, %v4223
      %v4294 = vadd.f32 %v3847, %v4226
      %v4295 = vadd.f32 %v3848, %v4231
      %v4296 = vadd.f32 %v3849, %v4234
      %v4297 = vadd.f32 %v3850, %v4239
      %v4298 = vadd.f32 %v3851, %v4242
      %v4299 = vadd.f32 %v3852, %v4247
      %v4300 = vadd.f32 %v3853, %v4250
      %v4301 = vadd.f32 %v3854, %v4255
      %v4302 = vadd.f32 %v3855, %v4258
      %v4303 = vadd.f32 %v3856, %v4263
      %v4304 = vadd.f32 %v3857, %v4266
      %v4305 = vld [vmem:[%s2] sm:$0x1]
      %v4307 = vlaneseq
      %v4308 = vshrl.u32 %v4307, 7
      %v4309 = vsub.s32 0, %v4308
      %v4310 = vrot.slane %v4305, %v4309
      %v4312 = vadd.f32 %v4269, %v4310
      %v4313 = vadd.f32 %v4270, %v4310
      %v4314 = vadd.f32 %v4271, %v4310
      %v4315 = vadd.f32 %v4272, %v4310
      %v4316 = vadd.f32 %v4273, %v4310
      %v4317 = vadd.f32 %v4274, %v4310
      %v4318 = vadd.f32 %v4275, %v4310
      %v4319 = vadd.f32 %v4276, %v4310
      %v4320 = vadd.f32 %v4277, %v4310
      %v4321 = vadd.f32 %v4278, %v4310
      %v4322 = vadd.f32 %v4279, %v4310
      %v4323 = vadd.f32 %v4280, %v4310
      %v4324 = vadd.f32 %v4281, %v4310
      %v4325 = vadd.f32 %v4282, %v4310
      %v4326 = vadd.f32 %v4283, %v4310
      %v4327 = vadd.f32 %v4284, %v4310
      %v4328 = vadd.f32 %v4285, %v4310
      %v4329 = vadd.f32 %v4286, %v4310
      %v4330 = vadd.f32 %v4287, %v4310
      %v4331 = vadd.f32 %v4288, %v4310
      %v4332 = vadd.f32 %v4289, %v4310
      %v4333 = vadd.f32 %v4290, %v4310
      %v4334 = vadd.f32 %v4291, %v4310
      %v4335 = vadd.f32 %v4292, %v4310
      %v4336 = vadd.f32 %v4293, %v4310
      %v4337 = vadd.f32 %v4294, %v4310
      %v4338 = vadd.f32 %v4295, %v4310
      %v4339 = vadd.f32 %v4296, %v4310
      %v4340 = vadd.f32 %v4297, %v4310
      %v4341 = vadd.f32 %v4298, %v4310
      %v4342 = vadd.f32 %v4299, %v4310
      %v4343 = vadd.f32 %v4300, %v4310
      %v4344 = vadd.f32 %v4301, %v4310
      %v4345 = vadd.f32 %v4302, %v4310
      %v4346 = vadd.f32 %v4303, %v4310
      %v4347 = vadd.f32 %v4304, %v4310
      %p4348 = scmp.eq.s32.totalorder %s21, 0
      %p4349 = scmp.eq.s32.totalorder %s22, 0
      %p4350 = pnand %p4348, %p4349
      %p4351 = pneg %p4350
      // Predicated region
      $region45: #{unet_encoder.5} parent=43 // pred_check
        _
      $region46: #{unet_encoder.5} parent=43 // pred_check_branch
        %4353 = sbr.rel (%p4350) target = $region48
      $region47: #{unet_encoder.5} parent=43 // pred_region
        %4354 = vst [vmem:[#allocation2] sm:$0x3] 0.0
      $region48: #{unet_encoder.5} parent=43 // pred_fallthru
        _
      // Predicated region
      $region49: #{unet_encoder.5} parent=43 // pred_check
        %p4355 = pneg %p4348
      $region50: #{unet_encoder.5} parent=43 // pred_check_branch
        %4357 = sbr.rel (%p4355) target = $region52
      $region51: #{unet_encoder.5} parent=43 // pred_region
        %v4358 = vld [vmem:[%s5] sm:$0xff]
        %v4359 = vld [vmem:[%s5 + $0x8] sm:$0xff]
        %v4360 = vld [vmem:[%s5 + $0x10] sm:$0xff]
        %v4361 = vld [vmem:[%s5 + $0x18] sm:$0xff]
        %v4362 = vld [vmem:[%s5 + $0x20] sm:$0xff]
        %v4363 = vld [vmem:[%s5 + $0x28] sm:$0xff]
        %v4364 = vld [vmem:[%s5 + $0x30] sm:$0xff]
        %v4365 = vld [vmem:[%s5 + $0x38] sm:$0xff]
        %v4366 = vld [vmem:[%s5 + $0x40] sm:$0xff]
        %v4367 = vld [vmem:[%s5 + $0x48] sm:$0xff]
        %v4368 = vld [vmem:[%s5 + $0x50] sm:$0xff]
        %v4369 = vld [vmem:[%s5 + $0x58] sm:$0xff]
        %v4370 = vld [vmem:[%s5 + $0x60] sm:$0xff]
        %v4371 = vld [vmem:[%s5 + $0x68] sm:$0xff]
        %v4372 = vld [vmem:[%s5 + $0x70] sm:$0xff]
        %v4373 = vld [vmem:[%s5 + $0x78] sm:$0xff]
        %v4374 = vld [vmem:[%s5 + $0x80] sm:$0xff]
        %v4375 = vld [vmem:[%s5 + $0x88] sm:$0xff]
        %v4376 = vld [vmem:[%s5 + $0x90] sm:$0xff]
        %v4377 = vld [vmem:[%s5 + $0x98] sm:$0xff]
        %v4378 = vld [vmem:[%s5 + $0xa0] sm:$0xff]
        %v4379 = vld [vmem:[%s5 + $0xa8] sm:$0xff]
        %v4380 = vld [vmem:[%s5 + $0xb0] sm:$0xff]
        %v4381 = vld [vmem:[%s5 + $0xb8] sm:$0xff]
        %v4382 = vld [vmem:[%s5 + $0xc0] sm:$0xff]
        %v4383 = vld [vmem:[%s5 + $0xc8] sm:$0xff]
        %v4384 = vld [vmem:[%s5 + $0xd0] sm:$0xff]
        %v4385 = vld [vmem:[%s5 + $0xd8] sm:$0xff]
        %v4386 = vld [vmem:[%s5 + $0xe0] sm:$0xff]
        %v4387 = vld [vmem:[%s5 + $0xe8] sm:$0xff]
        %v4388 = vld [vmem:[%s5 + $0xf0] sm:$0xff]
        %v4389 = vld [vmem:[%s5 + $0xf8] sm:$0xff]
        %v4390 = vld [vmem:[%s5 + $0x100] sm:$0xff]
        %v4391 = vld [vmem:[%s5 + $0x108] sm:$0xff]
        %v4392 = vld [vmem:[%s5 + $0x110] sm:$0xff]
        %v4393 = vld [vmem:[%s5 + $0x118] sm:$0xff]
        %4395 = vset.pattern.permute.xlu0 0
        %4396 = vperm.xlu0 %4395, %v4358
        %v4397 = vpop.permute.xlu0 %4396
        %4400 = vset.pattern.permute.xlu0 0
        %4401 = vperm.xlu0 %4400, %v4359
        %v4402 = vpop.permute.xlu0 %4401
        %4405 = vset.pattern.permute.xlu0 0
        %4406 = vperm.xlu0 %4405, %v4360
        %v4407 = vpop.permute.xlu0 %4406
        %4410 = vset.pattern.permute.xlu0 0
        %4411 = vperm.xlu0 %4410, %v4361
        %v4412 = vpop.permute.xlu0 %4411
        %4415 = vset.pattern.permute.xlu0 0
        %4416 = vperm.xlu0 %4415, %v4362
        %v4417 = vpop.permute.xlu0 %4416
        %4420 = vset.pattern.permute.xlu0 0
        %4421 = vperm.xlu0 %4420, %v4363
        %v4422 = vpop.permute.xlu0 %4421
        %4425 = vset.pattern.permute.xlu0 0
        %4426 = vperm.xlu0 %4425, %v4364
        %v4427 = vpop.permute.xlu0 %4426
        %4430 = vset.pattern.permute.xlu0 0
        %4431 = vperm.xlu0 %4430, %v4365
        %v4432 = vpop.permute.xlu0 %4431
        %4435 = vset.pattern.permute.xlu0 0
        %4436 = vperm.xlu0 %4435, %v4366
        %v4437 = vpop.permute.xlu0 %4436
        %4440 = vset.pattern.permute.xlu0 0
        %4441 = vperm.xlu0 %4440, %v4367
        %v4442 = vpop.permute.xlu0 %4441
        %4445 = vset.pattern.permute.xlu0 0
        %4446 = vperm.xlu0 %4445, %v4368
        %v4447 = vpop.permute.xlu0 %4446
        %4450 = vset.pattern.permute.xlu0 0
        %4451 = vperm.xlu0 %4450, %v4369
        %v4452 = vpop.permute.xlu0 %4451
        %4455 = vset.pattern.permute.xlu0 0
        %4456 = vperm.xlu0 %4455, %v4370
        %v4457 = vpop.permute.xlu0 %4456
        %4460 = vset.pattern.permute.xlu0 0
        %4461 = vperm.xlu0 %4460, %v4371
        %v4462 = vpop.permute.xlu0 %4461
        %4465 = vset.pattern.permute.xlu0 0
        %4466 = vperm.xlu0 %4465, %v4372
        %v4467 = vpop.permute.xlu0 %4466
        %4470 = vset.pattern.permute.xlu0 0
        %4471 = vperm.xlu0 %4470, %v4373
        %v4472 = vpop.permute.xlu0 %4471
        %4475 = vset.pattern.permute.xlu0 0
        %4476 = vperm.xlu0 %4475, %v4374
        %v4477 = vpop.permute.xlu0 %4476
        %4480 = vset.pattern.permute.xlu0 0
        %4481 = vperm.xlu0 %4480, %v4375
        %v4482 = vpop.permute.xlu0 %4481
        %4485 = vset.pattern.permute.xlu0 0
        %4486 = vperm.xlu0 %4485, %v4376
        %v4487 = vpop.permute.xlu0 %4486
        %4490 = vset.pattern.permute.xlu0 0
        %4491 = vperm.xlu0 %4490, %v4377
        %v4492 = vpop.permute.xlu0 %4491
        %4495 = vset.pattern.permute.xlu0 0
        %4496 = vperm.xlu0 %4495, %v4378
        %v4497 = vpop.permute.xlu0 %4496
        %4500 = vset.pattern.permute.xlu0 0
        %4501 = vperm.xlu0 %4500, %v4379
        %v4502 = vpop.permute.xlu0 %4501
        %4505 = vset.pattern.permute.xlu0 0
        %4506 = vperm.xlu0 %4505, %v4380
        %v4507 = vpop.permute.xlu0 %4506
        %4510 = vset.pattern.permute.xlu0 0
        %4511 = vperm.xlu0 %4510, %v4381
        %v4512 = vpop.permute.xlu0 %4511
        %4515 = vset.pattern.permute.xlu0 0
        %4516 = vperm.xlu0 %4515, %v4382
        %v4517 = vpop.permute.xlu0 %4516
        %4520 = vset.pattern.permute.xlu0 0
        %4521 = vperm.xlu0 %4520, %v4383
        %v4522 = vpop.permute.xlu0 %4521
        %4525 = vset.pattern.permute.xlu0 0
        %4526 = vperm.xlu0 %4525, %v4384
        %v4527 = vpop.permute.xlu0 %4526
        %4530 = vset.pattern.permute.xlu0 0
        %4531 = vperm.xlu0 %4530, %v4385
        %v4532 = vpop.permute.xlu0 %4531
        %4535 = vset.pattern.permute.xlu0 0
        %4536 = vperm.xlu0 %4535, %v4386
        %v4537 = vpop.permute.xlu0 %4536
        %4540 = vset.pattern.permute.xlu0 0
        %4541 = vperm.xlu0 %4540, %v4387
        %v4542 = vpop.permute.xlu0 %4541
        %4545 = vset.pattern.permute.xlu0 0
        %4546 = vperm.xlu0 %4545, %v4388
        %v4547 = vpop.permute.xlu0 %4546
        %4550 = vset.pattern.permute.xlu0 0
        %4551 = vperm.xlu0 %4550, %v4389
        %v4552 = vpop.permute.xlu0 %4551
        %4555 = vset.pattern.permute.xlu0 0
        %4556 = vperm.xlu0 %4555, %v4390
        %v4557 = vpop.permute.xlu0 %4556
        %4560 = vset.pattern.permute.xlu0 0
        %4561 = vperm.xlu0 %4560, %v4391
        %v4562 = vpop.permute.xlu0 %4561
        %4565 = vset.pattern.permute.xlu0 0
        %4566 = vperm.xlu0 %4565, %v4392
        %v4567 = vpop.permute.xlu0 %4566
        %4570 = vset.pattern.permute.xlu0 0
        %4571 = vperm.xlu0 %4570, %v4393
        %v4572 = vpop.permute.xlu0 %4571
        %v4574 = vmul.f32 %v4312, %v4397
        %v4575 = vmul.f32 %v4313, %v4402
        %v4576 = vmul.f32 %v4314, %v4407
        %v4577 = vmul.f32 %v4315, %v4412
        %v4578 = vmul.f32 %v4316, %v4417
        %v4579 = vmul.f32 %v4317, %v4422
        %v4580 = vmul.f32 %v4318, %v4427
        %v4581 = vmul.f32 %v4319, %v4432
        %v4582 = vmul.f32 %v4320, %v4437
        %v4583 = vmul.f32 %v4321, %v4442
        %v4584 = vmul.f32 %v4322, %v4447
        %v4585 = vmul.f32 %v4323, %v4452
        %v4586 = vmul.f32 %v4324, %v4457
        %v4587 = vmul.f32 %v4325, %v4462
        %v4588 = vmul.f32 %v4326, %v4467
        %v4589 = vmul.f32 %v4327, %v4472
        %v4590 = vmul.f32 %v4328, %v4477
        %v4591 = vmul.f32 %v4329, %v4482
        %v4592 = vmul.f32 %v4330, %v4487
        %v4593 = vmul.f32 %v4331, %v4492
        %v4594 = vmul.f32 %v4332, %v4497
        %v4595 = vmul.f32 %v4333, %v4502
        %v4596 = vmul.f32 %v4334, %v4507
        %v4597 = vmul.f32 %v4335, %v4512
        %v4598 = vmul.f32 %v4336, %v4517
        %v4599 = vmul.f32 %v4337, %v4522
        %v4600 = vmul.f32 %v4338, %v4527
        %v4601 = vmul.f32 %v4339, %v4532
        %v4602 = vmul.f32 %v4340, %v4537
        %v4603 = vmul.f32 %v4341, %v4542
        %v4604 = vmul.f32 %v4342, %v4547
        %v4605 = vmul.f32 %v4343, %v4552
        %v4606 = vmul.f32 %v4344, %v4557
        %v4607 = vmul.f32 %v4345, %v4562
        %v4608 = vmul.f32 %v4346, %v4567
        %v4609 = vmul.f32 %v4347, %v4572
        %v4610 = vld [vmem:[#allocation2] sm:$0x1]
        %v4611 = vadd.f32 %v4574, %v4575
        %v4612 = vadd.f32 %v4611, %v4576
        %v4613 = vadd.f32 %v4612, %v4577
        %v4614 = vadd.f32 %v4613, %v4578
        %v4615 = vadd.f32 %v4614, %v4579
        %v4616 = vadd.f32 %v4615, %v4580
        %v4617 = vadd.f32 %v4616, %v4581
        %v4618 = vadd.f32 %v4617, %v4582
        %v4619 = vadd.f32 %v4618, %v4583
        %v4620 = vadd.f32 %v4619, %v4584
        %v4621 = vadd.f32 %v4620, %v4585
        %v4622 = vadd.f32 %v4621, %v4586
        %v4623 = vadd.f32 %v4622, %v4587
        %v4624 = vadd.f32 %v4623, %v4588
        %v4625 = vadd.f32 %v4624, %v4589
        %v4626 = vadd.f32 %v4625, %v4590
        %v4627 = vadd.f32 %v4626, %v4591
        %v4628 = vadd.f32 %v4627, %v4592
        %v4629 = vadd.f32 %v4628, %v4593
        %v4630 = vadd.f32 %v4629, %v4594
        %v4631 = vadd.f32 %v4630, %v4595
        %v4632 = vadd.f32 %v4631, %v4596
        %v4633 = vadd.f32 %v4632, %v4597
        %v4634 = vadd.f32 %v4633, %v4598
        %v4635 = vadd.f32 %v4634, %v4599
        %v4636 = vadd.f32 %v4635, %v4600
        %v4637 = vadd.f32 %v4636, %v4601
        %v4638 = vadd.f32 %v4637, %v4602
        %v4639 = vadd.f32 %v4638, %v4603
        %v4640 = vadd.f32 %v4639, %v4604
        %v4641 = vadd.f32 %v4640, %v4605
        %v4642 = vadd.f32 %v4641, %v4606
        %v4643 = vadd.f32 %v4642, %v4607
        %v4644 = vadd.f32 %v4643, %v4608
        %v4645 = vadd.f32 %v4644, %v4609
        %v4646 = vrot.slane %v4645, 4
        %v4647 = vadd.f32 %v4645, %v4646
        %v4648 = vrot.slane %v4647, 2
        %v4649 = vadd.f32 %v4647, %v4648
        %v4650 = vrot.slane %v4649, 1
        %v4651 = vadd.f32 %v4649, %v4650
        %v4652 = vadd.f32 %v4610, %v4651
        %4653 = vst [vmem:[#allocation2] sm:$0x1] %v4652
        %v4654 = vld [vmem:[#allocation2 + $0x1] sm:$0x1]
        %v4655 = vmul.f32 %v4574, %v4312
        %v4656 = vmul.f32 %v4575, %v4313
        %v4657 = vmul.f32 %v4576, %v4314
        %v4658 = vmul.f32 %v4577, %v4315
        %v4659 = vmul.f32 %v4578, %v4316
        %v4660 = vmul.f32 %v4579, %v4317
        %v4661 = vmul.f32 %v4580, %v4318
        %v4662 = vmul.f32 %v4581, %v4319
        %v4663 = vmul.f32 %v4582, %v4320
        %v4664 = vmul.f32 %v4583, %v4321
        %v4665 = vmul.f32 %v4584, %v4322
        %v4666 = vmul.f32 %v4585, %v4323
        %v4667 = vmul.f32 %v4586, %v4324
        %v4668 = vmul.f32 %v4587, %v4325
        %v4669 = vmul.f32 %v4588, %v4326
        %v4670 = vmul.f32 %v4589, %v4327
        %v4671 = vmul.f32 %v4590, %v4328
        %v4672 = vmul.f32 %v4591, %v4329
        %v4673 = vmul.f32 %v4592, %v4330
        %v4674 = vmul.f32 %v4593, %v4331
        %v4675 = vmul.f32 %v4594, %v4332
        %v4676 = vmul.f32 %v4595, %v4333
        %v4677 = vmul.f32 %v4596, %v4334
        %v4678 = vmul.f32 %v4597, %v4335
        %v4679 = vmul.f32 %v4598, %v4336
        %v4680 = vmul.f32 %v4599, %v4337
        %v4681 = vmul.f32 %v4600, %v4338
        %v4682 = vmul.f32 %v4601, %v4339
        %v4683 = vmul.f32 %v4602, %v4340
        %v4684 = vmul.f32 %v4603, %v4341
        %v4685 = vmul.f32 %v4604, %v4342
        %v4686 = vmul.f32 %v4605, %v4343
        %v4687 = vmul.f32 %v4606, %v4344
        %v4688 = vmul.f32 %v4607, %v4345
        %v4689 = vmul.f32 %v4608, %v4346
        %v4690 = vmul.f32 %v4609, %v4347
        %v4691 = vadd.f32 %v4655, %v4656
        %v4692 = vadd.f32 %v4691, %v4657
        %v4693 = vadd.f32 %v4692, %v4658
        %v4694 = vadd.f32 %v4693, %v4659
        %v4695 = vadd.f32 %v4694, %v4660
        %v4696 = vadd.f32 %v4695, %v4661
        %v4697 = vadd.f32 %v4696, %v4662
        %v4698 = vadd.f32 %v4697, %v4663
        %v4699 = vadd.f32 %v4698, %v4664
        %v4700 = vadd.f32 %v4699, %v4665
        %v4701 = vadd.f32 %v4700, %v4666
        %v4702 = vadd.f32 %v4701, %v4667
        %v4703 = vadd.f32 %v4702, %v4668
        %v4704 = vadd.f32 %v4703, %v4669
        %v4705 = vadd.f32 %v4704, %v4670
        %v4706 = vadd.f32 %v4705, %v4671
        %v4707 = vadd.f32 %v4706, %v4672
        %v4708 = vadd.f32 %v4707, %v4673
        %v4709 = vadd.f32 %v4708, %v4674
        %v4710 = vadd.f32 %v4709, %v4675
        %v4711 = vadd.f32 %v4710, %v4676
        %v4712 = vadd.f32 %v4711, %v4677
        %v4713 = vadd.f32 %v4712, %v4678
        %v4714 = vadd.f32 %v4713, %v4679
        %v4715 = vadd.f32 %v4714, %v4680
        %v4716 = vadd.f32 %v4715, %v4681
        %v4717 = vadd.f32 %v4716, %v4682
        %v4718 = vadd.f32 %v4717, %v4683
        %v4719 = vadd.f32 %v4718, %v4684
        %v4720 = vadd.f32 %v4719, %v4685
        %v4721 = vadd.f32 %v4720, %v4686
        %v4722 = vadd.f32 %v4721, %v4687
        %v4723 = vadd.f32 %v4722, %v4688
        %v4724 = vadd.f32 %v4723, %v4689
        %v4725 = vadd.f32 %v4724, %v4690
        %v4726 = vrot.slane %v4725, 4
        %v4727 = vadd.f32 %v4725, %v4726
        %v4728 = vrot.slane %v4727, 2
        %v4729 = vadd.f32 %v4727, %v4728
        %v4730 = vrot.slane %v4729, 1
        %v4731 = vadd.f32 %v4729, %v4730
        %v4732 = vadd.f32 %v4654, %v4731
        %4733 = vst [vmem:[#allocation2 + $0x1] sm:$0x1] %v4732
      $region52: #{unet_encoder.5} parent=43 // pred_fallthru
        _
      %p4734 = scmp.eq.s32.totalorder %s21, 1
      // Predicated region
      $region53: #{unet_encoder.5} parent=43 // pred_check
        %p4735 = pneg %p4734
      $region54: #{unet_encoder.5} parent=43 // pred_check_branch
        %4737 = sbr.rel (%p4735) target = $region56
      $region55: #{unet_encoder.5} parent=43 // pred_region
        %v4738 = vld [vmem:[#allocation2] sm:$0x1]
        %v4739 = vmul.f32 %v4738, 0.001953125
        %v4740 = vld [vmem:[#allocation2 + $0x1] sm:$0x1]
        %v4741 = vmul.f32 %v4740, 0.001953125
        %v4742 = vmul.f32 %v4739, %v4739
        %v4743 = vsub.f32 %v4741, %v4742
        %v4744 = vmax.f32 %v4743, 0.0
        %v4745 = vld [vmem:[%s3] sm:$0x1]
        %v4746 = vadd.f32 %v4744, 1e-05
        %v4747 = vrsqrt.pop %v4746
        %v4748 = vmul.f32 %v4745, %v4747
        %v4749 = vld [vmem:[%s4] sm:$0x1]
        %v4750 = vmul.f32 %v4739, %v4748
        %v4751 = vsub.f32 %v4749, %v4750
        %v4753 = vlaneseq
        %v4754 = vshrl.u32 %v4753, 7
        %v4755 = vsub.s32 0, %v4754
        %v4756 = vrot.slane %v4748, %v4755
        %v4758 = vmul.f32 %v4312, %v4756
        %v4759 = vmul.f32 %v4313, %v4756
        %v4760 = vmul.f32 %v4314, %v4756
        %v4761 = vmul.f32 %v4315, %v4756
        %v4762 = vmul.f32 %v4316, %v4756
        %v4763 = vmul.f32 %v4317, %v4756
        %v4764 = vmul.f32 %v4318, %v4756
        %v4765 = vmul.f32 %v4319, %v4756
        %v4766 = vmul.f32 %v4320, %v4756
        %v4767 = vmul.f32 %v4321, %v4756
        %v4768 = vmul.f32 %v4322, %v4756
        %v4769 = vmul.f32 %v4323, %v4756
        %v4770 = vmul.f32 %v4324, %v4756
        %v4771 = vmul.f32 %v4325, %v4756
        %v4772 = vmul.f32 %v4326, %v4756
        %v4773 = vmul.f32 %v4327, %v4756
        %v4774 = vmul.f32 %v4328, %v4756
        %v4775 = vmul.f32 %v4329, %v4756
        %v4776 = vmul.f32 %v4330, %v4756
        %v4777 = vmul.f32 %v4331, %v4756
        %v4778 = vmul.f32 %v4332, %v4756
        %v4779 = vmul.f32 %v4333, %v4756
        %v4780 = vmul.f32 %v4334, %v4756
        %v4781 = vmul.f32 %v4335, %v4756
        %v4782 = vmul.f32 %v4336, %v4756
        %v4783 = vmul.f32 %v4337, %v4756
        %v4784 = vmul.f32 %v4338, %v4756
        %v4785 = vmul.f32 %v4339, %v4756
        %v4786 = vmul.f32 %v4340, %v4756
        %v4787 = vmul.f32 %v4341, %v4756
        %v4788 = vmul.f32 %v4342, %v4756
        %v4789 = vmul.f32 %v4343, %v4756
        %v4790 = vmul.f32 %v4344, %v4756
        %v4791 = vmul.f32 %v4345, %v4756
        %v4792 = vmul.f32 %v4346, %v4756
        %v4793 = vmul.f32 %v4347, %v4756
        %v4795 = vlaneseq
        %v4796 = vshrl.u32 %v4795, 7
        %v4797 = vsub.s32 0, %v4796
        %v4798 = vrot.slane %v4751, %v4797
        %v4800 = vadd.f32 %v4758, %v4798
        %v4801 = vadd.f32 %v4759, %v4798
        %v4802 = vadd.f32 %v4760, %v4798
        %v4803 = vadd.f32 %v4761, %v4798
        %v4804 = vadd.f32 %v4762, %v4798
        %v4805 = vadd.f32 %v4763, %v4798
        %v4806 = vadd.f32 %v4764, %v4798
        %v4807 = vadd.f32 %v4765, %v4798
        %v4808 = vadd.f32 %v4766, %v4798
        %v4809 = vadd.f32 %v4767, %v4798
        %v4810 = vadd.f32 %v4768, %v4798
        %v4811 = vadd.f32 %v4769, %v4798
        %v4812 = vadd.f32 %v4770, %v4798
        %v4813 = vadd.f32 %v4771, %v4798
        %v4814 = vadd.f32 %v4772, %v4798
        %v4815 = vadd.f32 %v4773, %v4798
        %v4816 = vadd.f32 %v4774, %v4798
        %v4817 = vadd.f32 %v4775, %v4798
        %v4818 = vadd.f32 %v4776, %v4798
        %v4819 = vadd.f32 %v4777, %v4798
        %v4820 = vadd.f32 %v4778, %v4798
        %v4821 = vadd.f32 %v4779, %v4798
        %v4822 = vadd.f32 %v4780, %v4798
        %v4823 = vadd.f32 %v4781, %v4798
        %v4824 = vadd.f32 %v4782, %v4798
        %v4825 = vadd.f32 %v4783, %v4798
        %v4826 = vadd.f32 %v4784, %v4798
        %v4827 = vadd.f32 %v4785, %v4798
        %v4828 = vadd.f32 %v4786, %v4798
        %v4829 = vadd.f32 %v4787, %v4798
        %v4830 = vadd.f32 %v4788, %v4798
        %v4831 = vadd.f32 %v4789, %v4798
        %v4832 = vadd.f32 %v4790, %v4798
        %v4833 = vadd.f32 %v4791, %v4798
        %v4834 = vadd.f32 %v4792, %v4798
        %v4835 = vadd.f32 %v4793, %v4798
        %vm4836 = vcmp.gt.f32.partialorder %v4800, 0.0
        %vm4837 = vcmp.gt.f32.partialorder %v4801, 0.0
        %vm4838 = vcmp.gt.f32.partialorder %v4802, 0.0
        %vm4839 = vcmp.gt.f32.partialorder %v4803, 0.0
        %vm4840 = vcmp.gt.f32.partialorder %v4804, 0.0
        %vm4841 = vcmp.gt.f32.partialorder %v4805, 0.0
        %vm4842 = vcmp.gt.f32.partialorder %v4806, 0.0
        %vm4843 = vcmp.gt.f32.partialorder %v4807, 0.0
        %vm4844 = vcmp.gt.f32.partialorder %v4808, 0.0
        %vm4845 = vcmp.gt.f32.partialorder %v4809, 0.0
        %vm4846 = vcmp.gt.f32.partialorder %v4810, 0.0
        %vm4847 = vcmp.gt.f32.partialorder %v4811, 0.0
        %vm4848 = vcmp.gt.f32.partialorder %v4812, 0.0
        %vm4849 = vcmp.gt.f32.partialorder %v4813, 0.0
        %vm4850 = vcmp.gt.f32.partialorder %v4814, 0.0
        %vm4851 = vcmp.gt.f32.partialorder %v4815, 0.0
        %vm4852 = vcmp.gt.f32.partialorder %v4816, 0.0
        %vm4853 = vcmp.gt.f32.partialorder %v4817, 0.0
        %vm4854 = vcmp.gt.f32.partialorder %v4818, 0.0
        %vm4855 = vcmp.gt.f32.partialorder %v4819, 0.0
        %vm4856 = vcmp.gt.f32.partialorder %v4820, 0.0
        %vm4857 = vcmp.gt.f32.partialorder %v4821, 0.0
        %vm4858 = vcmp.gt.f32.partialorder %v4822, 0.0
        %vm4859 = vcmp.gt.f32.partialorder %v4823, 0.0
        %vm4860 = vcmp.gt.f32.partialorder %v4824, 0.0
        %vm4861 = vcmp.gt.f32.partialorder %v4825, 0.0
        %vm4862 = vcmp.gt.f32.partialorder %v4826, 0.0
        %vm4863 = vcmp.gt.f32.partialorder %v4827, 0.0
        %vm4864 = vcmp.gt.f32.partialorder %v4828, 0.0
        %vm4865 = vcmp.gt.f32.partialorder %v4829, 0.0
        %vm4866 = vcmp.gt.f32.partialorder %v4830, 0.0
        %vm4867 = vcmp.gt.f32.partialorder %v4831, 0.0
        %vm4868 = vcmp.gt.f32.partialorder %v4832, 0.0
        %vm4869 = vcmp.gt.f32.partialorder %v4833, 0.0
        %vm4870 = vcmp.gt.f32.partialorder %v4834, 0.0
        %vm4871 = vcmp.gt.f32.partialorder %v4835, 0.0
        %v4872 = vmul.f32 %v4800, 0.2
        %v4873 = vmul.f32 %v4801, 0.2
        %v4874 = vmul.f32 %v4802, 0.2
        %v4875 = vmul.f32 %v4803, 0.2
        %v4876 = vmul.f32 %v4804, 0.2
        %v4877 = vmul.f32 %v4805, 0.2
        %v4878 = vmul.f32 %v4806, 0.2
        %v4879 = vmul.f32 %v4807, 0.2
        %v4880 = vmul.f32 %v4808, 0.2
        %v4881 = vmul.f32 %v4809, 0.2
        %v4882 = vmul.f32 %v4810, 0.2
        %v4883 = vmul.f32 %v4811, 0.2
        %v4884 = vmul.f32 %v4812, 0.2
        %v4885 = vmul.f32 %v4813, 0.2
        %v4886 = vmul.f32 %v4814, 0.2
        %v4887 = vmul.f32 %v4815, 0.2
        %v4888 = vmul.f32 %v4816, 0.2
        %v4889 = vmul.f32 %v4817, 0.2
        %v4890 = vmul.f32 %v4818, 0.2
        %v4891 = vmul.f32 %v4819, 0.2
        %v4892 = vmul.f32 %v4820, 0.2
        %v4893 = vmul.f32 %v4821, 0.2
        %v4894 = vmul.f32 %v4822, 0.2
        %v4895 = vmul.f32 %v4823, 0.2
        %v4896 = vmul.f32 %v4824, 0.2
        %v4897 = vmul.f32 %v4825, 0.2
        %v4898 = vmul.f32 %v4826, 0.2
        %v4899 = vmul.f32 %v4827, 0.2
        %v4900 = vmul.f32 %v4828, 0.2
        %v4901 = vmul.f32 %v4829, 0.2
        %v4902 = vmul.f32 %v4830, 0.2
        %v4903 = vmul.f32 %v4831, 0.2
        %v4904 = vmul.f32 %v4832, 0.2
        %v4905 = vmul.f32 %v4833, 0.2
        %v4906 = vmul.f32 %v4834, 0.2
        %v4907 = vmul.f32 %v4835, 0.2
        %v4908 = vsel %vm4836, %v4800, %v4872
        %v4909 = vsel %vm4837, %v4801, %v4873
        %v4910 = vsel %vm4838, %v4802, %v4874
        %v4911 = vsel %vm4839, %v4803, %v4875
        %v4912 = vsel %vm4840, %v4804, %v4876
        %v4913 = vsel %vm4841, %v4805, %v4877
        %v4914 = vsel %vm4842, %v4806, %v4878
        %v4915 = vsel %vm4843, %v4807, %v4879
        %v4916 = vsel %vm4844, %v4808, %v4880
        %v4917 = vsel %vm4845, %v4809, %v4881
        %v4918 = vsel %vm4846, %v4810, %v4882
        %v4919 = vsel %vm4847, %v4811, %v4883
        %v4920 = vsel %vm4848, %v4812, %v4884
        %v4921 = vsel %vm4849, %v4813, %v4885
        %v4922 = vsel %vm4850, %v4814, %v4886
        %v4923 = vsel %vm4851, %v4815, %v4887
        %v4924 = vsel %vm4852, %v4816, %v4888
        %v4925 = vsel %vm4853, %v4817, %v4889
        %v4926 = vsel %vm4854, %v4818, %v4890
        %v4927 = vsel %vm4855, %v4819, %v4891
        %v4928 = vsel %vm4856, %v4820, %v4892
        %v4929 = vsel %vm4857, %v4821, %v4893
        %v4930 = vsel %vm4858, %v4822, %v4894
        %v4931 = vsel %vm4859, %v4823, %v4895
        %v4932 = vsel %vm4860, %v4824, %v4896
        %v4933 = vsel %vm4861, %v4825, %v4897
        %v4934 = vsel %vm4862, %v4826, %v4898
        %v4935 = vsel %vm4863, %v4827, %v4899
        %v4936 = vsel %vm4864, %v4828, %v4900
        %v4937 = vsel %vm4865, %v4829, %v4901
        %v4938 = vsel %vm4866, %v4830, %v4902
        %v4939 = vsel %vm4867, %v4831, %v4903
        %v4940 = vsel %vm4868, %v4832, %v4904
        %v4941 = vsel %vm4869, %v4833, %v4905
        %v4942 = vsel %vm4870, %v4834, %v4906
        %v4943 = vsel %vm4871, %v4835, %v4907
        %v4944 = vpack.c.bf16 %v4909, %v4908
        %v4945 = vpack.c.bf16 %v4911, %v4910
        %v4946 = vpack.c.bf16 %v4913, %v4912
        %v4947 = vpack.c.bf16 %v4915, %v4914
        %v4948 = vpack.c.bf16 %v4917, %v4916
        %v4949 = vpack.c.bf16 %v4919, %v4918
        %v4950 = vpack.c.bf16 %v4921, %v4920
        %v4951 = vpack.c.bf16 %v4923, %v4922
        %v4952 = vpack.c.bf16 %v4925, %v4924
        %v4953 = vpack.c.bf16 %v4927, %v4926
        %v4954 = vpack.c.bf16 %v4929, %v4928
        %v4955 = vpack.c.bf16 %v4931, %v4930
        %v4956 = vpack.c.bf16 %v4933, %v4932
        %v4957 = vpack.c.bf16 %v4935, %v4934
        %v4958 = vpack.c.bf16 %v4937, %v4936
        %v4959 = vpack.c.bf16 %v4939, %v4938
        %v4960 = vpack.c.bf16 %v4941, %v4940
        %v4961 = vpack.c.bf16 %v4943, %v4942
        %v4980 = vunpack.c.l.b16 %v4944
        %v4981 = vunpack.c.h.b16 %v4944
        %v4982 = vunpack.c.l.b16 %v4945
        %v4983 = vunpack.c.h.b16 %v4945
        %v4984 = vunpack.c.l.b16 %v4946
        %v4985 = vunpack.c.h.b16 %v4946
        %v4986 = vunpack.c.l.b16 %v4947
        %v4987 = vunpack.c.h.b16 %v4947
        %v4988 = vunpack.c.l.b16 %v4948
        %v4989 = vunpack.c.h.b16 %v4948
        %v4990 = vunpack.c.l.b16 %v4949
        %v4991 = vunpack.c.h.b16 %v4949
        %v4992 = vunpack.c.l.b16 %v4950
        %v4993 = vunpack.c.h.b16 %v4950
        %v4994 = vunpack.c.l.b16 %v4951
        %v4995 = vunpack.c.h.b16 %v4951
        %v4996 = vunpack.c.l.b16 %v4952
        %v4997 = vunpack.c.h.b16 %v4952
        %v4998 = vunpack.c.l.b16 %v4953
        %v4999 = vunpack.c.h.b16 %v4953
        %v5000 = vunpack.c.l.b16 %v4954
        %v5001 = vunpack.c.h.b16 %v4954
        %v5002 = vunpack.c.l.b16 %v4955
        %v5003 = vunpack.c.h.b16 %v4955
        %v5004 = vunpack.c.l.b16 %v4956
        %v5005 = vunpack.c.h.b16 %v4956
        %v5006 = vunpack.c.l.b16 %v4957
        %v5007 = vunpack.c.h.b16 %v4957
        %v5008 = vunpack.c.l.b16 %v4958
        %v5009 = vunpack.c.h.b16 %v4958
        %v5010 = vunpack.c.l.b16 %v4959
        %v5011 = vunpack.c.h.b16 %v4959
        %v5012 = vunpack.c.l.b16 %v4960
        %v5013 = vunpack.c.h.b16 %v4960
        %v5014 = vunpack.c.l.b16 %v4961
        %v5015 = vunpack.c.h.b16 %v4961
        %v5016 = vpack.c.b16 %v4980, %v4980
        %v5017 = vpack.c.b16 %v4981, %v4981
        %v5018 = vpack.c.b16 %v4982, %v4982
        %v5019 = vpack.c.b16 %v4983, %v4983
        %v5020 = vpack.c.b16 %v4984, %v4984
        %v5021 = vpack.c.b16 %v4985, %v4985
        %v5022 = vpack.c.b16 %v4986, %v4986
        %v5023 = vpack.c.b16 %v4987, %v4987
        %v5024 = vpack.c.b16 %v4988, %v4988
        %v5025 = vpack.c.b16 %v4989, %v4989
        %v5026 = vpack.c.b16 %v4990, %v4990
        %v5027 = vpack.c.b16 %v4991, %v4991
        %v5028 = vpack.c.b16 %v4992, %v4992
        %v5029 = vpack.c.b16 %v4993, %v4993
        %v5030 = vpack.c.b16 %v4994, %v4994
        %v5031 = vpack.c.b16 %v4995, %v4995
        %v5032 = vpack.c.b16 %v4996, %v4996
        %v5033 = vpack.c.b16 %v4997, %v4997
        %v5034 = vpack.c.b16 %v4998, %v4998
        %v5035 = vpack.c.b16 %v4999, %v4999
        %v5036 = vpack.c.b16 %v5000, %v5000
        %v5037 = vpack.c.b16 %v5001, %v5001
        %v5038 = vpack.c.b16 %v5002, %v5002
        %v5039 = vpack.c.b16 %v5003, %v5003
        %v5040 = vpack.c.b16 %v5004, %v5004
        %v5041 = vpack.c.b16 %v5005, %v5005
        %v5042 = vpack.c.b16 %v5006, %v5006
        %v5043 = vpack.c.b16 %v5007, %v5007
        %v5044 = vpack.c.b16 %v5008, %v5008
        %v5045 = vpack.c.b16 %v5009, %v5009
        %v5046 = vpack.c.b16 %v5010, %v5010
        %v5047 = vpack.c.b16 %v5011, %v5011
        %v5048 = vpack.c.b16 %v5012, %v5012
        %v5049 = vpack.c.b16 %v5013, %v5013
        %v5050 = vpack.c.b16 %v5014, %v5014
        %v5051 = vpack.c.b16 %v5015, %v5015
        %5088 = vst [vmem:[%s267] sm:$0xf] %v5016
        %5089 = vst [vmem:[%s267 + $0x4] sm:$0xf] %v5017
        %5090 = vst [vmem:[%s267 + $0x8] sm:$0xf] %v5018
        %5091 = vst [vmem:[%s267 + $0xc] sm:$0xf] %v5019
        %5092 = vst [vmem:[%s267 + $0x10] sm:$0xf] %v5020
        %5093 = vst [vmem:[%s267 + $0x14] sm:$0xf] %v5021
        %5094 = vst [vmem:[%s267 + $0x18] sm:$0xf] %v5022
        %5095 = vst [vmem:[%s267 + $0x1c] sm:$0xf] %v5023
        %5096 = vst [vmem:[%s267 + $0x20] sm:$0xf] %v5024
        %5097 = vst [vmem:[%s267 + $0x24] sm:$0xf] %v5025
        %5098 = vst [vmem:[%s267 + $0x28] sm:$0xf] %v5026
        %5099 = vst [vmem:[%s267 + $0x2c] sm:$0xf] %v5027
        %5100 = vst [vmem:[%s267 + $0x30] sm:$0xf] %v5028
        %5101 = vst [vmem:[%s267 + $0x34] sm:$0xf] %v5029
        %5102 = vst [vmem:[%s267 + $0x38] sm:$0xf] %v5030
        %5103 = vst [vmem:[%s267 + $0x3c] sm:$0xf] %v5031
        %5104 = vst [vmem:[%s267 + $0x40] sm:$0xf] %v5032
        %5105 = vst [vmem:[%s267 + $0x44] sm:$0xf] %v5033
        %5106 = vst [vmem:[%s267 + $0x48] sm:$0xf] %v5034
        %5107 = vst [vmem:[%s267 + $0x4c] sm:$0xf] %v5035
        %5108 = vst [vmem:[%s267 + $0x50] sm:$0xf] %v5036
        %5109 = vst [vmem:[%s267 + $0x54] sm:$0xf] %v5037
        %5110 = vst [vmem:[%s267 + $0x58] sm:$0xf] %v5038
        %5111 = vst [vmem:[%s267 + $0x5c] sm:$0xf] %v5039
        %5112 = vst [vmem:[%s267 + $0x60] sm:$0xf] %v5040
        %5113 = vst [vmem:[%s267 + $0x64] sm:$0xf] %v5041
        %5114 = vst [vmem:[%s267 + $0x68] sm:$0xf] %v5042
        %5115 = vst [vmem:[%s267 + $0x6c] sm:$0xf] %v5043
        %5116 = vst [vmem:[%s267 + $0x70] sm:$0xf] %v5044
        %5117 = vst [vmem:[%s267 + $0x74] sm:$0xf] %v5045
        %5118 = vst [vmem:[%s267 + $0x78] sm:$0xf] %v5046
        %5119 = vst [vmem:[%s267 + $0x7c] sm:$0xf] %v5047
        %5120 = vst [vmem:[%s267 + $0x80] sm:$0xf] %v5048
        %5121 = vst [vmem:[%s267 + $0x84] sm:$0xf] %v5049
        %5122 = vst [vmem:[%s267 + $0x88] sm:$0xf] %v5050
        %5123 = vst [vmem:[%s267 + $0x8c] sm:$0xf] %v5051
      $region56: #{unet_encoder.5} parent=43 // pred_fallthru
        _
      %s5124 = smul.u32 %s22, %s21
      %p5125 = scmp.lt.s32.totalorder %s5124, 1
      %s5126 = scalar_select %p5125, %s5124, 1
      %s5127 = smul.addr %s5126, 36
      %s5128 = smul.addr %s5127, 4
      %s5129 = scalar_lea.vmem %s6, %s5128
      // Predicated region
      $region57: #{unet_encoder.5} parent=43 // pred_check
        %p5130 = pneg %p180
      $region58: #{unet_encoder.5} parent=43 // pred_check_branch
        %5132 = sbr.rel (%p5130) target = $region60
      $region59: #{unet_encoder.5} parent=43 // pred_region
        %s5133 = smul.u32 %s22, %s21
      $region60: #{unet_encoder.5} parent=43 // pred_fallthru
        _
    $region44: #{unet_encoder.5} parent=5 // pred_fallthru
      _
    %p5134 = scmp.le.s32.totalorder 2, %s12
    // Predicated region
    $region61: #{unet_encoder.5} parent=5 // pred_check
      %p5135 = pneg %p5134
    $region62: #{unet_encoder.5} parent=5 // pred_check_branch
      %5137 = sbr.rel (%p5135) target = $region64
    $region63: #{unet_encoder.5} parent=5 // pred_region
      %s5138 = ssub.s32 %s12, 2
      // Predicated region
      $region65: #{unet_encoder.5} parent=63 // pred_check
        %p5139 = pneg %p186
      $region66: #{unet_encoder.5} parent=63 // pred_check_branch
        %5141 = sbr.rel (%p5139) target = $region68
      $region67: #{unet_encoder.5} parent=63 // pred_region
        %s5142 = smul.u32 %s24, %s23
        %p5143 = scmp.lt.s32.totalorder %s5142, 1
        %s5144 = scalar_select %p5143, %s5142, 1
        %s5145 = smul.addr %s5144, 36
        %s5146 = smul.addr %s5145, 4
        %s5147 = scalar_lea.vmem %s6, %s5146
      $region68: #{unet_encoder.5} parent=63 // pred_fallthru
        _
    $region64: #{unet_encoder.5} parent=5 // pred_fallthru
      _
  $region6: #{unet_encoder.5} parent=0 // loop_footer
    %s16 = sadd.s32 1, %s12
  $region7: #{unet_encoder.5} parent=0 // loop_footer_branch
    %11 = sbr.rel target = $region3
  $region8: #{unet_encoder.5} parent=0 // loop_exit
    _

// kernel: unet_encoder.6
$region0: #{unet_encoder.6}
  #allocation0 [shape = 'u32[]', space=smem, size = 0x4, offset = 0x4, fixed_abs, tag = 'smem constant byte address 0x4 - core index']
  #allocation1 [shape = 'u32[144,128]{1,0:T(1,128)}', space=vmem, size = 0x12000, scoped, tag = 'internal scratch']
  #allocation2 [shape = 'f32[2,128]{1,0:T(2,128)}', space=vmem, size = 0x400, scoped, tag = 'scratch operand']
  %s0 = inlined_call_operand.vmem [shape: bf16[2,400,32], index: 0, kind: input, shape index: {}]
  %s1 = inlined_call_operand.vmem [shape: bf16[9,32,128], index: 1, kind: input, shape index: {}]
  %s2 = inlined_call_operand.vmem [shape: f32[1,128], index: 2, kind: input, shape index: {}]
  %s3 = inlined_call_operand.vmem [shape: f32[1,128], index: 3, kind: input, shape index: {}]
  %s4 = inlined_call_operand.vmem [shape: f32[1,128], index: 4, kind: input, shape index: {}]
  %s5 = inlined_call_operand.vmem [shape: f32[80,1], index: 5, kind: input, shape index: {}]
  %s6 = inlined_call_operand.vmem [shape: bf16[2,80,128], index: 6, kind: output, shape index: {}]
  %s7 = sld [smem:[#allocation0]]
  $region69: #{unet_encoder.6} parent=0
    _
  %s9 = ssub.s32 1, %s7
  %s10 = scalar_select 0, %s9, %s7
  loop: start=0, step=1, limit=6
  $region2: #{unet_encoder.6} parent=0 // loop_pre_header
    _
  $region3: #{unet_encoder.6} parent=0 // loop_header
    %s12 = sphi 0, %s16
    %p13 = scmp.ge.s32.totalorder %s12, 6
    %s19 = sphi 0, %s31
    %s20 = sphi 0, %s27
    %s21 = sphi 0, %s19
    %s22 = sphi 0, %s20
    %s23 = sphi 0, %s21
    %s24 = sphi 0, %s22
    %s34 = sphi 0, %s36
    %s37 = sphi 0, %s34
    %s38 = sphi 0, %s37
    %s54 = sphi 0, %s38
    %s58 = sphi 0, %s58
    %s60 = sphi 0, %s58
    %s61 = sphi 0, %s60
    %s75 = sphi 0, %s61
    %s79 = sphi 0, %s79
    %s81 = sphi 0, %s79
    %s82 = sphi 0, %s81
    %s96 = sphi 0, %s82
    %s100 = sphi 0, %s100
    %s102 = sphi 0, %s100
    %s103 = sphi 0, %s102
    %s117 = sphi 0, %s103
    %s121 = sphi 0, %s121
    %s123 = sphi 0, %s121
    %s124 = sphi 0, %s123
    %s138 = sphi 0, %s124
    %s142 = sphi 0, %s142
    %s144 = sphi 0, %s142
    %s145 = sphi 0, %s144
    %s159 = sphi 0, %s145
    %s167 = sphi 0, %s169
    %s170 = sphi 0, %s167
    %s171 = sphi 0, %s170
    %s187 = sphi 0, %s171
  $region4: #{unet_encoder.6} parent=0 // loop_header_branch
    %15 = sbr.rel (%p13) target = $region8
  $region5: #{unet_encoder.6} parent=0 // loop_body
    %s17 = ssub.s32 %s12, 1
    %s18 = ssub.s32 %s12, 2
    %s25 = sadd.s32 1, %s20
    %p26 = scmp.ge.s32.totalorder %s25, 2
    %s27 = scalar_select %p26, 0, %s25
    %s28 = sadd.s32 1, %s19
    %s29 = scalar_select %p26, %s28, %s19
    %p30 = scmp.ge.s32.totalorder %s29, 2
    %s31 = scalar_select %p30, 0, %s29
    %s32 = ssub.s32 %s20, %s27
    %p33 = scmp.eq.s32.totalorder %s32, 0
    %s35 = sadd.s32 %s34, 1
    %s36 = scalar_select %p33, %s34, %s35
    %p39 = pneg %p33
    %p40 = scmp.eq.s32.totalorder %s12, 3
    %p41 = por %p39, %p40
    %p42 = scmp.ne.s32.totalorder %s34, %s37
    %p43 = scmp.eq.s32.totalorder %s12, 0
    %p44 = por %p42, %p43
    %p45 = scmp.ne.s32.totalorder %s34, %s37
    %p46 = scmp.eq.s32.totalorder %s17, 3
    %p47 = por %p45, %p46
    %p48 = scmp.ne.s32.totalorder %s37, %s38
    %p49 = scmp.eq.s32.totalorder %s17, 0
    %p50 = por %p48, %p49
    %p51 = scmp.ne.s32.totalorder %s37, %s38
    %p52 = scmp.eq.s32.totalorder %s18, 3
    %p53 = por %p51, %p52
    %p55 = scmp.ne.s32.totalorder %s38, %s54
    %p56 = scmp.eq.s32.totalorder %s18, 0
    %p57 = por %p55, %p56
    %s59 = sadd.s32 %s58, 1
    %p62 = scmp.eq.s32.totalorder %s12, 3
    %p63 = scmp.ne.s32.totalorder %s58, %s60
    %p64 = scmp.eq.s32.totalorder %s12, 0
    %p65 = por %p63, %p64
    %p66 = scmp.ne.s32.totalorder %s58, %s60
    %p67 = scmp.eq.s32.totalorder %s17, 3
    %p68 = por %p66, %p67
    %p69 = scmp.ne.s32.totalorder %s60, %s61
    %p70 = scmp.eq.s32.totalorder %s17, 0
    %p71 = por %p69, %p70
    %p72 = scmp.ne.s32.totalorder %s60, %s61
    %p73 = scmp.eq.s32.totalorder %s18, 3
    %p74 = por %p72, %p73
    %p76 = scmp.ne.s32.totalorder %s61, %s75
    %p77 = scmp.eq.s32.totalorder %s18, 0
    %p78 = por %p76, %p77
    %s80 = sadd.s32 %s79, 1
    %p83 = scmp.eq.s32.totalorder %s12, 3
    %p84 = scmp.ne.s32.totalorder %s79, %s81
    %p85 = scmp.eq.s32.totalorder %s12, 0
    %p86 = por %p84, %p85
    %p87 = scmp.ne.s32.totalorder %s79, %s81
    %p88 = scmp.eq.s32.totalorder %s17, 3
    %p89 = por %p87, %p88
    %p90 = scmp.ne.s32.totalorder %s81, %s82
    %p91 = scmp.eq.s32.totalorder %s17, 0
    %p92 = por %p90, %p91
    %p93 = scmp.ne.s32.totalorder %s81, %s82
    %p94 = scmp.eq.s32.totalorder %s18, 3
    %p95 = por %p93, %p94
    %p97 = scmp.ne.s32.totalorder %s82, %s96
    %p98 = scmp.eq.s32.totalorder %s18, 0
    %p99 = por %p97, %p98
    %s101 = sadd.s32 %s100, 1
    %p104 = scmp.eq.s32.totalorder %s12, 3
    %p105 = scmp.ne.s32.totalorder %s100, %s102
    %p106 = scmp.eq.s32.totalorder %s12, 0
    %p107 = por %p105, %p106
    %p108 = scmp.ne.s32.totalorder %s100, %s102
    %p109 = scmp.eq.s32.totalorder %s17, 3
    %p110 = por %p108, %p109
    %p111 = scmp.ne.s32.totalorder %s102, %s103
    %p112 = scmp.eq.s32.totalorder %s17, 0
    %p113 = por %p111, %p112
    %p114 = scmp.ne.s32.totalorder %s102, %s103
    %p115 = scmp.eq.s32.totalorder %s18, 3
    %p116 = por %p114, %p115
    %p118 = scmp.ne.s32.totalorder %s103, %s117
    %p119 = scmp.eq.s32.totalorder %s18, 0
    %p120 = por %p118, %p119
    %s122 = sadd.s32 %s121, 1
    %p125 = scmp.eq.s32.totalorder %s12, 3
    %p126 = scmp.ne.s32.totalorder %s121, %s123
    %p127 = scmp.eq.s32.totalorder %s12, 0
    %p128 = por %p126, %p127
    %p129 = scmp.ne.s32.totalorder %s121, %s123
    %p130 = scmp.eq.s32.totalorder %s17, 3
    %p131 = por %p129, %p130
    %p132 = scmp.ne.s32.totalorder %s123, %s124
    %p133 = scmp.eq.s32.totalorder %s17, 0
    %p134 = por %p132, %p133
    %p135 = scmp.ne.s32.totalorder %s123, %s124
    %p136 = scmp.eq.s32.totalorder %s18, 3
    %p137 = por %p135, %p136
    %p139 = scmp.ne.s32.totalorder %s124, %s138
    %p140 = scmp.eq.s32.totalorder %s18, 0
    %p141 = por %p139, %p140
    %s143 = sadd.s32 %s142, 1
    %p146 = scmp.eq.s32.totalorder %s12, 3
    %p147 = scmp.ne.s32.totalorder %s142, %s144
    %p148 = scmp.eq.s32.totalorder %s12, 0
    %p149 = por %p147, %p148
    %p150 = scmp.ne.s32.totalorder %s142, %s144
    %p151 = scmp.eq.s32.totalorder %s17, 3
    %p152 = por %p150, %p151
    %p153 = scmp.ne.s32.totalorder %s144, %s145
    %p154 = scmp.eq.s32.totalorder %s17, 0
    %p155 = por %p153, %p154
    %p156 = scmp.ne.s32.totalorder %s144, %s145
    %p157 = scmp.eq.s32.totalorder %s18, 3
    %p158 = por %p156, %p157
    %p160 = scmp.ne.s32.totalorder %s145, %s159
    %p161 = scmp.eq.s32.totalorder %s18, 0
    %p162 = por %p160, %p161
    %s163 = smul.u32 %s20, %s19
    %s164 = smul.u32 %s27, %s31
    %s165 = ssub.s32 %s163, %s164
    %p166 = scmp.eq.s32.totalorder %s165, 0
    %s168 = sadd.s32 %s167, 1
    %s169 = scalar_select %p166, %s167, %s168
    %p172 = pneg %p166
    %p173 = scmp.eq.s32.totalorder %s12, 3
    %p174 = por %p172, %p173
    %p175 = scmp.ne.s32.totalorder %s167, %s170
    %p176 = scmp.eq.s32.totalorder %s12, 0
    %p177 = por %p175, %p176
    %p178 = scmp.ne.s32.totalorder %s167, %s170
    %p179 = scmp.eq.s32.totalorder %s17, 3
    %p180 = por %p178, %p179
    %p181 = scmp.ne.s32.totalorder %s170, %s171
    %p182 = scmp.eq.s32.totalorder %s17, 0
    %p183 = por %p181, %p182
    %p184 = scmp.ne.s32.totalorder %s170, %s171
    %p185 = scmp.eq.s32.totalorder %s18, 3
    %p186 = por %p184, %p185
    %p188 = scmp.ne.s32.totalorder %s171, %s187
    %p189 = scmp.eq.s32.totalorder %s18, 0
    %p190 = por %p188, %p189
    %p191 = scmp.le.s32.totalorder 1, %s12
    %p192 = scmp.lt.s32.totalorder %s12, 5
    %p193 = pnand %p191, %p192
    %p194 = pneg %p193
    // Predicated region
    $region9: #{unet_encoder.6} parent=5 // pred_check
      _
    $region10: #{unet_encoder.6} parent=5 // pred_check_branch
      %196 = sbr.rel (%p193) target = $region12
    $region11: #{unet_encoder.6} parent=5 // pred_region
      %s197 = ssub.s32 %s12, 1
      // Predicated region
      $region13: #{unet_encoder.6} parent=11 // pred_check
        %p198 = pneg %p71
      $region14: #{unet_encoder.6} parent=11 // pred_check_branch
        %200 = sbr.rel (%p198) target = $region16
      $region15: #{unet_encoder.6} parent=11 // pred_region
        _
      $region16: #{unet_encoder.6} parent=11 // pred_fallthru
        _
      // Predicated region
      $region17: #{unet_encoder.6} parent=11 // pred_check
        %p201 = pneg %p92
      $region18: #{unet_encoder.6} parent=11 // pred_check_branch
        %203 = sbr.rel (%p201) target = $region20
      $region19: #{unet_encoder.6} parent=11 // pred_region
        _
      $region20: #{unet_encoder.6} parent=11 // pred_fallthru
        _
      // Predicated region
      $region21: #{unet_encoder.6} parent=11 // pred_check
        %p204 = pneg %p113
      $region22: #{unet_encoder.6} parent=11 // pred_check_branch
        %206 = sbr.rel (%p204) target = $region24
      $region23: #{unet_encoder.6} parent=11 // pred_region
        _
      $region24: #{unet_encoder.6} parent=11 // pred_fallthru
        _
      // Predicated region
      $region25: #{unet_encoder.6} parent=11 // pred_check
        %p207 = pneg %p134
      $region26: #{unet_encoder.6} parent=11 // pred_check_branch
        %209 = sbr.rel (%p207) target = $region28
      $region27: #{unet_encoder.6} parent=11 // pred_region
        _
      $region28: #{unet_encoder.6} parent=11 // pred_fallthru
        _
      // Predicated region
      $region29: #{unet_encoder.6} parent=11 // pred_check
        %p210 = pneg %p155
      $region30: #{unet_encoder.6} parent=11 // pred_check_branch
        %212 = sbr.rel (%p210) target = $region32
      $region31: #{unet_encoder.6} parent=11 // pred_region
        _
      $region32: #{unet_encoder.6} parent=11 // pred_fallthru
        _
    $region12: #{unet_encoder.6} parent=5 // pred_fallthru
      _
    %p213 = scmp.lt.s32.totalorder %s12, 4
    // Predicated region
    $region33: #{unet_encoder.6} parent=5 // pred_check
      %p214 = pneg %p213
    $region34: #{unet_encoder.6} parent=5 // pred_check_branch
      %216 = sbr.rel (%p214) target = $region36
    $region35: #{unet_encoder.6} parent=5 // pred_region
      // Predicated region
      $region37: #{unet_encoder.6} parent=35 // pred_check
        %p217 = pneg %p44
      $region38: #{unet_encoder.6} parent=35 // pred_check_branch
        %219 = sbr.rel (%p217) target = $region40
      $region39: #{unet_encoder.6} parent=35 // pred_region
        %p220 = scmp.lt.s32.totalorder %s20, 1
        %s221 = scalar_select %p220, %s20, 1
        %s222 = smul.addr %s221, 50
        %s223 = smul.addr %s222, 4
        %s224 = scalar_lea.vmem %s0, %s223
      $region40: #{unet_encoder.6} parent=35 // pred_fallthru
        _
    $region36: #{unet_encoder.6} parent=5 // pred_fallthru
      _
    %p225 = scmp.le.s32.totalorder 1, %s12
    %p226 = scmp.lt.s32.totalorder %s12, 5
    %p227 = pnand %p225, %p226
    %p228 = pneg %p227
    // Predicated region
    $region41: #{unet_encoder.6} parent=5 // pred_check
      _
    $region42: #{unet_encoder.6} parent=5 // pred_check_branch
      %230 = sbr.rel (%p227) target = $region44
    $region43: #{unet_encoder.6} parent=5 // pred_region
      %s231 = ssub.s32 %s12, 1
      %p232 = scmp.lt.s32.totalorder %s22, 1
      %s233 = scalar_select %p232, %s22, 1
      %s234 = smul.addr %s233, 50
      %s235 = smul.addr %s234, 4
      %s236 = scalar_lea.vmem %s0, %s235
      %p237 = pneg %p50
      %p238 = pneg %p47
      %p239 = pneg %p71
      %p240 = pneg %p68
      %p241 = pneg %p92
      %p242 = pneg %p89
      %p243 = pneg %p113
      %p244 = pneg %p110
      %p245 = pneg %p134
      %p246 = pneg %p131
      %p247 = pneg %p155
      %p248 = pneg %p152
      %p249 = pneg %p183
      %p250 = pneg %p180
      %s251 = smul.u32 %s22, %s21
      %p252 = scmp.lt.s32.totalorder %s251, 1
      %s253 = scalar_select %p252, %s251, 1
      %s254 = smul.addr %s253, 10
      %s255 = smul.addr %s254, 4
      %s256 = scalar_lea.vmem %s6, %s255
      %p257 = scmp.lt.s32.totalorder %s22, 1
      %s258 = scalar_select %p257, %s22, 1
      %s259 = smul.addr %s258, 50
      %s260 = smul.addr %s259, 4
      %s261 = scalar_lea.vmem %s0, %s260
      %s262 = smul.u32 %s22, %s21
      %p263 = scmp.lt.s32.totalorder %s262, 1
      %s264 = scalar_select %p263, %s262, 1
      %s265 = smul.addr %s264, 10
      %s266 = smul.addr %s265, 4
      %s267 = scalar_lea.vmem %s6, %s266
      %s268 = smul.u32 %s22, %s21
      %v270 = vld [vmem:[%s261] sm:$0xf]
      %v271 = vld [vmem:[%s261 + $0x4] sm:$0xf]
      %v272 = vld [vmem:[%s261 + $0x8] sm:$0xf]
      %v273 = vld [vmem:[%s261 + $0xc] sm:$0xf]
      %v274 = vld [vmem:[%s261 + $0x10] sm:$0xf]
      %v275 = vld [vmem:[%s261 + $0x14] sm:$0xf]
      %v276 = vld [vmem:[%s261 + $0x18] sm:$0xf]
      %v277 = vld [vmem:[%s261 + $0x1c] sm:$0xf]
      %v278 = vld [vmem:[%s261 + $0x20] sm:$0xf]
      %v279 = vld [vmem:[%s261 + $0x24] sm:$0xf]
      %v280 = vld [vmem:[%s1] sm:$0xf]
      %v281 = vld [vmem:[%s1 + $0x4] sm:$0xf]
      %v282 = vld [vmem:[%s1 + $0x8] sm:$0xf]
      %v283 = vld [vmem:[%s1 + $0xc] sm:$0xf]
      %v284 = vld [vmem:[%s261 + $0x30] sm:$0xc]
      %v285 = vld [vmem:[%s261 + $0x34] sm:$0xf]
      %v286 = vld [vmem:[%s261 + $0x38] sm:$0xf]
      %v287 = vld [vmem:[%s261 + $0x3c] sm:$0xf]
      %v288 = vld [vmem:[%s261 + $0x40] sm:$0xf]
      %v289 = vld [vmem:[%s261 + $0x44] sm:$0xf]
      %v290 = vld [vmem:[%s261 + $0x48] sm:$0xf]
      %v291 = vld [vmem:[%s261 + $0x4c] sm:$0xf]
      %v292 = vld [vmem:[%s261 + $0x50] sm:$0xf]
      %v293 = vld [vmem:[%s261 + $0x54] sm:$0xf]
      %v294 = vld [vmem:[%s261 + $0x58] sm:$0x3]
      %s295 = scalar_lea.vmem %s1, 16
      %v296 = vld [vmem:[%s295] sm:$0xf]
      %v297 = vld [vmem:[%s295 + $0x4] sm:$0xf]
      %v298 = vld [vmem:[%s295 + $0x8] sm:$0xf]
      %v299 = vld [vmem:[%s295 + $0xc] sm:$0xf]
      %v311 = vunpack.c.l.b16 %v284
      %v312 = vunpack.c.l.b16 %v285
      %v313 = vunpack.c.l.b16 %v286
      %v314 = vunpack.c.l.b16 %v287
      %v315 = vunpack.c.l.b16 %v288
      %v316 = vunpack.c.l.b16 %v289
      %v317 = vunpack.c.l.b16 %v290
      %v318 = vunpack.c.l.b16 %v291
      %v319 = vunpack.c.l.b16 %v292
      %v320 = vunpack.c.l.b16 %v293
      %v321 = vunpack.c.l.b16 %v294
      %v322 = vpack.c.b16 %v312, %v311
      %v323 = vpack.c.b16 %v314, %v313
      %v324 = vpack.c.b16 %v316, %v315
      %v325 = vpack.c.b16 %v318, %v317
      %v326 = vpack.c.b16 %v320, %v319
      %v327 = vpack.c.b16 %v321, %v321
      %vm328 = vcmask 1045504
      %v329 = vrot.slane %v322, 2
      %v330 = vrot.slane %v323, 2
      %v331 = vsel %vm328, %v329, %v330
      %v332 = vrot.slane %v324, 2
      %v333 = vsel %vm328, %v330, %v332
      %v334 = vrot.slane %v325, 2
      %v335 = vsel %vm328, %v332, %v334
      %v336 = vrot.slane %v326, 2
      %v337 = vsel %vm328, %v334, %v336
      %v338 = vrot.slane %v327, 2
      %v339 = vsel %vm328, %v336, %v338
      %v344 = vunpack.c.l.b16 %v296
      %v345 = vunpack.c.l.b16 %v297
      %v346 = vunpack.c.l.b16 %v298
      %v347 = vunpack.c.l.b16 %v299
      %v348 = vpack.c.b16 %v345, %v344
      %v349 = vpack.c.b16 %v347, %v346
      %vm352 = vcmask 261120
      %v354 = vsel %vm352, %v331, 0
      %v357 = vsel %vm352, %v333, 0
      %v360 = vsel %vm352, %v335, 0
      %v363 = vsel %vm352, %v337, 0
      %v366 = vsel %vm352, %v339, 0
      %368 = vmatprep.subr.bf16.mxu0 0
      %369 = vmatpush1.bf16.msra.mxu0 %v348
      %370 = vmatprep.subr.bf16.mxu0 0
      %371 = vmatpush1.bf16.msra.mxu0 %v349
      %372 = vmatprep.subr.bf16.mxu0 0
      %373 = vmatpush1.bf16.msra.mxu0 0
      %374 = vmatprep.subr.bf16.mxu0 0
      %375 = vmatpush1.bf16.msra.mxu0 0
      %376 = vmatprep.subr.bf16.mxu0 0
      %377 = vmatpush1.bf16.msra.mxu0 0
      %378 = vmatprep.subr.bf16.mxu0 0
      %379 = vmatpush1.bf16.msra.mxu0 0
      %380 = vmatprep.subr.bf16.mxu0 0
      %381 = vmatpush1.bf16.msra.mxu0 0
      %382 = vmatprep.subr.bf16.mxu0 0
      %383 = vmatpush1.bf16.msra.mxu0 0
      %384 = vmatprep.subr.bf16.mxu0 0
      %385 = vmatpush1.bf16.msra.mxu0 0
      %386 = vmatprep.subr.bf16.mxu0 0
      %387 = vmatpush1.bf16.msra.mxu0 0
      %388 = vmatprep.subr.bf16.mxu0 0
      %389 = vmatpush1.bf16.msra.mxu0 0
      %390 = vmatprep.subr.bf16.mxu0 0
      %391 = vmatpush1.bf16.msra.mxu0 0
      %392 = vmatprep.subr.bf16.mxu0 0
      %393 = vmatpush1.bf16.msra.mxu0 0
      %394 = vmatprep.subr.bf16.mxu0 0
      %395 = vmatpush1.bf16.msra.mxu0 0
      %396 = vmatprep.subr.bf16.mxu0 0
      %397 = vmatpush1.bf16.msra.mxu0 0
      %398 = vmatprep.subr.bf16.mxu0 0
      %399 = vmatpush1.bf16.msra.mxu0 0
      %400 = vmatprep.mubr.bf16.mxu0 0
      %401 = vmatmul.mubr.bf16.gmra.mrb[0].mxu0 %v354
      %v402 = vpop.f32.mrb[0].mxu0
      %v403 = vadd.f32 0.0, %v402
      %v404 = vpop.f32.mrb[0].mxu0
      %v405 = vpop.f32.mrb[0].mxu0
      %v406 = vadd.f32 0.0, %v405
      %v407 = vpop.f32.mrb[0].mxu0
      %408 = vmatprep.mubr.bf16.mxu0 0
      %409 = vmatmul.mubr.bf16.gmra.mrb[0].mxu0 %v357
      %v410 = vpop.f32.mrb[0].mxu0
      %v411 = vadd.f32 0.0, %v410
      %v412 = vpop.f32.mrb[0].mxu0
      %v413 = vpop.f32.mrb[0].mxu0
      %v414 = vadd.f32 0.0, %v413
      %v415 = vpop.f32.mrb[0].mxu0
      %416 = vmatprep.mubr.bf16.mxu0 0
      %417 = vmatmul.mubr.bf16.gmra.mrb[0].mxu0 %v360
      %v418 = vpop.f32.mrb[0].mxu0
      %v419 = vadd.f32 0.0, %v418
      %v420 = vpop.f32.mrb[0].mxu0
      %v421 = vpop.f32.mrb[0].mxu0
      %v422 = vadd.f32 0.0, %v421
      %v423 = vpop.f32.mrb[0].mxu0
      %424 = vmatprep.mubr.bf16.mxu0 0
      %425 = vmatmul.mubr.bf16.gmra.mrb[0].mxu0 %v363
      %v426 = vpop.f32.mrb[0].mxu0
      %v427 = vadd.f32 0.0, %v426
      %v428 = vpop.f32.mrb[0].mxu0
      %v429 = vpop.f32.mrb[0].mxu0
      %v430 = vadd.f32 0.0, %v429
      %v431 = vpop.f32.mrb[0].mxu0
      %432 = vmatprep.mubr.bf16.mxu0 0
      %433 = vmatmul.mubr.bf16.gmra.mrb[0].mxu0 %v366
      %v434 = vpop.f32.mrb[0].mxu0
      %v435 = vadd.f32 0.0, %v434
      %v436 = vpop.f32.mrb[0].mxu0
      %v437 = vpop.f32.mrb[0].mxu0
      %v438 = vadd.f32 0.0, %v437
      %v439 = vpop.f32.mrb[0].mxu0
      %440 = vdwg.mxu0
      %v451 = vunpack.c.l.b16 %v270
      %v452 = vunpack.c.l.b16 %v271
      %v453 = vunpack.c.l.b16 %v272
      %v454 = vunpack.c.l.b16 %v273
      %v455 = vunpack.c.l.b16 %v274
      %v456 = vunpack.c.l.b16 %v275
      %v457 = vunpack.c.l.b16 %v276
      %v458 = vunpack.c.l.b16 %v277
      %v459 = vunpack.c.l.b16 %v278
      %v460 = vunpack.c.l.b16 %v279
      %v461 = vpack.c.b16 %v452, %v451
      %v462 = vpack.c.b16 %v454, %v453
      %v463 = vpack.c.b16 %v456, %v455
      %v464 = vpack.c.b16 %v458, %v457
      %v465 = vpack.c.b16 %v460, %v459
      %v470 = vunpack.c.l.b16 %v280
      %v471 = vunpack.c.l.b16 %v281
      %v472 = vunpack.c.l.b16 %v282
      %v473 = vunpack.c.l.b16 %v283
      %v474 = vpack.c.b16 %v471, %v470
      %v475 = vpack.c.b16 %v473, %v472
      %v479 = vsel %vm352, %v461, 0
      %v482 = vsel %vm352, %v462, 0
      %v485 = vsel %vm352, %v463, 0
      %v488 = vsel %vm352, %v464, 0
      %v491 = vsel %vm352, %v465, 0
      %493 = vmatprep.subr.bf16.mxu0 0
      %494 = vmatpush1.bf16.msra.mxu0 %v474
      %495 = vmatprep.subr.bf16.mxu0 0
      %496 = vmatpush1.bf16.msra.mxu0 %v475
      %497 = vmatprep.subr.bf16.mxu0 0
      %498 = vmatpush1.bf16.msra.mxu0 0
      %499 = vmatprep.subr.bf16.mxu0 0
      %500 = vmatpush1.bf16.msra.mxu0 0
      %501 = vmatprep.subr.bf16.mxu0 0
      %502 = vmatpush1.bf16.msra.mxu0 0
      %503 = vmatprep.subr.bf16.mxu0 0
      %504 = vmatpush1.bf16.msra.mxu0 0
      %505 = vmatprep.subr.bf16.mxu0 0
      %506 = vmatpush1.bf16.msra.mxu0 0
      %507 = vmatprep.subr.bf16.mxu0 0
      %508 = vmatpush1.bf16.msra.mxu0 0
      %509 = vmatprep.subr.bf16.mxu0 0
      %510 = vmatpush1.bf16.msra.mxu0 0
      %511 = vmatprep.subr.bf16.mxu0 0
      %512 = vmatpush1.bf16.msra.mxu0 0
      %513 = vmatprep.subr.bf16.mxu0 0
      %514 = vmatpush1.bf16.msra.mxu0 0
      %515 = vmatprep.subr.bf16.mxu0 0
      %516 = vmatpush1.bf16.msra.mxu0 0
      %517 = vmatprep.subr.bf16.mxu0 0
      %518 = vmatpush1.bf16.msra.mxu0 0
      %519 = vmatprep.subr.bf16.mxu0 0
      %520 = vmatpush1.bf16.msra.mxu0 0
      %521 = vmatprep.subr.bf16.mxu0 0
      %522 = vmatpush1.bf16.msra.mxu0 0
      %523 = vmatprep.subr.bf16.mxu0 0
      %524 = vmatpush1.bf16.msra.mxu0 0
      %525 = vmatprep.mubr.bf16.mxu0 0
      %526 = vmatmul.mubr.bf16.gmra.mrb[0].mxu0 %v479
      %v527 = vpop.f32.mrb[0].mxu0
      %v528 = vadd.f32 %v403, %v527
      %v529 = vpop.f32.mrb[0].mxu0
      %v530 = vpop.f32.mrb[0].mxu0
      %v531 = vadd.f32 %v406, %v530
      %v532 = vpop.f32.mrb[0].mxu0
      %533 = vmatprep.mubr.bf16.mxu0 0
      %534 = vmatmul.mubr.bf16.gmra.mrb[0].mxu0 %v482
      %v535 = vpop.f32.mrb[0].mxu0
      %v536 = vadd.f32 %v411, %v535
      %v537 = vpop.f32.mrb[0].mxu0
      %v538 = vpop.f32.mrb[0].mxu0
      %v539 = vadd.f32 %v414, %v538
      %v540 = vpop.f32.mrb[0].mxu0
      %541 = vmatprep.mubr.bf16.mxu0 0
      %542 = vmatmul.mubr.bf16.gmra.mrb[0].mxu0 %v485
      %v543 = vpop.f32.mrb[0].mxu0
      %v544 = vadd.f32 %v419, %v543
      %v545 = vpop.f32.mrb[0].mxu0
      %v546 = vpop.f32.mrb[0].mxu0
      %v547 = vadd.f32 %v422, %v546
      %v548 = vpop.f32.mrb[0].mxu0
      %549 = vmatprep.mubr.bf16.mxu0 0
      %550 = vmatmul.mubr.bf16.gmra.mrb[0].mxu0 %v488
      %v551 = vpop.f32.mrb[0].mxu0
      %v552 = vadd.f32 %v427, %v551
      %v553 = vpop.f32.mrb[0].mxu0
      %v554 = vpop.f32.mrb[0].mxu0
      %v555 = vadd.f32 %v430, %v554
      %v556 = vpop.f32.mrb[0].mxu0
      %557 = vmatprep.mubr.bf16.mxu0 0
      %558 = vmatmul.mubr.bf16.gmra.mrb[0].mxu0 %v491
      %v559 = vpop.f32.mrb[0].mxu0
      %v560 = vadd.f32 %v435, %v559
      %v561 = vpop.f32.mrb[0].mxu0
      %v562 = vpop.f32.mrb[0].mxu0
      %v563 = vadd.f32 %v438, %v562
      %v564 = vpop.f32.mrb[0].mxu0
      %565 = vdwg.mxu0
      %v566 = vld [vmem:[%s261] sm:$0xf]
      %v567 = vld [vmem:[%s261 + $0x4] sm:$0xf]
      %v568 = vld [vmem:[%s261 + $0x8] sm:$0xf]
      %v569 = vld [vmem:[%s261 + $0xc] sm:$0xf]
      %v570 = vld [vmem:[%s261 + $0x10] sm:$0xf]
      %v571 = vld [vmem:[%s261 + $0x14] sm:$0xf]
      %v572 = vld [vmem:[%s261 + $0x18] sm:$0xf]
      %v573 = vld [vmem:[%s261 + $0x1c] sm:$0xf]
      %v574 = vld [vmem:[%s261 + $0x20] sm:$0xf]
      %v575 = vld [vmem:[%s261 + $0x24] sm:$0xf]
      %v576 = vld [vmem:[%s261 + $0x28] sm:$0x1]
      %s577 = scalar_lea.vmem %s1, 32
      %v578 = vld [vmem:[%s577] sm:$0xf]
      %v579 = vld [vmem:[%s577 + $0x4] sm:$0xf]
      %v580 = vld [vmem:[%s577 + $0x8] sm:$0xf]
      %v581 = vld [vmem:[%s577 + $0xc] sm:$0xf]
      %v593 = vunpack.c.l.b16 %v566
      %v594 = vunpack.c.l.b16 %v567
      %v595 = vunpack.c.l.b16 %v568
      %v596 = vunpack.c.l.b16 %v569
      %v597 = vunpack.c.l.b16 %v570
      %v598 = vunpack.c.l.b16 %v571
      %v599 = vunpack.c.l.b16 %v572
      %v600 = vunpack.c.l.b16 %v573
      %v601 = vunpack.c.l.b16 %v574
      %v602 = vunpack.c.l.b16 %v575
      %v603 = vunpack.c.l.b16 %v576
      %v604 = vpack.c.b16 %v594, %v593
      %v605 = vpack.c.b16 %v596, %v595
      %v606 = vpack.c.b16 %v598, %v597
      %v607 = vpack.c.b16 %v600, %v599
      %v608 = vpack.c.b16 %v602, %v601
      %v609 = vpack.c.b16 %v603, %v603
      %vm610 = vsmask.f32 7424
      %v612 = vshrl.u32 %v604, 16
      %v614 = vshll.u32 %v604, 16
      %v616 = vrot.slane %v614, 1
      %v617 = vor.u32 %v612, %v616
      %v619 = vshll.u32 %v605, 16
      %v621 = vrot.slane %v619, 1
      %v622 = vsel %vm610, %v617, %v621
      %v623 = vshrl.u32 %v605, 16
      %v625 = vor.u32 %v623, %v621
      %v627 = vshll.u32 %v606, 16
      %v629 = vrot.slane %v627, 1
      %v630 = vsel %vm610, %v625, %v629
      %v631 = vshrl.u32 %v606, 16
      %v633 = vor.u32 %v631, %v629
      %v635 = vshll.u32 %v607, 16
      %v637 = vrot.slane %v635, 1
      %v638 = vsel %vm610, %v633, %v637
      %v639 = vshrl.u32 %v607, 16
      %v641 = vor.u32 %v639, %v637
      %v643 = vshll.u32 %v608, 16
      %v645 = vrot.slane %v643, 1
      %v646 = vsel %vm610, %v641, %v645
      %v647 = vshrl.u32 %v608, 16
      %v649 = vor.u32 %v647, %v645
      %v651 = vshll.u32 %v609, 16
      %v653 = vrot.slane %v651, 1
      %v654 = vsel %vm610, %v649, %v653
      %v659 = vunpack.c.l.b16 %v578
      %v660 = vunpack.c.l.b16 %v579
      %v661 = vunpack.c.l.b16 %v580
      %v662 = vunpack.c.l.b16 %v581
      %v663 = vpack.c.b16 %v660, %v659
      %v664 = vpack.c.b16 %v662, %v661
      %v668 = vsel %vm352, %v622, 0
      %v671 = vsel %vm352, %v630, 0
      %v674 = vsel %vm352, %v638, 0
      %v677 = vsel %vm352, %v646, 0
      %v680 = vsel %vm352, %v654, 0
      %682 = vmatprep.subr.bf16.mxu0 0
      %683 = vmatpush1.bf16.msra.mxu0 %v663
      %684 = vmatprep.subr.bf16.mxu0 0
      %685 = vmatpush1.bf16.msra.mxu0 %v664
      %686 = vmatprep.subr.bf16.mxu0 0
      %687 = vmatpush1.bf16.msra.mxu0 0
      %688 = vmatprep.subr.bf16.mxu0 0
      %689 = vmatpush1.bf16.msra.mxu0 0
      %690 = vmatprep.subr.bf16.mxu0 0
      %691 = vmatpush1.bf16.msra.mxu0 0
      %692 = vmatprep.subr.bf16.mxu0 0
      %693 = vmatpush1.bf16.msra.mxu0 0
      %694 = vmatprep.subr.bf16.mxu0 0
      %695 = vmatpush1.bf16.msra.mxu0 0
      %696 = vmatprep.subr.bf16.mxu0 0
      %697 = vmatpush1.bf16.msra.mxu0 0
      %698 = vmatprep.subr.bf16.mxu0 0
      %699 = vmatpush1.bf16.msra.mxu0 0
      %700 = vmatprep.subr.bf16.mxu0 0
      %701 = vmatpush1.bf16.msra.mxu0 0
      %702 = vmatprep.subr.bf16.mxu0 0
      %703 = vmatpush1.bf16.msra.mxu0 0
      %704 = vmatprep.subr.bf16.mxu0 0
      %705 = vmatpush1.bf16.msra.mxu0 0
      %706 = vmatprep.subr.bf16.mxu0 0
      %707 = vmatpush1.bf16.msra.mxu0 0
      %708 = vmatprep.subr.bf16.mxu0 0
      %709 = vmatpush1.bf16.msra.mxu0 0
      %710 = vmatprep.subr.bf16.mxu0 0
      %711 = vmatpush1.bf16.msra.mxu0 0
      %712 = vmatprep.subr.bf16.mxu0 0
      %713 = vmatpush1.bf16.msra.mxu0 0
      %714 = vmatprep.mubr.bf16.mxu0 0
      %715 = vmatmul.mubr.bf16.gmra.mrb[0].mxu0 %v668
      %v716 = vpop.f32.mrb[0].mxu0
      %v717 = vadd.f32 0.0, %v716
      %v718 = vpop.f32.mrb[0].mxu0
      %v719 = vpop.f32.mrb[0].mxu0
      %v720 = vadd.f32 0.0, %v719
      %v721 = vpop.f32.mrb[0].mxu0
      %722 = vmatprep.mubr.bf16.mxu0 0
      %723 = vmatmul.mubr.bf16.gmra.mrb[0].mxu0 %v671
      %v724 = vpop.f32.mrb[0].mxu0
      %v725 = vadd.f32 0.0, %v724
      %v726 = vpop.f32.mrb[0].mxu0
      %v727 = vpop.f32.mrb[0].mxu0
      %v728 = vadd.f32 0.0, %v727
      %v729 = vpop.f32.mrb[0].mxu0
      %730 = vmatprep.mubr.bf16.mxu0 0
      %731 = vmatmul.mubr.bf16.gmra.mrb[0].mxu0 %v674
      %v732 = vpop.f32.mrb[0].mxu0
      %v733 = vadd.f32 0.0, %v732
      %v734 = vpop.f32.mrb[0].mxu0
      %v735 = vpop.f32.mrb[0].mxu0
      %v736 = vadd.f32 0.0, %v735
      %v737 = vpop.f32.mrb[0].mxu0
      %738 = vmatprep.mubr.bf16.mxu0 0
      %739 = vmatmul.mubr.bf16.gmra.mrb[0].mxu0 %v677
      %v740 = vpop.f32.mrb[0].mxu0
      %v741 = vadd.f32 0.0, %v740
      %v742 = vpop.f32.mrb[0].mxu0
      %v743 = vpop.f32.mrb[0].mxu0
      %v744 = vadd.f32 0.0, %v743
      %v745 = vpop.f32.mrb[0].mxu0
      %746 = vmatprep.mubr.bf16.mxu0 0
      %747 = vmatmul.mubr.bf16.gmra.mrb[0].mxu0 %v680
      %v748 = vpop.f32.mrb[0].mxu0
      %v749 = vadd.f32 0.0, %v748
      %v750 = vpop.f32.mrb[0].mxu0
      %v751 = vpop.f32.mrb[0].mxu0
      %v752 = vadd.f32 0.0, %v751
      %v753 = vpop.f32.mrb[0].mxu0
      %754 = vdwg.mxu0
      %v755 = vadd.f32 %v528, %v717
      %v756 = vadd.f32 %v531, %v720
      %v757 = vadd.f32 %v536, %v725
      %v758 = vadd.f32 %v539, %v728
      %v759 = vadd.f32 %v544, %v733
      %v760 = vadd.f32 %v547, %v736
      %v761 = vadd.f32 %v552, %v741
      %v762 = vadd.f32 %v555, %v744
      %v763 = vadd.f32 %v560, %v749
      %v764 = vadd.f32 %v563, %v752
      %v765 = vld [vmem:[%s261 + $0x64] sm:$0xf]
      %v766 = vld [vmem:[%s261 + $0x68] sm:$0xf]
      %v767 = vld [vmem:[%s261 + $0x6c] sm:$0xf]
      %v768 = vld [vmem:[%s261 + $0x70] sm:$0xf]
      %v769 = vld [vmem:[%s261 + $0x74] sm:$0xf]
      %v770 = vld [vmem:[%s261 + $0x78] sm:$0xf]
      %v771 = vld [vmem:[%s261 + $0x7c] sm:$0xf]
      %v772 = vld [vmem:[%s261 + $0x80] sm:$0xf]
      %v773 = vld [vmem:[%s261 + $0x84] sm:$0xf]
      %v774 = vld [vmem:[%s261 + $0x88] sm:$0xf]
      %s775 = scalar_lea.vmem %s1, 48
      %v776 = vld [vmem:[%s775] sm:$0xf]
      %v777 = vld [vmem:[%s775 + $0x4] sm:$0xf]
      %v778 = vld [vmem:[%s775 + $0x8] sm:$0xf]
      %v779 = vld [vmem:[%s775 + $0xc] sm:$0xf]
      %v790 = vunpack.c.l.b16 %v765
      %v791 = vunpack.c.l.b16 %v766
      %v792 = vunpack.c.l.b16 %v767
      %v793 = vunpack.c.l.b16 %v768
      %v794 = vunpack.c.l.b16 %v769
      %v795 = vunpack.c.l.b16 %v770
      %v796 = vunpack.c.l.b16 %v771
      %v797 = vunpack.c.l.b16 %v772
      %v798 = vunpack.c.l.b16 %v773
      %v799 = vunpack.c.l.b16 %v774
      %v800 = vpack.c.b16 %v791, %v790
      %v801 = vpack.c.b16 %v793, %v792
      %v802 = vpack.c.b16 %v795, %v794
      %v803 = vpack.c.b16 %v797, %v796
      %v804 = vpack.c.b16 %v799, %v798
      %v809 = vunpack.c.l.b16 %v776
      %v810 = vunpack.c.l.b16 %v777
      %v811 = vunpack.c.l.b16 %v778
      %v812 = vunpack.c.l.b16 %v779
      %v813 = vpack.c.b16 %v810, %v809
      %v814 = vpack.c.b16 %v812, %v811
      %v818 = vsel %vm352, %v800, 0
      %v821 = vsel %vm352, %v801, 0
      %v824 = vsel %vm352, %v802, 0
      %v827 = vsel %vm352, %v803, 0
      %v830 = vsel %vm352, %v804, 0
      %832 = vmatprep.subr.bf16.mxu0 0
      %833 = vmatpush1.bf16.msra.mxu0 %v813
      %834 = vmatprep.subr.bf16.mxu0 0
      %835 = vmatpush1.bf16.msra.mxu0 %v814
      %836 = vmatprep.subr.bf16.mxu0 0
      %837 = vmatpush1.bf16.msra.mxu0 0
      %838 = vmatprep.subr.bf16.mxu0 0
      %839 = vmatpush1.bf16.msra.mxu0 0
      %840 = vmatprep.subr.bf16.mxu0 0
      %841 = vmatpush1.bf16.msra.mxu0 0
      %842 = vmatprep.subr.bf16.mxu0 0
      %843 = vmatpush1.bf16.msra.mxu0 0
      %844 = vmatprep.subr.bf16.mxu0 0
      %845 = vmatpush1.bf16.msra.mxu0 0
      %846 = vmatprep.subr.bf16.mxu0 0
      %847 = vmatpush1.bf16.msra.mxu0 0
      %848 = vmatprep.subr.bf16.mxu0 0
      %849 = vmatpush1.bf16.msra.mxu0 0
      %850 = vmatprep.subr.bf16.mxu0 0
      %851 = vmatpush1.bf16.msra.mxu0 0
      %852 = vmatprep.subr.bf16.mxu0 0
      %853 = vmatpush1.bf16.msra.mxu0 0
      %854 = vmatprep.subr.bf16.mxu0 0
      %855 = vmatpush1.bf16.msra.mxu0 0
      %856 = vmatprep.subr.bf16.mxu0 0
      %857 = vmatpush1.bf16.msra.mxu0 0
      %858 = vmatprep.subr.bf16.mxu0 0
      %859 = vmatpush1.bf16.msra.mxu0 0
      %860 = vmatprep.subr.bf16.mxu0 0
      %861 = vmatpush1.bf16.msra.mxu0 0
      %862 = vmatprep.subr.bf16.mxu0 0
      %863 = vmatpush1.bf16.msra.mxu0 0
      %864 = vmatprep.mubr.bf16.mxu0 0
      %865 = vmatmul.mubr.bf16.gmra.mrb[0].mxu0 %v818
      %v866 = vpop.f32.mrb[0].mxu0
      %v867 = vadd.f32 0.0, %v866
      %v868 = vpop.f32.mrb[0].mxu0
      %v869 = vpop.f32.mrb[0].mxu0
      %v870 = vadd.f32 0.0, %v869
      %v871 = vpop.f32.mrb[0].mxu0
      %872 = vmatprep.mubr.bf16.mxu0 0
      %873 = vmatmul.mubr.bf16.gmra.mrb[0].mxu0 %v821
      %v874 = vpop.f32.mrb[0].mxu0
      %v875 = vadd.f32 0.0, %v874
      %v876 = vpop.f32.mrb[0].mxu0
      %v877 = vpop.f32.mrb[0].mxu0
      %v878 = vadd.f32 0.0, %v877
      %v879 = vpop.f32.mrb[0].mxu0
      %880 = vmatprep.mubr.bf16.mxu0 0
      %881 = vmatmul.mubr.bf16.gmra.mrb[0].mxu0 %v824
      %v882 = vpop.f32.mrb[0].mxu0
      %v883 = vadd.f32 0.0, %v882
      %v884 = vpop.f32.mrb[0].mxu0
      %v885 = vpop.f32.mrb[0].mxu0
      %v886 = vadd.f32 0.0, %v885
      %v887 = vpop.f32.mrb[0].mxu0
      %888 = vmatprep.mubr.bf16.mxu0 0
      %889 = vmatmul.mubr.bf16.gmra.mrb[0].mxu0 %v827
      %v890 = vpop.f32.mrb[0].mxu0
      %v891 = vadd.f32 0.0, %v890
      %v892 = vpop.f32.mrb[0].mxu0
      %v893 = vpop.f32.mrb[0].mxu0
      %v894 = vadd.f32 0.0, %v893
      %v895 = vpop.f32.mrb[0].mxu0
      %896 = vmatprep.mubr.bf16.mxu0 0
      %897 = vmatmul.mubr.bf16.gmra.mrb[0].mxu0 %v830
      %v898 = vpop.f32.mrb[0].mxu0
      %v899 = vadd.f32 0.0, %v898
      %v900 = vpop.f32.mrb[0].mxu0
      %v901 = vpop.f32.mrb[0].mxu0
      %v902 = vadd.f32 0.0, %v901
      %v903 = vpop.f32.mrb[0].mxu0
      %904 = vdwg.mxu0
      %v905 = vadd.f32 %v755, %v867
      %v906 = vadd.f32 %v756, %v870
      %v907 = vadd.f32 %v757, %v875
      %v908 = vadd.f32 %v758, %v878
      %v909 = vadd.f32 %v759, %v883
      %v910 = vadd.f32 %v760, %v886
      %v911 = vadd.f32 %v761, %v891
      %v912 = vadd.f32 %v762, %v894
      %v913 = vadd.f32 %v763, %v899
      %v914 = vadd.f32 %v764, %v902
      %v915 = vld [vmem:[%s261 + $0x94] sm:$0xc]
      %v916 = vld [vmem:[%s261 + $0x98] sm:$0xf]
      %v917 = vld [vmem:[%s261 + $0x9c] sm:$0xf]
      %v918 = vld [vmem:[%s261 + $0xa0] sm:$0xf]
      %v919 = vld [vmem:[%s261 + $0xa4] sm:$0xf]
      %v920 = vld [vmem:[%s261 + $0xa8] sm:$0xf]
      %v921 = vld [vmem:[%s261 + $0xac] sm:$0xf]
      %v922 = vld [vmem:[%s261 + $0xb0] sm:$0xf]
      %v923 = vld [vmem:[%s261 + $0xb4] sm:$0xf]
      %v924 = vld [vmem:[%s261 + $0xb8] sm:$0xf]
      %v925 = vld [vmem:[%s261 + $0xbc] sm:$0x3]
      %s926 = scalar_lea.vmem %s1, 64
      %v927 = vld [vmem:[%s926] sm:$0xf]
      %v928 = vld [vmem:[%s926 + $0x4] sm:$0xf]
      %v929 = vld [vmem:[%s926 + $0x8] sm:$0xf]
      %v930 = vld [vmem:[%s926 + $0xc] sm:$0xf]
      %v942 = vunpack.c.l.b16 %v915
      %v943 = vunpack.c.l.b16 %v916
      %v944 = vunpack.c.l.b16 %v917
      %v945 = vunpack.c.l.b16 %v918
      %v946 = vunpack.c.l.b16 %v919
      %v947 = vunpack.c.l.b16 %v920
      %v948 = vunpack.c.l.b16 %v921
      %v949 = vunpack.c.l.b16 %v922
      %v950 = vunpack.c.l.b16 %v923
      %v951 = vunpack.c.l.b16 %v924
      %v952 = vunpack.c.l.b16 %v925
      %v953 = vpack.c.b16 %v943, %v942
      %v954 = vpack.c.b16 %v945, %v944
      %v955 = vpack.c.b16 %v947, %v946
      %v956 = vpack.c.b16 %v949, %v948
      %v957 = vpack.c.b16 %v951, %v950
      %v958 = vpack.c.b16 %v952, %v952
      %v959 = vrot.slane %v953, 2
      %v960 = vrot.slane %v954, 2
      %v961 = vsel %vm328, %v959, %v960
      %v962 = vrot.slane %v955, 2
      %v963 = vsel %vm328, %v960, %v962
      %v964 = vrot.slane %v956, 2
      %v965 = vsel %vm328, %v962, %v964
      %v966 = vrot.slane %v957, 2
      %v967 = vsel %vm328, %v964, %v966
      %v968 = vrot.slane %v958, 2
      %v969 = vsel %vm328, %v966, %v968
      %v974 = vunpack.c.l.b16 %v927
      %v975 = vunpack.c.l.b16 %v928
      %v976 = vunpack.c.l.b16 %v929
      %v977 = vunpack.c.l.b16 %v930
      %v978 = vpack.c.b16 %v975, %v974
      %v979 = vpack.c.b16 %v977, %v976
      %v983 = vsel %vm352, %v961, 0
      %v986 = vsel %vm352, %v963, 0
      %v989 = vsel %vm352, %v965, 0
      %v992 = vsel %vm352, %v967, 0
      %v995 = vsel %vm352, %v969, 0
      %997 = vmatprep.subr.bf16.mxu0 0
      %998 = vmatpush1.bf16.msra.mxu0 %v978
      %999 = vmatprep.subr.bf16.mxu0 0
      %1000 = vmatpush1.bf16.msra.mxu0 %v979
      %1001 = vmatprep.subr.bf16.mxu0 0
      %1002 = vmatpush1.bf16.msra.mxu0 0
      %1003 = vmatprep.subr.bf16.mxu0 0
      %1004 = vmatpush1.bf16.msra.mxu0 0
      %1005 = vmatprep.subr.bf16.mxu0 0
      %1006 = vmatpush1.bf16.msra.mxu0 0
      %1007 = vmatprep.subr.bf16.mxu0 0
      %1008 = vmatpush1.bf16.msra.mxu0 0
      %1009 = vmatprep.subr.bf16.mxu0 0
      %1010 = vmatpush1.bf16.msra.mxu0 0
      %1011 = vmatprep.subr.bf16.mxu0 0
      %1012 = vmatpush1.bf16.msra.mxu0 0
      %1013 = vmatprep.subr.bf16.mxu0 0
      %1014 = vmatpush1.bf16.msra.mxu0 0
      %1015 = vmatprep.subr.bf16.mxu0 0
      %1016 = vmatpush1.bf16.msra.mxu0 0
      %1017 = vmatprep.subr.bf16.mxu0 0
      %1018 = vmatpush1.bf16.msra.mxu0 0
      %1019 = vmatprep.subr.bf16.mxu0 0
      %1020 = vmatpush1.bf16.msra.mxu0 0
      %1021 = vmatprep.subr.bf16.mxu0 0
      %1022 = vmatpush1.bf16.msra.mxu0 0
      %1023 = vmatprep.subr.bf16.mxu0 0
      %1024 = vmatpush1.bf16.msra.mxu0 0
      %1025 = vmatprep.subr.bf16.mxu0 0
      %1026 = vmatpush1.bf16.msra.mxu0 0
      %1027 = vmatprep.subr.bf16.mxu0 0
      %1028 = vmatpush1.bf16.msra.mxu0 0
      %1029 = vmatprep.mubr.bf16.mxu0 0
      %1030 = vmatmul.mubr.bf16.gmra.mrb[0].mxu0 %v983
      %v1031 = vpop.f32.mrb[0].mxu0
      %v1032 = vadd.f32 0.0, %v1031
      %v1033 = vpop.f32.mrb[0].mxu0
      %v1034 = vpop.f32.mrb[0].mxu0
      %v1035 = vadd.f32 0.0, %v1034
      %v1036 = vpop.f32.mrb[0].mxu0
      %1037 = vmatprep.mubr.bf16.mxu0 0
      %1038 = vmatmul.mubr.bf16.gmra.mrb[0].mxu0 %v986
      %v1039 = vpop.f32.mrb[0].mxu0
      %v1040 = vadd.f32 0.0, %v1039
      %v1041 = vpop.f32.mrb[0].mxu0
      %v1042 = vpop.f32.mrb[0].mxu0
      %v1043 = vadd.f32 0.0, %v1042
      %v1044 = vpop.f32.mrb[0].mxu0
      %1045 = vmatprep.mubr.bf16.mxu0 0
      %1046 = vmatmul.mubr.bf16.gmra.mrb[0].mxu0 %v989
      %v1047 = vpop.f32.mrb[0].mxu0
      %v1048 = vadd.f32 0.0, %v1047
      %v1049 = vpop.f32.mrb[0].mxu0
      %v1050 = vpop.f32.mrb[0].mxu0
      %v1051 = vadd.f32 0.0, %v1050
      %v1052 = vpop.f32.mrb[0].mxu0
      %1053 = vmatprep.mubr.bf16.mxu0 0
      %1054 = vmatmul.mubr.bf16.gmra.mrb[0].mxu0 %v992
      %v1055 = vpop.f32.mrb[0].mxu0
      %v1056 = vadd.f32 0.0, %v1055
      %v1057 = vpop.f32.mrb[0].mxu0
      %v1058 = vpop.f32.mrb[0].mxu0
      %v1059 = vadd.f32 0.0, %v1058
      %v1060 = vpop.f32.mrb[0].mxu0
      %1061 = vmatprep.mubr.bf16.mxu0 0
      %1062 = vmatmul.mubr.bf16.gmra.mrb[0].mxu0 %v995
      %v1063 = vpop.f32.mrb[0].mxu0
      %v1064 = vadd.f32 0.0, %v1063
      %v1065 = vpop.f32.mrb[0].mxu0
      %v1066 = vpop.f32.mrb[0].mxu0
      %v1067 = vadd.f32 0.0, %v1066
      %v1068 = vpop.f32.mrb[0].mxu0
      %1069 = vdwg.mxu0
      %v1070 = vadd.f32 %v905, %v1032
      %v1071 = vadd.f32 %v906, %v1035
      %v1072 = vadd.f32 %v907, %v1040
      %v1073 = vadd.f32 %v908, %v1043
      %v1074 = vadd.f32 %v909, %v1048
      %v1075 = vadd.f32 %v910, %v1051
      %v1076 = vadd.f32 %v911, %v1056
      %v1077 = vadd.f32 %v912, %v1059
      %v1078 = vadd.f32 %v913, %v1064
      %v1079 = vadd.f32 %v914, %v1067
      %v1080 = vld [vmem:[%s261 + $0x64] sm:$0xf]
      %v1081 = vld [vmem:[%s261 + $0x68] sm:$0xf]
      %v1082 = vld [vmem:[%s261 + $0x6c] sm:$0xf]
      %v1083 = vld [vmem:[%s261 + $0x70] sm:$0xf]
      %v1084 = vld [vmem:[%s261 + $0x74] sm:$0xf]
      %v1085 = vld [vmem:[%s261 + $0x78] sm:$0xf]
      %v1086 = vld [vmem:[%s261 + $0x7c] sm:$0xf]
      %v1087 = vld [vmem:[%s261 + $0x80] sm:$0xf]
      %v1088 = vld [vmem:[%s261 + $0x84] sm:$0xf]
      %v1089 = vld [vmem:[%s261 + $0x88] sm:$0xf]
      %v1090 = vld [vmem:[%s261 + $0x8c] sm:$0x1]
      %s1091 = scalar_lea.vmem %s1, 80
      %v1092 = vld [vmem:[%s1091] sm:$0xf]
      %v1093 = vld [vmem:[%s1091 + $0x4] sm:$0xf]
      %v1094 = vld [vmem:[%s1091 + $0x8] sm:$0xf]
      %v1095 = vld [vmem:[%s1091 + $0xc] sm:$0xf]
      %v1107 = vunpack.c.l.b16 %v1080
      %v1108 = vunpack.c.l.b16 %v1081
      %v1109 = vunpack.c.l.b16 %v1082
      %v1110 = vunpack.c.l.b16 %v1083
      %v1111 = vunpack.c.l.b16 %v1084
      %v1112 = vunpack.c.l.b16 %v1085
      %v1113 = vunpack.c.l.b16 %v1086
      %v1114 = vunpack.c.l.b16 %v1087
      %v1115 = vunpack.c.l.b16 %v1088
      %v1116 = vunpack.c.l.b16 %v1089
      %v1117 = vunpack.c.l.b16 %v1090
      %v1118 = vpack.c.b16 %v1108, %v1107
      %v1119 = vpack.c.b16 %v1110, %v1109
      %v1120 = vpack.c.b16 %v1112, %v1111
      %v1121 = vpack.c.b16 %v1114, %v1113
      %v1122 = vpack.c.b16 %v1116, %v1115
      %v1123 = vpack.c.b16 %v1117, %v1117
      %v1125 = vshrl.u32 %v1118, 16
      %v1127 = vshll.u32 %v1118, 16
      %v1129 = vrot.slane %v1127, 1
      %v1130 = vor.u32 %v1125, %v1129
      %v1132 = vshll.u32 %v1119, 16
      %v1134 = vrot.slane %v1132, 1
      %v1135 = vsel %vm610, %v1130, %v1134
      %v1136 = vshrl.u32 %v1119, 16
      %v1138 = vor.u32 %v1136, %v1134
      %v1140 = vshll.u32 %v1120, 16
      %v1142 = vrot.slane %v1140, 1
      %v1143 = vsel %vm610, %v1138, %v1142
      %v1144 = vshrl.u32 %v1120, 16
      %v1146 = vor.u32 %v1144, %v1142
      %v1148 = vshll.u32 %v1121, 16
      %v1150 = vrot.slane %v1148, 1
      %v1151 = vsel %vm610, %v1146, %v1150
      %v1152 = vshrl.u32 %v1121, 16
      %v1154 = vor.u32 %v1152, %v1150
      %v1156 = vshll.u32 %v1122, 16
      %v1158 = vrot.slane %v1156, 1
      %v1159 = vsel %vm610, %v1154, %v1158
      %v1160 = vshrl.u32 %v1122, 16
      %v1162 = vor.u32 %v1160, %v1158
      %v1164 = vshll.u32 %v1123, 16
      %v1166 = vrot.slane %v1164, 1
      %v1167 = vsel %vm610, %v1162, %v1166
      %v1172 = vunpack.c.l.b16 %v1092
      %v1173 = vunpack.c.l.b16 %v1093
      %v1174 = vunpack.c.l.b16 %v1094
      %v1175 = vunpack.c.l.b16 %v1095
      %v1176 = vpack.c.b16 %v1173, %v1172
      %v1177 = vpack.c.b16 %v1175, %v1174
      %v1181 = vsel %vm352, %v1135, 0
      %v1184 = vsel %vm352, %v1143, 0
      %v1187 = vsel %vm352, %v1151, 0
      %v1190 = vsel %vm352, %v1159, 0
      %v1193 = vsel %vm352, %v1167, 0
      %1195 = vmatprep.subr.bf16.mxu0 0
      %1196 = vmatpush1.bf16.msra.mxu0 %v1176
      %1197 = vmatprep.subr.bf16.mxu0 0
      %1198 = vmatpush1.bf16.msra.mxu0 %v1177
      %1199 = vmatprep.subr.bf16.mxu0 0
      %1200 = vmatpush1.bf16.msra.mxu0 0
      %1201 = vmatprep.subr.bf16.mxu0 0
      %1202 = vmatpush1.bf16.msra.mxu0 0
      %1203 = vmatprep.subr.bf16.mxu0 0
      %1204 = vmatpush1.bf16.msra.mxu0 0
      %1205 = vmatprep.subr.bf16.mxu0 0
      %1206 = vmatpush1.bf16.msra.mxu0 0
      %1207 = vmatprep.subr.bf16.mxu0 0
      %1208 = vmatpush1.bf16.msra.mxu0 0
      %1209 = vmatprep.subr.bf16.mxu0 0
      %1210 = vmatpush1.bf16.msra.mxu0 0
      %1211 = vmatprep.subr.bf16.mxu0 0
      %1212 = vmatpush1.bf16.msra.mxu0 0
      %1213 = vmatprep.subr.bf16.mxu0 0
      %1214 = vmatpush1.bf16.msra.mxu0 0
      %1215 = vmatprep.subr.bf16.mxu0 0
      %1216 = vmatpush1.bf16.msra.mxu0 0
      %1217 = vmatprep.subr.bf16.mxu0 0
      %1218 = vmatpush1.bf16.msra.mxu0 0
      %1219 = vmatprep.subr.bf16.mxu0 0
      %1220 = vmatpush1.bf16.msra.mxu0 0
      %1221 = vmatprep.subr.bf16.mxu0 0
      %1222 = vmatpush1.bf16.msra.mxu0 0
      %1223 = vmatprep.subr.bf16.mxu0 0
      %1224 = vmatpush1.bf16.msra.mxu0 0
      %1225 = vmatprep.subr.bf16.mxu0 0
      %1226 = vmatpush1.bf16.msra.mxu0 0
      %1227 = vmatprep.mubr.bf16.mxu0 0
      %1228 = vmatmul.mubr.bf16.gmra.mrb[0].mxu0 %v1181
      %v1229 = vpop.f32.mrb[0].mxu0
      %v1230 = vadd.f32 0.0, %v1229
      %v1231 = vpop.f32.mrb[0].mxu0
      %v1232 = vpop.f32.mrb[0].mxu0
      %v1233 = vadd.f32 0.0, %v1232
      %v1234 = vpop.f32.mrb[0].mxu0
      %1235 = vmatprep.mubr.bf16.mxu0 0
      %1236 = vmatmul.mubr.bf16.gmra.mrb[0].mxu0 %v1184
      %v1237 = vpop.f32.mrb[0].mxu0
      %v1238 = vadd.f32 0.0, %v1237
      %v1239 = vpop.f32.mrb[0].mxu0
      %v1240 = vpop.f32.mrb[0].mxu0
      %v1241 = vadd.f32 0.0, %v1240
      %v1242 = vpop.f32.mrb[0].mxu0
      %1243 = vmatprep.mubr.bf16.mxu0 0
      %1244 = vmatmul.mubr.bf16.gmra.mrb[0].mxu0 %v1187
      %v1245 = vpop.f32.mrb[0].mxu0
      %v1246 = vadd.f32 0.0, %v1245
      %v1247 = vpop.f32.mrb[0].mxu0
      %v1248 = vpop.f32.mrb[0].mxu0
      %v1249 = vadd.f32 0.0, %v1248
      %v1250 = vpop.f32.mrb[0].mxu0
      %1251 = vmatprep.mubr.bf16.mxu0 0
      %1252 = vmatmul.mubr.bf16.gmra.mrb[0].mxu0 %v1190
      %v1253 = vpop.f32.mrb[0].mxu0
      %v1254 = vadd.f32 0.0, %v1253
      %v1255 = vpop.f32.mrb[0].mxu0
      %v1256 = vpop.f32.mrb[0].mxu0
      %v1257 = vadd.f32 0.0, %v1256
      %v1258 = vpop.f32.mrb[0].mxu0
      %1259 = vmatprep.mubr.bf16.mxu0 0
      %1260 = vmatmul.mubr.bf16.gmra.mrb[0].mxu0 %v1193
      %v1261 = vpop.f32.mrb[0].mxu0
      %v1262 = vadd.f32 0.0, %v1261
      %v1263 = vpop.f32.mrb[0].mxu0
      %v1264 = vpop.f32.mrb[0].mxu0
      %v1265 = vadd.f32 0.0, %v1264
      %v1266 = vpop.f32.mrb[0].mxu0
      %1267 = vdwg.mxu0
      %v1268 = vadd.f32 %v1070, %v1230
      %v1269 = vadd.f32 %v1071, %v1233
      %v1270 = vadd.f32 %v1072, %v1238
      %v1271 = vadd.f32 %v1073, %v1241
      %v1272 = vadd.f32 %v1074, %v1246
      %v1273 = vadd.f32 %v1075, %v1249
      %v1274 = vadd.f32 %v1076, %v1254
      %v1275 = vadd.f32 %v1077, %v1257
      %v1276 = vadd.f32 %v1078, %v1262
      %v1277 = vadd.f32 %v1079, %v1265
      %v1278 = vld [vmem:[%s261 + $0x4] sm:$0xe]
      %v1279 = vld [vmem:[%s261 + $0x8] sm:$0xf]
      %v1280 = vld [vmem:[%s261 + $0xc] sm:$0xf]
      %v1281 = vld [vmem:[%s261 + $0x10] sm:$0xf]
      %v1282 = vld [vmem:[%s261 + $0x14] sm:$0xf]
      %v1283 = vld [vmem:[%s261 + $0x18] sm:$0xf]
      %v1284 = vld [vmem:[%s261 + $0x1c] sm:$0xf]
      %v1285 = vld [vmem:[%s261 + $0x20] sm:$0xf]
      %v1286 = vld [vmem:[%s261 + $0x24] sm:$0xf]
      %v1287 = vld [vmem:[%s261 + $0x28] sm:$0xf]
      %v1288 = vld [vmem:[%s261 + $0x2c] sm:$0x1]
      %s1289 = scalar_lea.vmem %s1, 96
      %v1290 = vld [vmem:[%s1289] sm:$0xf]
      %v1291 = vld [vmem:[%s1289 + $0x4] sm:$0xf]
      %v1292 = vld [vmem:[%s1289 + $0x8] sm:$0xf]
      %v1293 = vld [vmem:[%s1289 + $0xc] sm:$0xf]
      %v1305 = vunpack.c.l.b16 %v1278
      %v1306 = vunpack.c.l.b16 %v1279
      %v1307 = vunpack.c.l.b16 %v1280
      %v1308 = vunpack.c.l.b16 %v1281
      %v1309 = vunpack.c.l.b16 %v1282
      %v1310 = vunpack.c.l.b16 %v1283
      %v1311 = vunpack.c.l.b16 %v1284
      %v1312 = vunpack.c.l.b16 %v1285
      %v1313 = vunpack.c.l.b16 %v1286
      %v1314 = vunpack.c.l.b16 %v1287
      %v1315 = vunpack.c.l.b16 %v1288
      %v1316 = vpack.c.b16 %v1306, %v1305
      %v1317 = vpack.c.b16 %v1308, %v1307
      %v1318 = vpack.c.b16 %v1310, %v1309
      %v1319 = vpack.c.b16 %v1312, %v1311
      %v1320 = vpack.c.b16 %v1314, %v1313
      %v1321 = vpack.c.b16 %v1315, %v1315
      %vm1322 = vcmask 1046528
      %v1323 = vrot.slane %v1316, 1
      %v1324 = vrot.slane %v1317, 1
      %v1325 = vsel %vm1322, %v1323, %v1324
      %v1326 = vrot.slane %v1318, 1
      %v1327 = vsel %vm1322, %v1324, %v1326
      %v1328 = vrot.slane %v1319, 1
      %v1329 = vsel %vm1322, %v1326, %v1328
      %v1330 = vrot.slane %v1320, 1
      %v1331 = vsel %vm1322, %v1328, %v1330
      %v1332 = vrot.slane %v1321, 1
      %v1333 = vsel %vm1322, %v1330, %v1332
      %v1338 = vunpack.c.l.b16 %v1290
      %v1339 = vunpack.c.l.b16 %v1291
      %v1340 = vunpack.c.l.b16 %v1292
      %v1341 = vunpack.c.l.b16 %v1293
      %v1342 = vpack.c.b16 %v1339, %v1338
      %v1343 = vpack.c.b16 %v1341, %v1340
      %v1347 = vsel %vm352, %v1325, 0
      %v1350 = vsel %vm352, %v1327, 0
      %v1353 = vsel %vm352, %v1329, 0
      %v1356 = vsel %vm352, %v1331, 0
      %v1359 = vsel %vm352, %v1333, 0
      %1361 = vmatprep.subr.bf16.mxu0 0
      %1362 = vmatpush1.bf16.msra.mxu0 %v1342
      %1363 = vmatprep.subr.bf16.mxu0 0
      %1364 = vmatpush1.bf16.msra.mxu0 %v1343
      %1365 = vmatprep.subr.bf16.mxu0 0
      %1366 = vmatpush1.bf16.msra.mxu0 0
      %1367 = vmatprep.subr.bf16.mxu0 0
      %1368 = vmatpush1.bf16.msra.mxu0 0
      %1369 = vmatprep.subr.bf16.mxu0 0
      %1370 = vmatpush1.bf16.msra.mxu0 0
      %1371 = vmatprep.subr.bf16.mxu0 0
      %1372 = vmatpush1.bf16.msra.mxu0 0
      %1373 = vmatprep.subr.bf16.mxu0 0
      %1374 = vmatpush1.bf16.msra.mxu0 0
      %1375 = vmatprep.subr.bf16.mxu0 0
      %1376 = vmatpush1.bf16.msra.mxu0 0
      %1377 = vmatprep.subr.bf16.mxu0 0
      %1378 = vmatpush1.bf16.msra.mxu0 0
      %1379 = vmatprep.subr.bf16.mxu0 0
      %1380 = vmatpush1.bf16.msra.mxu0 0
      %1381 = vmatprep.subr.bf16.mxu0 0
      %1382 = vmatpush1.bf16.msra.mxu0 0
      %1383 = vmatprep.subr.bf16.mxu0 0
      %1384 = vmatpush1.bf16.msra.mxu0 0
      %1385 = vmatprep.subr.bf16.mxu0 0
      %1386 = vmatpush1.bf16.msra.mxu0 0
      %1387 = vmatprep.subr.bf16.mxu0 0
      %1388 = vmatpush1.bf16.msra.mxu0 0
      %1389 = vmatprep.subr.bf16.mxu0 0
      %1390 = vmatpush1.bf16.msra.mxu0 0
      %1391 = vmatprep.subr.bf16.mxu0 0
      %1392 = vmatpush1.bf16.msra.mxu0 0
      %1393 = vmatprep.mubr.bf16.mxu0 0
      %1394 = vmatmul.mubr.bf16.gmra.mrb[0].mxu0 %v1347
      %v1395 = vpop.f32.mrb[0].mxu0
      %v1396 = vadd.f32 0.0, %v1395
      %v1397 = vpop.f32.mrb[0].mxu0
      %v1398 = vpop.f32.mrb[0].mxu0
      %v1399 = vadd.f32 0.0, %v1398
      %v1400 = vpop.f32.mrb[0].mxu0
      %1401 = vmatprep.mubr.bf16.mxu0 0
      %1402 = vmatmul.mubr.bf16.gmra.mrb[0].mxu0 %v1350
      %v1403 = vpop.f32.mrb[0].mxu0
      %v1404 = vadd.f32 0.0, %v1403
      %v1405 = vpop.f32.mrb[0].mxu0
      %v1406 = vpop.f32.mrb[0].mxu0
      %v1407 = vadd.f32 0.0, %v1406
      %v1408 = vpop.f32.mrb[0].mxu0
      %1409 = vmatprep.mubr.bf16.mxu0 0
      %1410 = vmatmul.mubr.bf16.gmra.mrb[0].mxu0 %v1353
      %v1411 = vpop.f32.mrb[0].mxu0
      %v1412 = vadd.f32 0.0, %v1411
      %v1413 = vpop.f32.mrb[0].mxu0
      %v1414 = vpop.f32.mrb[0].mxu0
      %v1415 = vadd.f32 0.0, %v1414
      %v1416 = vpop.f32.mrb[0].mxu0
      %1417 = vmatprep.mubr.bf16.mxu0 0
      %1418 = vmatmul.mubr.bf16.gmra.mrb[0].mxu0 %v1356
      %v1419 = vpop.f32.mrb[0].mxu0
      %v1420 = vadd.f32 0.0, %v1419
      %v1421 = vpop.f32.mrb[0].mxu0
      %v1422 = vpop.f32.mrb[0].mxu0
      %v1423 = vadd.f32 0.0, %v1422
      %v1424 = vpop.f32.mrb[0].mxu0
      %1425 = vmatprep.mubr.bf16.mxu0 0
      %1426 = vmatmul.mubr.bf16.gmra.mrb[0].mxu0 %v1359
      %v1427 = vpop.f32.mrb[0].mxu0
      %v1428 = vadd.f32 0.0, %v1427
      %v1429 = vpop.f32.mrb[0].mxu0
      %v1430 = vpop.f32.mrb[0].mxu0
      %v1431 = vadd.f32 0.0, %v1430
      %v1432 = vpop.f32.mrb[0].mxu0
      %1433 = vdwg.mxu0
      %v1434 = vadd.f32 %v1268, %v1396
      %v1435 = vadd.f32 %v1269, %v1399
      %v1436 = vadd.f32 %v1270, %v1404
      %v1437 = vadd.f32 %v1271, %v1407
      %v1438 = vadd.f32 %v1272, %v1412
      %v1439 = vadd.f32 %v1273, %v1415
      %v1440 = vadd.f32 %v1274, %v1420
      %v1441 = vadd.f32 %v1275, %v1423
      %v1442 = vadd.f32 %v1276, %v1428
      %v1443 = vadd.f32 %v1277, %v1431
      %v1444 = vld [vmem:[%s261 + $0x34] sm:$0x8]
      %v1445 = vld [vmem:[%s261 + $0x38] sm:$0xf]
      %v1446 = vld [vmem:[%s261 + $0x3c] sm:$0xf]
      %v1447 = vld [vmem:[%s261 + $0x40] sm:$0xf]
      %v1448 = vld [vmem:[%s261 + $0x44] sm:$0xf]
      %v1449 = vld [vmem:[%s261 + $0x48] sm:$0xf]
      %v1450 = vld [vmem:[%s261 + $0x4c] sm:$0xf]
      %v1451 = vld [vmem:[%s261 + $0x50] sm:$0xf]
      %v1452 = vld [vmem:[%s261 + $0x54] sm:$0xf]
      %v1453 = vld [vmem:[%s261 + $0x58] sm:$0xf]
      %v1454 = vld [vmem:[%s261 + $0x5c] sm:$0x7]
      %s1455 = scalar_lea.vmem %s1, 112
      %v1456 = vld [vmem:[%s1455] sm:$0xf]
      %v1457 = vld [vmem:[%s1455 + $0x4] sm:$0xf]
      %v1458 = vld [vmem:[%s1455 + $0x8] sm:$0xf]
      %v1459 = vld [vmem:[%s1455 + $0xc] sm:$0xf]
      %v1471 = vunpack.c.l.b16 %v1444
      %v1472 = vunpack.c.l.b16 %v1445
      %v1473 = vunpack.c.l.b16 %v1446
      %v1474 = vunpack.c.l.b16 %v1447
      %v1475 = vunpack.c.l.b16 %v1448
      %v1476 = vunpack.c.l.b16 %v1449
      %v1477 = vunpack.c.l.b16 %v1450
      %v1478 = vunpack.c.l.b16 %v1451
      %v1479 = vunpack.c.l.b16 %v1452
      %v1480 = vunpack.c.l.b16 %v1453
      %v1481 = vunpack.c.l.b16 %v1454
      %v1482 = vpack.c.b16 %v1472, %v1471
      %v1483 = vpack.c.b16 %v1474, %v1473
      %v1484 = vpack.c.b16 %v1476, %v1475
      %v1485 = vpack.c.b16 %v1478, %v1477
      %v1486 = vpack.c.b16 %v1480, %v1479
      %v1487 = vpack.c.b16 %v1481, %v1481
      %vm1488 = vcmask 1044480
      %v1489 = vrot.slane %v1482, 3
      %v1490 = vrot.slane %v1483, 3
      %v1491 = vsel %vm1488, %v1489, %v1490
      %v1492 = vrot.slane %v1484, 3
      %v1493 = vsel %vm1488, %v1490, %v1492
      %v1494 = vrot.slane %v1485, 3
      %v1495 = vsel %vm1488, %v1492, %v1494
      %v1496 = vrot.slane %v1486, 3
      %v1497 = vsel %vm1488, %v1494, %v1496
      %v1498 = vrot.slane %v1487, 3
      %v1499 = vsel %vm1488, %v1496, %v1498
      %v1504 = vunpack.c.l.b16 %v1456
      %v1505 = vunpack.c.l.b16 %v1457
      %v1506 = vunpack.c.l.b16 %v1458
      %v1507 = vunpack.c.l.b16 %v1459
      %v1508 = vpack.c.b16 %v1505, %v1504
      %v1509 = vpack.c.b16 %v1507, %v1506
      %v1513 = vsel %vm352, %v1491, 0
      %v1516 = vsel %vm352, %v1493, 0
      %v1519 = vsel %vm352, %v1495, 0
      %v1522 = vsel %vm352, %v1497, 0
      %v1525 = vsel %vm352, %v1499, 0
      %1527 = vmatprep.subr.bf16.mxu0 0
      %1528 = vmatpush1.bf16.msra.mxu0 %v1508
      %1529 = vmatprep.subr.bf16.mxu0 0
      %1530 = vmatpush1.bf16.msra.mxu0 %v1509
      %1531 = vmatprep.subr.bf16.mxu0 0
      %1532 = vmatpush1.bf16.msra.mxu0 0
      %1533 = vmatprep.subr.bf16.mxu0 0
      %1534 = vmatpush1.bf16.msra.mxu0 0
      %1535 = vmatprep.subr.bf16.mxu0 0
      %1536 = vmatpush1.bf16.msra.mxu0 0
      %1537 = vmatprep.subr.bf16.mxu0 0
      %1538 = vmatpush1.bf16.msra.mxu0 0
      %1539 = vmatprep.subr.bf16.mxu0 0
      %1540 = vmatpush1.bf16.msra.mxu0 0
      %1541 = vmatprep.subr.bf16.mxu0 0
      %1542 = vmatpush1.bf16.msra.mxu0 0
      %1543 = vmatprep.subr.bf16.mxu0 0
      %1544 = vmatpush1.bf16.msra.mxu0 0
      %1545 = vmatprep.subr.bf16.mxu0 0
      %1546 = vmatpush1.bf16.msra.mxu0 0
      %1547 = vmatprep.subr.bf16.mxu0 0
      %1548 = vmatpush1.bf16.msra.mxu0 0
      %1549 = vmatprep.subr.bf16.mxu0 0
      %1550 = vmatpush1.bf16.msra.mxu0 0
      %1551 = vmatprep.subr.bf16.mxu0 0
      %1552 = vmatpush1.bf16.msra.mxu0 0
      %1553 = vmatprep.subr.bf16.mxu0 0
      %1554 = vmatpush1.bf16.msra.mxu0 0
      %1555 = vmatprep.subr.bf16.mxu0 0
      %1556 = vmatpush1.bf16.msra.mxu0 0
      %1557 = vmatprep.subr.bf16.mxu0 0
      %1558 = vmatpush1.bf16.msra.mxu0 0
      %1559 = vmatprep.mubr.bf16.mxu0 0
      %1560 = vmatmul.mubr.bf16.gmra.mrb[0].mxu0 %v1513
      %v1561 = vpop.f32.mrb[0].mxu0
      %v1562 = vadd.f32 0.0, %v1561
      %v1563 = vpop.f32.mrb[0].mxu0
      %v1564 = vpop.f32.mrb[0].mxu0
      %v1565 = vadd.f32 0.0, %v1564
      %v1566 = vpop.f32.mrb[0].mxu0
      %1567 = vmatprep.mubr.bf16.mxu0 0
      %1568 = vmatmul.mubr.bf16.gmra.mrb[0].mxu0 %v1516
      %v1569 = vpop.f32.mrb[0].mxu0
      %v1570 = vadd.f32 0.0, %v1569
      %v1571 = vpop.f32.mrb[0].mxu0
      %v1572 = vpop.f32.mrb[0].mxu0
      %v1573 = vadd.f32 0.0, %v1572
      %v1574 = vpop.f32.mrb[0].mxu0
      %1575 = vmatprep.mubr.bf16.mxu0 0
      %1576 = vmatmul.mubr.bf16.gmra.mrb[0].mxu0 %v1519
      %v1577 = vpop.f32.mrb[0].mxu0
      %v1578 = vadd.f32 0.0, %v1577
      %v1579 = vpop.f32.mrb[0].mxu0
      %v1580 = vpop.f32.mrb[0].mxu0
      %v1581 = vadd.f32 0.0, %v1580
      %v1582 = vpop.f32.mrb[0].mxu0
      %1583 = vmatprep.mubr.bf16.mxu0 0
      %1584 = vmatmul.mubr.bf16.gmra.mrb[0].mxu0 %v1522
      %v1585 = vpop.f32.mrb[0].mxu0
      %v1586 = vadd.f32 0.0, %v1585
      %v1587 = vpop.f32.mrb[0].mxu0
      %v1588 = vpop.f32.mrb[0].mxu0
      %v1589 = vadd.f32 0.0, %v1588
      %v1590 = vpop.f32.mrb[0].mxu0
      %1591 = vmatprep.mubr.bf16.mxu0 0
      %1592 = vmatmul.mubr.bf16.gmra.mrb[0].mxu0 %v1525
      %v1593 = vpop.f32.mrb[0].mxu0
      %v1594 = vadd.f32 0.0, %v1593
      %v1595 = vpop.f32.mrb[0].mxu0
      %v1596 = vpop.f32.mrb[0].mxu0
      %v1597 = vadd.f32 0.0, %v1596
      %v1598 = vpop.f32.mrb[0].mxu0
      %1599 = vdwg.mxu0
      %v1600 = vadd.f32 %v1434, %v1562
      %v1601 = vadd.f32 %v1435, %v1565
      %v1602 = vadd.f32 %v1436, %v1570
      %v1603 = vadd.f32 %v1437, %v1573
      %v1604 = vadd.f32 %v1438, %v1578
      %v1605 = vadd.f32 %v1439, %v1581
      %v1606 = vadd.f32 %v1440, %v1586
      %v1607 = vadd.f32 %v1441, %v1589
      %v1608 = vadd.f32 %v1442, %v1594
      %v1609 = vadd.f32 %v1443, %v1597
      %v1610 = vld [vmem:[%s261 + $0x2c] sm:$0x3]
      %s1611 = scalar_lea.vmem %s1, 128
      %v1612 = vld [vmem:[%s1611] sm:$0xf]
      %v1613 = vld [vmem:[%s1611 + $0x4] sm:$0xf]
      %v1614 = vld [vmem:[%s1611 + $0x8] sm:$0xf]
      %v1615 = vld [vmem:[%s1611 + $0xc] sm:$0xf]
      %v1617 = vunpack.c.l.b16 %v1610
      %v1618 = vpack.c.b16 %v1617, %v1617
      %vm1619 = vsmask.f32 6400
      %v1621 = vshrl.u32 %v1316, 16
      %v1623 = vrot.slane %v1621, 1
      %v1624 = vshll.u32 %v1316, 16
      %v1626 = vrot.slane %v1624, 2
      %v1627 = vor.u32 %v1623, %v1626
      %v1629 = vshrl.u32 %v1317, 16
      %v1631 = vrot.slane %v1629, 1
      %v1632 = vshll.u32 %v1317, 16
      %v1634 = vrot.slane %v1632, 2
      %v1635 = vor.u32 %v1631, %v1634
      %v1636 = vsel %vm1619, %v1627, %v1635
      %v1638 = vshrl.u32 %v1318, 16
      %v1640 = vrot.slane %v1638, 1
      %v1641 = vshll.u32 %v1318, 16
      %v1643 = vrot.slane %v1641, 2
      %v1644 = vor.u32 %v1640, %v1643
      %v1645 = vsel %vm1619, %v1635, %v1644
      %v1647 = vshrl.u32 %v1319, 16
      %v1649 = vrot.slane %v1647, 1
      %v1650 = vshll.u32 %v1319, 16
      %v1652 = vrot.slane %v1650, 2
      %v1653 = vor.u32 %v1649, %v1652
      %v1654 = vsel %vm1619, %v1644, %v1653
      %v1656 = vshrl.u32 %v1320, 16
      %v1658 = vrot.slane %v1656, 1
      %v1659 = vshll.u32 %v1320, 16
      %v1661 = vrot.slane %v1659, 2
      %v1662 = vor.u32 %v1658, %v1661
      %v1663 = vsel %vm1619, %v1653, %v1662
      %v1665 = vshrl.u32 %v1618, 16
      %v1667 = vrot.slane %v1665, 1
      %v1668 = vshll.u32 %v1618, 16
      %v1670 = vrot.slane %v1668, 2
      %v1671 = vor.u32 %v1667, %v1670
      %v1672 = vsel %vm1619, %v1662, %v1671
      %v1677 = vunpack.c.l.b16 %v1612
      %v1678 = vunpack.c.l.b16 %v1613
      %v1679 = vunpack.c.l.b16 %v1614
      %v1680 = vunpack.c.l.b16 %v1615
      %v1681 = vpack.c.b16 %v1678, %v1677
      %v1682 = vpack.c.b16 %v1680, %v1679
      %v1686 = vsel %vm352, %v1636, 0
      %v1689 = vsel %vm352, %v1645, 0
      %v1692 = vsel %vm352, %v1654, 0
      %v1695 = vsel %vm352, %v1663, 0
      %v1698 = vsel %vm352, %v1672, 0
      %1700 = vmatprep.subr.bf16.mxu0 0
      %1701 = vmatpush1.bf16.msra.mxu0 %v1681
      %1702 = vmatprep.subr.bf16.mxu0 0
      %1703 = vmatpush1.bf16.msra.mxu0 %v1682
      %1704 = vmatprep.subr.bf16.mxu0 0
      %1705 = vmatpush1.bf16.msra.mxu0 0
      %1706 = vmatprep.subr.bf16.mxu0 0
      %1707 = vmatpush1.bf16.msra.mxu0 0
      %1708 = vmatprep.subr.bf16.mxu0 0
      %1709 = vmatpush1.bf16.msra.mxu0 0
      %1710 = vmatprep.subr.bf16.mxu0 0
      %1711 = vmatpush1.bf16.msra.mxu0 0
      %1712 = vmatprep.subr.bf16.mxu0 0
      %1713 = vmatpush1.bf16.msra.mxu0 0
      %1714 = vmatprep.subr.bf16.mxu0 0
      %1715 = vmatpush1.bf16.msra.mxu0 0
      %1716 = vmatprep.subr.bf16.mxu0 0
      %1717 = vmatpush1.bf16.msra.mxu0 0
      %1718 = vmatprep.subr.bf16.mxu0 0
      %1719 = vmatpush1.bf16.msra.mxu0 0
      %1720 = vmatprep.subr.bf16.mxu0 0
      %1721 = vmatpush1.bf16.msra.mxu0 0
      %1722 = vmatprep.subr.bf16.mxu0 0
      %1723 = vmatpush1.bf16.msra.mxu0 0
      %1724 = vmatprep.subr.bf16.mxu0 0
      %1725 = vmatpush1.bf16.msra.mxu0 0
      %1726 = vmatprep.subr.bf16.mxu0 0
      %1727 = vmatpush1.bf16.msra.mxu0 0
      %1728 = vmatprep.subr.bf16.mxu0 0
      %1729 = vmatpush1.bf16.msra.mxu0 0
      %1730 = vmatprep.subr.bf16.mxu0 0
      %1731 = vmatpush1.bf16.msra.mxu0 0
      %1732 = vmatprep.mubr.bf16.mxu0 0
      %1733 = vmatmul.mubr.bf16.gmra.mrb[0].mxu0 %v1686
      %v1734 = vpop.f32.mrb[0].mxu0
      %v1735 = vadd.f32 0.0, %v1734
      %v1736 = vpop.f32.mrb[0].mxu0
      %v1737 = vpop.f32.mrb[0].mxu0
      %v1738 = vadd.f32 0.0, %v1737
      %v1739 = vpop.f32.mrb[0].mxu0
      %1740 = vmatprep.mubr.bf16.mxu0 0
      %1741 = vmatmul.mubr.bf16.gmra.mrb[0].mxu0 %v1689
      %v1742 = vpop.f32.mrb[0].mxu0
      %v1743 = vadd.f32 0.0, %v1742
      %v1744 = vpop.f32.mrb[0].mxu0
      %v1745 = vpop.f32.mrb[0].mxu0
      %v1746 = vadd.f32 0.0, %v1745
      %v1747 = vpop.f32.mrb[0].mxu0
      %1748 = vmatprep.mubr.bf16.mxu0 0
      %1749 = vmatmul.mubr.bf16.gmra.mrb[0].mxu0 %v1692
      %v1750 = vpop.f32.mrb[0].mxu0
      %v1751 = vadd.f32 0.0, %v1750
      %v1752 = vpop.f32.mrb[0].mxu0
      %v1753 = vpop.f32.mrb[0].mxu0
      %v1754 = vadd.f32 0.0, %v1753
      %v1755 = vpop.f32.mrb[0].mxu0
      %1756 = vmatprep.mubr.bf16.mxu0 0
      %1757 = vmatmul.mubr.bf16.gmra.mrb[0].mxu0 %v1695
      %v1758 = vpop.f32.mrb[0].mxu0
      %v1759 = vadd.f32 0.0, %v1758
      %v1760 = vpop.f32.mrb[0].mxu0
      %v1761 = vpop.f32.mrb[0].mxu0
      %v1762 = vadd.f32 0.0, %v1761
      %v1763 = vpop.f32.mrb[0].mxu0
      %1764 = vmatprep.mubr.bf16.mxu0 0
      %1765 = vmatmul.mubr.bf16.gmra.mrb[0].mxu0 %v1698
      %v1766 = vpop.f32.mrb[0].mxu0
      %v1767 = vadd.f32 0.0, %v1766
      %v1768 = vpop.f32.mrb[0].mxu0
      %v1769 = vpop.f32.mrb[0].mxu0
      %v1770 = vadd.f32 0.0, %v1769
      %v1771 = vpop.f32.mrb[0].mxu0
      %1772 = vdwg.mxu0
      %v1773 = vadd.f32 %v1600, %v1735
      %v1774 = vadd.f32 %v1601, %v1738
      %v1775 = vadd.f32 %v1602, %v1743
      %v1776 = vadd.f32 %v1603, %v1746
      %v1777 = vadd.f32 %v1604, %v1751
      %v1778 = vadd.f32 %v1605, %v1754
      %v1779 = vadd.f32 %v1606, %v1759
      %v1780 = vadd.f32 %v1607, %v1762
      %v1781 = vadd.f32 %v1608, %v1767
      %v1782 = vadd.f32 %v1609, %v1770
      %v1783 = vld [vmem:[%s2] sm:$0x1]
      %v1785 = vlaneseq
      %v1786 = vshrl.u32 %v1785, 7
      %v1787 = vsub.s32 0, %v1786
      %v1788 = vrot.slane %v1783, %v1787
      %v1790 = vadd.f32 %v1773, %v1788
      %v1791 = vadd.f32 %v1774, %v1788
      %v1792 = vadd.f32 %v1775, %v1788
      %v1793 = vadd.f32 %v1776, %v1788
      %v1794 = vadd.f32 %v1777, %v1788
      %v1795 = vadd.f32 %v1778, %v1788
      %v1796 = vadd.f32 %v1779, %v1788
      %v1797 = vadd.f32 %v1780, %v1788
      %v1798 = vadd.f32 %v1781, %v1788
      %v1799 = vadd.f32 %v1782, %v1788
      %p1800 = scmp.eq.s32.totalorder %s21, 0
      %p1801 = scmp.eq.s32.totalorder %s22, 0
      %p1802 = pnand %p1800, %p1801
      %p1803 = pneg %p1802
      // Predicated region
      $region45: #{unet_encoder.6} parent=43 // pred_check
        _
      $region46: #{unet_encoder.6} parent=43 // pred_check_branch
        %1805 = sbr.rel (%p1802) target = $region48
      $region47: #{unet_encoder.6} parent=43 // pred_region
        %1806 = vst [vmem:[#allocation2] sm:$0x3] 0.0
      $region48: #{unet_encoder.6} parent=43 // pred_fallthru
        _
      // Predicated region
      $region49: #{unet_encoder.6} parent=43 // pred_check
        %p1807 = pneg %p1800
      $region50: #{unet_encoder.6} parent=43 // pred_check_branch
        %1809 = sbr.rel (%p1807) target = $region52
      $region51: #{unet_encoder.6} parent=43 // pred_region
        %v1810 = vld [vmem:[%s5] sm:$0xff]
        %v1811 = vld [vmem:[%s5 + $0x8] sm:$0xff]
        %v1812 = vld [vmem:[%s5 + $0x10] sm:$0xff]
        %v1813 = vld [vmem:[%s5 + $0x18] sm:$0xff]
        %v1814 = vld [vmem:[%s5 + $0x20] sm:$0xff]
        %v1815 = vld [vmem:[%s5 + $0x28] sm:$0xff]
        %v1816 = vld [vmem:[%s5 + $0x30] sm:$0xff]
        %v1817 = vld [vmem:[%s5 + $0x38] sm:$0xff]
        %v1818 = vld [vmem:[%s5 + $0x40] sm:$0xff]
        %v1819 = vld [vmem:[%s5 + $0x48] sm:$0xff]
        %1821 = vset.pattern.permute.xlu0 0
        %1822 = vperm.xlu0 %1821, %v1810
        %v1823 = vpop.permute.xlu0 %1822
        %1826 = vset.pattern.permute.xlu0 0
        %1827 = vperm.xlu0 %1826, %v1811
        %v1828 = vpop.permute.xlu0 %1827
        %1831 = vset.pattern.permute.xlu0 0
        %1832 = vperm.xlu0 %1831, %v1812
        %v1833 = vpop.permute.xlu0 %1832
        %1836 = vset.pattern.permute.xlu0 0
        %1837 = vperm.xlu0 %1836, %v1813
        %v1838 = vpop.permute.xlu0 %1837
        %1841 = vset.pattern.permute.xlu0 0
        %1842 = vperm.xlu0 %1841, %v1814
        %v1843 = vpop.permute.xlu0 %1842
        %1846 = vset.pattern.permute.xlu0 0
        %1847 = vperm.xlu0 %1846, %v1815
        %v1848 = vpop.permute.xlu0 %1847
        %1851 = vset.pattern.permute.xlu0 0
        %1852 = vperm.xlu0 %1851, %v1816
        %v1853 = vpop.permute.xlu0 %1852
        %1856 = vset.pattern.permute.xlu0 0
        %1857 = vperm.xlu0 %1856, %v1817
        %v1858 = vpop.permute.xlu0 %1857
        %1861 = vset.pattern.permute.xlu0 0
        %1862 = vperm.xlu0 %1861, %v1818
        %v1863 = vpop.permute.xlu0 %1862
        %1866 = vset.pattern.permute.xlu0 0
        %1867 = vperm.xlu0 %1866, %v1819
        %v1868 = vpop.permute.xlu0 %1867
        %v1870 = vmul.f32 %v1790, %v1823
        %v1871 = vmul.f32 %v1791, %v1828
        %v1872 = vmul.f32 %v1792, %v1833
        %v1873 = vmul.f32 %v1793, %v1838
        %v1874 = vmul.f32 %v1794, %v1843
        %v1875 = vmul.f32 %v1795, %v1848
        %v1876 = vmul.f32 %v1796, %v1853
        %v1877 = vmul.f32 %v1797, %v1858
        %v1878 = vmul.f32 %v1798, %v1863
        %v1879 = vmul.f32 %v1799, %v1868
        %v1880 = vld [vmem:[#allocation2] sm:$0x1]
        %v1881 = vadd.f32 %v1870, %v1871
        %v1882 = vadd.f32 %v1881, %v1872
        %v1883 = vadd.f32 %v1882, %v1873
        %v1884 = vadd.f32 %v1883, %v1874
        %v1885 = vadd.f32 %v1884, %v1875
        %v1886 = vadd.f32 %v1885, %v1876
        %v1887 = vadd.f32 %v1886, %v1877
        %v1888 = vadd.f32 %v1887, %v1878
        %v1889 = vadd.f32 %v1888, %v1879
        %v1890 = vrot.slane %v1889, 4
        %v1891 = vadd.f32 %v1889, %v1890
        %v1892 = vrot.slane %v1891, 2
        %v1893 = vadd.f32 %v1891, %v1892
        %v1894 = vrot.slane %v1893, 1
        %v1895 = vadd.f32 %v1893, %v1894
        %v1896 = vadd.f32 %v1880, %v1895
        %1897 = vst [vmem:[#allocation2] sm:$0x1] %v1896
        %v1898 = vld [vmem:[#allocation2 + $0x1] sm:$0x1]
        %v1899 = vmul.f32 %v1870, %v1790
        %v1900 = vmul.f32 %v1871, %v1791
        %v1901 = vmul.f32 %v1872, %v1792
        %v1902 = vmul.f32 %v1873, %v1793
        %v1903 = vmul.f32 %v1874, %v1794
        %v1904 = vmul.f32 %v1875, %v1795
        %v1905 = vmul.f32 %v1876, %v1796
        %v1906 = vmul.f32 %v1877, %v1797
        %v1907 = vmul.f32 %v1878, %v1798
        %v1908 = vmul.f32 %v1879, %v1799
        %v1909 = vadd.f32 %v1899, %v1900
        %v1910 = vadd.f32 %v1909, %v1901
        %v1911 = vadd.f32 %v1910, %v1902
        %v1912 = vadd.f32 %v1911, %v1903
        %v1913 = vadd.f32 %v1912, %v1904
        %v1914 = vadd.f32 %v1913, %v1905
        %v1915 = vadd.f32 %v1914, %v1906
        %v1916 = vadd.f32 %v1915, %v1907
        %v1917 = vadd.f32 %v1916, %v1908
        %v1918 = vrot.slane %v1917, 4
        %v1919 = vadd.f32 %v1917, %v1918
        %v1920 = vrot.slane %v1919, 2
        %v1921 = vadd.f32 %v1919, %v1920
        %v1922 = vrot.slane %v1921, 1
        %v1923 = vadd.f32 %v1921, %v1922
        %v1924 = vadd.f32 %v1898, %v1923
        %1925 = vst [vmem:[#allocation2 + $0x1] sm:$0x1] %v1924
      $region52: #{unet_encoder.6} parent=43 // pred_fallthru
        _
      %p1926 = scmp.eq.s32.totalorder %s21, 1
      // Predicated region
      $region53: #{unet_encoder.6} parent=43 // pred_check
        %p1927 = pneg %p1926
      $region54: #{unet_encoder.6} parent=43 // pred_check_branch
        %1929 = sbr.rel (%p1927) target = $region56
      $region55: #{unet_encoder.6} parent=43 // pred_region
        %v1930 = vld [vmem:[#allocation2] sm:$0x1]
        %v1931 = vmul.f32 %v1930, 0.0078125
        %v1932 = vld [vmem:[#allocation2 + $0x1] sm:$0x1]
        %v1933 = vmul.f32 %v1932, 0.0078125
        %v1934 = vmul.f32 %v1931, %v1931
        %v1935 = vsub.f32 %v1933, %v1934
        %v1936 = vmax.f32 %v1935, 0.0
        %v1937 = vld [vmem:[%s3] sm:$0x1]
        %v1938 = vadd.f32 %v1936, 1e-05
        %v1939 = vrsqrt.pop %v1938
        %v1940 = vmul.f32 %v1937, %v1939
        %v1941 = vld [vmem:[%s4] sm:$0x1]
        %v1942 = vmul.f32 %v1931, %v1940
        %v1943 = vsub.f32 %v1941, %v1942
        %v1945 = vlaneseq
        %v1946 = vshrl.u32 %v1945, 7
        %v1947 = vsub.s32 0, %v1946
        %v1948 = vrot.slane %v1940, %v1947
        %v1950 = vmul.f32 %v1790, %v1948
        %v1951 = vmul.f32 %v1791, %v1948
        %v1952 = vmul.f32 %v1792, %v1948
        %v1953 = vmul.f32 %v1793, %v1948
        %v1954 = vmul.f32 %v1794, %v1948
        %v1955 = vmul.f32 %v1795, %v1948
        %v1956 = vmul.f32 %v1796, %v1948
        %v1957 = vmul.f32 %v1797, %v1948
        %v1958 = vmul.f32 %v1798, %v1948
        %v1959 = vmul.f32 %v1799, %v1948
        %v1961 = vlaneseq
        %v1962 = vshrl.u32 %v1961, 7
        %v1963 = vsub.s32 0, %v1962
        %v1964 = vrot.slane %v1943, %v1963
        %v1966 = vadd.f32 %v1950, %v1964
        %v1967 = vadd.f32 %v1951, %v1964
        %v1968 = vadd.f32 %v1952, %v1964
        %v1969 = vadd.f32 %v1953, %v1964
        %v1970 = vadd.f32 %v1954, %v1964
        %v1971 = vadd.f32 %v1955, %v1964
        %v1972 = vadd.f32 %v1956, %v1964
        %v1973 = vadd.f32 %v1957, %v1964
        %v1974 = vadd.f32 %v1958, %v1964
        %v1975 = vadd.f32 %v1959, %v1964
        %vm1976 = vcmp.gt.f32.partialorder %v1966, 0.0
        %vm1977 = vcmp.gt.f32.partialorder %v1967, 0.0
        %vm1978 = vcmp.gt.f32.partialorder %v1968, 0.0
        %vm1979 = vcmp.gt.f32.partialorder %v1969, 0.0
        %vm1980 = vcmp.gt.f32.partialorder %v1970, 0.0
        %vm1981 = vcmp.gt.f32.partialorder %v1971, 0.0
        %vm1982 = vcmp.gt.f32.partialorder %v1972, 0.0
        %vm1983 = vcmp.gt.f32.partialorder %v1973, 0.0
        %vm1984 = vcmp.gt.f32.partialorder %v1974, 0.0
        %vm1985 = vcmp.gt.f32.partialorder %v1975, 0.0
        %v1986 = vmul.f32 %v1966, 0.2
        %v1987 = vmul.f32 %v1967, 0.2
        %v1988 = vmul.f32 %v1968, 0.2
        %v1989 = vmul.f32 %v1969, 0.2
        %v1990 = vmul.f32 %v1970, 0.2
        %v1991 = vmul.f32 %v1971, 0.2
        %v1992 = vmul.f32 %v1972, 0.2
        %v1993 = vmul.f32 %v1973, 0.2
        %v1994 = vmul.f32 %v1974, 0.2
        %v1995 = vmul.f32 %v1975, 0.2
        %v1996 = vsel %vm1976, %v1966, %v1986
        %v1997 = vsel %vm1977, %v1967, %v1987
        %v1998 = vsel %vm1978, %v1968, %v1988
        %v1999 = vsel %vm1979, %v1969, %v1989
        %v2000 = vsel %vm1980, %v1970, %v1990
        %v2001 = vsel %vm1981, %v1971, %v1991
        %v2002 = vsel %vm1982, %v1972, %v1992
        %v2003 = vsel %vm1983, %v1973, %v1993
        %v2004 = vsel %vm1984, %v1974, %v1994
        %v2005 = vsel %vm1985, %v1975, %v1995
        %v2006 = vpack.c.bf16 %v1997, %v1996
        %v2007 = vpack.c.bf16 %v1999, %v1998
        %v2008 = vpack.c.bf16 %v2001, %v2000
        %v2009 = vpack.c.bf16 %v2003, %v2002
        %v2010 = vpack.c.bf16 %v2005, %v2004
        %v2016 = vunpack.c.l.b16 %v2006
        %v2017 = vunpack.c.h.b16 %v2006
        %v2018 = vunpack.c.l.b16 %v2007
        %v2019 = vunpack.c.h.b16 %v2007
        %v2020 = vunpack.c.l.b16 %v2008
        %v2021 = vunpack.c.h.b16 %v2008
        %v2022 = vunpack.c.l.b16 %v2009
        %v2023 = vunpack.c.h.b16 %v2009
        %v2024 = vunpack.c.l.b16 %v2010
        %v2025 = vunpack.c.h.b16 %v2010
        %v2026 = vpack.c.b16 %v2016, %v2016
        %v2027 = vpack.c.b16 %v2017, %v2017
        %v2028 = vpack.c.b16 %v2018, %v2018
        %v2029 = vpack.c.b16 %v2019, %v2019
        %v2030 = vpack.c.b16 %v2020, %v2020
        %v2031 = vpack.c.b16 %v2021, %v2021
        %v2032 = vpack.c.b16 %v2022, %v2022
        %v2033 = vpack.c.b16 %v2023, %v2023
        %v2034 = vpack.c.b16 %v2024, %v2024
        %v2035 = vpack.c.b16 %v2025, %v2025
        %2046 = vst [vmem:[%s267] sm:$0xf] %v2026
        %2047 = vst [vmem:[%s267 + $0x4] sm:$0xf] %v2027
        %2048 = vst [vmem:[%s267 + $0x8] sm:$0xf] %v2028
        %2049 = vst [vmem:[%s267 + $0xc] sm:$0xf] %v2029
        %2050 = vst [vmem:[%s267 + $0x10] sm:$0xf] %v2030
        %2051 = vst [vmem:[%s267 + $0x14] sm:$0xf] %v2031
        %2052 = vst [vmem:[%s267 + $0x18] sm:$0xf] %v2032
        %2053 = vst [vmem:[%s267 + $0x1c] sm:$0xf] %v2033
        %2054 = vst [vmem:[%s267 + $0x20] sm:$0xf] %v2034
        %2055 = vst [vmem:[%s267 + $0x24] sm:$0xf] %v2035
      $region56: #{unet_encoder.6} parent=43 // pred_fallthru
        _
      %s2056 = smul.u32 %s22, %s21
      %p2057 = scmp.lt.s32.totalorder %s2056, 1
      %s2058 = scalar_select %p2057, %s2056, 1
      %s2059 = smul.addr %s2058, 10
      %s2060 = smul.addr %s2059, 4
      %s2061 = scalar_lea.vmem %s6, %s2060
      // Predicated region
      $region57: #{unet_encoder.6} parent=43 // pred_check
        %p2062 = pneg %p180
      $region58: #{unet_encoder.6} parent=43 // pred_check_branch
        %2064 = sbr.rel (%p2062) target = $region60
      $region59: #{unet_encoder.6} parent=43 // pred_region
        %s2065 = smul.u32 %s22, %s21
      $region60: #{unet_encoder.6} parent=43 // pred_fallthru
        _
    $region44: #{unet_encoder.6} parent=5 // pred_fallthru
      _
    %p2066 = scmp.le.s32.totalorder 2, %s12
    // Predicated region
    $region61: #{unet_encoder.6} parent=5 // pred_check
      %p2067 = pneg %p2066
    $region62: #{unet_encoder.6} parent=5 // pred_check_branch
      %2069 = sbr.rel (%p2067) target = $region64
    $region63: #{unet_encoder.6} parent=5 // pred_region
      %s2070 = ssub.s32 %s12, 2
      // Predicated region
      $region65: #{unet_encoder.6} parent=63 // pred_check
        %p2071 = pneg %p186
      $region66: #{unet_encoder.6} parent=63 // pred_check_branch
        %2073 = sbr.rel (%p2071) target = $region68
      $region67: #{unet_encoder.6} parent=63 // pred_region
        %s2074 = smul.u32 %s24, %s23
        %p2075 = scmp.lt.s32.totalorder %s2074, 1
        %s2076 = scalar_select %p2075, %s2074, 1
        %s2077 = smul.addr %s2076, 10
        %s2078 = smul.addr %s2077, 4
        %s2079 = scalar_lea.vmem %s6, %s2078
      $region68: #{unet_encoder.6} parent=63 // pred_fallthru
        _
    $region64: #{unet_encoder.6} parent=5 // pred_fallthru
      _
  $region6: #{unet_encoder.6} parent=0 // loop_footer
    %s16 = sadd.s32 1, %s12
  $region7: #{unet_encoder.6} parent=0 // loop_footer_branch
    %11 = sbr.rel target = $region3
  $region8: #{unet_encoder.6} parent=0 // loop_exit
    _

// kernel: unet_encoder.7
$region0: #{unet_encoder.7}
  #allocation0 [shape = 'u32[]', space=smem, size = 0x4, offset = 0x4, fixed_abs, tag = 'smem constant byte address 0x4 - core index']
  #allocation1 [shape = 'u32[144,128]{1,0:T(1,128)}', space=vmem, size = 0x12000, scoped, tag = 'internal scratch']
  #allocation2 [shape = 'f32[2,128]{1,0:T(2,128)}', space=vmem, size = 0x400, scoped, tag = 'scratch operand']
  %s0 = inlined_call_operand.vmem [shape: bf16[2,144,64], index: 0, kind: input, shape index: {}]
  %s1 = inlined_call_operand.vmem [shape: bf16[9,64,128], index: 1, kind: input, shape index: {}]
  %s2 = inlined_call_operand.vmem [shape: f32[1,128], index: 2, kind: input, shape index: {}]
  %s3 = inlined_call_operand.vmem [shape: f32[1,128], index: 3, kind: input, shape index: {}]
  %s4 = inlined_call_operand.vmem [shape: f32[1,128], index: 4, kind: input, shape index: {}]
  %s5 = inlined_call_operand.vmem [shape: f32[24,1], index: 5, kind: input, shape index: {}]
  %s6 = inlined_call_operand.vmem [shape: bf16[2,24,128], index: 6, kind: output, shape index: {}]
  %s7 = sld [smem:[#allocation0]]
  $region69: #{unet_encoder.7} parent=0
    _
  %s9 = ssub.s32 1, %s7
  %s10 = scalar_select 0, %s9, %s7
  loop: start=0, step=1, limit=6
  $region2: #{unet_encoder.7} parent=0 // loop_pre_header
    _
  $region3: #{unet_encoder.7} parent=0 // loop_header
    %s12 = sphi 0, %s16
    %p13 = scmp.ge.s32.totalorder %s12, 6
    %s19 = sphi 0, %s31
    %s20 = sphi 0, %s27
    %s21 = sphi 0, %s19
    %s22 = sphi 0, %s20
    %s23 = sphi 0, %s21
    %s24 = sphi 0, %s22
    %s34 = sphi 0, %s36
    %s37 = sphi 0, %s34
    %s38 = sphi 0, %s37
    %s54 = sphi 0, %s38
    %s58 = sphi 0, %s58
    %s60 = sphi 0, %s58
    %s61 = sphi 0, %s60
    %s75 = sphi 0, %s61
    %s79 = sphi 0, %s79
    %s81 = sphi 0, %s79
    %s82 = sphi 0, %s81
    %s96 = sphi 0, %s82
    %s100 = sphi 0, %s100
    %s102 = sphi 0, %s100
    %s103 = sphi 0, %s102
    %s117 = sphi 0, %s103
    %s121 = sphi 0, %s121
    %s123 = sphi 0, %s121
    %s124 = sphi 0, %s123
    %s138 = sphi 0, %s124
    %s142 = sphi 0, %s142
    %s144 = sphi 0, %s142
    %s145 = sphi 0, %s144
    %s159 = sphi 0, %s145
    %s167 = sphi 0, %s169
    %s170 = sphi 0, %s167
    %s171 = sphi 0, %s170
    %s187 = sphi 0, %s171
  $region4: #{unet_encoder.7} parent=0 // loop_header_branch
    %15 = sbr.rel (%p13) target = $region8
  $region5: #{unet_encoder.7} parent=0 // loop_body
    %s17 = ssub.s32 %s12, 1
    %s18 = ssub.s32 %s12, 2
    %s25 = sadd.s32 1, %s20
    %p26 = scmp.ge.s32.totalorder %s25, 2
    %s27 = scalar_select %p26, 0, %s25
    %s28 = sadd.s32 1, %s19
    %s29 = scalar_select %p26, %s28, %s19
    %p30 = scmp.ge.s32.totalorder %s29, 2
    %s31 = scalar_select %p30, 0, %s29
    %s32 = ssub.s32 %s20, %s27
    %p33 = scmp.eq.s32.totalorder %s32, 0
    %s35 = sadd.s32 %s34, 1
    %s36 = scalar_select %p33, %s34, %s35
    %p39 = pneg %p33
    %p40 = scmp.eq.s32.totalorder %s12, 3
    %p41 = por %p39, %p40
    %p42 = scmp.ne.s32.totalorder %s34, %s37
    %p43 = scmp.eq.s32.totalorder %s12, 0
    %p44 = por %p42, %p43
    %p45 = scmp.ne.s32.totalorder %s34, %s37
    %p46 = scmp.eq.s32.totalorder %s17, 3
    %p47 = por %p45, %p46
    %p48 = scmp.ne.s32.totalorder %s37, %s38
    %p49 = scmp.eq.s32.totalorder %s17, 0
    %p50 = por %p48, %p49
    %p51 = scmp.ne.s32.totalorder %s37, %s38
    %p52 = scmp.eq.s32.totalorder %s18, 3
    %p53 = por %p51, %p52
    %p55 = scmp.ne.s32.totalorder %s38, %s54
    %p56 = scmp.eq.s32.totalorder %s18, 0
    %p57 = por %p55, %p56
    %s59 = sadd.s32 %s58, 1
    %p62 = scmp.eq.s32.totalorder %s12, 3
    %p63 = scmp.ne.s32.totalorder %s58, %s60
    %p64 = scmp.eq.s32.totalorder %s12, 0
    %p65 = por %p63, %p64
    %p66 = scmp.ne.s32.totalorder %s58, %s60
    %p67 = scmp.eq.s32.totalorder %s17, 3
    %p68 = por %p66, %p67
    %p69 = scmp.ne.s32.totalorder %s60, %s61
    %p70 = scmp.eq.s32.totalorder %s17, 0
    %p71 = por %p69, %p70
    %p72 = scmp.ne.s32.totalorder %s60, %s61
    %p73 = scmp.eq.s32.totalorder %s18, 3
    %p74 = por %p72, %p73
    %p76 = scmp.ne.s32.totalorder %s61, %s75
    %p77 = scmp.eq.s32.totalorder %s18, 0
    %p78 = por %p76, %p77
    %s80 = sadd.s32 %s79, 1
    %p83 = scmp.eq.s32.totalorder %s12, 3
    %p84 = scmp.ne.s32.totalorder %s79, %s81
    %p85 = scmp.eq.s32.totalorder %s12, 0
    %p86 = por %p84, %p85
    %p87 = scmp.ne.s32.totalorder %s79, %s81
    %p88 = scmp.eq.s32.totalorder %s17, 3
    %p89 = por %p87, %p88
    %p90 = scmp.ne.s32.totalorder %s81, %s82
    %p91 = scmp.eq.s32.totalorder %s17, 0
    %p92 = por %p90, %p91
    %p93 = scmp.ne.s32.totalorder %s81, %s82
    %p94 = scmp.eq.s32.totalorder %s18, 3
    %p95 = por %p93, %p94
    %p97 = scmp.ne.s32.totalorder %s82, %s96
    %p98 = scmp.eq.s32.totalorder %s18, 0
    %p99 = por %p97, %p98
    %s101 = sadd.s32 %s100, 1
    %p104 = scmp.eq.s32.totalorder %s12, 3
    %p105 = scmp.ne.s32.totalorder %s100, %s102
    %p106 = scmp.eq.s32.totalorder %s12, 0
    %p107 = por %p105, %p106
    %p108 = scmp.ne.s32.totalorder %s100, %s102
    %p109 = scmp.eq.s32.totalorder %s17, 3
    %p110 = por %p108, %p109
    %p111 = scmp.ne.s32.totalorder %s102, %s103
    %p112 = scmp.eq.s32.totalorder %s17, 0
    %p113 = por %p111, %p112
    %p114 = scmp.ne.s32.totalorder %s102, %s103
    %p115 = scmp.eq.s32.totalorder %s18, 3
    %p116 = por %p114, %p115
    %p118 = scmp.ne.s32.totalorder %s103, %s117
    %p119 = scmp.eq.s32.totalorder %s18, 0
    %p120 = por %p118, %p119
    %s122 = sadd.s32 %s121, 1
    %p125 = scmp.eq.s32.totalorder %s12, 3
    %p126 = scmp.ne.s32.totalorder %s121, %s123
    %p127 = scmp.eq.s32.totalorder %s12, 0
    %p128 = por %p126, %p127
    %p129 = scmp.ne.s32.totalorder %s121, %s123
    %p130 = scmp.eq.s32.totalorder %s17, 3
    %p131 = por %p129, %p130
    %p132 = scmp.ne.s32.totalorder %s123, %s124
    %p133 = scmp.eq.s32.totalorder %s17, 0
    %p134 = por %p132, %p133
    %p135 = scmp.ne.s32.totalorder %s123, %s124
    %p136 = scmp.eq.s32.totalorder %s18, 3
    %p137 = por %p135, %p136
    %p139 = scmp.ne.s32.totalorder %s124, %s138
    %p140 = scmp.eq.s32.totalorder %s18, 0
    %p141 = por %p139, %p140
    %s143 = sadd.s32 %s142, 1
    %p146 = scmp.eq.s32.totalorder %s12, 3
    %p147 = scmp.ne.s32.totalorder %s142, %s144
    %p148 = scmp.eq.s32.totalorder %s12, 0
    %p149 = por %p147, %p148
    %p150 = scmp.ne.s32.totalorder %s142, %s144
    %p151 = scmp.eq.s32.totalorder %s17, 3
    %p152 = por %p150, %p151
    %p153 = scmp.ne.s32.totalorder %s144, %s145
    %p154 = scmp.eq.s32.totalorder %s17, 0
    %p155 = por %p153, %p154
    %p156 = scmp.ne.s32.totalorder %s144, %s145
    %p157 = scmp.eq.s32.totalorder %s18, 3
    %p158 = por %p156, %p157
    %p160 = scmp.ne.s32.totalorder %s145, %s159
    %p161 = scmp.eq.s32.totalorder %s18, 0
    %p162 = por %p160, %p161
    %s163 = smul.u32 %s20, %s19
    %s164 = smul.u32 %s27, %s31
    %s165 = ssub.s32 %s163, %s164
    %p166 = scmp.eq.s32.totalorder %s165, 0
    %s168 = sadd.s32 %s167, 1
    %s169 = scalar_select %p166, %s167, %s168
    %p172 = pneg %p166
    %p173 = scmp.eq.s32.totalorder %s12, 3
    %p174 = por %p172, %p173
    %p175 = scmp.ne.s32.totalorder %s167, %s170
    %p176 = scmp.eq.s32.totalorder %s12, 0
    %p177 = por %p175, %p176
    %p178 = scmp.ne.s32.totalorder %s167, %s170
    %p179 = scmp.eq.s32.totalorder %s17, 3
    %p180 = por %p178, %p179
    %p181 = scmp.ne.s32.totalorder %s170, %s171
    %p182 = scmp.eq.s32.totalorder %s17, 0
    %p183 = por %p181, %p182
    %p184 = scmp.ne.s32.totalorder %s170, %s171
    %p185 = scmp.eq.s32.totalorder %s18, 3
    %p186 = por %p184, %p185
    %p188 = scmp.ne.s32.totalorder %s171, %s187
    %p189 = scmp.eq.s32.totalorder %s18, 0
    %p190 = por %p188, %p189
    %p191 = scmp.le.s32.totalorder 1, %s12
    %p192 = scmp.lt.s32.totalorder %s12, 5
    %p193 = pnand %p191, %p192
    %p194 = pneg %p193
    // Predicated region
    $region9: #{unet_encoder.7} parent=5 // pred_check
      _
    $region10: #{unet_encoder.7} parent=5 // pred_check_branch
      %196 = sbr.rel (%p193) target = $region12
    $region11: #{unet_encoder.7} parent=5 // pred_region
      %s197 = ssub.s32 %s12, 1
      // Predicated region
      $region13: #{unet_encoder.7} parent=11 // pred_check
        %p198 = pneg %p71
      $region14: #{unet_encoder.7} parent=11 // pred_check_branch
        %200 = sbr.rel (%p198) target = $region16
      $region15: #{unet_encoder.7} parent=11 // pred_region
        _
      $region16: #{unet_encoder.7} parent=11 // pred_fallthru
        _
      // Predicated region
      $region17: #{unet_encoder.7} parent=11 // pred_check
        %p201 = pneg %p92
      $region18: #{unet_encoder.7} parent=11 // pred_check_branch
        %203 = sbr.rel (%p201) target = $region20
      $region19: #{unet_encoder.7} parent=11 // pred_region
        _
      $region20: #{unet_encoder.7} parent=11 // pred_fallthru
        _
      // Predicated region
      $region21: #{unet_encoder.7} parent=11 // pred_check
        %p204 = pneg %p113
      $region22: #{unet_encoder.7} parent=11 // pred_check_branch
        %206 = sbr.rel (%p204) target = $region24
      $region23: #{unet_encoder.7} parent=11 // pred_region
        _
      $region24: #{unet_encoder.7} parent=11 // pred_fallthru
        _
      // Predicated region
      $region25: #{unet_encoder.7} parent=11 // pred_check
        %p207 = pneg %p134
      $region26: #{unet_encoder.7} parent=11 // pred_check_branch
        %209 = sbr.rel (%p207) target = $region28
      $region27: #{unet_encoder.7} parent=11 // pred_region
        _
      $region28: #{unet_encoder.7} parent=11 // pred_fallthru
        _
      // Predicated region
      $region29: #{unet_encoder.7} parent=11 // pred_check
        %p210 = pneg %p155
      $region30: #{unet_encoder.7} parent=11 // pred_check_branch
        %212 = sbr.rel (%p210) target = $region32
      $region31: #{unet_encoder.7} parent=11 // pred_region
        _
      $region32: #{unet_encoder.7} parent=11 // pred_fallthru
        _
    $region12: #{unet_encoder.7} parent=5 // pred_fallthru
      _
    %p213 = scmp.lt.s32.totalorder %s12, 4
    // Predicated region
    $region33: #{unet_encoder.7} parent=5 // pred_check
      %p214 = pneg %p213
    $region34: #{unet_encoder.7} parent=5 // pred_check_branch
      %216 = sbr.rel (%p214) target = $region36
    $region35: #{unet_encoder.7} parent=5 // pred_region
      // Predicated region
      $region37: #{unet_encoder.7} parent=35 // pred_check
        %p217 = pneg %p44
      $region38: #{unet_encoder.7} parent=35 // pred_check_branch
        %219 = sbr.rel (%p217) target = $region40
      $region39: #{unet_encoder.7} parent=35 // pred_region
        %p220 = scmp.lt.s32.totalorder %s20, 1
        %s221 = scalar_select %p220, %s20, 1
        %s222 = smul.addr %s221, 18
        %s223 = smul.addr %s222, 4
        %s224 = scalar_lea.vmem %s0, %s223
      $region40: #{unet_encoder.7} parent=35 // pred_fallthru
        _
    $region36: #{unet_encoder.7} parent=5 // pred_fallthru
      _
    %p225 = scmp.le.s32.totalorder 1, %s12
    %p226 = scmp.lt.s32.totalorder %s12, 5
    %p227 = pnand %p225, %p226
    %p228 = pneg %p227
    // Predicated region
    $region41: #{unet_encoder.7} parent=5 // pred_check
      _
    $region42: #{unet_encoder.7} parent=5 // pred_check_branch
      %230 = sbr.rel (%p227) target = $region44
    $region43: #{unet_encoder.7} parent=5 // pred_region
      %s231 = ssub.s32 %s12, 1
      %p232 = scmp.lt.s32.totalorder %s22, 1
      %s233 = scalar_select %p232, %s22, 1
      %s234 = smul.addr %s233, 18
      %s235 = smul.addr %s234, 4
      %s236 = scalar_lea.vmem %s0, %s235
      %p237 = pneg %p50
      %p238 = pneg %p47
      %p239 = pneg %p71
      %p240 = pneg %p68
      %p241 = pneg %p92
      %p242 = pneg %p89
      %p243 = pneg %p113
      %p244 = pneg %p110
      %p245 = pneg %p134
      %p246 = pneg %p131
      %p247 = pneg %p155
      %p248 = pneg %p152
      %p249 = pneg %p183
      %p250 = pneg %p180
      %s251 = smul.u32 %s22, %s21
      %p252 = scmp.lt.s32.totalorder %s251, 1
      %s253 = scalar_select %p252, %s251, 1
      %s254 = smul.addr %s253, 3
      %s255 = smul.addr %s254, 4
      %s256 = scalar_lea.vmem %s6, %s255
      %p257 = scmp.lt.s32.totalorder %s22, 1
      %s258 = scalar_select %p257, %s22, 1
      %s259 = smul.addr %s258, 18
      %s260 = smul.addr %s259, 4
      %s261 = scalar_lea.vmem %s0, %s260
      %s262 = smul.u32 %s22, %s21
      %p263 = scmp.lt.s32.totalorder %s262, 1
      %s264 = scalar_select %p263, %s262, 1
      %s265 = smul.addr %s264, 3
      %s266 = smul.addr %s265, 4
      %s267 = scalar_lea.vmem %s6, %s266
      %s268 = smul.u32 %s22, %s21
      %v270 = vld [vmem:[%s261] sm:$0xf]
      %v271 = vld [vmem:[%s261 + $0x4] sm:$0xf]
      %v272 = vld [vmem:[%s261 + $0x8] sm:$0xf]
      %v273 = vld [vmem:[%s1] sm:$0xf]
      %v274 = vld [vmem:[%s1 + $0x4] sm:$0xf]
      %v275 = vld [vmem:[%s1 + $0x8] sm:$0xf]
      %v276 = vld [vmem:[%s1 + $0xc] sm:$0xf]
      %v277 = vld [vmem:[%s1 + $0x10] sm:$0xf]
      %v278 = vld [vmem:[%s1 + $0x14] sm:$0xf]
      %v279 = vld [vmem:[%s1 + $0x18] sm:$0xf]
      %v280 = vld [vmem:[%s1 + $0x1c] sm:$0xf]
      %v281 = vld [vmem:[%s261 + $0x10] sm:$0xc]
      %v282 = vld [vmem:[%s261 + $0x14] sm:$0xf]
      %v283 = vld [vmem:[%s261 + $0x18] sm:$0xf]
      %v284 = vld [vmem:[%s261 + $0x1c] sm:$0x3]
      %s285 = scalar_lea.vmem %s1, 32
      %v286 = vld [vmem:[%s285] sm:$0xf]
      %v287 = vld [vmem:[%s285 + $0x4] sm:$0xf]
      %v288 = vld [vmem:[%s285 + $0x8] sm:$0xf]
      %v289 = vld [vmem:[%s285 + $0xc] sm:$0xf]
      %v290 = vld [vmem:[%s285 + $0x10] sm:$0xf]
      %v291 = vld [vmem:[%s285 + $0x14] sm:$0xf]
      %v292 = vld [vmem:[%s285 + $0x18] sm:$0xf]
      %v293 = vld [vmem:[%s285 + $0x1c] sm:$0xf]
      %v298 = vunpack.c.l.b16 %v281
      %v299 = vunpack.c.l.b16 %v282
      %v300 = vunpack.c.l.b16 %v283
      %v301 = vunpack.c.l.b16 %v284
      %v302 = vpack.c.b16 %v299, %v298
      %v303 = vpack.c.b16 %v301, %v300
      %vm304 = vcmask 1045504
      %v305 = vrot.slane %v302, 2
      %v306 = vrot.slane %v303, 2
      %v307 = vsel %vm304, %v305, %v306
      %v316 = vunpack.c.l.b16 %v286
      %v317 = vunpack.c.l.b16 %v287
      %v318 = vunpack.c.l.b16 %v288
      %v319 = vunpack.c.l.b16 %v289
      %v320 = vunpack.c.l.b16 %v290
      %v321 = vunpack.c.l.b16 %v291
      %v322 = vunpack.c.l.b16 %v292
      %v323 = vunpack.c.l.b16 %v293
      %v324 = vpack.c.b16 %v317, %v316
      %v325 = vpack.c.b16 %v319, %v318
      %v326 = vpack.c.b16 %v321, %v320
      %v327 = vpack.c.b16 %v323, %v322
      %vm332 = vcmask 523264
      %v334 = vsel %vm332, %v307, 0
      %v337 = vsel %vm332, %v306, 0
      %339 = vmatprep.subr.bf16.mxu0 0
      %340 = vmatpush1.bf16.msra.mxu0 %v324
      %341 = vmatprep.subr.bf16.mxu0 0
      %342 = vmatpush1.bf16.msra.mxu0 %v325
      %343 = vmatprep.subr.bf16.mxu0 0
      %344 = vmatpush1.bf16.msra.mxu0 %v326
      %345 = vmatprep.subr.bf16.mxu0 0
      %346 = vmatpush1.bf16.msra.mxu0 %v327
      %347 = vmatprep.subr.bf16.mxu0 0
      %348 = vmatpush1.bf16.msra.mxu0 0
      %349 = vmatprep.subr.bf16.mxu0 0
      %350 = vmatpush1.bf16.msra.mxu0 0
      %351 = vmatprep.subr.bf16.mxu0 0
      %352 = vmatpush1.bf16.msra.mxu0 0
      %353 = vmatprep.subr.bf16.mxu0 0
      %354 = vmatpush1.bf16.msra.mxu0 0
      %355 = vmatprep.subr.bf16.mxu0 0
      %356 = vmatpush1.bf16.msra.mxu0 0
      %357 = vmatprep.subr.bf16.mxu0 0
      %358 = vmatpush1.bf16.msra.mxu0 0
      %359 = vmatprep.subr.bf16.mxu0 0
      %360 = vmatpush1.bf16.msra.mxu0 0
      %361 = vmatprep.subr.bf16.mxu0 0
      %362 = vmatpush1.bf16.msra.mxu0 0
      %363 = vmatprep.subr.bf16.mxu0 0
      %364 = vmatpush1.bf16.msra.mxu0 0
      %365 = vmatprep.subr.bf16.mxu0 0
      %366 = vmatpush1.bf16.msra.mxu0 0
      %367 = vmatprep.subr.bf16.mxu0 0
      %368 = vmatpush1.bf16.msra.mxu0 0
      %369 = vmatprep.subr.bf16.mxu0 0
      %370 = vmatpush1.bf16.msra.mxu0 0
      %371 = vmatprep.mubr.bf16.mxu0 0
      %372 = vmatmul.mubr.bf16.gmra.mrb[0].mxu0 %v334
      %v373 = vpop.f32.mrb[0].mxu0
      %v374 = vadd.f32 0.0, %v373
      %v375 = vpop.f32.mrb[0].mxu0
      %v376 = vpop.f32.mrb[0].mxu0
      %v377 = vadd.f32 0.0, %v376
      %v378 = vpop.f32.mrb[0].mxu0
      %379 = vmatprep.mubr.bf16.mxu0 0
      %380 = vmatmul.mubr.bf16.gmra.mrb[0].mxu0 %v337
      %v381 = vpop.f32.mrb[0].mxu0
      %v382 = vadd.f32 0.0, %v381
      %v383 = vpop.f32.mrb[0].mxu0
      %v384 = vpop.f32.mrb[0].mxu0
      %v385 = vpop.f32.mrb[0].mxu0
      %386 = vdwg.mxu0
      %v390 = vunpack.c.l.b16 %v270
      %v391 = vunpack.c.l.b16 %v271
      %v392 = vunpack.c.l.b16 %v272
      %v393 = vpack.c.b16 %v391, %v390
      %v394 = vpack.c.b16 %v392, %v392
      %v403 = vunpack.c.l.b16 %v273
      %v404 = vunpack.c.l.b16 %v274
      %v405 = vunpack.c.l.b16 %v275
      %v406 = vunpack.c.l.b16 %v276
      %v407 = vunpack.c.l.b16 %v277
      %v408 = vunpack.c.l.b16 %v278
      %v409 = vunpack.c.l.b16 %v279
      %v410 = vunpack.c.l.b16 %v280
      %v411 = vpack.c.b16 %v404, %v403
      %v412 = vpack.c.b16 %v406, %v405
      %v413 = vpack.c.b16 %v408, %v407
      %v414 = vpack.c.b16 %v410, %v409
      %v420 = vsel %vm332, %v393, 0
      %v423 = vsel %vm332, %v394, 0
      %425 = vmatprep.subr.bf16.mxu0 0
      %426 = vmatpush1.bf16.msra.mxu0 %v411
      %427 = vmatprep.subr.bf16.mxu0 0
      %428 = vmatpush1.bf16.msra.mxu0 %v412
      %429 = vmatprep.subr.bf16.mxu0 0
      %430 = vmatpush1.bf16.msra.mxu0 %v413
      %431 = vmatprep.subr.bf16.mxu0 0
      %432 = vmatpush1.bf16.msra.mxu0 %v414
      %433 = vmatprep.subr.bf16.mxu0 0
      %434 = vmatpush1.bf16.msra.mxu0 0
      %435 = vmatprep.subr.bf16.mxu0 0
      %436 = vmatpush1.bf16.msra.mxu0 0
      %437 = vmatprep.subr.bf16.mxu0 0
      %438 = vmatpush1.bf16.msra.mxu0 0
      %439 = vmatprep.subr.bf16.mxu0 0
      %440 = vmatpush1.bf16.msra.mxu0 0
      %441 = vmatprep.subr.bf16.mxu0 0
      %442 = vmatpush1.bf16.msra.mxu0 0
      %443 = vmatprep.subr.bf16.mxu0 0
      %444 = vmatpush1.bf16.msra.mxu0 0
      %445 = vmatprep.subr.bf16.mxu0 0
      %446 = vmatpush1.bf16.msra.mxu0 0
      %447 = vmatprep.subr.bf16.mxu0 0
      %448 = vmatpush1.bf16.msra.mxu0 0
      %449 = vmatprep.subr.bf16.mxu0 0
      %450 = vmatpush1.bf16.msra.mxu0 0
      %451 = vmatprep.subr.bf16.mxu0 0
      %452 = vmatpush1.bf16.msra.mxu0 0
      %453 = vmatprep.subr.bf16.mxu0 0
      %454 = vmatpush1.bf16.msra.mxu0 0
      %455 = vmatprep.subr.bf16.mxu0 0
      %456 = vmatpush1.bf16.msra.mxu0 0
      %457 = vmatprep.mubr.bf16.mxu0 0
      %458 = vmatmul.mubr.bf16.gmra.mrb[0].mxu0 %v420
      %v459 = vpop.f32.mrb[0].mxu0
      %v460 = vadd.f32 %v374, %v459
      %v461 = vpop.f32.mrb[0].mxu0
      %v462 = vpop.f32.mrb[0].mxu0
      %v463 = vadd.f32 %v377, %v462
      %v464 = vpop.f32.mrb[0].mxu0
      %465 = vmatprep.mubr.bf16.mxu0 0
      %466 = vmatmul.mubr.bf16.gmra.mrb[0].mxu0 %v423
      %v467 = vpop.f32.mrb[0].mxu0
      %v468 = vadd.f32 %v382, %v467
      %v469 = vpop.f32.mrb[0].mxu0
      %v470 = vpop.f32.mrb[0].mxu0
      %v471 = vpop.f32.mrb[0].mxu0
      %472 = vdwg.mxu0
      %v473 = vld [vmem:[%s261] sm:$0xf]
      %v474 = vld [vmem:[%s261 + $0x4] sm:$0xf]
      %v475 = vld [vmem:[%s261 + $0x8] sm:$0xf]
      %v476 = vld [vmem:[%s261 + $0xc] sm:$0x1]
      %s477 = scalar_lea.vmem %s1, 64
      %v478 = vld [vmem:[%s477] sm:$0xf]
      %v479 = vld [vmem:[%s477 + $0x4] sm:$0xf]
      %v480 = vld [vmem:[%s477 + $0x8] sm:$0xf]
      %v481 = vld [vmem:[%s477 + $0xc] sm:$0xf]
      %v482 = vld [vmem:[%s477 + $0x10] sm:$0xf]
      %v483 = vld [vmem:[%s477 + $0x14] sm:$0xf]
      %v484 = vld [vmem:[%s477 + $0x18] sm:$0xf]
      %v485 = vld [vmem:[%s477 + $0x1c] sm:$0xf]
      %v490 = vunpack.c.l.b16 %v473
      %v491 = vunpack.c.l.b16 %v474
      %v492 = vunpack.c.l.b16 %v475
      %v493 = vunpack.c.l.b16 %v476
      %v494 = vpack.c.b16 %v491, %v490
      %v495 = vpack.c.b16 %v493, %v492
      %vm496 = vsmask.f32 7424
      %v498 = vshrl.u32 %v494, 16
      %v500 = vshll.u32 %v494, 16
      %v502 = vrot.slane %v500, 1
      %v503 = vor.u32 %v498, %v502
      %v505 = vshll.u32 %v495, 16
      %v507 = vrot.slane %v505, 1
      %v508 = vsel %vm496, %v503, %v507
      %v509 = vshrl.u32 %v495, 16
      %v511 = vor.u32 %v509, %v507
      %v520 = vunpack.c.l.b16 %v478
      %v521 = vunpack.c.l.b16 %v479
      %v522 = vunpack.c.l.b16 %v480
      %v523 = vunpack.c.l.b16 %v481
      %v524 = vunpack.c.l.b16 %v482
      %v525 = vunpack.c.l.b16 %v483
      %v526 = vunpack.c.l.b16 %v484
      %v527 = vunpack.c.l.b16 %v485
      %v528 = vpack.c.b16 %v521, %v520
      %v529 = vpack.c.b16 %v523, %v522
      %v530 = vpack.c.b16 %v525, %v524
      %v531 = vpack.c.b16 %v527, %v526
      %v537 = vsel %vm332, %v508, 0
      %v540 = vsel %vm332, %v511, 0
      %542 = vmatprep.subr.bf16.mxu0 0
      %543 = vmatpush1.bf16.msra.mxu0 %v528
      %544 = vmatprep.subr.bf16.mxu0 0
      %545 = vmatpush1.bf16.msra.mxu0 %v529
      %546 = vmatprep.subr.bf16.mxu0 0
      %547 = vmatpush1.bf16.msra.mxu0 %v530
      %548 = vmatprep.subr.bf16.mxu0 0
      %549 = vmatpush1.bf16.msra.mxu0 %v531
      %550 = vmatprep.subr.bf16.mxu0 0
      %551 = vmatpush1.bf16.msra.mxu0 0
      %552 = vmatprep.subr.bf16.mxu0 0
      %553 = vmatpush1.bf16.msra.mxu0 0
      %554 = vmatprep.subr.bf16.mxu0 0
      %555 = vmatpush1.bf16.msra.mxu0 0
      %556 = vmatprep.subr.bf16.mxu0 0
      %557 = vmatpush1.bf16.msra.mxu0 0
      %558 = vmatprep.subr.bf16.mxu0 0
      %559 = vmatpush1.bf16.msra.mxu0 0
      %560 = vmatprep.subr.bf16.mxu0 0
      %561 = vmatpush1.bf16.msra.mxu0 0
      %562 = vmatprep.subr.bf16.mxu0 0
      %563 = vmatpush1.bf16.msra.mxu0 0
      %564 = vmatprep.subr.bf16.mxu0 0
      %565 = vmatpush1.bf16.msra.mxu0 0
      %566 = vmatprep.subr.bf16.mxu0 0
      %567 = vmatpush1.bf16.msra.mxu0 0
      %568 = vmatprep.subr.bf16.mxu0 0
      %569 = vmatpush1.bf16.msra.mxu0 0
      %570 = vmatprep.subr.bf16.mxu0 0
      %571 = vmatpush1.bf16.msra.mxu0 0
      %572 = vmatprep.subr.bf16.mxu0 0
      %573 = vmatpush1.bf16.msra.mxu0 0
      %574 = vmatprep.mubr.bf16.mxu0 0
      %575 = vmatmul.mubr.bf16.gmra.mrb[0].mxu0 %v537
      %v576 = vpop.f32.mrb[0].mxu0
      %v577 = vadd.f32 0.0, %v576
      %v578 = vpop.f32.mrb[0].mxu0
      %v579 = vpop.f32.mrb[0].mxu0
      %v580 = vadd.f32 0.0, %v579
      %v581 = vpop.f32.mrb[0].mxu0
      %582 = vmatprep.mubr.bf16.mxu0 0
      %583 = vmatmul.mubr.bf16.gmra.mrb[0].mxu0 %v540
      %v584 = vpop.f32.mrb[0].mxu0
      %v585 = vadd.f32 0.0, %v584
      %v586 = vpop.f32.mrb[0].mxu0
      %v587 = vpop.f32.mrb[0].mxu0
      %v588 = vpop.f32.mrb[0].mxu0
      %589 = vdwg.mxu0
      %v590 = vadd.f32 %v460, %v577
      %v591 = vadd.f32 %v463, %v580
      %v592 = vadd.f32 %v468, %v585
      %v593 = vld [vmem:[%s261 + $0x24] sm:$0xf]
      %v594 = vld [vmem:[%s261 + $0x28] sm:$0xf]
      %v595 = vld [vmem:[%s261 + $0x2c] sm:$0xf]
      %s596 = scalar_lea.vmem %s1, 96
      %v597 = vld [vmem:[%s596] sm:$0xf]
      %v598 = vld [vmem:[%s596 + $0x4] sm:$0xf]
      %v599 = vld [vmem:[%s596 + $0x8] sm:$0xf]
      %v600 = vld [vmem:[%s596 + $0xc] sm:$0xf]
      %v601 = vld [vmem:[%s596 + $0x10] sm:$0xf]
      %v602 = vld [vmem:[%s596 + $0x14] sm:$0xf]
      %v603 = vld [vmem:[%s596 + $0x18] sm:$0xf]
      %v604 = vld [vmem:[%s596 + $0x1c] sm:$0xf]
      %v608 = vunpack.c.l.b16 %v593
      %v609 = vunpack.c.l.b16 %v594
      %v610 = vunpack.c.l.b16 %v595
      %v611 = vpack.c.b16 %v609, %v608
      %v612 = vpack.c.b16 %v610, %v610
      %v621 = vunpack.c.l.b16 %v597
      %v622 = vunpack.c.l.b16 %v598
      %v623 = vunpack.c.l.b16 %v599
      %v624 = vunpack.c.l.b16 %v600
      %v625 = vunpack.c.l.b16 %v601
      %v626 = vunpack.c.l.b16 %v602
      %v627 = vunpack.c.l.b16 %v603
      %v628 = vunpack.c.l.b16 %v604
      %v629 = vpack.c.b16 %v622, %v621
      %v630 = vpack.c.b16 %v624, %v623
      %v631 = vpack.c.b16 %v626, %v625
      %v632 = vpack.c.b16 %v628, %v627
      %v638 = vsel %vm332, %v611, 0
      %v641 = vsel %vm332, %v612, 0
      %643 = vmatprep.subr.bf16.mxu0 0
      %644 = vmatpush1.bf16.msra.mxu0 %v629
      %645 = vmatprep.subr.bf16.mxu0 0
      %646 = vmatpush1.bf16.msra.mxu0 %v630
      %647 = vmatprep.subr.bf16.mxu0 0
      %648 = vmatpush1.bf16.msra.mxu0 %v631
      %649 = vmatprep.subr.bf16.mxu0 0
      %650 = vmatpush1.bf16.msra.mxu0 %v632
      %651 = vmatprep.subr.bf16.mxu0 0
      %652 = vmatpush1.bf16.msra.mxu0 0
      %653 = vmatprep.subr.bf16.mxu0 0
      %654 = vmatpush1.bf16.msra.mxu0 0
      %655 = vmatprep.subr.bf16.mxu0 0
      %656 = vmatpush1.bf16.msra.mxu0 0
      %657 = vmatprep.subr.bf16.mxu0 0
      %658 = vmatpush1.bf16.msra.mxu0 0
      %659 = vmatprep.subr.bf16.mxu0 0
      %660 = vmatpush1.bf16.msra.mxu0 0
      %661 = vmatprep.subr.bf16.mxu0 0
      %662 = vmatpush1.bf16.msra.mxu0 0
      %663 = vmatprep.subr.bf16.mxu0 0
      %664 = vmatpush1.bf16.msra.mxu0 0
      %665 = vmatprep.subr.bf16.mxu0 0
      %666 = vmatpush1.bf16.msra.mxu0 0
      %667 = vmatprep.subr.bf16.mxu0 0
      %668 = vmatpush1.bf16.msra.mxu0 0
      %669 = vmatprep.subr.bf16.mxu0 0
      %670 = vmatpush1.bf16.msra.mxu0 0
      %671 = vmatprep.subr.bf16.mxu0 0
      %672 = vmatpush1.bf16.msra.mxu0 0
      %673 = vmatprep.subr.bf16.mxu0 0
      %674 = vmatpush1.bf16.msra.mxu0 0
      %675 = vmatprep.mubr.bf16.mxu0 0
      %676 = vmatmul.mubr.bf16.gmra.mrb[0].mxu0 %v638
      %v677 = vpop.f32.mrb[0].mxu0
      %v678 = vadd.f32 0.0, %v677
      %v679 = vpop.f32.mrb[0].mxu0
      %v680 = vpop.f32.mrb[0].mxu0
      %v681 = vadd.f32 0.0, %v680
      %v682 = vpop.f32.mrb[0].mxu0
      %683 = vmatprep.mubr.bf16.mxu0 0
      %684 = vmatmul.mubr.bf16.gmra.mrb[0].mxu0 %v641
      %v685 = vpop.f32.mrb[0].mxu0
      %v686 = vadd.f32 0.0, %v685
      %v687 = vpop.f32.mrb[0].mxu0
      %v688 = vpop.f32.mrb[0].mxu0
      %v689 = vpop.f32.mrb[0].mxu0
      %690 = vdwg.mxu0
      %v691 = vadd.f32 %v590, %v678
      %v692 = vadd.f32 %v591, %v681
      %v693 = vadd.f32 %v592, %v686
      %v694 = vld [vmem:[%s261 + $0x34] sm:$0xc]
      %v695 = vld [vmem:[%s261 + $0x38] sm:$0xf]
      %v696 = vld [vmem:[%s261 + $0x3c] sm:$0xf]
      %v697 = vld [vmem:[%s261 + $0x40] sm:$0x3]
      %s698 = scalar_lea.vmem %s1, 128
      %v699 = vld [vmem:[%s698] sm:$0xf]
      %v700 = vld [vmem:[%s698 + $0x4] sm:$0xf]
      %v701 = vld [vmem:[%s698 + $0x8] sm:$0xf]
      %v702 = vld [vmem:[%s698 + $0xc] sm:$0xf]
      %v703 = vld [vmem:[%s698 + $0x10] sm:$0xf]
      %v704 = vld [vmem:[%s698 + $0x14] sm:$0xf]
      %v705 = vld [vmem:[%s698 + $0x18] sm:$0xf]
      %v706 = vld [vmem:[%s698 + $0x1c] sm:$0xf]
      %v711 = vunpack.c.l.b16 %v694
      %v712 = vunpack.c.l.b16 %v695
      %v713 = vunpack.c.l.b16 %v696
      %v714 = vunpack.c.l.b16 %v697
      %v715 = vpack.c.b16 %v712, %v711
      %v716 = vpack.c.b16 %v714, %v713
      %v717 = vrot.slane %v715, 2
      %v718 = vrot.slane %v716, 2
      %v719 = vsel %vm304, %v717, %v718
      %v728 = vunpack.c.l.b16 %v699
      %v729 = vunpack.c.l.b16 %v700
      %v730 = vunpack.c.l.b16 %v701
      %v731 = vunpack.c.l.b16 %v702
      %v732 = vunpack.c.l.b16 %v703
      %v733 = vunpack.c.l.b16 %v704
      %v734 = vunpack.c.l.b16 %v705
      %v735 = vunpack.c.l.b16 %v706
      %v736 = vpack.c.b16 %v729, %v728
      %v737 = vpack.c.b16 %v731, %v730
      %v738 = vpack.c.b16 %v733, %v732
      %v739 = vpack.c.b16 %v735, %v734
      %v745 = vsel %vm332, %v719, 0
      %v748 = vsel %vm332, %v718, 0
      %750 = vmatprep.subr.bf16.mxu0 0
      %751 = vmatpush1.bf16.msra.mxu0 %v736
      %752 = vmatprep.subr.bf16.mxu0 0
      %753 = vmatpush1.bf16.msra.mxu0 %v737
      %754 = vmatprep.subr.bf16.mxu0 0
      %755 = vmatpush1.bf16.msra.mxu0 %v738
      %756 = vmatprep.subr.bf16.mxu0 0
      %757 = vmatpush1.bf16.msra.mxu0 %v739
      %758 = vmatprep.subr.bf16.mxu0 0
      %759 = vmatpush1.bf16.msra.mxu0 0
      %760 = vmatprep.subr.bf16.mxu0 0
      %761 = vmatpush1.bf16.msra.mxu0 0
      %762 = vmatprep.subr.bf16.mxu0 0
      %763 = vmatpush1.bf16.msra.mxu0 0
      %764 = vmatprep.subr.bf16.mxu0 0
      %765 = vmatpush1.bf16.msra.mxu0 0
      %766 = vmatprep.subr.bf16.mxu0 0
      %767 = vmatpush1.bf16.msra.mxu0 0
      %768 = vmatprep.subr.bf16.mxu0 0
      %769 = vmatpush1.bf16.msra.mxu0 0
      %770 = vmatprep.subr.bf16.mxu0 0
      %771 = vmatpush1.bf16.msra.mxu0 0
      %772 = vmatprep.subr.bf16.mxu0 0
      %773 = vmatpush1.bf16.msra.mxu0 0
      %774 = vmatprep.subr.bf16.mxu0 0
      %775 = vmatpush1.bf16.msra.mxu0 0
      %776 = vmatprep.subr.bf16.mxu0 0
      %777 = vmatpush1.bf16.msra.mxu0 0
      %778 = vmatprep.subr.bf16.mxu0 0
      %779 = vmatpush1.bf16.msra.mxu0 0
      %780 = vmatprep.subr.bf16.mxu0 0
      %781 = vmatpush1.bf16.msra.mxu0 0
      %782 = vmatprep.mubr.bf16.mxu0 0
      %783 = vmatmul.mubr.bf16.gmra.mrb[0].mxu0 %v745
      %v784 = vpop.f32.mrb[0].mxu0
      %v785 = vadd.f32 0.0, %v784
      %v786 = vpop.f32.mrb[0].mxu0
      %v787 = vpop.f32.mrb[0].mxu0
      %v788 = vadd.f32 0.0, %v787
      %v789 = vpop.f32.mrb[0].mxu0
      %790 = vmatprep.mubr.bf16.mxu0 0
      %791 = vmatmul.mubr.bf16.gmra.mrb[0].mxu0 %v748
      %v792 = vpop.f32.mrb[0].mxu0
      %v793 = vadd.f32 0.0, %v792
      %v794 = vpop.f32.mrb[0].mxu0
      %v795 = vpop.f32.mrb[0].mxu0
      %v796 = vpop.f32.mrb[0].mxu0
      %797 = vdwg.mxu0
      %v798 = vadd.f32 %v691, %v785
      %v799 = vadd.f32 %v692, %v788
      %v800 = vadd.f32 %v693, %v793
      %v801 = vld [vmem:[%s261 + $0x24] sm:$0xf]
      %v802 = vld [vmem:[%s261 + $0x28] sm:$0xf]
      %v803 = vld [vmem:[%s261 + $0x2c] sm:$0xf]
      %v804 = vld [vmem:[%s261 + $0x30] sm:$0x1]
      %s805 = scalar_lea.vmem %s1, 160
      %v806 = vld [vmem:[%s805] sm:$0xf]
      %v807 = vld [vmem:[%s805 + $0x4] sm:$0xf]
      %v808 = vld [vmem:[%s805 + $0x8] sm:$0xf]
      %v809 = vld [vmem:[%s805 + $0xc] sm:$0xf]
      %v810 = vld [vmem:[%s805 + $0x10] sm:$0xf]
      %v811 = vld [vmem:[%s805 + $0x14] sm:$0xf]
      %v812 = vld [vmem:[%s805 + $0x18] sm:$0xf]
      %v813 = vld [vmem:[%s805 + $0x1c] sm:$0xf]
      %v818 = vunpack.c.l.b16 %v801
      %v819 = vunpack.c.l.b16 %v802
      %v820 = vunpack.c.l.b16 %v803
      %v821 = vunpack.c.l.b16 %v804
      %v822 = vpack.c.b16 %v819, %v818
      %v823 = vpack.c.b16 %v821, %v820
      %v825 = vshrl.u32 %v822, 16
      %v827 = vshll.u32 %v822, 16
      %v829 = vrot.slane %v827, 1
      %v830 = vor.u32 %v825, %v829
      %v832 = vshll.u32 %v823, 16
      %v834 = vrot.slane %v832, 1
      %v835 = vsel %vm496, %v830, %v834
      %v836 = vshrl.u32 %v823, 16
      %v838 = vor.u32 %v836, %v834
      %v847 = vunpack.c.l.b16 %v806
      %v848 = vunpack.c.l.b16 %v807
      %v849 = vunpack.c.l.b16 %v808
      %v850 = vunpack.c.l.b16 %v809
      %v851 = vunpack.c.l.b16 %v810
      %v852 = vunpack.c.l.b16 %v811
      %v853 = vunpack.c.l.b16 %v812
      %v854 = vunpack.c.l.b16 %v813
      %v855 = vpack.c.b16 %v848, %v847
      %v856 = vpack.c.b16 %v850, %v849
      %v857 = vpack.c.b16 %v852, %v851
      %v858 = vpack.c.b16 %v854, %v853
      %v864 = vsel %vm332, %v835, 0
      %v867 = vsel %vm332, %v838, 0
      %869 = vmatprep.subr.bf16.mxu0 0
      %870 = vmatpush1.bf16.msra.mxu0 %v855
      %871 = vmatprep.subr.bf16.mxu0 0
      %872 = vmatpush1.bf16.msra.mxu0 %v856
      %873 = vmatprep.subr.bf16.mxu0 0
      %874 = vmatpush1.bf16.msra.mxu0 %v857
      %875 = vmatprep.subr.bf16.mxu0 0
      %876 = vmatpush1.bf16.msra.mxu0 %v858
      %877 = vmatprep.subr.bf16.mxu0 0
      %878 = vmatpush1.bf16.msra.mxu0 0
      %879 = vmatprep.subr.bf16.mxu0 0
      %880 = vmatpush1.bf16.msra.mxu0 0
      %881 = vmatprep.subr.bf16.mxu0 0
      %882 = vmatpush1.bf16.msra.mxu0 0
      %883 = vmatprep.subr.bf16.mxu0 0
      %884 = vmatpush1.bf16.msra.mxu0 0
      %885 = vmatprep.subr.bf16.mxu0 0
      %886 = vmatpush1.bf16.msra.mxu0 0
      %887 = vmatprep.subr.bf16.mxu0 0
      %888 = vmatpush1.bf16.msra.mxu0 0
      %889 = vmatprep.subr.bf16.mxu0 0
      %890 = vmatpush1.bf16.msra.mxu0 0
      %891 = vmatprep.subr.bf16.mxu0 0
      %892 = vmatpush1.bf16.msra.mxu0 0
      %893 = vmatprep.subr.bf16.mxu0 0
      %894 = vmatpush1.bf16.msra.mxu0 0
      %895 = vmatprep.subr.bf16.mxu0 0
      %896 = vmatpush1.bf16.msra.mxu0 0
      %897 = vmatprep.subr.bf16.mxu0 0
      %898 = vmatpush1.bf16.msra.mxu0 0
      %899 = vmatprep.subr.bf16.mxu0 0
      %900 = vmatpush1.bf16.msra.mxu0 0
      %901 = vmatprep.mubr.bf16.mxu0 0
      %902 = vmatmul.mubr.bf16.gmra.mrb[0].mxu0 %v864
      %v903 = vpop.f32.mrb[0].mxu0
      %v904 = vadd.f32 0.0, %v903
      %v905 = vpop.f32.mrb[0].mxu0
      %v906 = vpop.f32.mrb[0].mxu0
      %v907 = vadd.f32 0.0, %v906
      %v908 = vpop.f32.mrb[0].mxu0
      %909 = vmatprep.mubr.bf16.mxu0 0
      %910 = vmatmul.mubr.bf16.gmra.mrb[0].mxu0 %v867
      %v911 = vpop.f32.mrb[0].mxu0
      %v912 = vadd.f32 0.0, %v911
      %v913 = vpop.f32.mrb[0].mxu0
      %v914 = vpop.f32.mrb[0].mxu0
      %v915 = vpop.f32.mrb[0].mxu0
      %916 = vdwg.mxu0
      %v917 = vadd.f32 %v798, %v904
      %v918 = vadd.f32 %v799, %v907
      %v919 = vadd.f32 %v800, %v912
      %v920 = vld [vmem:[%s261] sm:$0x8]
      %v921 = vld [vmem:[%s261 + $0xc] sm:$0x7]
      %s922 = scalar_lea.vmem %s1, 192
      %v923 = vld [vmem:[%s922] sm:$0xf]
      %v924 = vld [vmem:[%s922 + $0x4] sm:$0xf]
      %v925 = vld [vmem:[%s922 + $0x8] sm:$0xf]
      %v926 = vld [vmem:[%s922 + $0xc] sm:$0xf]
      %v927 = vld [vmem:[%s922 + $0x10] sm:$0xf]
      %v928 = vld [vmem:[%s922 + $0x14] sm:$0xf]
      %v929 = vld [vmem:[%s922 + $0x18] sm:$0xf]
      %v930 = vld [vmem:[%s922 + $0x1c] sm:$0xf]
      %v933 = vunpack.c.l.b16 %v920
      %v934 = vunpack.c.l.b16 %v921
      %v935 = vpack.c.b16 %v491, %v933
      %v936 = vpack.c.b16 %v934, %v492
      %vm937 = vcmask 1044480
      %v938 = vrot.slane %v935, 3
      %v939 = vrot.slane %v936, 3
      %v940 = vsel %vm937, %v938, %v939
      %v949 = vunpack.c.l.b16 %v923
      %v950 = vunpack.c.l.b16 %v924
      %v951 = vunpack.c.l.b16 %v925
      %v952 = vunpack.c.l.b16 %v926
      %v953 = vunpack.c.l.b16 %v927
      %v954 = vunpack.c.l.b16 %v928
      %v955 = vunpack.c.l.b16 %v929
      %v956 = vunpack.c.l.b16 %v930
      %v957 = vpack.c.b16 %v950, %v949
      %v958 = vpack.c.b16 %v952, %v951
      %v959 = vpack.c.b16 %v954, %v953
      %v960 = vpack.c.b16 %v956, %v955
      %v966 = vsel %vm332, %v940, 0
      %v969 = vsel %vm332, %v939, 0
      %971 = vmatprep.subr.bf16.mxu0 0
      %972 = vmatpush1.bf16.msra.mxu0 %v957
      %973 = vmatprep.subr.bf16.mxu0 0
      %974 = vmatpush1.bf16.msra.mxu0 %v958
      %975 = vmatprep.subr.bf16.mxu0 0
      %976 = vmatpush1.bf16.msra.mxu0 %v959
      %977 = vmatprep.subr.bf16.mxu0 0
      %978 = vmatpush1.bf16.msra.mxu0 %v960
      %979 = vmatprep.subr.bf16.mxu0 0
      %980 = vmatpush1.bf16.msra.mxu0 0
      %981 = vmatprep.subr.bf16.mxu0 0
      %982 = vmatpush1.bf16.msra.mxu0 0
      %983 = vmatprep.subr.bf16.mxu0 0
      %984 = vmatpush1.bf16.msra.mxu0 0
      %985 = vmatprep.subr.bf16.mxu0 0
      %986 = vmatpush1.bf16.msra.mxu0 0
      %987 = vmatprep.subr.bf16.mxu0 0
      %988 = vmatpush1.bf16.msra.mxu0 0
      %989 = vmatprep.subr.bf16.mxu0 0
      %990 = vmatpush1.bf16.msra.mxu0 0
      %991 = vmatprep.subr.bf16.mxu0 0
      %992 = vmatpush1.bf16.msra.mxu0 0
      %993 = vmatprep.subr.bf16.mxu0 0
      %994 = vmatpush1.bf16.msra.mxu0 0
      %995 = vmatprep.subr.bf16.mxu0 0
      %996 = vmatpush1.bf16.msra.mxu0 0
      %997 = vmatprep.subr.bf16.mxu0 0
      %998 = vmatpush1.bf16.msra.mxu0 0
      %999 = vmatprep.subr.bf16.mxu0 0
      %1000 = vmatpush1.bf16.msra.mxu0 0
      %1001 = vmatprep.subr.bf16.mxu0 0
      %1002 = vmatpush1.bf16.msra.mxu0 0
      %1003 = vmatprep.mubr.bf16.mxu0 0
      %1004 = vmatmul.mubr.bf16.gmra.mrb[0].mxu0 %v966
      %v1005 = vpop.f32.mrb[0].mxu0
      %v1006 = vadd.f32 0.0, %v1005
      %v1007 = vpop.f32.mrb[0].mxu0
      %v1008 = vpop.f32.mrb[0].mxu0
      %v1009 = vadd.f32 0.0, %v1008
      %v1010 = vpop.f32.mrb[0].mxu0
      %1011 = vmatprep.mubr.bf16.mxu0 0
      %1012 = vmatmul.mubr.bf16.gmra.mrb[0].mxu0 %v969
      %v1013 = vpop.f32.mrb[0].mxu0
      %v1014 = vadd.f32 0.0, %v1013
      %v1015 = vpop.f32.mrb[0].mxu0
      %v1016 = vpop.f32.mrb[0].mxu0
      %v1017 = vpop.f32.mrb[0].mxu0
      %1018 = vdwg.mxu0
      %v1019 = vadd.f32 %v917, %v1006
      %v1020 = vadd.f32 %v918, %v1009
      %v1021 = vadd.f32 %v919, %v1014
      %v1022 = vld [vmem:[%s261 + $0x14] sm:$0xe]
      %v1023 = vld [vmem:[%s261 + $0x18] sm:$0xf]
      %v1024 = vld [vmem:[%s261 + $0x1c] sm:$0xf]
      %v1025 = vld [vmem:[%s261 + $0x20] sm:$0x1]
      %s1026 = scalar_lea.vmem %s1, 224
      %v1027 = vld [vmem:[%s1026] sm:$0xf]
      %v1028 = vld [vmem:[%s1026 + $0x4] sm:$0xf]
      %v1029 = vld [vmem:[%s1026 + $0x8] sm:$0xf]
      %v1030 = vld [vmem:[%s1026 + $0xc] sm:$0xf]
      %v1031 = vld [vmem:[%s1026 + $0x10] sm:$0xf]
      %v1032 = vld [vmem:[%s1026 + $0x14] sm:$0xf]
      %v1033 = vld [vmem:[%s1026 + $0x18] sm:$0xf]
      %v1034 = vld [vmem:[%s1026 + $0x1c] sm:$0xf]
      %v1039 = vunpack.c.l.b16 %v1022
      %v1040 = vunpack.c.l.b16 %v1023
      %v1041 = vunpack.c.l.b16 %v1024
      %v1042 = vunpack.c.l.b16 %v1025
      %v1043 = vpack.c.b16 %v1040, %v1039
      %v1044 = vpack.c.b16 %v1042, %v1041
      %vm1045 = vcmask 1046528
      %v1046 = vrot.slane %v1043, 1
      %v1047 = vrot.slane %v1044, 1
      %v1048 = vsel %vm1045, %v1046, %v1047
      %v1057 = vunpack.c.l.b16 %v1027
      %v1058 = vunpack.c.l.b16 %v1028
      %v1059 = vunpack.c.l.b16 %v1029
      %v1060 = vunpack.c.l.b16 %v1030
      %v1061 = vunpack.c.l.b16 %v1031
      %v1062 = vunpack.c.l.b16 %v1032
      %v1063 = vunpack.c.l.b16 %v1033
      %v1064 = vunpack.c.l.b16 %v1034
      %v1065 = vpack.c.b16 %v1058, %v1057
      %v1066 = vpack.c.b16 %v1060, %v1059
      %v1067 = vpack.c.b16 %v1062, %v1061
      %v1068 = vpack.c.b16 %v1064, %v1063
      %v1074 = vsel %vm332, %v1048, 0
      %v1077 = vsel %vm332, %v1047, 0
      %1079 = vmatprep.subr.bf16.mxu0 0
      %1080 = vmatpush1.bf16.msra.mxu0 %v1065
      %1081 = vmatprep.subr.bf16.mxu0 0
      %1082 = vmatpush1.bf16.msra.mxu0 %v1066
      %1083 = vmatprep.subr.bf16.mxu0 0
      %1084 = vmatpush1.bf16.msra.mxu0 %v1067
      %1085 = vmatprep.subr.bf16.mxu0 0
      %1086 = vmatpush1.bf16.msra.mxu0 %v1068
      %1087 = vmatprep.subr.bf16.mxu0 0
      %1088 = vmatpush1.bf16.msra.mxu0 0
      %1089 = vmatprep.subr.bf16.mxu0 0
      %1090 = vmatpush1.bf16.msra.mxu0 0
      %1091 = vmatprep.subr.bf16.mxu0 0
      %1092 = vmatpush1.bf16.msra.mxu0 0
      %1093 = vmatprep.subr.bf16.mxu0 0
      %1094 = vmatpush1.bf16.msra.mxu0 0
      %1095 = vmatprep.subr.bf16.mxu0 0
      %1096 = vmatpush1.bf16.msra.mxu0 0
      %1097 = vmatprep.subr.bf16.mxu0 0
      %1098 = vmatpush1.bf16.msra.mxu0 0
      %1099 = vmatprep.subr.bf16.mxu0 0
      %1100 = vmatpush1.bf16.msra.mxu0 0
      %1101 = vmatprep.subr.bf16.mxu0 0
      %1102 = vmatpush1.bf16.msra.mxu0 0
      %1103 = vmatprep.subr.bf16.mxu0 0
      %1104 = vmatpush1.bf16.msra.mxu0 0
      %1105 = vmatprep.subr.bf16.mxu0 0
      %1106 = vmatpush1.bf16.msra.mxu0 0
      %1107 = vmatprep.subr.bf16.mxu0 0
      %1108 = vmatpush1.bf16.msra.mxu0 0
      %1109 = vmatprep.subr.bf16.mxu0 0
      %1110 = vmatpush1.bf16.msra.mxu0 0
      %1111 = vmatprep.mubr.bf16.mxu0 0
      %1112 = vmatmul.mubr.bf16.gmra.mrb[0].mxu0 %v1074
      %v1113 = vpop.f32.mrb[0].mxu0
      %v1114 = vadd.f32 0.0, %v1113
      %v1115 = vpop.f32.mrb[0].mxu0
      %v1116 = vpop.f32.mrb[0].mxu0
      %v1117 = vadd.f32 0.0, %v1116
      %v1118 = vpop.f32.mrb[0].mxu0
      %1119 = vmatprep.mubr.bf16.mxu0 0
      %1120 = vmatmul.mubr.bf16.gmra.mrb[0].mxu0 %v1077
      %v1121 = vpop.f32.mrb[0].mxu0
      %v1122 = vadd.f32 0.0, %v1121
      %v1123 = vpop.f32.mrb[0].mxu0
      %v1124 = vpop.f32.mrb[0].mxu0
      %v1125 = vpop.f32.mrb[0].mxu0
      %1126 = vdwg.mxu0
      %v1127 = vadd.f32 %v1019, %v1114
      %v1128 = vadd.f32 %v1020, %v1117
      %v1129 = vadd.f32 %v1021, %v1122
      %v1130 = vld [vmem:[%s261 + $0xc] sm:$0xf]
      %s1131 = scalar_lea.vmem %s1, 256
      %v1132 = vld [vmem:[%s1131] sm:$0xf]
      %v1133 = vld [vmem:[%s1131 + $0x4] sm:$0xf]
      %v1134 = vld [vmem:[%s1131 + $0x8] sm:$0xf]
      %v1135 = vld [vmem:[%s1131 + $0xc] sm:$0xf]
      %v1136 = vld [vmem:[%s1131 + $0x10] sm:$0xf]
      %v1137 = vld [vmem:[%s1131 + $0x14] sm:$0xf]
      %v1138 = vld [vmem:[%s1131 + $0x18] sm:$0xf]
      %v1139 = vld [vmem:[%s1131 + $0x1c] sm:$0xf]
      %v1141 = vunpack.c.l.b16 %v1130
      %v1142 = vpack.c.b16 %v1141, %v492
      %vm1143 = vsmask.f32 4352
      %v1145 = vshrl.u32 %v935, 16
      %v1147 = vrot.slane %v1145, 3
      %v1148 = vshll.u32 %v935, 16
      %v1150 = vrot.slane %v1148, 4
      %v1151 = vor.u32 %v1147, %v1150
      %v1153 = vshrl.u32 %v1142, 16
      %v1155 = vrot.slane %v1153, 3
      %v1156 = vshll.u32 %v1142, 16
      %v1158 = vrot.slane %v1156, 4
      %v1159 = vor.u32 %v1155, %v1158
      %v1160 = vsel %vm1143, %v1151, %v1159
      %v1169 = vunpack.c.l.b16 %v1132
      %v1170 = vunpack.c.l.b16 %v1133
      %v1171 = vunpack.c.l.b16 %v1134
      %v1172 = vunpack.c.l.b16 %v1135
      %v1173 = vunpack.c.l.b16 %v1136
      %v1174 = vunpack.c.l.b16 %v1137
      %v1175 = vunpack.c.l.b16 %v1138
      %v1176 = vunpack.c.l.b16 %v1139
      %v1177 = vpack.c.b16 %v1170, %v1169
      %v1178 = vpack.c.b16 %v1172, %v1171
      %v1179 = vpack.c.b16 %v1174, %v1173
      %v1180 = vpack.c.b16 %v1176, %v1175
      %v1186 = vsel %vm332, %v1160, 0
      %v1189 = vsel %vm332, %v1159, 0
      %1191 = vmatprep.subr.bf16.mxu0 0
      %1192 = vmatpush1.bf16.msra.mxu0 %v1177
      %1193 = vmatprep.subr.bf16.mxu0 0
      %1194 = vmatpush1.bf16.msra.mxu0 %v1178
      %1195 = vmatprep.subr.bf16.mxu0 0
      %1196 = vmatpush1.bf16.msra.mxu0 %v1179
      %1197 = vmatprep.subr.bf16.mxu0 0
      %1198 = vmatpush1.bf16.msra.mxu0 %v1180
      %1199 = vmatprep.subr.bf16.mxu0 0
      %1200 = vmatpush1.bf16.msra.mxu0 0
      %1201 = vmatprep.subr.bf16.mxu0 0
      %1202 = vmatpush1.bf16.msra.mxu0 0
      %1203 = vmatprep.subr.bf16.mxu0 0
      %1204 = vmatpush1.bf16.msra.mxu0 0
      %1205 = vmatprep.subr.bf16.mxu0 0
      %1206 = vmatpush1.bf16.msra.mxu0 0
      %1207 = vmatprep.subr.bf16.mxu0 0
      %1208 = vmatpush1.bf16.msra.mxu0 0
      %1209 = vmatprep.subr.bf16.mxu0 0
      %1210 = vmatpush1.bf16.msra.mxu0 0
      %1211 = vmatprep.subr.bf16.mxu0 0
      %1212 = vmatpush1.bf16.msra.mxu0 0
      %1213 = vmatprep.subr.bf16.mxu0 0
      %1214 = vmatpush1.bf16.msra.mxu0 0
      %1215 = vmatprep.subr.bf16.mxu0 0
      %1216 = vmatpush1.bf16.msra.mxu0 0
      %1217 = vmatprep.subr.bf16.mxu0 0
      %1218 = vmatpush1.bf16.msra.mxu0 0
      %1219 = vmatprep.subr.bf16.mxu0 0
      %1220 = vmatpush1.bf16.msra.mxu0 0
      %1221 = vmatprep.subr.bf16.mxu0 0
      %1222 = vmatpush1.bf16.msra.mxu0 0
      %1223 = vmatprep.mubr.bf16.mxu0 0
      %1224 = vmatmul.mubr.bf16.gmra.mrb[0].mxu0 %v1186
      %v1225 = vpop.f32.mrb[0].mxu0
      %v1226 = vadd.f32 0.0, %v1225
      %v1227 = vpop.f32.mrb[0].mxu0
      %v1228 = vpop.f32.mrb[0].mxu0
      %v1229 = vadd.f32 0.0, %v1228
      %v1230 = vpop.f32.mrb[0].mxu0
      %1231 = vmatprep.mubr.bf16.mxu0 0
      %1232 = vmatmul.mubr.bf16.gmra.mrb[0].mxu0 %v1189
      %v1233 = vpop.f32.mrb[0].mxu0
      %v1234 = vadd.f32 0.0, %v1233
      %v1235 = vpop.f32.mrb[0].mxu0
      %v1236 = vpop.f32.mrb[0].mxu0
      %v1237 = vpop.f32.mrb[0].mxu0
      %1238 = vdwg.mxu0
      %v1239 = vadd.f32 %v1127, %v1226
      %v1240 = vadd.f32 %v1128, %v1229
      %v1241 = vadd.f32 %v1129, %v1234
      %v1242 = vld [vmem:[%s2] sm:$0x1]
      %v1244 = vlaneseq
      %v1245 = vshrl.u32 %v1244, 7
      %v1246 = vsub.s32 0, %v1245
      %v1247 = vrot.slane %v1242, %v1246
      %v1249 = vadd.f32 %v1239, %v1247
      %v1250 = vadd.f32 %v1240, %v1247
      %v1251 = vadd.f32 %v1241, %v1247
      %p1252 = scmp.eq.s32.totalorder %s21, 0
      %p1253 = scmp.eq.s32.totalorder %s22, 0
      %p1254 = pnand %p1252, %p1253
      %p1255 = pneg %p1254
      // Predicated region
      $region45: #{unet_encoder.7} parent=43 // pred_check
        _
      $region46: #{unet_encoder.7} parent=43 // pred_check_branch
        %1257 = sbr.rel (%p1254) target = $region48
      $region47: #{unet_encoder.7} parent=43 // pred_region
        %1258 = vst [vmem:[#allocation2] sm:$0x3] 0.0
      $region48: #{unet_encoder.7} parent=43 // pred_fallthru
        _
      // Predicated region
      $region49: #{unet_encoder.7} parent=43 // pred_check
        %p1259 = pneg %p1252
      $region50: #{unet_encoder.7} parent=43 // pred_check_branch
        %1261 = sbr.rel (%p1259) target = $region52
      $region51: #{unet_encoder.7} parent=43 // pred_region
        %v1262 = vld [vmem:[%s5] sm:$0xff]
        %v1263 = vld [vmem:[%s5 + $0x8] sm:$0xff]
        %v1264 = vld [vmem:[%s5 + $0x10] sm:$0xff]
        %1266 = vset.pattern.permute.xlu0 0
        %1267 = vperm.xlu0 %1266, %v1262
        %v1268 = vpop.permute.xlu0 %1267
        %1271 = vset.pattern.permute.xlu0 0
        %1272 = vperm.xlu0 %1271, %v1263
        %v1273 = vpop.permute.xlu0 %1272
        %1276 = vset.pattern.permute.xlu0 0
        %1277 = vperm.xlu0 %1276, %v1264
        %v1278 = vpop.permute.xlu0 %1277
        %v1280 = vmul.f32 %v1249, %v1268
        %v1281 = vmul.f32 %v1250, %v1273
        %v1282 = vmul.f32 %v1251, %v1278
        %v1283 = vld [vmem:[#allocation2] sm:$0x1]
        %v1284 = vadd.f32 %v1280, %v1281
        %v1285 = vadd.f32 %v1284, %v1282
        %v1286 = vrot.slane %v1285, 4
        %v1287 = vadd.f32 %v1285, %v1286
        %v1288 = vrot.slane %v1287, 2
        %v1289 = vadd.f32 %v1287, %v1288
        %v1290 = vrot.slane %v1289, 1
        %v1291 = vadd.f32 %v1289, %v1290
        %v1292 = vadd.f32 %v1283, %v1291
        %1293 = vst [vmem:[#allocation2] sm:$0x1] %v1292
        %v1294 = vld [vmem:[#allocation2 + $0x1] sm:$0x1]
        %v1295 = vmul.f32 %v1280, %v1249
        %v1296 = vmul.f32 %v1281, %v1250
        %v1297 = vmul.f32 %v1282, %v1251
        %v1298 = vadd.f32 %v1295, %v1296
        %v1299 = vadd.f32 %v1298, %v1297
        %v1300 = vrot.slane %v1299, 4
        %v1301 = vadd.f32 %v1299, %v1300
        %v1302 = vrot.slane %v1301, 2
        %v1303 = vadd.f32 %v1301, %v1302
        %v1304 = vrot.slane %v1303, 1
        %v1305 = vadd.f32 %v1303, %v1304
        %v1306 = vadd.f32 %v1294, %v1305
        %1307 = vst [vmem:[#allocation2 + $0x1] sm:$0x1] %v1306
      $region52: #{unet_encoder.7} parent=43 // pred_fallthru
        _
      %p1308 = scmp.eq.s32.totalorder %s21, 1
      // Predicated region
      $region53: #{unet_encoder.7} parent=43 // pred_check
        %p1309 = pneg %p1308
      $region54: #{unet_encoder.7} parent=43 // pred_check_branch
        %1311 = sbr.rel (%p1309) target = $region56
      $region55: #{unet_encoder.7} parent=43 // pred_region
        %v1312 = vld [vmem:[#allocation2] sm:$0x1]
        %v1313 = vmul.f32 %v1312, 0.03125
        %v1314 = vld [vmem:[#allocation2 + $0x1] sm:$0x1]
        %v1315 = vmul.f32 %v1314, 0.03125
        %v1316 = vmul.f32 %v1313, %v1313
        %v1317 = vsub.f32 %v1315, %v1316
        %v1318 = vmax.f32 %v1317, 0.0
        %v1319 = vld [vmem:[%s3] sm:$0x1]
        %v1320 = vadd.f32 %v1318, 1e-05
        %v1321 = vrsqrt.pop %v1320
        %v1322 = vmul.f32 %v1319, %v1321
        %v1323 = vld [vmem:[%s4] sm:$0x1]
        %v1324 = vmul.f32 %v1313, %v1322
        %v1325 = vsub.f32 %v1323, %v1324
        %v1327 = vlaneseq
        %v1328 = vshrl.u32 %v1327, 7
        %v1329 = vsub.s32 0, %v1328
        %v1330 = vrot.slane %v1322, %v1329
        %v1332 = vmul.f32 %v1249, %v1330
        %v1333 = vmul.f32 %v1250, %v1330
        %v1334 = vmul.f32 %v1251, %v1330
        %v1336 = vlaneseq
        %v1337 = vshrl.u32 %v1336, 7
        %v1338 = vsub.s32 0, %v1337
        %v1339 = vrot.slane %v1325, %v1338
        %v1341 = vadd.f32 %v1332, %v1339
        %v1342 = vadd.f32 %v1333, %v1339
        %v1343 = vadd.f32 %v1334, %v1339
        %vm1344 = vcmp.gt.f32.partialorder %v1341, 0.0
        %vm1345 = vcmp.gt.f32.partialorder %v1342, 0.0
        %vm1346 = vcmp.gt.f32.partialorder %v1343, 0.0
        %v1347 = vmul.f32 %v1341, 0.2
        %v1348 = vmul.f32 %v1342, 0.2
        %v1349 = vmul.f32 %v1343, 0.2
        %v1350 = vsel %vm1344, %v1341, %v1347
        %v1351 = vsel %vm1345, %v1342, %v1348
        %v1352 = vsel %vm1346, %v1343, %v1349
        %v1353 = vpack.c.bf16 %v1351, %v1350
        %v1354 = vpack.c.bf16 %v1352, %v1352
        %v1357 = vunpack.c.l.b16 %v1353
        %v1358 = vunpack.c.h.b16 %v1353
        %v1359 = vunpack.c.l.b16 %v1354
        %v1360 = vpack.c.b16 %v1357, %v1357
        %v1361 = vpack.c.b16 %v1358, %v1358
        %v1362 = vpack.c.b16 %v1359, %v1359
        %1366 = vst [vmem:[%s267] sm:$0xf] %v1360
        %1367 = vst [vmem:[%s267 + $0x4] sm:$0xf] %v1361
        %1368 = vst [vmem:[%s267 + $0x8] sm:$0xf] %v1362
      $region56: #{unet_encoder.7} parent=43 // pred_fallthru
        _
      %s1369 = smul.u32 %s22, %s21
      %p1370 = scmp.lt.s32.totalorder %s1369, 1
      %s1371 = scalar_select %p1370, %s1369, 1
      %s1372 = smul.addr %s1371, 3
      %s1373 = smul.addr %s1372, 4
      %s1374 = scalar_lea.vmem %s6, %s1373
      // Predicated region
      $region57: #{unet_encoder.7} parent=43 // pred_check
        %p1375 = pneg %p180
      $region58: #{unet_encoder.7} parent=43 // pred_check_branch
        %1377 = sbr.rel (%p1375) target = $region60
      $region59: #{unet_encoder.7} parent=43 // pred_region
        %s1378 = smul.u32 %s22, %s21
      $region60: #{unet_encoder.7} parent=43 // pred_fallthru
        _
    $region44: #{unet_encoder.7} parent=5 // pred_fallthru
      _
    %p1379 = scmp.le.s32.totalorder 2, %s12
    // Predicated region
    $region61: #{unet_encoder.7} parent=5 // pred_check
      %p1380 = pneg %p1379
    $region62: #{unet_encoder.7} parent=5 // pred_check_branch
      %1382 = sbr.rel (%p1380) target = $region64
    $region63: #{unet_encoder.7} parent=5 // pred_region
      %s1383 = ssub.s32 %s12, 2
      // Predicated region
      $region65: #{unet_encoder.7} parent=63 // pred_check
        %p1384 = pneg %p186
      $region66: #{unet_encoder.7} parent=63 // pred_check_branch
        %1386 = sbr.rel (%p1384) target = $region68
      $region67: #{unet_encoder.7} parent=63 // pred_region
        %s1387 = smul.u32 %s24, %s23
        %p1388 = scmp.lt.s32.totalorder %s1387, 1
        %s1389 = scalar_select %p1388, %s1387, 1
        %s1390 = smul.addr %s1389, 3
        %s1391 = smul.addr %s1390, 4
        %s1392 = scalar_lea.vmem %s6, %s1391
      $region68: #{unet_encoder.7} parent=63 // pred_fallthru
        _
    $region64: #{unet_encoder.7} parent=5 // pred_fallthru
      _
  $region6: #{unet_encoder.7} parent=0 // loop_footer
    %s16 = sadd.s32 1, %s12
  $region7: #{unet_encoder.7} parent=0 // loop_footer_branch
    %11 = sbr.rel target = $region3
  $region8: #{unet_encoder.7} parent=0 // loop_exit
    _

// kernel: unet_encoder.9
$region0: #{unet_encoder.9}
  #allocation0 [shape = 'u32[]', space=smem, size = 0x4, offset = 0x4, fixed_abs, tag = 'smem constant byte address 0x4 - core index']
  #allocation1 [shape = 'u32[144,128]{1,0:T(1,128)}', space=vmem, size = 0x12000, scoped, tag = 'internal scratch']
  %s0 = inlined_call_operand.vmem [shape: bf16[2,8,128], index: 0, kind: input, shape index: {}]
  %s1 = inlined_call_operand.vmem [shape: f32[8,1], index: 1, kind: input, shape index: {}]
  %s2 = inlined_call_operand.vmem [shape: bf16[4,128,128], index: 2, kind: input, shape index: {}]
  %s3 = inlined_call_operand.vmem [shape: f32[4,1,128], index: 3, kind: input, shape index: {}]
  %s4 = inlined_call_operand.vmem [shape: f32[4,1,128], index: 4, kind: input, shape index: {}]
  %s5 = inlined_call_operand.vmem [shape: f32[4,1,128], index: 5, kind: input, shape index: {}]
  %s6 = inlined_call_operand.hbm [shape: f32[2,128], index: 6, kind: output, shape index: {}]
  %s7 = sld [smem:[#allocation0]]
  $region34: #{unet_encoder.9} parent=0
    _
  %s9 = ssub.s32 1, %s7
  %s10 = scalar_select 0, %s9, %s7
  $region1: #{unet_encoder.9} parent=0
    #allocation2 [shape = 'u8[1024]{0}', space=vmem, size = 0x400, scoped, tag = 'output window, operand 0, single buffered']
    #allocation3 [shape = 's32[1]{0}', space=sflag, size = 0x4, scoped, tag = 'scoped memory for unet_encoder.9']
    %11 = vsyncpa [#allocation3], 0
    // Predicated region
    $region2: #{unet_encoder.9} parent=1 // pred_check
      _
    $region3: #{unet_encoder.9} parent=1 // pred_check_branch
      %13 = sbr.rel (0) target = $region5
    $region4: #{unet_encoder.9} parent=1 // pred_region
      _
    $region5: #{unet_encoder.9} parent=1 // pred_fallthru
      _
    // Predicated region
    $region6: #{unet_encoder.9} parent=1 // pred_check
      _
    $region7: #{unet_encoder.9} parent=1 // pred_check_branch
      %15 = sbr.rel (0) target = $region9
    $region8: #{unet_encoder.9} parent=1 // pred_region
      _
    $region9: #{unet_encoder.9} parent=1 // pred_fallthru
      _
    // Predicated region
    $region10: #{unet_encoder.9} parent=1 // pred_check
      _
    $region11: #{unet_encoder.9} parent=1 // pred_check_branch
      %17 = sbr.rel (0) target = $region13
    $region12: #{unet_encoder.9} parent=1 // pred_region
      _
    $region13: #{unet_encoder.9} parent=1 // pred_fallthru
      _
    // Predicated region
    $region14: #{unet_encoder.9} parent=1 // pred_check
      _
    $region15: #{unet_encoder.9} parent=1 // pred_check_branch
      %19 = sbr.rel (0) target = $region17
    $region16: #{unet_encoder.9} parent=1 // pred_region
      _
    $region17: #{unet_encoder.9} parent=1 // pred_fallthru
      _
    // Predicated region
    $region18: #{unet_encoder.9} parent=1 // pred_check
      _
    $region19: #{unet_encoder.9} parent=1 // pred_check_branch
      %21 = sbr.rel (0) target = $region21
    $region20: #{unet_encoder.9} parent=1 // pred_region
      _
    $region21: #{unet_encoder.9} parent=1 // pred_fallthru
      _
    // Predicated region
    $region22: #{unet_encoder.9} parent=1 // pred_check
      _
    $region23: #{unet_encoder.9} parent=1 // pred_check_branch
      %23 = sbr.rel (0) target = $region25
    $region24: #{unet_encoder.9} parent=1 // pred_region
      _
    $region25: #{unet_encoder.9} parent=1 // pred_fallthru
      _
    %v25 = vld [vmem:[%s0] sm:$0xf]
    %v26 = vld [vmem:[%s0 + $0x4] sm:$0xf]
    %v27 = vunpack.c.l.bf16 %v25
    %v28 = vunpack.c.l.bf16 %v26
    %v29 = vld [vmem:[%s1] sm:$0xff]
    %31 = vset.pattern.permute.xlu0 0
    %32 = vperm.xlu0 %31, %v29
    %v33 = vpop.permute.xlu0 %32
    %v35 = vmul.f32 %v27, %v33
    %v36 = vmul.f32 %v28, %v33
    %v37 = vrot.slane %v35, 4
    %v38 = vadd.f32 %v35, %v37
    %v39 = vrot.slane %v38, 2
    %v40 = vadd.f32 %v38, %v39
    %v41 = vrot.slane %v40, 1
    %v42 = vadd.f32 %v40, %v41
    %v43 = vrot.slane %v36, 4
    %v44 = vadd.f32 %v36, %v43
    %v45 = vrot.slane %v44, 2
    %v46 = vadd.f32 %v44, %v45
    %v47 = vrot.slane %v46, 1
    %v48 = vadd.f32 %v46, %v47
    %v49 = vmul.f32 %v42, 0.25
    %v50 = vmul.f32 %v48, 0.25
    %v51 = vpack.c.bf16 %v49, %v49
    %v52 = vpack.c.bf16 %v50, %v50
    %v53 = vld [vmem:[%s2] sm:$0xf]
    %v54 = vld [vmem:[%s2 + $0x4] sm:$0xf]
    %v55 = vld [vmem:[%s2 + $0x8] sm:$0xf]
    %v56 = vld [vmem:[%s2 + $0xc] sm:$0xf]
    %v57 = vld [vmem:[%s2 + $0x10] sm:$0xf]
    %v58 = vld [vmem:[%s2 + $0x14] sm:$0xf]
    %v59 = vld [vmem:[%s2 + $0x18] sm:$0xf]
    %v60 = vld [vmem:[%s2 + $0x1c] sm:$0xf]
    %v61 = vld [vmem:[%s2 + $0x20] sm:$0xf]
    %v62 = vld [vmem:[%s2 + $0x24] sm:$0xf]
    %v63 = vld [vmem:[%s2 + $0x28] sm:$0xf]
    %v64 = vld [vmem:[%s2 + $0x2c] sm:$0xf]
    %v65 = vld [vmem:[%s2 + $0x30] sm:$0xf]
    %v66 = vld [vmem:[%s2 + $0x34] sm:$0xf]
    %v67 = vld [vmem:[%s2 + $0x38] sm:$0xf]
    %v68 = vld [vmem:[%s2 + $0x3c] sm:$0xf]
    %v69 = vld [vmem:[%s3] sm:$0x1]
    %v71 = vlaneseq
    %v72 = vshrl.u32 %v71, 7
    %v73 = vsub.s32 0, %v72
    %v74 = vrot.slane %v69, %v73
    %v78 = vunpack.c.l.b16 %v51
    %v79 = vunpack.c.l.b16 %v52
    %vm80 = vcmask 1041409
    %v81 = vsel %vm80, %v79, %v78
    %v82 = vpack.c.b16 %v81, %v81
    %v100 = vunpack.c.l.b16 %v53
    %v101 = vunpack.c.l.b16 %v54
    %v102 = vunpack.c.l.b16 %v55
    %v103 = vunpack.c.l.b16 %v56
    %v104 = vunpack.c.l.b16 %v57
    %v105 = vunpack.c.l.b16 %v58
    %v106 = vunpack.c.l.b16 %v59
    %v107 = vunpack.c.l.b16 %v60
    %v108 = vunpack.c.l.b16 %v61
    %v109 = vunpack.c.l.b16 %v62
    %v110 = vunpack.c.l.b16 %v63
    %v111 = vunpack.c.l.b16 %v64
    %v112 = vunpack.c.l.b16 %v65
    %v113 = vunpack.c.l.b16 %v66
    %v114 = vunpack.c.l.b16 %v67
    %v115 = vunpack.c.l.b16 %v68
    %v116 = vpack.c.b16 %v101, %v100
    %v117 = vpack.c.b16 %v103, %v102
    %v118 = vpack.c.b16 %v105, %v104
    %v119 = vpack.c.b16 %v107, %v106
    %v120 = vpack.c.b16 %v109, %v108
    %v121 = vpack.c.b16 %v111, %v110
    %v122 = vpack.c.b16 %v113, %v112
    %v123 = vpack.c.b16 %v115, %v114
    %132 = vmatprep.subr.bf16.mxu0 0
    %133 = vmatpush1.bf16.msra.mxu0 %v116
    %134 = vmatprep.subr.bf16.mxu0 0
    %135 = vmatpush1.bf16.msra.mxu0 %v117
    %136 = vmatprep.subr.bf16.mxu0 0
    %137 = vmatpush1.bf16.msra.mxu0 %v118
    %138 = vmatprep.subr.bf16.mxu0 0
    %139 = vmatpush1.bf16.msra.mxu0 %v119
    %140 = vmatprep.subr.bf16.mxu0 0
    %141 = vmatpush1.bf16.msra.mxu0 %v120
    %142 = vmatprep.subr.bf16.mxu0 0
    %143 = vmatpush1.bf16.msra.mxu0 %v121
    %144 = vmatprep.subr.bf16.mxu0 0
    %145 = vmatpush1.bf16.msra.mxu0 %v122
    %146 = vmatprep.subr.bf16.mxu0 0
    %147 = vmatpush1.bf16.msra.mxu0 %v123
    %148 = vmatprep.subr.bf16.mxu0 0
    %149 = vmatpush1.bf16.msra.mxu0 0
    %150 = vmatprep.subr.bf16.mxu0 0
    %151 = vmatpush1.bf16.msra.mxu0 0
    %152 = vmatprep.subr.bf16.mxu0 0
    %153 = vmatpush1.bf16.msra.mxu0 0
    %154 = vmatprep.subr.bf16.mxu0 0
    %155 = vmatpush1.bf16.msra.mxu0 0
    %156 = vmatprep.subr.bf16.mxu0 0
    %157 = vmatpush1.bf16.msra.mxu0 0
    %158 = vmatprep.subr.bf16.mxu0 0
    %159 = vmatpush1.bf16.msra.mxu0 0
    %160 = vmatprep.subr.bf16.mxu0 0
    %161 = vmatpush1.bf16.msra.mxu0 0
    %162 = vmatprep.subr.bf16.mxu0 0
    %163 = vmatpush1.bf16.msra.mxu0 0
    %164 = vmatprep.mubr.bf16.mxu0 0
    %165 = vmatmul.mubr.bf16.gmra.mrb[0].mxu0 %v82
    %v166 = vpop.f32.mrb[0].mxu0
    %v167 = vadd.f32 %v74, %v166
    %v168 = vpop.f32.mrb[0].mxu0
    %v169 = vpop.f32.mrb[0].mxu0
    %v170 = vpop.f32.mrb[0].mxu0
    %171 = vdwg.mxu0
    %vm172 = vcmask 1041408
    %v173 = vsel %vm172, %v167, 0.0
    %v174 = vrot.slane %v173, 4
    %v175 = vadd.f32 %v173, %v174
    %v176 = vrot.slane %v175, 2
    %v177 = vadd.f32 %v175, %v176
    %v178 = vrot.slane %v177, 1
    %v179 = vadd.f32 %v177, %v178
    %v180 = vmul.f32 %v179, 0.5
    %v181 = vmul.f32 %v167, %v167
    %v182 = vsel %vm172, %v181, 0.0
    %v183 = vrot.slane %v182, 4
    %v184 = vadd.f32 %v182, %v183
    %v185 = vrot.slane %v184, 2
    %v186 = vadd.f32 %v184, %v185
    %v187 = vrot.slane %v186, 1
    %v188 = vadd.f32 %v186, %v187
    %v189 = vmul.f32 %v188, 0.5
    %v190 = vmul.f32 %v180, %v180
    %v191 = vsub.f32 %v189, %v190
    %v192 = vmax.f32 %v191, 0.0
    %v193 = vld [vmem:[%s4] sm:$0x1]
    %v194 = vadd.f32 %v192, 1e-05
    %v195 = vrsqrt.pop %v194
    %v196 = vmul.f32 %v193, %v195
    %v197 = vld [vmem:[%s5] sm:$0x1]
    %v198 = vmul.f32 %v180, %v196
    %v199 = vsub.f32 %v197, %v198
    %v201 = vlaneseq
    %v202 = vshrl.u32 %v201, 7
    %v203 = vsub.s32 0, %v202
    %v204 = vrot.slane %v196, %v203
    %v206 = vmul.f32 %v167, %v204
    %v208 = vlaneseq
    %v209 = vshrl.u32 %v208, 7
    %v210 = vsub.s32 0, %v209
    %v211 = vrot.slane %v199, %v210
    %v213 = vadd.f32 %v206, %v211
    %vm214 = vcmp.gt.f32.partialorder %v213, 0.0
    %v215 = vmul.f32 %v213, 0.2
    %v216 = vsel %vm214, %v213, %v215
    %v217 = vpack.c.bf16 %v216, %v216
    %s218 = scalar_lea.vmem %s2, 64
    %v219 = vld [vmem:[%s218] sm:$0xf]
    %v220 = vld [vmem:[%s218 + $0x4] sm:$0xf]
    %v221 = vld [vmem:[%s218 + $0x8] sm:$0xf]
    %v222 = vld [vmem:[%s218 + $0xc] sm:$0xf]
    %v223 = vld [vmem:[%s218 + $0x10] sm:$0xf]
    %v224 = vld [vmem:[%s218 + $0x14] sm:$0xf]
    %v225 = vld [vmem:[%s218 + $0x18] sm:$0xf]
    %v226 = vld [vmem:[%s218 + $0x1c] sm:$0xf]
    %v227 = vld [vmem:[%s218 + $0x20] sm:$0xf]
    %v228 = vld [vmem:[%s218 + $0x24] sm:$0xf]
    %v229 = vld [vmem:[%s218 + $0x28] sm:$0xf]
    %v230 = vld [vmem:[%s218 + $0x2c] sm:$0xf]
    %v231 = vld [vmem:[%s218 + $0x30] sm:$0xf]
    %v232 = vld [vmem:[%s218 + $0x34] sm:$0xf]
    %v233 = vld [vmem:[%s218 + $0x38] sm:$0xf]
    %v234 = vld [vmem:[%s218 + $0x3c] sm:$0xf]
    %s235 = scalar_lea.vmem %s3, 1
    %v236 = vld [vmem:[%s235] sm:$0x1]
    %v238 = vlaneseq
    %v239 = vshrl.u32 %v238, 7
    %v240 = vsub.s32 0, %v239
    %v241 = vrot.slane %v236, %v240
    %v259 = vunpack.c.l.b16 %v219
    %v260 = vunpack.c.l.b16 %v220
    %v261 = vunpack.c.l.b16 %v221
    %v262 = vunpack.c.l.b16 %v222
    %v263 = vunpack.c.l.b16 %v223
    %v264 = vunpack.c.l.b16 %v224
    %v265 = vunpack.c.l.b16 %v225
    %v266 = vunpack.c.l.b16 %v226
    %v267 = vunpack.c.l.b16 %v227
    %v268 = vunpack.c.l.b16 %v228
    %v269 = vunpack.c.l.b16 %v229
    %v270 = vunpack.c.l.b16 %v230
    %v271 = vunpack.c.l.b16 %v231
    %v272 = vunpack.c.l.b16 %v232
    %v273 = vunpack.c.l.b16 %v233
    %v274 = vunpack.c.l.b16 %v234
    %v275 = vpack.c.b16 %v260, %v259
    %v276 = vpack.c.b16 %v262, %v261
    %v277 = vpack.c.b16 %v264, %v263
    %v278 = vpack.c.b16 %v266, %v265
    %v279 = vpack.c.b16 %v268, %v267
    %v280 = vpack.c.b16 %v270, %v269
    %v281 = vpack.c.b16 %v272, %v271
    %v282 = vpack.c.b16 %v274, %v273
    %291 = vmatprep.subr.bf16.mxu0 0
    %292 = vmatpush1.bf16.msra.mxu0 %v275
    %293 = vmatprep.subr.bf16.mxu0 0
    %294 = vmatpush1.bf16.msra.mxu0 %v276
    %295 = vmatprep.subr.bf16.mxu0 0
    %296 = vmatpush1.bf16.msra.mxu0 %v277
    %297 = vmatprep.subr.bf16.mxu0 0
    %298 = vmatpush1.bf16.msra.mxu0 %v278
    %299 = vmatprep.subr.bf16.mxu0 0
    %300 = vmatpush1.bf16.msra.mxu0 %v279
    %301 = vmatprep.subr.bf16.mxu0 0
    %302 = vmatpush1.bf16.msra.mxu0 %v280
    %303 = vmatprep.subr.bf16.mxu0 0
    %304 = vmatpush1.bf16.msra.mxu0 %v281
    %305 = vmatprep.subr.bf16.mxu0 0
    %306 = vmatpush1.bf16.msra.mxu0 %v282
    %307 = vmatprep.subr.bf16.mxu0 0
    %308 = vmatpush1.bf16.msra.mxu0 0
    %309 = vmatprep.subr.bf16.mxu0 0
    %310 = vmatpush1.bf16.msra.mxu0 0
    %311 = vmatprep.subr.bf16.mxu0 0
    %312 = vmatpush1.bf16.msra.mxu0 0
    %313 = vmatprep.subr.bf16.mxu0 0
    %314 = vmatpush1.bf16.msra.mxu0 0
    %315 = vmatprep.subr.bf16.mxu0 0
    %316 = vmatpush1.bf16.msra.mxu0 0
    %317 = vmatprep.subr.bf16.mxu0 0
    %318 = vmatpush1.bf16.msra.mxu0 0
    %319 = vmatprep.subr.bf16.mxu0 0
    %320 = vmatpush1.bf16.msra.mxu0 0
    %321 = vmatprep.subr.bf16.mxu0 0
    %322 = vmatpush1.bf16.msra.mxu0 0
    %323 = vmatprep.mubr.bf16.mxu0 0
    %324 = vmatmul.mubr.bf16.gmra.mrb[0].mxu0 %v217
    %v325 = vpop.f32.mrb[0].mxu0
    %v326 = vadd.f32 %v241, %v325
    %v327 = vpop.f32.mrb[0].mxu0
    %v328 = vpop.f32.mrb[0].mxu0
    %v329 = vpop.f32.mrb[0].mxu0
    %330 = vdwg.mxu0
    %v331 = vsel %vm172, %v326, 0.0
    %v332 = vrot.slane %v331, 4
    %v333 = vadd.f32 %v331, %v332
    %v334 = vrot.slane %v333, 2
    %v335 = vadd.f32 %v333, %v334
    %v336 = vrot.slane %v335, 1
    %v337 = vadd.f32 %v335, %v336
    %v338 = vmul.f32 %v337, 0.5
    %v339 = vmul.f32 %v326, %v326
    %v340 = vsel %vm172, %v339, 0.0
    %v341 = vrot.slane %v340, 4
    %v342 = vadd.f32 %v340, %v341
    %v343 = vrot.slane %v342, 2
    %v344 = vadd.f32 %v342, %v343
    %v345 = vrot.slane %v344, 1
    %v346 = vadd.f32 %v344, %v345
    %v347 = vmul.f32 %v346, 0.5
    %v348 = vmul.f32 %v338, %v338
    %v349 = vsub.f32 %v347, %v348
    %v350 = vmax.f32 %v349, 0.0
    %s351 = scalar_lea.vmem %s4, 1
    %v352 = vld [vmem:[%s351] sm:$0x1]
    %v353 = vadd.f32 %v350, 1e-05
    %v354 = vrsqrt.pop %v353
    %v355 = vmul.f32 %v352, %v354
    %s356 = scalar_lea.vmem %s5, 1
    %v357 = vld [vmem:[%s356] sm:$0x1]
    %v358 = vmul.f32 %v338, %v355
    %v359 = vsub.f32 %v357, %v358
    %v361 = vlaneseq
    %v362 = vshrl.u32 %v361, 7
    %v363 = vsub.s32 0, %v362
    %v364 = vrot.slane %v355, %v363
    %v366 = vmul.f32 %v326, %v364
    %v368 = vlaneseq
    %v369 = vshrl.u32 %v368, 7
    %v370 = vsub.s32 0, %v369
    %v371 = vrot.slane %v359, %v370
    %v373 = vadd.f32 %v366, %v371
    %vm374 = vcmp.gt.f32.partialorder %v373, 0.0
    %v375 = vmul.f32 %v373, 0.2
    %v376 = vsel %vm374, %v373, %v375
    %v377 = vpack.c.bf16 %v376, %v376
    %s378 = scalar_lea.vmem %s2, 128
    %v379 = vld [vmem:[%s378] sm:$0xf]
    %v380 = vld [vmem:[%s378 + $0x4] sm:$0xf]
    %v381 = vld [vmem:[%s378 + $0x8] sm:$0xf]
    %v382 = vld [vmem:[%s378 + $0xc] sm:$0xf]
    %v383 = vld [vmem:[%s378 + $0x10] sm:$0xf]
    %v384 = vld [vmem:[%s378 + $0x14] sm:$0xf]
    %v385 = vld [vmem:[%s378 + $0x18] sm:$0xf]
    %v386 = vld [vmem:[%s378 + $0x1c] sm:$0xf]
    %v387 = vld [vmem:[%s378 + $0x20] sm:$0xf]
    %v388 = vld [vmem:[%s378 + $0x24] sm:$0xf]
    %v389 = vld [vmem:[%s378 + $0x28] sm:$0xf]
    %v390 = vld [vmem:[%s378 + $0x2c] sm:$0xf]
    %v391 = vld [vmem:[%s378 + $0x30] sm:$0xf]
    %v392 = vld [vmem:[%s378 + $0x34] sm:$0xf]
    %v393 = vld [vmem:[%s378 + $0x38] sm:$0xf]
    %v394 = vld [vmem:[%s378 + $0x3c] sm:$0xf]
    %s395 = scalar_lea.vmem %s3, 2
    %v396 = vld [vmem:[%s395] sm:$0x1]
    %v398 = vlaneseq
    %v399 = vshrl.u32 %v398, 7
    %v400 = vsub.s32 0, %v399
    %v401 = vrot.slane %v396, %v400
    %v419 = vunpack.c.l.b16 %v379
    %v420 = vunpack.c.l.b16 %v380
    %v421 = vunpack.c.l.b16 %v381
    %v422 = vunpack.c.l.b16 %v382
    %v423 = vunpack.c.l.b16 %v383
    %v424 = vunpack.c.l.b16 %v384
    %v425 = vunpack.c.l.b16 %v385
    %v426 = vunpack.c.l.b16 %v386
    %v427 = vunpack.c.l.b16 %v387
    %v428 = vunpack.c.l.b16 %v388
    %v429 = vunpack.c.l.b16 %v389
    %v430 = vunpack.c.l.b16 %v390
    %v431 = vunpack.c.l.b16 %v391
    %v432 = vunpack.c.l.b16 %v392
    %v433 = vunpack.c.l.b16 %v393
    %v434 = vunpack.c.l.b16 %v394
    %v435 = vpack.c.b16 %v420, %v419
    %v436 = vpack.c.b16 %v422, %v421
    %v437 = vpack.c.b16 %v424, %v423
    %v438 = vpack.c.b16 %v426, %v425
    %v439 = vpack.c.b16 %v428, %v427
    %v440 = vpack.c.b16 %v430, %v429
    %v441 = vpack.c.b16 %v432, %v431
    %v442 = vpack.c.b16 %v434, %v433
    %451 = vmatprep.subr.bf16.mxu0 0
    %452 = vmatpush1.bf16.msra.mxu0 %v435
    %453 = vmatprep.subr.bf16.mxu0 0
    %454 = vmatpush1.bf16.msra.mxu0 %v436
    %455 = vmatprep.subr.bf16.mxu0 0
    %456 = vmatpush1.bf16.msra.mxu0 %v437
    %457 = vmatprep.subr.bf16.mxu0 0
    %458 = vmatpush1.bf16.msra.mxu0 %v438
    %459 = vmatprep.subr.bf16.mxu0 0
    %460 = vmatpush1.bf16.msra.mxu0 %v439
    %461 = vmatprep.subr.bf16.mxu0 0
    %462 = vmatpush1.bf16.msra.mxu0 %v440
    %463 = vmatprep.subr.bf16.mxu0 0
    %464 = vmatpush1.bf16.msra.mxu0 %v441
    %465 = vmatprep.subr.bf16.mxu0 0
    %466 = vmatpush1.bf16.msra.mxu0 %v442
    %467 = vmatprep.subr.bf16.mxu0 0
    %468 = vmatpush1.bf16.msra.mxu0 0
    %469 = vmatprep.subr.bf16.mxu0 0
    %470 = vmatpush1.bf16.msra.mxu0 0
    %471 = vmatprep.subr.bf16.mxu0 0
    %472 = vmatpush1.bf16.msra.mxu0 0
    %473 = vmatprep.subr.bf16.mxu0 0
    %474 = vmatpush1.bf16.msra.mxu0 0
    %475 = vmatprep.subr.bf16.mxu0 0
    %476 = vmatpush1.bf16.msra.mxu0 0
    %477 = vmatprep.subr.bf16.mxu0 0
    %478 = vmatpush1.bf16.msra.mxu0 0
    %479 = vmatprep.subr.bf16.mxu0 0
    %480 = vmatpush1.bf16.msra.mxu0 0
    %481 = vmatprep.subr.bf16.mxu0 0
    %482 = vmatpush1.bf16.msra.mxu0 0
    %483 = vmatprep.mubr.bf16.mxu0 0
    %484 = vmatmul.mubr.bf16.gmra.mrb[0].mxu0 %v377
    %v485 = vpop.f32.mrb[0].mxu0
    %v486 = vadd.f32 %v401, %v485
    %v487 = vpop.f32.mrb[0].mxu0
    %v488 = vpop.f32.mrb[0].mxu0
    %v489 = vpop.f32.mrb[0].mxu0
    %490 = vdwg.mxu0
    %v491 = vsel %vm172, %v486, 0.0
    %v492 = vrot.slane %v491, 4
    %v493 = vadd.f32 %v491, %v492
    %v494 = vrot.slane %v493, 2
    %v495 = vadd.f32 %v493, %v494
    %v496 = vrot.slane %v495, 1
    %v497 = vadd.f32 %v495, %v496
    %v498 = vmul.f32 %v497, 0.5
    %v499 = vmul.f32 %v486, %v486
    %v500 = vsel %vm172, %v499, 0.0
    %v501 = vrot.slane %v500, 4
    %v502 = vadd.f32 %v500, %v501
    %v503 = vrot.slane %v502, 2
    %v504 = vadd.f32 %v502, %v503
    %v505 = vrot.slane %v504, 1
    %v506 = vadd.f32 %v504, %v505
    %v507 = vmul.f32 %v506, 0.5
    %v508 = vmul.f32 %v498, %v498
    %v509 = vsub.f32 %v507, %v508
    %v510 = vmax.f32 %v509, 0.0
    %s511 = scalar_lea.vmem %s4, 2
    %v512 = vld [vmem:[%s511] sm:$0x1]
    %v513 = vadd.f32 %v510, 1e-05
    %v514 = vrsqrt.pop %v513
    %v515 = vmul.f32 %v512, %v514
    %s516 = scalar_lea.vmem %s5, 2
    %v517 = vld [vmem:[%s516] sm:$0x1]
    %v518 = vmul.f32 %v498, %v515
    %v519 = vsub.f32 %v517, %v518
    %v521 = vlaneseq
    %v522 = vshrl.u32 %v521, 7
    %v523 = vsub.s32 0, %v522
    %v524 = vrot.slane %v515, %v523
    %v526 = vmul.f32 %v486, %v524
    %v528 = vlaneseq
    %v529 = vshrl.u32 %v528, 7
    %v530 = vsub.s32 0, %v529
    %v531 = vrot.slane %v519, %v530
    %v533 = vadd.f32 %v526, %v531
    %vm534 = vcmp.gt.f32.partialorder %v533, 0.0
    %v535 = vmul.f32 %v533, 0.2
    %v536 = vsel %vm534, %v533, %v535
    %v537 = vpack.c.bf16 %v536, %v536
    %s538 = scalar_lea.vmem %s2, 192
    %v539 = vld [vmem:[%s538] sm:$0xf]
    %v540 = vld [vmem:[%s538 + $0x4] sm:$0xf]
    %v541 = vld [vmem:[%s538 + $0x8] sm:$0xf]
    %v542 = vld [vmem:[%s538 + $0xc] sm:$0xf]
    %v543 = vld [vmem:[%s538 + $0x10] sm:$0xf]
    %v544 = vld [vmem:[%s538 + $0x14] sm:$0xf]
    %v545 = vld [vmem:[%s538 + $0x18] sm:$0xf]
    %v546 = vld [vmem:[%s538 + $0x1c] sm:$0xf]
    %v547 = vld [vmem:[%s538 + $0x20] sm:$0xf]
    %v548 = vld [vmem:[%s538 + $0x24] sm:$0xf]
    %v549 = vld [vmem:[%s538 + $0x28] sm:$0xf]
    %v550 = vld [vmem:[%s538 + $0x2c] sm:$0xf]
    %v551 = vld [vmem:[%s538 + $0x30] sm:$0xf]
    %v552 = vld [vmem:[%s538 + $0x34] sm:$0xf]
    %v553 = vld [vmem:[%s538 + $0x38] sm:$0xf]
    %v554 = vld [vmem:[%s538 + $0x3c] sm:$0xf]
    %s555 = scalar_lea.vmem %s3, 3
    %v556 = vld [vmem:[%s555] sm:$0x1]
    %v558 = vlaneseq
    %v559 = vshrl.u32 %v558, 7
    %v560 = vsub.s32 0, %v559
    %v561 = vrot.slane %v556, %v560
    %v579 = vunpack.c.l.b16 %v539
    %v580 = vunpack.c.l.b16 %v540
    %v581 = vunpack.c.l.b16 %v541
    %v582 = vunpack.c.l.b16 %v542
    %v583 = vunpack.c.l.b16 %v543
    %v584 = vunpack.c.l.b16 %v544
    %v585 = vunpack.c.l.b16 %v545
    %v586 = vunpack.c.l.b16 %v546
    %v587 = vunpack.c.l.b16 %v547
    %v588 = vunpack.c.l.b16 %v548
    %v589 = vunpack.c.l.b16 %v549
    %v590 = vunpack.c.l.b16 %v550
    %v591 = vunpack.c.l.b16 %v551
    %v592 = vunpack.c.l.b16 %v552
    %v593 = vunpack.c.l.b16 %v553
    %v594 = vunpack.c.l.b16 %v554
    %v595 = vpack.c.b16 %v580, %v579
    %v596 = vpack.c.b16 %v582, %v581
    %v597 = vpack.c.b16 %v584, %v583
    %v598 = vpack.c.b16 %v586, %v585
    %v599 = vpack.c.b16 %v588, %v587
    %v600 = vpack.c.b16 %v590, %v589
    %v601 = vpack.c.b16 %v592, %v591
    %v602 = vpack.c.b16 %v594, %v593
    %611 = vmatprep.subr.bf16.mxu0 0
    %612 = vmatpush1.bf16.msra.mxu0 %v595
    %613 = vmatprep.subr.bf16.mxu0 0
    %614 = vmatpush1.bf16.msra.mxu0 %v596
    %615 = vmatprep.subr.bf16.mxu0 0
    %616 = vmatpush1.bf16.msra.mxu0 %v597
    %617 = vmatprep.subr.bf16.mxu0 0
    %618 = vmatpush1.bf16.msra.mxu0 %v598
    %619 = vmatprep.subr.bf16.mxu0 0
    %620 = vmatpush1.bf16.msra.mxu0 %v599
    %621 = vmatprep.subr.bf16.mxu0 0
    %622 = vmatpush1.bf16.msra.mxu0 %v600
    %623 = vmatprep.subr.bf16.mxu0 0
    %624 = vmatpush1.bf16.msra.mxu0 %v601
    %625 = vmatprep.subr.bf16.mxu0 0
    %626 = vmatpush1.bf16.msra.mxu0 %v602
    %627 = vmatprep.subr.bf16.mxu0 0
    %628 = vmatpush1.bf16.msra.mxu0 0
    %629 = vmatprep.subr.bf16.mxu0 0
    %630 = vmatpush1.bf16.msra.mxu0 0
    %631 = vmatprep.subr.bf16.mxu0 0
    %632 = vmatpush1.bf16.msra.mxu0 0
    %633 = vmatprep.subr.bf16.mxu0 0
    %634 = vmatpush1.bf16.msra.mxu0 0
    %635 = vmatprep.subr.bf16.mxu0 0
    %636 = vmatpush1.bf16.msra.mxu0 0
    %637 = vmatprep.subr.bf16.mxu0 0
    %638 = vmatpush1.bf16.msra.mxu0 0
    %639 = vmatprep.subr.bf16.mxu0 0
    %640 = vmatpush1.bf16.msra.mxu0 0
    %641 = vmatprep.subr.bf16.mxu0 0
    %642 = vmatpush1.bf16.msra.mxu0 0
    %643 = vmatprep.mubr.bf16.mxu0 0
    %644 = vmatmul.mubr.bf16.gmra.mrb[0].mxu0 %v537
    %v645 = vpop.f32.mrb[0].mxu0
    %v646 = vadd.f32 %v561, %v645
    %v647 = vpop.f32.mrb[0].mxu0
    %v648 = vpop.f32.mrb[0].mxu0
    %v649 = vpop.f32.mrb[0].mxu0
    %650 = vdwg.mxu0
    %v651 = vsel %vm172, %v646, 0.0
    %v652 = vrot.slane %v651, 4
    %v653 = vadd.f32 %v651, %v652
    %v654 = vrot.slane %v653, 2
    %v655 = vadd.f32 %v653, %v654
    %v656 = vrot.slane %v655, 1
    %v657 = vadd.f32 %v655, %v656
    %v658 = vmul.f32 %v657, 0.5
    %v659 = vmul.f32 %v646, %v646
    %v660 = vsel %vm172, %v659, 0.0
    %v661 = vrot.slane %v660, 4
    %v662 = vadd.f32 %v660, %v661
    %v663 = vrot.slane %v662, 2
    %v664 = vadd.f32 %v662, %v663
    %v665 = vrot.slane %v664, 1
    %v666 = vadd.f32 %v664, %v665
    %v667 = vmul.f32 %v666, 0.5
    %v668 = vmul.f32 %v658, %v658
    %v669 = vsub.f32 %v667, %v668
    %v670 = vmax.f32 %v669, 0.0
    %s671 = scalar_lea.vmem %s4, 3
    %v672 = vld [vmem:[%s671] sm:$0x1]
    %v673 = vadd.f32 %v670, 1e-05
    %v674 = vrsqrt.pop %v673
    %v675 = vmul.f32 %v672, %v674
    %s676 = scalar_lea.vmem %s5, 3
    %v677 = vld [vmem:[%s676] sm:$0x1]
    %v678 = vmul.f32 %v658, %v675
    %v679 = vsub.f32 %v677, %v678
    %v681 = vlaneseq
    %v682 = vshrl.u32 %v681, 7
    %v683 = vsub.s32 0, %v682
    %v684 = vrot.slane %v675, %v683
    %v686 = vmul.f32 %v646, %v684
    %v688 = vlaneseq
    %v689 = vshrl.u32 %v688, 7
    %v690 = vsub.s32 0, %v689
    %v691 = vrot.slane %v679, %v690
    %v693 = vadd.f32 %v686, %v691
    %vm694 = vcmp.gt.f32.partialorder %v693, 0.0
    %v695 = vmul.f32 %v693, 0.2
    %v696 = vsel %vm694, %v693, %v695
    %697 = vst [vmem:[#allocation2] sm:$0x3] %v696
    // Predicated region
    $region26: #{unet_encoder.9} parent=1 // pred_check
      _
    $region27: #{unet_encoder.9} parent=1 // pred_check_branch
      %699 = sbr.rel (0) target = $region29
    $region28: #{unet_encoder.9} parent=1 // pred_region
      %s701 = ssub.s32 32, 32
      %702 = vsyncadd [#allocation3], %s701
      %s704 = sshll.u32 [#allocation2], 4
      %s705 = int_to_ptr.vmem [resolvable:$true] %s704
      %707 = dma.vmem_to_hbm [thread:$0]  %s705, 32, %s6, [#allocation3]
    $region29: #{unet_encoder.9} parent=1 // pred_fallthru
      _
    // Predicated region
    $region30: #{unet_encoder.9} parent=1 // pred_check
      _
    $region31: #{unet_encoder.9} parent=1 // pred_check_branch
      %709 = sbr.rel (0) target = $region33
    $region32: #{unet_encoder.9} parent=1 // pred_region
      %710 = dma.done [#allocation3], 32
    $region33: #{unet_encoder.9} parent=1 // pred_fallthru
      _
    %711 = vsyncpa [#allocation3], 1

// kernel: unet_encoder.8
$region0: #{unet_encoder.8}
  #allocation0 [shape = 'u32[]', space=smem, size = 0x4, offset = 0x4, fixed_abs, tag = 'smem constant byte address 0x4 - core index']
  #allocation1 [shape = 'u32[144,128]{1,0:T(1,128)}', space=vmem, size = 0x12000, scoped, tag = 'internal scratch']
  #allocation2 [shape = 'f32[2,128]{1,0:T(2,128)}', space=vmem, size = 0x400, scoped, tag = 'scratch operand']
  %s0 = inlined_call_operand.vmem [shape: bf16[2,64,64], index: 0, kind: input, shape index: {}]
  %s1 = inlined_call_operand.vmem [shape: bf16[9,64,128], index: 1, kind: input, shape index: {}]
  %s2 = inlined_call_operand.vmem [shape: f32[1,128], index: 2, kind: input, shape index: {}]
  %s3 = inlined_call_operand.vmem [shape: f32[1,128], index: 3, kind: input, shape index: {}]
  %s4 = inlined_call_operand.vmem [shape: f32[1,128], index: 4, kind: input, shape index: {}]
  %s5 = inlined_call_operand.vmem [shape: f32[8,1], index: 5, kind: input, shape index: {}]
  %s6 = inlined_call_operand.vmem [shape: bf16[2,8,128], index: 6, kind: output, shape index: {}]
  %s7 = sld [smem:[#allocation0]]
  $region69: #{unet_encoder.8} parent=0
    _
  %s9 = ssub.s32 1, %s7
  %s10 = scalar_select 0, %s9, %s7
  loop: start=0, step=1, limit=6
  $region2: #{unet_encoder.8} parent=0 // loop_pre_header
    _
  $region3: #{unet_encoder.8} parent=0 // loop_header
    %s12 = sphi 0, %s16
    %p13 = scmp.ge.s32.totalorder %s12, 6
    %s19 = sphi 0, %s31
    %s20 = sphi 0, %s27
    %s21 = sphi 0, %s19
    %s22 = sphi 0, %s20
    %s23 = sphi 0, %s21
    %s24 = sphi 0, %s22
    %s34 = sphi 0, %s36
    %s37 = sphi 0, %s34
    %s38 = sphi 0, %s37
    %s54 = sphi 0, %s38
    %s58 = sphi 0, %s58
    %s60 = sphi 0, %s58
    %s61 = sphi 0, %s60
    %s75 = sphi 0, %s61
    %s79 = sphi 0, %s79
    %s81 = sphi 0, %s79
    %s82 = sphi 0, %s81
    %s96 = sphi 0, %s82
    %s100 = sphi 0, %s100
    %s102 = sphi 0, %s100
    %s103 = sphi 0, %s102
    %s117 = sphi 0, %s103
    %s121 = sphi 0, %s121
    %s123 = sphi 0, %s121
    %s124 = sphi 0, %s123
    %s138 = sphi 0, %s124
    %s142 = sphi 0, %s142
    %s144 = sphi 0, %s142
    %s145 = sphi 0, %s144
    %s159 = sphi 0, %s145
    %s167 = sphi 0, %s169
    %s170 = sphi 0, %s167
    %s171 = sphi 0, %s170
    %s187 = sphi 0, %s171
  $region4: #{unet_encoder.8} parent=0 // loop_header_branch
    %15 = sbr.rel (%p13) target = $region8
  $region5: #{unet_encoder.8} parent=0 // loop_body
    %s17 = ssub.s32 %s12, 1
    %s18 = ssub.s32 %s12, 2
    %s25 = sadd.s32 1, %s20
    %p26 = scmp.ge.s32.totalorder %s25, 2
    %s27 = scalar_select %p26, 0, %s25
    %s28 = sadd.s32 1, %s19
    %s29 = scalar_select %p26, %s28, %s19
    %p30 = scmp.ge.s32.totalorder %s29, 2
    %s31 = scalar_select %p30, 0, %s29
    %s32 = ssub.s32 %s20, %s27
    %p33 = scmp.eq.s32.totalorder %s32, 0
    %s35 = sadd.s32 %s34, 1
    %s36 = scalar_select %p33, %s34, %s35
    %p39 = pneg %p33
    %p40 = scmp.eq.s32.totalorder %s12, 3
    %p41 = por %p39, %p40
    %p42 = scmp.ne.s32.totalorder %s34, %s37
    %p43 = scmp.eq.s32.totalorder %s12, 0
    %p44 = por %p42, %p43
    %p45 = scmp.ne.s32.totalorder %s34, %s37
    %p46 = scmp.eq.s32.totalorder %s17, 3
    %p47 = por %p45, %p46
    %p48 = scmp.ne.s32.totalorder %s37, %s38
    %p49 = scmp.eq.s32.totalorder %s17, 0
    %p50 = por %p48, %p49
    %p51 = scmp.ne.s32.totalorder %s37, %s38
    %p52 = scmp.eq.s32.totalorder %s18, 3
    %p53 = por %p51, %p52
    %p55 = scmp.ne.s32.totalorder %s38, %s54
    %p56 = scmp.eq.s32.totalorder %s18, 0
    %p57 = por %p55, %p56
    %s59 = sadd.s32 %s58, 1
    %p62 = scmp.eq.s32.totalorder %s12, 3
    %p63 = scmp.ne.s32.totalorder %s58, %s60
    %p64 = scmp.eq.s32.totalorder %s12, 0
    %p65 = por %p63, %p64
    %p66 = scmp.ne.s32.totalorder %s58, %s60
    %p67 = scmp.eq.s32.totalorder %s17, 3
    %p68 = por %p66, %p67
    %p69 = scmp.ne.s32.totalorder %s60, %s61
    %p70 = scmp.eq.s32.totalorder %s17, 0
    %p71 = por %p69, %p70
    %p72 = scmp.ne.s32.totalorder %s60, %s61
    %p73 = scmp.eq.s32.totalorder %s18, 3
    %p74 = por %p72, %p73
    %p76 = scmp.ne.s32.totalorder %s61, %s75
    %p77 = scmp.eq.s32.totalorder %s18, 0
    %p78 = por %p76, %p77
    %s80 = sadd.s32 %s79, 1
    %p83 = scmp.eq.s32.totalorder %s12, 3
    %p84 = scmp.ne.s32.totalorder %s79, %s81
    %p85 = scmp.eq.s32.totalorder %s12, 0
    %p86 = por %p84, %p85
    %p87 = scmp.ne.s32.totalorder %s79, %s81
    %p88 = scmp.eq.s32.totalorder %s17, 3
    %p89 = por %p87, %p88
    %p90 = scmp.ne.s32.totalorder %s81, %s82
    %p91 = scmp.eq.s32.totalorder %s17, 0
    %p92 = por %p90, %p91
    %p93 = scmp.ne.s32.totalorder %s81, %s82
    %p94 = scmp.eq.s32.totalorder %s18, 3
    %p95 = por %p93, %p94
    %p97 = scmp.ne.s32.totalorder %s82, %s96
    %p98 = scmp.eq.s32.totalorder %s18, 0
    %p99 = por %p97, %p98
    %s101 = sadd.s32 %s100, 1
    %p104 = scmp.eq.s32.totalorder %s12, 3
    %p105 = scmp.ne.s32.totalorder %s100, %s102
    %p106 = scmp.eq.s32.totalorder %s12, 0
    %p107 = por %p105, %p106
    %p108 = scmp.ne.s32.totalorder %s100, %s102
    %p109 = scmp.eq.s32.totalorder %s17, 3
    %p110 = por %p108, %p109
    %p111 = scmp.ne.s32.totalorder %s102, %s103
    %p112 = scmp.eq.s32.totalorder %s17, 0
    %p113 = por %p111, %p112
    %p114 = scmp.ne.s32.totalorder %s102, %s103
    %p115 = scmp.eq.s32.totalorder %s18, 3
    %p116 = por %p114, %p115
    %p118 = scmp.ne.s32.totalorder %s103, %s117
    %p119 = scmp.eq.s32.totalorder %s18, 0
    %p120 = por %p118, %p119
    %s122 = sadd.s32 %s121, 1
    %p125 = scmp.eq.s32.totalorder %s12, 3
    %p126 = scmp.ne.s32.totalorder %s121, %s123
    %p127 = scmp.eq.s32.totalorder %s12, 0
    %p128 = por %p126, %p127
    %p129 = scmp.ne.s32.totalorder %s121, %s123
    %p130 = scmp.eq.s32.totalorder %s17, 3
    %p131 = por %p129, %p130
    %p132 = scmp.ne.s32.totalorder %s123, %s124
    %p133 = scmp.eq.s32.totalorder %s17, 0
    %p134 = por %p132, %p133
    %p135 = scmp.ne.s32.totalorder %s123, %s124
    %p136 = scmp.eq.s32.totalorder %s18, 3
    %p137 = por %p135, %p136
    %p139 = scmp.ne.s32.totalorder %s124, %s138
    %p140 = scmp.eq.s32.totalorder %s18, 0
    %p141 = por %p139, %p140
    %s143 = sadd.s32 %s142, 1
    %p146 = scmp.eq.s32.totalorder %s12, 3
    %p147 = scmp.ne.s32.totalorder %s142, %s144
    %p148 = scmp.eq.s32.totalorder %s12, 0
    %p149 = por %p147, %p148
    %p150 = scmp.ne.s32.totalorder %s142, %s144
    %p151 = scmp.eq.s32.totalorder %s17, 3
    %p152 = por %p150, %p151
    %p153 = scmp.ne.s32.totalorder %s144, %s145
    %p154 = scmp.eq.s32.totalorder %s17, 0
    %p155 = por %p153, %p154
    %p156 = scmp.ne.s32.totalorder %s144, %s145
    %p157 = scmp.eq.s32.totalorder %s18, 3
    %p158 = por %p156, %p157
    %p160 = scmp.ne.s32.totalorder %s145, %s159
    %p161 = scmp.eq.s32.totalorder %s18, 0
    %p162 = por %p160, %p161
    %s163 = smul.u32 %s20, %s19
    %s164 = smul.u32 %s27, %s31
    %s165 = ssub.s32 %s163, %s164
    %p166 = scmp.eq.s32.totalorder %s165, 0
    %s168 = sadd.s32 %s167, 1
    %s169 = scalar_select %p166, %s167, %s168
    %p172 = pneg %p166
    %p173 = scmp.eq.s32.totalorder %s12, 3
    %p174 = por %p172, %p173
    %p175 = scmp.ne.s32.totalorder %s167, %s170
    %p176 = scmp.eq.s32.totalorder %s12, 0
    %p177 = por %p175, %p176
    %p178 = scmp.ne.s32.totalorder %s167, %s170
    %p179 = scmp.eq.s32.totalorder %s17, 3
    %p180 = por %p178, %p179
    %p181 = scmp.ne.s32.totalorder %s170, %s171
    %p182 = scmp.eq.s32.totalorder %s17, 0
    %p183 = por %p181, %p182
    %p184 = scmp.ne.s32.totalorder %s170, %s171
    %p185 = scmp.eq.s32.totalorder %s18, 3
    %p186 = por %p184, %p185
    %p188 = scmp.ne.s32.totalorder %s171, %s187
    %p189 = scmp.eq.s32.totalorder %s18, 0
    %p190 = por %p188, %p189
    %p191 = scmp.le.s32.totalorder 1, %s12
    %p192 = scmp.lt.s32.totalorder %s12, 5
    %p193 = pnand %p191, %p192
    %p194 = pneg %p193
    // Predicated region
    $region9: #{unet_encoder.8} parent=5 // pred_check
      _
    $region10: #{unet_encoder.8} parent=5 // pred_check_branch
      %196 = sbr.rel (%p193) target = $region12
    $region11: #{unet_encoder.8} parent=5 // pred_region
      %s197 = ssub.s32 %s12, 1
      // Predicated region
      $region13: #{unet_encoder.8} parent=11 // pred_check
        %p198 = pneg %p71
      $region14: #{unet_encoder.8} parent=11 // pred_check_branch
        %200 = sbr.rel (%p198) target = $region16
      $region15: #{unet_encoder.8} parent=11 // pred_region
        _
      $region16: #{unet_encoder.8} parent=11 // pred_fallthru
        _
      // Predicated region
      $region17: #{unet_encoder.8} parent=11 // pred_check
        %p201 = pneg %p92
      $region18: #{unet_encoder.8} parent=11 // pred_check_branch
        %203 = sbr.rel (%p201) target = $region20
      $region19: #{unet_encoder.8} parent=11 // pred_region
        _
      $region20: #{unet_encoder.8} parent=11 // pred_fallthru
        _
      // Predicated region
      $region21: #{unet_encoder.8} parent=11 // pred_check
        %p204 = pneg %p113
      $region22: #{unet_encoder.8} parent=11 // pred_check_branch
        %206 = sbr.rel (%p204) target = $region24
      $region23: #{unet_encoder.8} parent=11 // pred_region
        _
      $region24: #{unet_encoder.8} parent=11 // pred_fallthru
        _
      // Predicated region
      $region25: #{unet_encoder.8} parent=11 // pred_check
        %p207 = pneg %p134
      $region26: #{unet_encoder.8} parent=11 // pred_check_branch
        %209 = sbr.rel (%p207) target = $region28
      $region27: #{unet_encoder.8} parent=11 // pred_region
        _
      $region28: #{unet_encoder.8} parent=11 // pred_fallthru
        _
      // Predicated region
      $region29: #{unet_encoder.8} parent=11 // pred_check
        %p210 = pneg %p155
      $region30: #{unet_encoder.8} parent=11 // pred_check_branch
        %212 = sbr.rel (%p210) target = $region32
      $region31: #{unet_encoder.8} parent=11 // pred_region
        _
      $region32: #{unet_encoder.8} parent=11 // pred_fallthru
        _
    $region12: #{unet_encoder.8} parent=5 // pred_fallthru
      _
    %p213 = scmp.lt.s32.totalorder %s12, 4
    // Predicated region
    $region33: #{unet_encoder.8} parent=5 // pred_check
      %p214 = pneg %p213
    $region34: #{unet_encoder.8} parent=5 // pred_check_branch
      %216 = sbr.rel (%p214) target = $region36
    $region35: #{unet_encoder.8} parent=5 // pred_region
      // Predicated region
      $region37: #{unet_encoder.8} parent=35 // pred_check
        %p217 = pneg %p44
      $region38: #{unet_encoder.8} parent=35 // pred_check_branch
        %219 = sbr.rel (%p217) target = $region40
      $region39: #{unet_encoder.8} parent=35 // pred_region
        %p220 = scmp.lt.s32.totalorder %s20, 1
        %s221 = scalar_select %p220, %s20, 1
        %s222 = smul.addr %s221, 8
        %s223 = smul.addr %s222, 4
        %s224 = scalar_lea.vmem %s0, %s223
      $region40: #{unet_encoder.8} parent=35 // pred_fallthru
        _
    $region36: #{unet_encoder.8} parent=5 // pred_fallthru
      _
    %p225 = scmp.le.s32.totalorder 1, %s12
    %p226 = scmp.lt.s32.totalorder %s12, 5
    %p227 = pnand %p225, %p226
    %p228 = pneg %p227
    // Predicated region
    $region41: #{unet_encoder.8} parent=5 // pred_check
      _
    $region42: #{unet_encoder.8} parent=5 // pred_check_branch
      %230 = sbr.rel (%p227) target = $region44
    $region43: #{unet_encoder.8} parent=5 // pred_region
      %s231 = ssub.s32 %s12, 1
      %p232 = scmp.lt.s32.totalorder %s22, 1
      %s233 = scalar_select %p232, %s22, 1
      %s234 = smul.addr %s233, 8
      %s235 = smul.addr %s234, 4
      %s236 = scalar_lea.vmem %s0, %s235
      %p237 = pneg %p50
      %p238 = pneg %p47
      %p239 = pneg %p71
      %p240 = pneg %p68
      %p241 = pneg %p92
      %p242 = pneg %p89
      %p243 = pneg %p113
      %p244 = pneg %p110
      %p245 = pneg %p134
      %p246 = pneg %p131
      %p247 = pneg %p155
      %p248 = pneg %p152
      %p249 = pneg %p183
      %p250 = pneg %p180
      %s251 = smul.u32 %s22, %s21
      %p252 = scmp.lt.s32.totalorder %s251, 1
      %s253 = scalar_select %p252, %s251, 1
      %s254 = smul.addr %s253, 4
      %s255 = scalar_lea.vmem %s6, %s254
      %p256 = scmp.lt.s32.totalorder %s22, 1
      %s257 = scalar_select %p256, %s22, 1
      %s258 = smul.addr %s257, 8
      %s259 = smul.addr %s258, 4
      %s260 = scalar_lea.vmem %s0, %s259
      %s261 = smul.u32 %s22, %s21
      %p262 = scmp.lt.s32.totalorder %s261, 1
      %s263 = scalar_select %p262, %s261, 1
      %s264 = smul.addr %s263, 4
      %s265 = scalar_lea.vmem %s6, %s264
      %s266 = smul.u32 %s22, %s21
      %v268 = vld [vmem:[%s260] sm:$0xf]
      %v269 = vld [vmem:[%s1] sm:$0xf]
      %v270 = vld [vmem:[%s1 + $0x4] sm:$0xf]
      %v271 = vld [vmem:[%s1 + $0x8] sm:$0xf]
      %v272 = vld [vmem:[%s1 + $0xc] sm:$0xf]
      %v273 = vld [vmem:[%s1 + $0x10] sm:$0xf]
      %v274 = vld [vmem:[%s1 + $0x14] sm:$0xf]
      %v275 = vld [vmem:[%s1 + $0x18] sm:$0xf]
      %v276 = vld [vmem:[%s1 + $0x1c] sm:$0xf]
      %v277 = vld [vmem:[%s260 + $0x8] sm:$0xf]
      %s278 = scalar_lea.vmem %s1, 32
      %v279 = vld [vmem:[%s278] sm:$0xf]
      %v280 = vld [vmem:[%s278 + $0x4] sm:$0xf]
      %v281 = vld [vmem:[%s278 + $0x8] sm:$0xf]
      %v282 = vld [vmem:[%s278 + $0xc] sm:$0xf]
      %v283 = vld [vmem:[%s278 + $0x10] sm:$0xf]
      %v284 = vld [vmem:[%s278 + $0x14] sm:$0xf]
      %v285 = vld [vmem:[%s278 + $0x18] sm:$0xf]
      %v286 = vld [vmem:[%s278 + $0x1c] sm:$0xf]
      %v295 = vunpack.c.l.b16 %v279
      %v296 = vunpack.c.l.b16 %v280
      %v297 = vunpack.c.l.b16 %v281
      %v298 = vunpack.c.l.b16 %v282
      %v299 = vunpack.c.l.b16 %v283
      %v300 = vunpack.c.l.b16 %v284
      %v301 = vunpack.c.l.b16 %v285
      %v302 = vunpack.c.l.b16 %v286
      %v303 = vpack.c.b16 %v296, %v295
      %v304 = vpack.c.b16 %v298, %v297
      %v305 = vpack.c.b16 %v300, %v299
      %v306 = vpack.c.b16 %v302, %v301
      %vm311 = vcmask 523264
      %v313 = vsel %vm311, %v277, 0
      %315 = vmatprep.subr.bf16.mxu0 0
      %316 = vmatpush1.bf16.msra.mxu0 %v303
      %317 = vmatprep.subr.bf16.mxu0 0
      %318 = vmatpush1.bf16.msra.mxu0 %v304
      %319 = vmatprep.subr.bf16.mxu0 0
      %320 = vmatpush1.bf16.msra.mxu0 %v305
      %321 = vmatprep.subr.bf16.mxu0 0
      %322 = vmatpush1.bf16.msra.mxu0 %v306
      %323 = vmatprep.subr.bf16.mxu0 0
      %324 = vmatpush1.bf16.msra.mxu0 0
      %325 = vmatprep.subr.bf16.mxu0 0
      %326 = vmatpush1.bf16.msra.mxu0 0
      %327 = vmatprep.subr.bf16.mxu0 0
      %328 = vmatpush1.bf16.msra.mxu0 0
      %329 = vmatprep.subr.bf16.mxu0 0
      %330 = vmatpush1.bf16.msra.mxu0 0
      %331 = vmatprep.subr.bf16.mxu0 0
      %332 = vmatpush1.bf16.msra.mxu0 0
      %333 = vmatprep.subr.bf16.mxu0 0
      %334 = vmatpush1.bf16.msra.mxu0 0
      %335 = vmatprep.subr.bf16.mxu0 0
      %336 = vmatpush1.bf16.msra.mxu0 0
      %337 = vmatprep.subr.bf16.mxu0 0
      %338 = vmatpush1.bf16.msra.mxu0 0
      %339 = vmatprep.subr.bf16.mxu0 0
      %340 = vmatpush1.bf16.msra.mxu0 0
      %341 = vmatprep.subr.bf16.mxu0 0
      %342 = vmatpush1.bf16.msra.mxu0 0
      %343 = vmatprep.subr.bf16.mxu0 0
      %344 = vmatpush1.bf16.msra.mxu0 0
      %345 = vmatprep.subr.bf16.mxu0 0
      %346 = vmatpush1.bf16.msra.mxu0 0
      %347 = vmatprep.mubr.bf16.mxu0 0
      %348 = vmatmul.mubr.bf16.gmra.mrb[0].mxu0 %v313
      %v349 = vpop.f32.mrb[0].mxu0
      %v350 = vadd.f32 0.0, %v349
      %v351 = vpop.f32.mrb[0].mxu0
      %v352 = vpop.f32.mrb[0].mxu0
      %v353 = vpop.f32.mrb[0].mxu0
      %354 = vdwg.mxu0
      %v363 = vunpack.c.l.b16 %v269
      %v364 = vunpack.c.l.b16 %v270
      %v365 = vunpack.c.l.b16 %v271
      %v366 = vunpack.c.l.b16 %v272
      %v367 = vunpack.c.l.b16 %v273
      %v368 = vunpack.c.l.b16 %v274
      %v369 = vunpack.c.l.b16 %v275
      %v370 = vunpack.c.l.b16 %v276
      %v371 = vpack.c.b16 %v364, %v363
      %v372 = vpack.c.b16 %v366, %v365
      %v373 = vpack.c.b16 %v368, %v367
      %v374 = vpack.c.b16 %v370, %v369
      %v380 = vsel %vm311, %v268, 0
      %382 = vmatprep.subr.bf16.mxu0 0
      %383 = vmatpush1.bf16.msra.mxu0 %v371
      %384 = vmatprep.subr.bf16.mxu0 0
      %385 = vmatpush1.bf16.msra.mxu0 %v372
      %386 = vmatprep.subr.bf16.mxu0 0
      %387 = vmatpush1.bf16.msra.mxu0 %v373
      %388 = vmatprep.subr.bf16.mxu0 0
      %389 = vmatpush1.bf16.msra.mxu0 %v374
      %390 = vmatprep.subr.bf16.mxu0 0
      %391 = vmatpush1.bf16.msra.mxu0 0
      %392 = vmatprep.subr.bf16.mxu0 0
      %393 = vmatpush1.bf16.msra.mxu0 0
      %394 = vmatprep.subr.bf16.mxu0 0
      %395 = vmatpush1.bf16.msra.mxu0 0
      %396 = vmatprep.subr.bf16.mxu0 0
      %397 = vmatpush1.bf16.msra.mxu0 0
      %398 = vmatprep.subr.bf16.mxu0 0
      %399 = vmatpush1.bf16.msra.mxu0 0
      %400 = vmatprep.subr.bf16.mxu0 0
      %401 = vmatpush1.bf16.msra.mxu0 0
      %402 = vmatprep.subr.bf16.mxu0 0
      %403 = vmatpush1.bf16.msra.mxu0 0
      %404 = vmatprep.subr.bf16.mxu0 0
      %405 = vmatpush1.bf16.msra.mxu0 0
      %406 = vmatprep.subr.bf16.mxu0 0
      %407 = vmatpush1.bf16.msra.mxu0 0
      %408 = vmatprep.subr.bf16.mxu0 0
      %409 = vmatpush1.bf16.msra.mxu0 0
      %410 = vmatprep.subr.bf16.mxu0 0
      %411 = vmatpush1.bf16.msra.mxu0 0
      %412 = vmatprep.subr.bf16.mxu0 0
      %413 = vmatpush1.bf16.msra.mxu0 0
      %414 = vmatprep.mubr.bf16.mxu0 0
      %415 = vmatmul.mubr.bf16.gmra.mrb[0].mxu0 %v380
      %v416 = vpop.f32.mrb[0].mxu0
      %v417 = vadd.f32 %v350, %v416
      %v418 = vpop.f32.mrb[0].mxu0
      %v419 = vpop.f32.mrb[0].mxu0
      %v420 = vpop.f32.mrb[0].mxu0
      %421 = vdwg.mxu0
      %v422 = vld [vmem:[%s260] sm:$0xf]
      %v423 = vld [vmem:[%s260 + $0x4] sm:$0x1]
      %s424 = scalar_lea.vmem %s1, 64
      %v425 = vld [vmem:[%s424] sm:$0xf]
      %v426 = vld [vmem:[%s424 + $0x4] sm:$0xf]
      %v427 = vld [vmem:[%s424 + $0x8] sm:$0xf]
      %v428 = vld [vmem:[%s424 + $0xc] sm:$0xf]
      %v429 = vld [vmem:[%s424 + $0x10] sm:$0xf]
      %v430 = vld [vmem:[%s424 + $0x14] sm:$0xf]
      %v431 = vld [vmem:[%s424 + $0x18] sm:$0xf]
      %v432 = vld [vmem:[%s424 + $0x1c] sm:$0xf]
      %v435 = vunpack.c.l.b16 %v422
      %v436 = vunpack.c.l.b16 %v423
      %v437 = vpack.c.b16 %v436, %v435
      %v439 = vshrl.u32 %v437, 16
      %v441 = vshll.u32 %v437, 16
      %v443 = vrot.slane %v441, 1
      %v444 = vor.u32 %v439, %v443
      %v453 = vunpack.c.l.b16 %v425
      %v454 = vunpack.c.l.b16 %v426
      %v455 = vunpack.c.l.b16 %v427
      %v456 = vunpack.c.l.b16 %v428
      %v457 = vunpack.c.l.b16 %v429
      %v458 = vunpack.c.l.b16 %v430
      %v459 = vunpack.c.l.b16 %v431
      %v460 = vunpack.c.l.b16 %v432
      %v461 = vpack.c.b16 %v454, %v453
      %v462 = vpack.c.b16 %v456, %v455
      %v463 = vpack.c.b16 %v458, %v457
      %v464 = vpack.c.b16 %v460, %v459
      %v470 = vsel %vm311, %v444, 0
      %472 = vmatprep.subr.bf16.mxu0 0
      %473 = vmatpush1.bf16.msra.mxu0 %v461
      %474 = vmatprep.subr.bf16.mxu0 0
      %475 = vmatpush1.bf16.msra.mxu0 %v462
      %476 = vmatprep.subr.bf16.mxu0 0
      %477 = vmatpush1.bf16.msra.mxu0 %v463
      %478 = vmatprep.subr.bf16.mxu0 0
      %479 = vmatpush1.bf16.msra.mxu0 %v464
      %480 = vmatprep.subr.bf16.mxu0 0
      %481 = vmatpush1.bf16.msra.mxu0 0
      %482 = vmatprep.subr.bf16.mxu0 0
      %483 = vmatpush1.bf16.msra.mxu0 0
      %484 = vmatprep.subr.bf16.mxu0 0
      %485 = vmatpush1.bf16.msra.mxu0 0
      %486 = vmatprep.subr.bf16.mxu0 0
      %487 = vmatpush1.bf16.msra.mxu0 0
      %488 = vmatprep.subr.bf16.mxu0 0
      %489 = vmatpush1.bf16.msra.mxu0 0
      %490 = vmatprep.subr.bf16.mxu0 0
      %491 = vmatpush1.bf16.msra.mxu0 0
      %492 = vmatprep.subr.bf16.mxu0 0
      %493 = vmatpush1.bf16.msra.mxu0 0
      %494 = vmatprep.subr.bf16.mxu0 0
      %495 = vmatpush1.bf16.msra.mxu0 0
      %496 = vmatprep.subr.bf16.mxu0 0
      %497 = vmatpush1.bf16.msra.mxu0 0
      %498 = vmatprep.subr.bf16.mxu0 0
      %499 = vmatpush1.bf16.msra.mxu0 0
      %500 = vmatprep.subr.bf16.mxu0 0
      %501 = vmatpush1.bf16.msra.mxu0 0
      %502 = vmatprep.subr.bf16.mxu0 0
      %503 = vmatpush1.bf16.msra.mxu0 0
      %504 = vmatprep.mubr.bf16.mxu0 0
      %505 = vmatmul.mubr.bf16.gmra.mrb[0].mxu0 %v470
      %v506 = vpop.f32.mrb[0].mxu0
      %v507 = vadd.f32 0.0, %v506
      %v508 = vpop.f32.mrb[0].mxu0
      %v509 = vpop.f32.mrb[0].mxu0
      %v510 = vpop.f32.mrb[0].mxu0
      %511 = vdwg.mxu0
      %v512 = vadd.f32 %v417, %v507
      %v513 = vld [vmem:[%s260 + $0x10] sm:$0xf]
      %s514 = scalar_lea.vmem %s1, 96
      %v515 = vld [vmem:[%s514] sm:$0xf]
      %v516 = vld [vmem:[%s514 + $0x4] sm:$0xf]
      %v517 = vld [vmem:[%s514 + $0x8] sm:$0xf]
      %v518 = vld [vmem:[%s514 + $0xc] sm:$0xf]
      %v519 = vld [vmem:[%s514 + $0x10] sm:$0xf]
      %v520 = vld [vmem:[%s514 + $0x14] sm:$0xf]
      %v521 = vld [vmem:[%s514 + $0x18] sm:$0xf]
      %v522 = vld [vmem:[%s514 + $0x1c] sm:$0xf]
      %v531 = vunpack.c.l.b16 %v515
      %v532 = vunpack.c.l.b16 %v516
      %v533 = vunpack.c.l.b16 %v517
      %v534 = vunpack.c.l.b16 %v518
      %v535 = vunpack.c.l.b16 %v519
      %v536 = vunpack.c.l.b16 %v520
      %v537 = vunpack.c.l.b16 %v521
      %v538 = vunpack.c.l.b16 %v522
      %v539 = vpack.c.b16 %v532, %v531
      %v540 = vpack.c.b16 %v534, %v533
      %v541 = vpack.c.b16 %v536, %v535
      %v542 = vpack.c.b16 %v538, %v537
      %v548 = vsel %vm311, %v513, 0
      %550 = vmatprep.subr.bf16.mxu0 0
      %551 = vmatpush1.bf16.msra.mxu0 %v539
      %552 = vmatprep.subr.bf16.mxu0 0
      %553 = vmatpush1.bf16.msra.mxu0 %v540
      %554 = vmatprep.subr.bf16.mxu0 0
      %555 = vmatpush1.bf16.msra.mxu0 %v541
      %556 = vmatprep.subr.bf16.mxu0 0
      %557 = vmatpush1.bf16.msra.mxu0 %v542
      %558 = vmatprep.subr.bf16.mxu0 0
      %559 = vmatpush1.bf16.msra.mxu0 0
      %560 = vmatprep.subr.bf16.mxu0 0
      %561 = vmatpush1.bf16.msra.mxu0 0
      %562 = vmatprep.subr.bf16.mxu0 0
      %563 = vmatpush1.bf16.msra.mxu0 0
      %564 = vmatprep.subr.bf16.mxu0 0
      %565 = vmatpush1.bf16.msra.mxu0 0
      %566 = vmatprep.subr.bf16.mxu0 0
      %567 = vmatpush1.bf16.msra.mxu0 0
      %568 = vmatprep.subr.bf16.mxu0 0
      %569 = vmatpush1.bf16.msra.mxu0 0
      %570 = vmatprep.subr.bf16.mxu0 0
      %571 = vmatpush1.bf16.msra.mxu0 0
      %572 = vmatprep.subr.bf16.mxu0 0
      %573 = vmatpush1.bf16.msra.mxu0 0
      %574 = vmatprep.subr.bf16.mxu0 0
      %575 = vmatpush1.bf16.msra.mxu0 0
      %576 = vmatprep.subr.bf16.mxu0 0
      %577 = vmatpush1.bf16.msra.mxu0 0
      %578 = vmatprep.subr.bf16.mxu0 0
      %579 = vmatpush1.bf16.msra.mxu0 0
      %580 = vmatprep.subr.bf16.mxu0 0
      %581 = vmatpush1.bf16.msra.mxu0 0
      %582 = vmatprep.mubr.bf16.mxu0 0
      %583 = vmatmul.mubr.bf16.gmra.mrb[0].mxu0 %v548
      %v584 = vpop.f32.mrb[0].mxu0
      %v585 = vadd.f32 0.0, %v584
      %v586 = vpop.f32.mrb[0].mxu0
      %v587 = vpop.f32.mrb[0].mxu0
      %v588 = vpop.f32.mrb[0].mxu0
      %589 = vdwg.mxu0
      %v590 = vadd.f32 %v512, %v585
      %v591 = vld [vmem:[%s260 + $0x18] sm:$0xf]
      %s592 = scalar_lea.vmem %s1, 128
      %v593 = vld [vmem:[%s592] sm:$0xf]
      %v594 = vld [vmem:[%s592 + $0x4] sm:$0xf]
      %v595 = vld [vmem:[%s592 + $0x8] sm:$0xf]
      %v596 = vld [vmem:[%s592 + $0xc] sm:$0xf]
      %v597 = vld [vmem:[%s592 + $0x10] sm:$0xf]
      %v598 = vld [vmem:[%s592 + $0x14] sm:$0xf]
      %v599 = vld [vmem:[%s592 + $0x18] sm:$0xf]
      %v600 = vld [vmem:[%s592 + $0x1c] sm:$0xf]
      %v609 = vunpack.c.l.b16 %v593
      %v610 = vunpack.c.l.b16 %v594
      %v611 = vunpack.c.l.b16 %v595
      %v612 = vunpack.c.l.b16 %v596
      %v613 = vunpack.c.l.b16 %v597
      %v614 = vunpack.c.l.b16 %v598
      %v615 = vunpack.c.l.b16 %v599
      %v616 = vunpack.c.l.b16 %v600
      %v617 = vpack.c.b16 %v610, %v609
      %v618 = vpack.c.b16 %v612, %v611
      %v619 = vpack.c.b16 %v614, %v613
      %v620 = vpack.c.b16 %v616, %v615
      %v626 = vsel %vm311, %v591, 0
      %628 = vmatprep.subr.bf16.mxu0 0
      %629 = vmatpush1.bf16.msra.mxu0 %v617
      %630 = vmatprep.subr.bf16.mxu0 0
      %631 = vmatpush1.bf16.msra.mxu0 %v618
      %632 = vmatprep.subr.bf16.mxu0 0
      %633 = vmatpush1.bf16.msra.mxu0 %v619
      %634 = vmatprep.subr.bf16.mxu0 0
      %635 = vmatpush1.bf16.msra.mxu0 %v620
      %636 = vmatprep.subr.bf16.mxu0 0
      %637 = vmatpush1.bf16.msra.mxu0 0
      %638 = vmatprep.subr.bf16.mxu0 0
      %639 = vmatpush1.bf16.msra.mxu0 0
      %640 = vmatprep.subr.bf16.mxu0 0
      %641 = vmatpush1.bf16.msra.mxu0 0
      %642 = vmatprep.subr.bf16.mxu0 0
      %643 = vmatpush1.bf16.msra.mxu0 0
      %644 = vmatprep.subr.bf16.mxu0 0
      %645 = vmatpush1.bf16.msra.mxu0 0
      %646 = vmatprep.subr.bf16.mxu0 0
      %647 = vmatpush1.bf16.msra.mxu0 0
      %648 = vmatprep.subr.bf16.mxu0 0
      %649 = vmatpush1.bf16.msra.mxu0 0
      %650 = vmatprep.subr.bf16.mxu0 0
      %651 = vmatpush1.bf16.msra.mxu0 0
      %652 = vmatprep.subr.bf16.mxu0 0
      %653 = vmatpush1.bf16.msra.mxu0 0
      %654 = vmatprep.subr.bf16.mxu0 0
      %655 = vmatpush1.bf16.msra.mxu0 0
      %656 = vmatprep.subr.bf16.mxu0 0
      %657 = vmatpush1.bf16.msra.mxu0 0
      %658 = vmatprep.subr.bf16.mxu0 0
      %659 = vmatpush1.bf16.msra.mxu0 0
      %660 = vmatprep.mubr.bf16.mxu0 0
      %661 = vmatmul.mubr.bf16.gmra.mrb[0].mxu0 %v626
      %v662 = vpop.f32.mrb[0].mxu0
      %v663 = vadd.f32 0.0, %v662
      %v664 = vpop.f32.mrb[0].mxu0
      %v665 = vpop.f32.mrb[0].mxu0
      %v666 = vpop.f32.mrb[0].mxu0
      %667 = vdwg.mxu0
      %v668 = vadd.f32 %v590, %v663
      %v669 = vld [vmem:[%s260 + $0x10] sm:$0xf]
      %v670 = vld [vmem:[%s260 + $0x14] sm:$0x1]
      %s671 = scalar_lea.vmem %s1, 160
      %v672 = vld [vmem:[%s671] sm:$0xf]
      %v673 = vld [vmem:[%s671 + $0x4] sm:$0xf]
      %v674 = vld [vmem:[%s671 + $0x8] sm:$0xf]
      %v675 = vld [vmem:[%s671 + $0xc] sm:$0xf]
      %v676 = vld [vmem:[%s671 + $0x10] sm:$0xf]
      %v677 = vld [vmem:[%s671 + $0x14] sm:$0xf]
      %v678 = vld [vmem:[%s671 + $0x18] sm:$0xf]
      %v679 = vld [vmem:[%s671 + $0x1c] sm:$0xf]
      %v682 = vunpack.c.l.b16 %v669
      %v683 = vunpack.c.l.b16 %v670
      %v684 = vpack.c.b16 %v683, %v682
      %v686 = vshrl.u32 %v684, 16
      %v688 = vshll.u32 %v684, 16
      %v690 = vrot.slane %v688, 1
      %v691 = vor.u32 %v686, %v690
      %v700 = vunpack.c.l.b16 %v672
      %v701 = vunpack.c.l.b16 %v673
      %v702 = vunpack.c.l.b16 %v674
      %v703 = vunpack.c.l.b16 %v675
      %v704 = vunpack.c.l.b16 %v676
      %v705 = vunpack.c.l.b16 %v677
      %v706 = vunpack.c.l.b16 %v678
      %v707 = vunpack.c.l.b16 %v679
      %v708 = vpack.c.b16 %v701, %v700
      %v709 = vpack.c.b16 %v703, %v702
      %v710 = vpack.c.b16 %v705, %v704
      %v711 = vpack.c.b16 %v707, %v706
      %v717 = vsel %vm311, %v691, 0
      %719 = vmatprep.subr.bf16.mxu0 0
      %720 = vmatpush1.bf16.msra.mxu0 %v708
      %721 = vmatprep.subr.bf16.mxu0 0
      %722 = vmatpush1.bf16.msra.mxu0 %v709
      %723 = vmatprep.subr.bf16.mxu0 0
      %724 = vmatpush1.bf16.msra.mxu0 %v710
      %725 = vmatprep.subr.bf16.mxu0 0
      %726 = vmatpush1.bf16.msra.mxu0 %v711
      %727 = vmatprep.subr.bf16.mxu0 0
      %728 = vmatpush1.bf16.msra.mxu0 0
      %729 = vmatprep.subr.bf16.mxu0 0
      %730 = vmatpush1.bf16.msra.mxu0 0
      %731 = vmatprep.subr.bf16.mxu0 0
      %732 = vmatpush1.bf16.msra.mxu0 0
      %733 = vmatprep.subr.bf16.mxu0 0
      %734 = vmatpush1.bf16.msra.mxu0 0
      %735 = vmatprep.subr.bf16.mxu0 0
      %736 = vmatpush1.bf16.msra.mxu0 0
      %737 = vmatprep.subr.bf16.mxu0 0
      %738 = vmatpush1.bf16.msra.mxu0 0
      %739 = vmatprep.subr.bf16.mxu0 0
      %740 = vmatpush1.bf16.msra.mxu0 0
      %741 = vmatprep.subr.bf16.mxu0 0
      %742 = vmatpush1.bf16.msra.mxu0 0
      %743 = vmatprep.subr.bf16.mxu0 0
      %744 = vmatpush1.bf16.msra.mxu0 0
      %745 = vmatprep.subr.bf16.mxu0 0
      %746 = vmatpush1.bf16.msra.mxu0 0
      %747 = vmatprep.subr.bf16.mxu0 0
      %748 = vmatpush1.bf16.msra.mxu0 0
      %749 = vmatprep.subr.bf16.mxu0 0
      %750 = vmatpush1.bf16.msra.mxu0 0
      %751 = vmatprep.mubr.bf16.mxu0 0
      %752 = vmatmul.mubr.bf16.gmra.mrb[0].mxu0 %v717
      %v753 = vpop.f32.mrb[0].mxu0
      %v754 = vadd.f32 0.0, %v753
      %v755 = vpop.f32.mrb[0].mxu0
      %v756 = vpop.f32.mrb[0].mxu0
      %v757 = vpop.f32.mrb[0].mxu0
      %758 = vdwg.mxu0
      %v759 = vadd.f32 %v668, %v754
      %v760 = vld [vmem:[%s260] sm:$0xc]
      %v761 = vld [vmem:[%s260 + $0x4] sm:$0x3]
      %s762 = scalar_lea.vmem %s1, 192
      %v763 = vld [vmem:[%s762] sm:$0xf]
      %v764 = vld [vmem:[%s762 + $0x4] sm:$0xf]
      %v765 = vld [vmem:[%s762 + $0x8] sm:$0xf]
      %v766 = vld [vmem:[%s762 + $0xc] sm:$0xf]
      %v767 = vld [vmem:[%s762 + $0x10] sm:$0xf]
      %v768 = vld [vmem:[%s762 + $0x14] sm:$0xf]
      %v769 = vld [vmem:[%s762 + $0x18] sm:$0xf]
      %v770 = vld [vmem:[%s762 + $0x1c] sm:$0xf]
      %v773 = vunpack.c.l.b16 %v760
      %v774 = vunpack.c.l.b16 %v761
      %v775 = vpack.c.b16 %v774, %v773
      %v776 = vrot.slane %v775, 2
      %v785 = vunpack.c.l.b16 %v763
      %v786 = vunpack.c.l.b16 %v764
      %v787 = vunpack.c.l.b16 %v765
      %v788 = vunpack.c.l.b16 %v766
      %v789 = vunpack.c.l.b16 %v767
      %v790 = vunpack.c.l.b16 %v768
      %v791 = vunpack.c.l.b16 %v769
      %v792 = vunpack.c.l.b16 %v770
      %v793 = vpack.c.b16 %v786, %v785
      %v794 = vpack.c.b16 %v788, %v787
      %v795 = vpack.c.b16 %v790, %v789
      %v796 = vpack.c.b16 %v792, %v791
      %v802 = vsel %vm311, %v776, 0
      %804 = vmatprep.subr.bf16.mxu0 0
      %805 = vmatpush1.bf16.msra.mxu0 %v793
      %806 = vmatprep.subr.bf16.mxu0 0
      %807 = vmatpush1.bf16.msra.mxu0 %v794
      %808 = vmatprep.subr.bf16.mxu0 0
      %809 = vmatpush1.bf16.msra.mxu0 %v795
      %810 = vmatprep.subr.bf16.mxu0 0
      %811 = vmatpush1.bf16.msra.mxu0 %v796
      %812 = vmatprep.subr.bf16.mxu0 0
      %813 = vmatpush1.bf16.msra.mxu0 0
      %814 = vmatprep.subr.bf16.mxu0 0
      %815 = vmatpush1.bf16.msra.mxu0 0
      %816 = vmatprep.subr.bf16.mxu0 0
      %817 = vmatpush1.bf16.msra.mxu0 0
      %818 = vmatprep.subr.bf16.mxu0 0
      %819 = vmatpush1.bf16.msra.mxu0 0
      %820 = vmatprep.subr.bf16.mxu0 0
      %821 = vmatpush1.bf16.msra.mxu0 0
      %822 = vmatprep.subr.bf16.mxu0 0
      %823 = vmatpush1.bf16.msra.mxu0 0
      %824 = vmatprep.subr.bf16.mxu0 0
      %825 = vmatpush1.bf16.msra.mxu0 0
      %826 = vmatprep.subr.bf16.mxu0 0
      %827 = vmatpush1.bf16.msra.mxu0 0
      %828 = vmatprep.subr.bf16.mxu0 0
      %829 = vmatpush1.bf16.msra.mxu0 0
      %830 = vmatprep.subr.bf16.mxu0 0
      %831 = vmatpush1.bf16.msra.mxu0 0
      %832 = vmatprep.subr.bf16.mxu0 0
      %833 = vmatpush1.bf16.msra.mxu0 0
      %834 = vmatprep.subr.bf16.mxu0 0
      %835 = vmatpush1.bf16.msra.mxu0 0
      %836 = vmatprep.mubr.bf16.mxu0 0
      %837 = vmatmul.mubr.bf16.gmra.mrb[0].mxu0 %v802
      %v838 = vpop.f32.mrb[0].mxu0
      %v839 = vadd.f32 0.0, %v838
      %v840 = vpop.f32.mrb[0].mxu0
      %v841 = vpop.f32.mrb[0].mxu0
      %v842 = vpop.f32.mrb[0].mxu0
      %843 = vdwg.mxu0
      %v844 = vadd.f32 %v759, %v839
      %v845 = vld [vmem:[%s260 + $0x8] sm:$0xc]
      %v846 = vld [vmem:[%s260 + $0xc] sm:$0x3]
      %s847 = scalar_lea.vmem %s1, 224
      %v848 = vld [vmem:[%s847] sm:$0xf]
      %v849 = vld [vmem:[%s847 + $0x4] sm:$0xf]
      %v850 = vld [vmem:[%s847 + $0x8] sm:$0xf]
      %v851 = vld [vmem:[%s847 + $0xc] sm:$0xf]
      %v852 = vld [vmem:[%s847 + $0x10] sm:$0xf]
      %v853 = vld [vmem:[%s847 + $0x14] sm:$0xf]
      %v854 = vld [vmem:[%s847 + $0x18] sm:$0xf]
      %v855 = vld [vmem:[%s847 + $0x1c] sm:$0xf]
      %v858 = vunpack.c.l.b16 %v845
      %v859 = vunpack.c.l.b16 %v846
      %v860 = vpack.c.b16 %v859, %v858
      %v861 = vrot.slane %v860, 2
      %v870 = vunpack.c.l.b16 %v848
      %v871 = vunpack.c.l.b16 %v849
      %v872 = vunpack.c.l.b16 %v850
      %v873 = vunpack.c.l.b16 %v851
      %v874 = vunpack.c.l.b16 %v852
      %v875 = vunpack.c.l.b16 %v853
      %v876 = vunpack.c.l.b16 %v854
      %v877 = vunpack.c.l.b16 %v855
      %v878 = vpack.c.b16 %v871, %v870
      %v879 = vpack.c.b16 %v873, %v872
      %v880 = vpack.c.b16 %v875, %v874
      %v881 = vpack.c.b16 %v877, %v876
      %v887 = vsel %vm311, %v861, 0
      %889 = vmatprep.subr.bf16.mxu0 0
      %890 = vmatpush1.bf16.msra.mxu0 %v878
      %891 = vmatprep.subr.bf16.mxu0 0
      %892 = vmatpush1.bf16.msra.mxu0 %v879
      %893 = vmatprep.subr.bf16.mxu0 0
      %894 = vmatpush1.bf16.msra.mxu0 %v880
      %895 = vmatprep.subr.bf16.mxu0 0
      %896 = vmatpush1.bf16.msra.mxu0 %v881
      %897 = vmatprep.subr.bf16.mxu0 0
      %898 = vmatpush1.bf16.msra.mxu0 0
      %899 = vmatprep.subr.bf16.mxu0 0
      %900 = vmatpush1.bf16.msra.mxu0 0
      %901 = vmatprep.subr.bf16.mxu0 0
      %902 = vmatpush1.bf16.msra.mxu0 0
      %903 = vmatprep.subr.bf16.mxu0 0
      %904 = vmatpush1.bf16.msra.mxu0 0
      %905 = vmatprep.subr.bf16.mxu0 0
      %906 = vmatpush1.bf16.msra.mxu0 0
      %907 = vmatprep.subr.bf16.mxu0 0
      %908 = vmatpush1.bf16.msra.mxu0 0
      %909 = vmatprep.subr.bf16.mxu0 0
      %910 = vmatpush1.bf16.msra.mxu0 0
      %911 = vmatprep.subr.bf16.mxu0 0
      %912 = vmatpush1.bf16.msra.mxu0 0
      %913 = vmatprep.subr.bf16.mxu0 0
      %914 = vmatpush1.bf16.msra.mxu0 0
      %915 = vmatprep.subr.bf16.mxu0 0
      %916 = vmatpush1.bf16.msra.mxu0 0
      %917 = vmatprep.subr.bf16.mxu0 0
      %918 = vmatpush1.bf16.msra.mxu0 0
      %919 = vmatprep.subr.bf16.mxu0 0
      %920 = vmatpush1.bf16.msra.mxu0 0
      %921 = vmatprep.mubr.bf16.mxu0 0
      %922 = vmatmul.mubr.bf16.gmra.mrb[0].mxu0 %v887
      %v923 = vpop.f32.mrb[0].mxu0
      %v924 = vadd.f32 0.0, %v923
      %v925 = vpop.f32.mrb[0].mxu0
      %v926 = vpop.f32.mrb[0].mxu0
      %v927 = vpop.f32.mrb[0].mxu0
      %928 = vdwg.mxu0
      %v929 = vadd.f32 %v844, %v924
      %v930 = vld [vmem:[%s260 + $0x4] sm:$0x7]
      %s931 = scalar_lea.vmem %s1, 256
      %v932 = vld [vmem:[%s931] sm:$0xf]
      %v933 = vld [vmem:[%s931 + $0x4] sm:$0xf]
      %v934 = vld [vmem:[%s931 + $0x8] sm:$0xf]
      %v935 = vld [vmem:[%s931 + $0xc] sm:$0xf]
      %v936 = vld [vmem:[%s931 + $0x10] sm:$0xf]
      %v937 = vld [vmem:[%s931 + $0x14] sm:$0xf]
      %v938 = vld [vmem:[%s931 + $0x18] sm:$0xf]
      %v939 = vld [vmem:[%s931 + $0x1c] sm:$0xf]
      %v941 = vunpack.c.l.b16 %v930
      %v942 = vpack.c.b16 %v941, %v773
      %v944 = vshrl.u32 %v942, 16
      %v946 = vrot.slane %v944, 2
      %v947 = vshll.u32 %v942, 16
      %v949 = vrot.slane %v947, 3
      %v950 = vor.u32 %v946, %v949
      %v959 = vunpack.c.l.b16 %v932
      %v960 = vunpack.c.l.b16 %v933
      %v961 = vunpack.c.l.b16 %v934
      %v962 = vunpack.c.l.b16 %v935
      %v963 = vunpack.c.l.b16 %v936
      %v964 = vunpack.c.l.b16 %v937
      %v965 = vunpack.c.l.b16 %v938
      %v966 = vunpack.c.l.b16 %v939
      %v967 = vpack.c.b16 %v960, %v959
      %v968 = vpack.c.b16 %v962, %v961
      %v969 = vpack.c.b16 %v964, %v963
      %v970 = vpack.c.b16 %v966, %v965
      %v976 = vsel %vm311, %v950, 0
      %978 = vmatprep.subr.bf16.mxu0 0
      %979 = vmatpush1.bf16.msra.mxu0 %v967
      %980 = vmatprep.subr.bf16.mxu0 0
      %981 = vmatpush1.bf16.msra.mxu0 %v968
      %982 = vmatprep.subr.bf16.mxu0 0
      %983 = vmatpush1.bf16.msra.mxu0 %v969
      %984 = vmatprep.subr.bf16.mxu0 0
      %985 = vmatpush1.bf16.msra.mxu0 %v970
      %986 = vmatprep.subr.bf16.mxu0 0
      %987 = vmatpush1.bf16.msra.mxu0 0
      %988 = vmatprep.subr.bf16.mxu0 0
      %989 = vmatpush1.bf16.msra.mxu0 0
      %990 = vmatprep.subr.bf16.mxu0 0
      %991 = vmatpush1.bf16.msra.mxu0 0
      %992 = vmatprep.subr.bf16.mxu0 0
      %993 = vmatpush1.bf16.msra.mxu0 0
      %994 = vmatprep.subr.bf16.mxu0 0
      %995 = vmatpush1.bf16.msra.mxu0 0
      %996 = vmatprep.subr.bf16.mxu0 0
      %997 = vmatpush1.bf16.msra.mxu0 0
      %998 = vmatprep.subr.bf16.mxu0 0
      %999 = vmatpush1.bf16.msra.mxu0 0
      %1000 = vmatprep.subr.bf16.mxu0 0
      %1001 = vmatpush1.bf16.msra.mxu0 0
      %1002 = vmatprep.subr.bf16.mxu0 0
      %1003 = vmatpush1.bf16.msra.mxu0 0
      %1004 = vmatprep.subr.bf16.mxu0 0
      %1005 = vmatpush1.bf16.msra.mxu0 0
      %1006 = vmatprep.subr.bf16.mxu0 0
      %1007 = vmatpush1.bf16.msra.mxu0 0
      %1008 = vmatprep.subr.bf16.mxu0 0
      %1009 = vmatpush1.bf16.msra.mxu0 0
      %1010 = vmatprep.mubr.bf16.mxu0 0
      %1011 = vmatmul.mubr.bf16.gmra.mrb[0].mxu0 %v976
      %v1012 = vpop.f32.mrb[0].mxu0
      %v1013 = vadd.f32 0.0, %v1012
      %v1014 = vpop.f32.mrb[0].mxu0
      %v1015 = vpop.f32.mrb[0].mxu0
      %v1016 = vpop.f32.mrb[0].mxu0
      %1017 = vdwg.mxu0
      %v1018 = vadd.f32 %v929, %v1013
      %v1019 = vld [vmem:[%s2] sm:$0x1]
      %v1021 = vlaneseq
      %v1022 = vshrl.u32 %v1021, 7
      %v1023 = vsub.s32 0, %v1022
      %v1024 = vrot.slane %v1019, %v1023
      %v1026 = vadd.f32 %v1018, %v1024
      %p1027 = scmp.eq.s32.totalorder %s21, 0
      %p1028 = scmp.eq.s32.totalorder %s22, 0
      %p1029 = pnand %p1027, %p1028
      %p1030 = pneg %p1029
      // Predicated region
      $region45: #{unet_encoder.8} parent=43 // pred_check
        _
      $region46: #{unet_encoder.8} parent=43 // pred_check_branch
        %1032 = sbr.rel (%p1029) target = $region48
      $region47: #{unet_encoder.8} parent=43 // pred_region
        %1033 = vst [vmem:[#allocation2] sm:$0x3] 0.0
      $region48: #{unet_encoder.8} parent=43 // pred_fallthru
        _
      // Predicated region
      $region49: #{unet_encoder.8} parent=43 // pred_check
        %p1034 = pneg %p1027
      $region50: #{unet_encoder.8} parent=43 // pred_check_branch
        %1036 = sbr.rel (%p1034) target = $region52
      $region51: #{unet_encoder.8} parent=43 // pred_region
        %v1037 = vld [vmem:[%s5] sm:$0xff]
        %1039 = vset.pattern.permute.xlu0 0
        %1040 = vperm.xlu0 %1039, %v1037
        %v1041 = vpop.permute.xlu0 %1040
        %v1043 = vmul.f32 %v1026, %v1041
        %v1044 = vld [vmem:[#allocation2] sm:$0x1]
        %v1045 = vrot.slane %v1043, 4
        %v1046 = vadd.f32 %v1043, %v1045
        %v1047 = vrot.slane %v1046, 2
        %v1048 = vadd.f32 %v1046, %v1047
        %v1049 = vrot.slane %v1048, 1
        %v1050 = vadd.f32 %v1048, %v1049
        %v1051 = vadd.f32 %v1044, %v1050
        %1052 = vst [vmem:[#allocation2] sm:$0x1] %v1051
        %v1053 = vld [vmem:[#allocation2 + $0x1] sm:$0x1]
        %v1054 = vmul.f32 %v1043, %v1026
        %v1055 = vrot.slane %v1054, 4
        %v1056 = vadd.f32 %v1054, %v1055
        %v1057 = vrot.slane %v1056, 2
        %v1058 = vadd.f32 %v1056, %v1057
        %v1059 = vrot.slane %v1058, 1
        %v1060 = vadd.f32 %v1058, %v1059
        %v1061 = vadd.f32 %v1053, %v1060
        %1062 = vst [vmem:[#allocation2 + $0x1] sm:$0x1] %v1061
      $region52: #{unet_encoder.8} parent=43 // pred_fallthru
        _
      %p1063 = scmp.eq.s32.totalorder %s21, 1
      // Predicated region
      $region53: #{unet_encoder.8} parent=43 // pred_check
        %p1064 = pneg %p1063
      $region54: #{unet_encoder.8} parent=43 // pred_check_branch
        %1066 = sbr.rel (%p1064) target = $region56
      $region55: #{unet_encoder.8} parent=43 // pred_region
        %v1067 = vld [vmem:[#allocation2] sm:$0x1]
        %v1068 = vmul.f32 %v1067, 0.125
        %v1069 = vld [vmem:[#allocation2 + $0x1] sm:$0x1]
        %v1070 = vmul.f32 %v1069, 0.125
        %v1071 = vmul.f32 %v1068, %v1068
        %v1072 = vsub.f32 %v1070, %v1071
        %v1073 = vmax.f32 %v1072, 0.0
        %v1074 = vld [vmem:[%s3] sm:$0x1]
        %v1075 = vadd.f32 %v1073, 1e-05
        %v1076 = vrsqrt.pop %v1075
        %v1077 = vmul.f32 %v1074, %v1076
        %v1078 = vld [vmem:[%s4] sm:$0x1]
        %v1079 = vmul.f32 %v1068, %v1077
        %v1080 = vsub.f32 %v1078, %v1079
        %v1082 = vlaneseq
        %v1083 = vshrl.u32 %v1082, 7
        %v1084 = vsub.s32 0, %v1083
        %v1085 = vrot.slane %v1077, %v1084
        %v1087 = vmul.f32 %v1026, %v1085
        %v1089 = vlaneseq
        %v1090 = vshrl.u32 %v1089, 7
        %v1091 = vsub.s32 0, %v1090
        %v1092 = vrot.slane %v1080, %v1091
        %v1094 = vadd.f32 %v1087, %v1092
        %vm1095 = vcmp.gt.f32.partialorder %v1094, 0.0
        %v1096 = vmul.f32 %v1094, 0.2
        %v1097 = vsel %vm1095, %v1094, %v1096
        %v1098 = vpack.c.bf16 %v1097, %v1097
        %1099 = vst [vmem:[%s265] sm:$0xf] %v1098
      $region56: #{unet_encoder.8} parent=43 // pred_fallthru
        _
      %s1100 = smul.u32 %s22, %s21
      %p1101 = scmp.lt.s32.totalorder %s1100, 1
      %s1102 = scalar_select %p1101, %s1100, 1
      %s1103 = smul.addr %s1102, 4
      %s1104 = scalar_lea.vmem %s6, %s1103
      // Predicated region
      $region57: #{unet_encoder.8} parent=43 // pred_check
        %p1105 = pneg %p180
      $region58: #{unet_encoder.8} parent=43 // pred_check_branch
        %1107 = sbr.rel (%p1105) target = $region60
      $region59: #{unet_encoder.8} parent=43 // pred_region
        %s1108 = smul.u32 %s22, %s21
      $region60: #{unet_encoder.8} parent=43 // pred_fallthru
        _
    $region44: #{unet_encoder.8} parent=5 // pred_fallthru
      _
    %p1109 = scmp.le.s32.totalorder 2, %s12
    // Predicated region
    $region61: #{unet_encoder.8} parent=5 // pred_check
      %p1110 = pneg %p1109
    $region62: #{unet_encoder.8} parent=5 // pred_check_branch
      %1112 = sbr.rel (%p1110) target = $region64
    $region63: #{unet_encoder.8} parent=5 // pred_region
      %s1113 = ssub.s32 %s12, 2
      // Predicated region
      $region65: #{unet_encoder.8} parent=63 // pred_check
        %p1114 = pneg %p186
      $region66: #{unet_encoder.8} parent=63 // pred_check_branch
        %1116 = sbr.rel (%p1114) target = $region68
      $region67: #{unet_encoder.8} parent=63 // pred_region
        %s1117 = smul.u32 %s24, %s23
        %p1118 = scmp.lt.s32.totalorder %s1117, 1
        %s1119 = scalar_select %p1118, %s1117, 1
        %s1120 = smul.addr %s1119, 4
        %s1121 = scalar_lea.vmem %s6, %s1120
      $region68: #{unet_encoder.8} parent=63 // pred_fallthru
        _
    $region64: #{unet_encoder.8} parent=5 // pred_fallthru
      _
  $region6: #{unet_encoder.8} parent=0 // loop_footer
    %s16 = sadd.s32 1, %s12
  $region7: #{unet_encoder.8} parent=0 // loop_footer_branch
    %11 = sbr.rel target = $region3
  $region8: #{unet_encoder.8} parent=0 // loop_exit
    _

</llo_original>
